<compile_context>
chip_gen: v7x
topology: tpu7x:2x2x1
jax: 0.10.0
libtpu: 0.0.40
codegen_flags: <defaults>
</compile_context>

<pallas_src>
import functools

import jax
import jax.numpy as jnp
from jax.experimental import pallas as pl
from jax.experimental.pallas import tpu as pltpu


def _layer_norm(x, gamma, beta, eps=1e-5):
    # x: (S, H) f32; gamma/beta: (1, H) f32
    mu = jnp.mean(x, axis=-1, keepdims=True)
    var = jnp.mean((x - mu) ** 2, axis=-1, keepdims=True)
    return (x - mu) * jax.lax.rsqrt(var + eps) * gamma + beta


def _mha(q_bf, kv_bf, wq, bq, wk, bk, wv, bv, wo, bo, head_scratch, num_heads, head_dim):
    """q_bf: (Sq, H) bf16, kv_bf: (Skv, H) bf16. Returns (Sq, H) f32."""
    Q = (jnp.dot(q_bf, wq[...], preferred_element_type=jnp.float32) + bq[...]).astype(jnp.bfloat16)
    K = (jnp.dot(kv_bf, wk[...], preferred_element_type=jnp.float32) + bk[...]).astype(jnp.bfloat16)
    V = (jnp.dot(kv_bf, wv[...], preferred_element_type=jnp.float32) + bv[...]).astype(jnp.bfloat16)
    scale = 1.0 / (head_dim ** 0.5)
    for h in range(num_heads):  # static unroll over heads
        s = h * head_dim
        Qh = Q[:, s:s + head_dim]
        Kh = K[:, s:s + head_dim]
        Vh = V[:, s:s + head_dim]
        # Q @ K^T without an explicit transpose: contract the last axes of Qh and Kh.
        e = jax.lax.dot_general(Qh, Kh, (((1,), (1,)), ((), ())),
                                preferred_element_type=jnp.float32) * scale
        e = e - jnp.max(e, axis=-1, keepdims=True)
        p = jnp.exp(e)
        inv = pl.reciprocal(jnp.sum(p, axis=-1, keepdims=True), approx=True)  # EUP, not VPU divide
        oh = jnp.dot(p.astype(jnp.bfloat16), Vh, preferred_element_type=jnp.float32) * inv
        head_scratch[:, s:s + head_dim] = oh  # write head output in place; no lane-concat
    merged = head_scratch[...].astype(jnp.bfloat16)  # (Sq, H)
    return jnp.dot(merged, wo[...], preferred_element_type=jnp.float32) + bo[...]


def _decoder_layer_kernel(
    xq_ref, xkv_ref, enc_ref,
    sa_wq, sa_bq, sa_wk, sa_bk, sa_wv, sa_bv, sa_wo, sa_bo,
    ca_wq, ca_bq, ca_wk, ca_bk, ca_wv, ca_bv, ca_wo, ca_bo,
    ff_w1, ff_b1, ff_w2, ff_b2,
    ln1_g, ln1_b, ln2_g, ln2_b, ln3_g, ln3_b,
    out_ref,
    head_scratch,
    *, num_heads, head_dim, ff_chunk,
):
    xq = xq_ref[0]    # (TQ, H)    bf16  query tile
    xkv = xkv_ref[0]  # (S, H)     bf16  full sequence (self-attn keys/values)
    enc = enc_ref[0]  # (S_enc, H) bf16  encoder outputs

    # --- self attention + residual + norm1 ---
    att = _mha(xq, xkv, sa_wq, sa_bq, sa_wk, sa_bk, sa_wv, sa_bv, sa_wo, sa_bo,
               head_scratch, num_heads, head_dim)
    x1 = _layer_norm(xq.astype(jnp.float32) + att, ln1_g[...], ln1_b[...])
    x1_bf = x1.astype(jnp.bfloat16)

    # --- cross attention + residual + norm2 ---
    att = _mha(x1_bf, enc, ca_wq, ca_bq, ca_wk, ca_bk, ca_wv, ca_bv, ca_wo, ca_bo,
               head_scratch, num_heads, head_dim)
    x2 = _layer_norm(x1 + att, ln2_g[...], ln2_b[...])
    x2_bf = x2.astype(jnp.bfloat16)

    # --- pointwise feed-forward (chunked over FF so no (TQ, FF) buffer is fully live) ---
    tq, hidden = x2.shape
    ff_size = ff_w1.shape[1]
    acc = jnp.zeros((tq, hidden), jnp.float32)
    for c in range(ff_size // ff_chunk):  # static unroll
        lo = c * ff_chunk
        hc = jnp.dot(x2_bf, ff_w1[:, lo:lo + ff_chunk],
                     preferred_element_type=jnp.float32) + ff_b1[:, lo:lo + ff_chunk]
        hc = jnp.maximum(hc, 0.0).astype(jnp.bfloat16)
        acc = acc + jnp.dot(hc, ff_w2[lo:lo + ff_chunk, :],
                            preferred_element_type=jnp.float32)
    ff = acc + ff_b2[...]
    x3 = _layer_norm(x2 + ff, ln3_g[...], ln3_b[...])
    out_ref[0] = x3.astype(out_ref.dtype)


_WEIGHT_ORDER = (
    "sa_wq", "sa_bq", "sa_wk", "sa_bk", "sa_wv", "sa_bv", "sa_wo", "sa_bo",
    "ca_wq", "ca_bq", "ca_wk", "ca_bk", "ca_wv", "ca_bv", "ca_wo", "ca_bo",
    "ff_w1", "ff_b1", "ff_w2", "ff_b2",
    "ln1_g", "ln1_b", "ln2_g", "ln2_b", "ln3_g", "ln3_b",
)


def decoder_transformer_layer(x, enc, params, num_heads, *, q_tile=None, ff_chunk=None):
    """x: (B, S, H), enc: (B, S_enc, H). Returns (B, S, H) float32 (eval mode)."""
    # TODO(synk): tgt_mask / src_mask are not supported (the module defaults them to None).
    B, S, H = x.shape
    _, S_enc, _ = enc.shape
    head_dim = H // num_heads
    FF = params["ff_w1"].shape[1]

    # Query-sequence tile: must divide S and (unless == S) be a multiple of 8.
    if q_tile is None:
        q_tile = min(S, 256)
    if S % q_tile != 0 or (q_tile != S and q_tile % 8 != 0):
        q_tile = S
    n_q = S // q_tile

    if ff_chunk is None:
        ff_chunk = min(FF, 512)
    if FF % ff_chunk != 0:
        ff_chunk = FF

    # bf16 for weight matrices and activations; biases + LayerNorm params stay f32
    # (they are added to f32 accumulators).
    def cast(name, a):
        return a.astype(jnp.bfloat16) if "_w" in name else a.astype(jnp.float32)

    weights = [cast(n, params[n]) for n in _WEIGHT_ORDER]
    x_bf = x.astype(jnp.bfloat16)
    enc_bf = enc.astype(jnp.bfloat16)

    # VMEM budget: single-buffered weights + double-buffered activation tiles + scratch/out.
    w_bytes = sum(int(a.size) * a.dtype.itemsize for a in weights)
    act_bytes = 2 * 2 * (q_tile * H + S * H + S_enc * H) + 2 * 4 * q_tile * H + 4 * q_tile * H
    vmem_limit = int(min(64 << 20, max(32 << 20, 2 * (w_bytes + act_bytes))))

    kernel = functools.partial(_decoder_layer_kernel, num_heads=num_heads,
                               head_dim=head_dim, ff_chunk=ff_chunk)
    out_shape = jax.ShapeDtypeStruct((B, S, H), jnp.float32)

    def build(weight_pipeline_mode):
        def w_spec(a):
            ndim = a.ndim
            idx = lambda b, q, _n=ndim: (0,) * _n  # grid-invariant block
            if weight_pipeline_mode is None:
                return pl.BlockSpec(a.shape, idx)
            return pl.BlockSpec(a.shape, idx, pipeline_mode=weight_pipeline_mode)

        in_specs = [
            pl.BlockSpec((1, q_tile, H), lambda b, q: (b, q, 0)),   # query tile of x
            pl.BlockSpec((1, S, H), lambda b, q: (b, 0, 0)),        # full x (self-attn K/V)
            pl.BlockSpec((1, S_enc, H), lambda b, q: (b, 0, 0)),    # encoder outputs
        ] + [w_spec(a) for a in weights]

        return pl.pallas_call(
            kernel,
            out_shape=out_shape,
            grid_spec=pltpu.PrefetchScalarGridSpec(
                num_scalar_prefetch=0,
                grid=(B, n_q),
                in_specs=in_specs,
                out_specs=pl.BlockSpec((1, q_tile, H), lambda b, q: (b, q, 0)),
                scratch_shapes=[pltpu.VMEM((q_tile, H), jnp.float32)],
            ),
            compiler_params=pltpu.CompilerParams(
                dimension_semantics=("parallel", "parallel"),
                vmem_limit_bytes=vmem_limit,
            ),
        )

    args = (x_bf, x_bf, enc_bf, *weights)
    try:
        # Grid-invariant weights: single-buffer them (halves their VMEM footprint — key on v7x).
        return build(pl.Buffered(1))(*args)
    except Exception:
        # Fallback for Pallas builds that reject pipeline_mode / Buffered(1): default buffering.
        return build(None)(*args)


def _init_params(key, H, FF):
    keys = jax.random.split(key, 20)
    k = iter(keys)

    def linear(k1, k2, din, dout):
        scale = 1.0 / (din ** 0.5)
        w = jax.random.uniform(k1, (din, dout), jnp.float32, -scale, scale)
        b = jax.random.uniform(k2, (1, dout), jnp.float32, -scale, scale)
        return w, b

    p = {}
    for prefix in ("sa", "ca"):
        for name in ("wq", "wk", "wv", "wo"):
            w, b = linear(next(k), next(k), H, H)
            p[f"{prefix}_{name}"] = w
            p[f"{prefix}_{name.replace('w', 'b')}"] = b
    p["ff_w1"], p["ff_b1"] = linear(next(k), next(k), H, FF)
    p["ff_w2"], p["ff_b2"] = linear(next(k), next(k), FF, H)
    for i in (1, 2, 3):
        p[f"ln{i}_g"] = jnp.ones((1, H), jnp.float32)
        p[f"ln{i}_b"] = jnp.zeros((1, H), jnp.float32)
    return p


def _reference(x, enc, p, num_heads):
    # pure-JAX f32 reference for verification
    B, S, H = x.shape
    hd = H // num_heads

    def mha(q_in, kv_in, pre):
        Q = q_in @ p[f"{pre}_wq"] + p[f"{pre}_bq"]
        K = kv_in @ p[f"{pre}_wk"] + p[f"{pre}_bk"]
        V = kv_in @ p[f"{pre}_wv"] + p[f"{pre}_bv"]

        def split(t):
            b, s, _ = t.shape
            return t.reshape(b, s, num_heads, hd).transpose(0, 2, 1, 3)

        Qh, Kh, Vh = split(Q), split(K), split(V)
        e = jnp.einsum("bhqd,bhkd->bhqk", Qh, Kh) / (hd ** 0.5)
        a = jax.nn.softmax(e, axis=-1)
        o = jnp.einsum("bhqk,bhkd->bhqd", a, Vh).transpose(0, 2, 1, 3).reshape(q_in.shape[0], -1, H)
        return o @ p[f"{pre}_wo"] + p[f"{pre}_bo"]

    def ln(t, i):
        mu = t.mean(-1, keepdims=True)
        var = ((t - mu) ** 2).mean(-1, keepdims=True)
        return (t - mu) / jnp.sqrt(var + 1e-5) * p[f"ln{i}_g"] + p[f"ln{i}_b"]

    x1 = ln(x + mha(x, x, "sa"), 1)
    x2 = ln(x1 + mha(x1, enc, "ca"), 2)
    ff = jnp.maximum(x2 @ p["ff_w1"] + p["ff_b1"], 0.0) @ p["ff_w2"] + p["ff_b2"]
    return ln(x2 + ff, 3)


if __name__ == "__main__":
    B, S, S_enc, H, NH, FF = 2, 8, 8, 32, 4, 64
    key = jax.random.PRNGKey(0)
    kx, kenc, kp = jax.random.split(key, 3)
    x = jax.random.normal(kx, (B, S, H), jnp.float32)
    enc = jax.random.normal(kenc, (B, S_enc, H), jnp.float32)
    params = _init_params(kp, H, FF)

    out = decoder_transformer_layer(x, enc, params, NH)
    out = jax.block_until_ready(out)

    ref = _reference(x, enc, params, NH)
    assert out.shape == (B, S, H)
    max_err = float(jnp.max(jnp.abs(out - ref)))
    # bf16 weights/activations + approx reciprocal => compare at relaxed tolerance vs f32 reference
    assert jnp.allclose(out, ref, atol=3e-2, rtol=3e-2), f"mismatch vs JAX reference (max abs err {max_err})"
    print("KERNEL_OK")
</pallas_src>

<mosaic_0001>
module attributes {stable_mosaic.version = 11 : i64} {
  func.func @_decoder_layer_kernel(%arg0: i32, %arg1: i32, %arg2: memref<1x8x32xbf16, #tpu.memory_space<vmem>>, %arg3: memref<1x8x32xbf16, #tpu.memory_space<vmem>>, %arg4: memref<1x8x32xbf16, #tpu.memory_space<vmem>>, %arg5: memref<32x32xbf16, #tpu.memory_space<vmem>>, %arg6: memref<1x32xf32, #tpu.memory_space<vmem>>, %arg7: memref<32x32xbf16, #tpu.memory_space<vmem>>, %arg8: memref<1x32xf32, #tpu.memory_space<vmem>>, %arg9: memref<32x32xbf16, #tpu.memory_space<vmem>>, %arg10: memref<1x32xf32, #tpu.memory_space<vmem>>, %arg11: memref<32x32xbf16, #tpu.memory_space<vmem>>, %arg12: memref<1x32xf32, #tpu.memory_space<vmem>>, %arg13: memref<32x32xbf16, #tpu.memory_space<vmem>>, %arg14: memref<1x32xf32, #tpu.memory_space<vmem>>, %arg15: memref<32x32xbf16, #tpu.memory_space<vmem>>, %arg16: memref<1x32xf32, #tpu.memory_space<vmem>>, %arg17: memref<32x32xbf16, #tpu.memory_space<vmem>>, %arg18: memref<1x32xf32, #tpu.memory_space<vmem>>, %arg19: memref<32x32xbf16, #tpu.memory_space<vmem>>, %arg20: memref<1x32xf32, #tpu.memory_space<vmem>>, %arg21: memref<32x64xbf16, #tpu.memory_space<vmem>>, %arg22: memref<1x64xf32, #tpu.memory_space<vmem>>, %arg23: memref<64x32xbf16, #tpu.memory_space<vmem>>, %arg24: memref<1x32xf32, #tpu.memory_space<vmem>>, %arg25: memref<1x32xf32, #tpu.memory_space<vmem>>, %arg26: memref<1x32xf32, #tpu.memory_space<vmem>>, %arg27: memref<1x32xf32, #tpu.memory_space<vmem>>, %arg28: memref<1x32xf32, #tpu.memory_space<vmem>>, %arg29: memref<1x32xf32, #tpu.memory_space<vmem>>, %arg30: memref<1x32xf32, #tpu.memory_space<vmem>>, %arg31: memref<1x8x32xf32, #tpu.memory_space<vmem>>, %arg32: memref<8x32xf32, #tpu.memory_space<vmem>>) attributes {dimension_semantics = [#tpu.dimension_semantics<parallel>, #tpu.dimension_semantics<parallel>], iteration_bounds = array<i64: 2, 1>, scalar_prefetch = 0 : i64, scratch_operands = 1 : i64, tpu.core_type = #tpu.core_type<tc>, window_params = [{transform_indices = @transform_0, window_bounds = array<i64: 1, 8, 32>}, {transform_indices = @transform_1, window_bounds = array<i64: 1, 8, 32>}, {transform_indices = @transform_2, window_bounds = array<i64: 1, 8, 32>}, {pipeline_mode = #tpu.pipeline_mode<synchronous>, transform_indices = @transform_3, window_bounds = array<i64: 32, 32>}, {pipeline_mode = #tpu.pipeline_mode<synchronous>, transform_indices = @transform_4, window_bounds = array<i64: 1, 32>}, {pipeline_mode = #tpu.pipeline_mode<synchronous>, transform_indices = @transform_5, window_bounds = array<i64: 32, 32>}, {pipeline_mode = #tpu.pipeline_mode<synchronous>, transform_indices = @transform_6, window_bounds = array<i64: 1, 32>}, {pipeline_mode = #tpu.pipeline_mode<synchronous>, transform_indices = @transform_7, window_bounds = array<i64: 32, 32>}, {pipeline_mode = #tpu.pipeline_mode<synchronous>, transform_indices = @transform_8, window_bounds = array<i64: 1, 32>}, {pipeline_mode = #tpu.pipeline_mode<synchronous>, transform_indices = @transform_9, window_bounds = array<i64: 32, 32>}, {pipeline_mode = #tpu.pipeline_mode<synchronous>, transform_indices = @transform_10, window_bounds = array<i64: 1, 32>}, {pipeline_mode = #tpu.pipeline_mode<synchronous>, transform_indices = @transform_11, window_bounds = array<i64: 32, 32>}, {pipeline_mode = #tpu.pipeline_mode<synchronous>, transform_indices = @transform_12, window_bounds = array<i64: 1, 32>}, {pipeline_mode = #tpu.pipeline_mode<synchronous>, transform_indices = @transform_13, window_bounds = array<i64: 32, 32>}, {pipeline_mode = #tpu.pipeline_mode<synchronous>, transform_indices = @transform_14, window_bounds = array<i64: 1, 32>}, {pipeline_mode = #tpu.pipeline_mode<synchronous>, transform_indices = @transform_15, window_bounds = array<i64: 32, 32>}, {pipeline_mode = #tpu.pipeline_mode<synchronous>, transform_indices = @transform_16, window_bounds = array<i64: 1, 32>}, {pipeline_mode = #tpu.pipeline_mode<synchronous>, transform_indices = @transform_17, window_bounds = array<i64: 32, 32>}, {pipeline_mode = #tpu.pipeline_mode<synchronous>, transform_indices = @transform_18, window_bounds = array<i64: 1, 32>}, {pipeline_mode = #tpu.pipeline_mode<synchronous>, transform_indices = @transform_19, window_bounds = array<i64: 32, 64>}, {pipeline_mode = #tpu.pipeline_mode<synchronous>, transform_indices = @transform_20, window_bounds = array<i64: 1, 64>}, {pipeline_mode = #tpu.pipeline_mode<synchronous>, transform_indices = @transform_21, window_bounds = array<i64: 64, 32>}, {pipeline_mode = #tpu.pipeline_mode<synchronous>, transform_indices = @transform_22, window_bounds = array<i64: 1, 32>}, {pipeline_mode = #tpu.pipeline_mode<synchronous>, transform_indices = @transform_23, window_bounds = array<i64: 1, 32>}, {pipeline_mode = #tpu.pipeline_mode<synchronous>, transform_indices = @transform_24, window_bounds = array<i64: 1, 32>}, {pipeline_mode = #tpu.pipeline_mode<synchronous>, transform_indices = @transform_25, window_bounds = array<i64: 1, 32>}, {pipeline_mode = #tpu.pipeline_mode<synchronous>, transform_indices = @transform_26, window_bounds = array<i64: 1, 32>}, {pipeline_mode = #tpu.pipeline_mode<synchronous>, transform_indices = @transform_27, window_bounds = array<i64: 1, 32>}, {pipeline_mode = #tpu.pipeline_mode<synchronous>, transform_indices = @transform_28, window_bounds = array<i64: 1, 32>}, {transform_indices = @transform_29, window_bounds = array<i64: 1, 8, 32>}]} {
    %c0 = arith.constant 0 : index
    %c0_0 = arith.constant 0 : index
    %c0_1 = arith.constant 0 : index
    %0 = vector.load %arg2[%c0, %c0_0, %c0_1] : memref<1x8x32xbf16, #tpu.memory_space<vmem>>, vector<1x8x32xbf16>
    %1 = vector.shape_cast %0 : vector<1x8x32xbf16> to vector<8x32xbf16>
    %c0_2 = arith.constant 0 : index
    %c0_3 = arith.constant 0 : index
    %c0_4 = arith.constant 0 : index
    %2 = vector.load %arg3[%c0_2, %c0_3, %c0_4] : memref<1x8x32xbf16, #tpu.memory_space<vmem>>, vector<1x8x32xbf16>
    %3 = vector.shape_cast %2 : vector<1x8x32xbf16> to vector<8x32xbf16>
    %c0_5 = arith.constant 0 : index
    %c0_6 = arith.constant 0 : index
    %c0_7 = arith.constant 0 : index
    %4 = vector.load %arg4[%c0_5, %c0_6, %c0_7] : memref<1x8x32xbf16, #tpu.memory_space<vmem>>, vector<1x8x32xbf16>
    %5 = vector.shape_cast %4 : vector<1x8x32xbf16> to vector<8x32xbf16>
    %c0_8 = arith.constant 0 : index
    %c0_9 = arith.constant 0 : index
    %6 = vector.load %arg5[%c0_8, %c0_9] : memref<32x32xbf16, #tpu.memory_space<vmem>>, vector<32x32xbf16>
    %cst = arith.constant dense<0.000000e+00> : vector<8x32xf32>
    %7 = tpu.matmul %1, %6, %cst {dimension_numbers = #tpu.dot_dimension_numbers<[1], [0], [0], [1], [0, 0, 1, 1], [], []>} : vector<8x32xbf16>, vector<32x32xbf16>, vector<8x32xf32> -> vector<8x32xf32>
    %c0_10 = arith.constant 0 : index
    %c0_11 = arith.constant 0 : index
    %8 = vector.load %arg6[%c0_10, %c0_11] : memref<1x32xf32, #tpu.memory_space<vmem>>, vector<1x32xf32>
    %9 = vector.broadcast %8 : vector<1x32xf32> to vector<8x32xf32>
    %10 = arith.addf %7, %9 : vector<8x32xf32>
    %11 = arith.truncf %10 : vector<8x32xf32> to vector<8x32xbf16>
    %c0_12 = arith.constant 0 : index
    %c0_13 = arith.constant 0 : index
    %12 = vector.load %arg7[%c0_12, %c0_13] : memref<32x32xbf16, #tpu.memory_space<vmem>>, vector<32x32xbf16>
    %cst_14 = arith.constant dense<0.000000e+00> : vector<8x32xf32>
    %13 = tpu.matmul %3, %12, %cst_14 {dimension_numbers = #tpu.dot_dimension_numbers<[1], [0], [0], [1], [0, 0, 1, 1], [], []>} : vector<8x32xbf16>, vector<32x32xbf16>, vector<8x32xf32> -> vector<8x32xf32>
    %c0_15 = arith.constant 0 : index
    %c0_16 = arith.constant 0 : index
    %14 = vector.load %arg8[%c0_15, %c0_16] : memref<1x32xf32, #tpu.memory_space<vmem>>, vector<1x32xf32>
    %15 = vector.broadcast %14 : vector<1x32xf32> to vector<8x32xf32>
    %16 = arith.addf %13, %15 : vector<8x32xf32>
    %17 = arith.truncf %16 : vector<8x32xf32> to vector<8x32xbf16>
    %c0_17 = arith.constant 0 : index
    %c0_18 = arith.constant 0 : index
    %18 = vector.load %arg9[%c0_17, %c0_18] : memref<32x32xbf16, #tpu.memory_space<vmem>>, vector<32x32xbf16>
    %cst_19 = arith.constant dense<0.000000e+00> : vector<8x32xf32>
    %19 = tpu.matmul %3, %18, %cst_19 {dimension_numbers = #tpu.dot_dimension_numbers<[1], [0], [0], [1], [0, 0, 1, 1], [], []>} : vector<8x32xbf16>, vector<32x32xbf16>, vector<8x32xf32> -> vector<8x32xf32>
    %c0_20 = arith.constant 0 : index
    %c0_21 = arith.constant 0 : index
    %20 = vector.load %arg10[%c0_20, %c0_21] : memref<1x32xf32, #tpu.memory_space<vmem>>, vector<1x32xf32>
    %21 = vector.broadcast %20 : vector<1x32xf32> to vector<8x32xf32>
    %22 = arith.addf %19, %21 : vector<8x32xf32>
    %23 = arith.truncf %22 : vector<8x32xf32> to vector<8x32xbf16>
    %24 = vector.extract_strided_slice %11 {offsets = [0, 0], sizes = [8, 8], strides = [1, 1]} : vector<8x32xbf16> to vector<8x8xbf16>
    %25 = vector.extract_strided_slice %17 {offsets = [0, 0], sizes = [8, 8], strides = [1, 1]} : vector<8x32xbf16> to vector<8x8xbf16>
    %26 = vector.extract_strided_slice %23 {offsets = [0, 0], sizes = [8, 8], strides = [1, 1]} : vector<8x32xbf16> to vector<8x8xbf16>
    %cst_22 = arith.constant dense<0.000000e+00> : vector<8x8xf32>
    %27 = tpu.matmul %24, %25, %cst_22 {dimension_numbers = #tpu.dot_dimension_numbers<[1], [1], [0], [0], [0, 0, 1, 0], [], []>} : vector<8x8xbf16>, vector<8x8xbf16>, vector<8x8xf32> -> vector<8x8xf32>
    %cst_23 = arith.constant 0.353553385 : f32
    %28 = vector.broadcast %cst_23 : f32 to vector<8x8xf32>
    %29 = arith.mulf %27, %28 : vector<8x8xf32>
    %cst_24 = arith.constant dense<0xFF800000> : vector<8xf32>
    %30 = vector.multi_reduction <maximumf>, %29, %cst_24 [1] : vector<8x8xf32> to vector<8xf32>
    %31 = vector.shape_cast %30 : vector<8xf32> to vector<8x1xf32>
    %32 = vector.broadcast %31 : vector<8x1xf32> to vector<8x8xf32>
    %33 = arith.subf %29, %32 : vector<8x8xf32>
    %34 = math.exp %33 : vector<8x8xf32>
    %cst_25 = arith.constant dense<0.000000e+00> : vector<8xf32>
    %35 = vector.multi_reduction <add>, %34, %cst_25 [1] : vector<8x8xf32> to vector<8xf32>
    %36 = vector.shape_cast %35 : vector<8xf32> to vector<8x1xf32>
    %37 = tpu.reciprocal %36 {approx = true} : vector<8x1xf32> -> vector<8x1xf32>
    %38 = arith.truncf %34 : vector<8x8xf32> to vector<8x8xbf16>
    %cst_26 = arith.constant dense<0.000000e+00> : vector<8x8xf32>
    %39 = tpu.matmul %38, %26, %cst_26 {dimension_numbers = #tpu.dot_dimension_numbers<[1], [0], [0], [1], [0, 0, 1, 1], [], []>} : vector<8x8xbf16>, vector<8x8xbf16>, vector<8x8xf32> -> vector<8x8xf32>
    %40 = vector.broadcast %37 : vector<8x1xf32> to vector<8x8xf32>
    %41 = arith.mulf %39, %40 : vector<8x8xf32>
    %c0_27 = arith.constant 0 : index
    %c0_28 = arith.constant 0 : index
    %42 = vector.load %arg32[%c0_27, %c0_28] : memref<8x32xf32, #tpu.memory_space<vmem>>, vector<8x8xf32>
    tpu.vector_store %arg32[%c0_27, %c0_28], %41 {strides = array<i32>} : memref<8x32xf32, #tpu.memory_space<vmem>>, vector<8x8xf32>,
    %43 = vector.extract_strided_slice %11 {offsets = [0, 8], sizes = [8, 8], strides = [1, 1]} : vector<8x32xbf16> to vector<8x8xbf16>
    %44 = vector.extract_strided_slice %17 {offsets = [0, 8], sizes = [8, 8], strides = [1, 1]} : vector<8x32xbf16> to vector<8x8xbf16>
    %45 = vector.extract_strided_slice %23 {offsets = [0, 8], sizes = [8, 8], strides = [1, 1]} : vector<8x32xbf16> to vector<8x8xbf16>
    %cst_29 = arith.constant dense<0.000000e+00> : vector<8x8xf32>
    %46 = tpu.matmul %43, %44, %cst_29 {dimension_numbers = #tpu.dot_dimension_numbers<[1], [1], [0], [0], [0, 0, 1, 0], [], []>} : vector<8x8xbf16>, vector<8x8xbf16>, vector<8x8xf32> -> vector<8x8xf32>
    %cst_30 = arith.constant 0.353553385 : f32
    %47 = vector.broadcast %cst_30 : f32 to vector<8x8xf32>
    %48 = arith.mulf %46, %47 : vector<8x8xf32>
    %cst_31 = arith.constant dense<0xFF800000> : vector<8xf32>
    %49 = vector.multi_reduction <maximumf>, %48, %cst_31 [1] : vector<8x8xf32> to vector<8xf32>
    %50 = vector.shape_cast %49 : vector<8xf32> to vector<8x1xf32>
    %51 = vector.broadcast %50 : vector<8x1xf32> to vector<8x8xf32>
    %52 = arith.subf %48, %51 : vector<8x8xf32>
    %53 = math.exp %52 : vector<8x8xf32>
    %cst_32 = arith.constant dense<0.000000e+00> : vector<8xf32>
    %54 = vector.multi_reduction <add>, %53, %cst_32 [1] : vector<8x8xf32> to vector<8xf32>
    %55 = vector.shape_cast %54 : vector<8xf32> to vector<8x1xf32>
    %56 = tpu.reciprocal %55 {approx = true} : vector<8x1xf32> -> vector<8x1xf32>
    %57 = arith.truncf %53 : vector<8x8xf32> to vector<8x8xbf16>
    %cst_33 = arith.constant dense<0.000000e+00> : vector<8x8xf32>
    %58 = tpu.matmul %57, %45, %cst_33 {dimension_numbers = #tpu.dot_dimension_numbers<[1], [0], [0], [1], [0, 0, 1, 1], [], []>} : vector<8x8xbf16>, vector<8x8xbf16>, vector<8x8xf32> -> vector<8x8xf32>
    %59 = vector.broadcast %56 : vector<8x1xf32> to vector<8x8xf32>
    %60 = arith.mulf %58, %59 : vector<8x8xf32>
    %c0_34 = arith.constant 0 : index
    %c8 = arith.constant 8 : index
    %61 = vector.load %arg32[%c0_34, %c8] : memref<8x32xf32, #tpu.memory_space<vmem>>, vector<8x8xf32>
    tpu.vector_store %arg32[%c0_34, %c8], %60 {strides = array<i32>} : memref<8x32xf32, #tpu.memory_space<vmem>>, vector<8x8xf32>,
    %62 = vector.extract_strided_slice %11 {offsets = [0, 16], sizes = [8, 8], strides = [1, 1]} : vector<8x32xbf16> to vector<8x8xbf16>
    %63 = vector.extract_strided_slice %17 {offsets = [0, 16], sizes = [8, 8], strides = [1, 1]} : vector<8x32xbf16> to vector<8x8xbf16>
    %64 = vector.extract_strided_slice %23 {offsets = [0, 16], sizes = [8, 8], strides = [1, 1]} : vector<8x32xbf16> to vector<8x8xbf16>
    %cst_35 = arith.constant dense<0.000000e+00> : vector<8x8xf32>
    %65 = tpu.matmul %62, %63, %cst_35 {dimension_numbers = #tpu.dot_dimension_numbers<[1], [1], [0], [0], [0, 0, 1, 0], [], []>} : vector<8x8xbf16>, vector<8x8xbf16>, vector<8x8xf32> -> vector<8x8xf32>
    %cst_36 = arith.constant 0.353553385 : f32
    %66 = vector.broadcast %cst_36 : f32 to vector<8x8xf32>
    %67 = arith.mulf %65, %66 : vector<8x8xf32>
    %cst_37 = arith.constant dense<0xFF800000> : vector<8xf32>
    %68 = vector.multi_reduction <maximumf>, %67, %cst_37 [1] : vector<8x8xf32> to vector<8xf32>
    %69 = vector.shape_cast %68 : vector<8xf32> to vector<8x1xf32>
    %70 = vector.broadcast %69 : vector<8x1xf32> to vector<8x8xf32>
    %71 = arith.subf %67, %70 : vector<8x8xf32>
    %72 = math.exp %71 : vector<8x8xf32>
    %cst_38 = arith.constant dense<0.000000e+00> : vector<8xf32>
    %73 = vector.multi_reduction <add>, %72, %cst_38 [1] : vector<8x8xf32> to vector<8xf32>
    %74 = vector.shape_cast %73 : vector<8xf32> to vector<8x1xf32>
    %75 = tpu.reciprocal %74 {approx = true} : vector<8x1xf32> -> vector<8x1xf32>
    %76 = arith.truncf %72 : vector<8x8xf32> to vector<8x8xbf16>
    %cst_39 = arith.constant dense<0.000000e+00> : vector<8x8xf32>
    %77 = tpu.matmul %76, %64, %cst_39 {dimension_numbers = #tpu.dot_dimension_numbers<[1], [0], [0], [1], [0, 0, 1, 1], [], []>} : vector<8x8xbf16>, vector<8x8xbf16>, vector<8x8xf32> -> vector<8x8xf32>
    %78 = vector.broadcast %75 : vector<8x1xf32> to vector<8x8xf32>
    %79 = arith.mulf %77, %78 : vector<8x8xf32>
    %c0_40 = arith.constant 0 : index
    %c16 = arith.constant 16 : index
    %80 = vector.load %arg32[%c0_40, %c16] : memref<8x32xf32, #tpu.memory_space<vmem>>, vector<8x8xf32>
    tpu.vector_store %arg32[%c0_40, %c16], %79 {strides = array<i32>} : memref<8x32xf32, #tpu.memory_space<vmem>>, vector<8x8xf32>,
    %81 = vector.extract_strided_slice %11 {offsets = [0, 24], sizes = [8, 8], strides = [1, 1]} : vector<8x32xbf16> to vector<8x8xbf16>
    %82 = vector.extract_strided_slice %17 {offsets = [0, 24], sizes = [8, 8], strides = [1, 1]} : vector<8x32xbf16> to vector<8x8xbf16>
    %83 = vector.extract_strided_slice %23 {offsets = [0, 24], sizes = [8, 8], strides = [1, 1]} : vector<8x32xbf16> to vector<8x8xbf16>
    %cst_41 = arith.constant dense<0.000000e+00> : vector<8x8xf32>
    %84 = tpu.matmul %81, %82, %cst_41 {dimension_numbers = #tpu.dot_dimension_numbers<[1], [1], [0], [0], [0, 0, 1, 0], [], []>} : vector<8x8xbf16>, vector<8x8xbf16>, vector<8x8xf32> -> vector<8x8xf32>
    %cst_42 = arith.constant 0.353553385 : f32
    %85 = vector.broadcast %cst_42 : f32 to vector<8x8xf32>
    %86 = arith.mulf %84, %85 : vector<8x8xf32>
    %cst_43 = arith.constant dense<0xFF800000> : vector<8xf32>
    %87 = vector.multi_reduction <maximumf>, %86, %cst_43 [1] : vector<8x8xf32> to vector<8xf32>
    %88 = vector.shape_cast %87 : vector<8xf32> to vector<8x1xf32>
    %89 = vector.broadcast %88 : vector<8x1xf32> to vector<8x8xf32>
    %90 = arith.subf %86, %89 : vector<8x8xf32>
    %91 = math.exp %90 : vector<8x8xf32>
    %cst_44 = arith.constant dense<0.000000e+00> : vector<8xf32>
    %92 = vector.multi_reduction <add>, %91, %cst_44 [1] : vector<8x8xf32> to vector<8xf32>
    %93 = vector.shape_cast %92 : vector<8xf32> to vector<8x1xf32>
    %94 = tpu.reciprocal %93 {approx = true} : vector<8x1xf32> -> vector<8x1xf32>
    %95 = arith.truncf %91 : vector<8x8xf32> to vector<8x8xbf16>
    %cst_45 = arith.constant dense<0.000000e+00> : vector<8x8xf32>
    %96 = tpu.matmul %95, %83, %cst_45 {dimension_numbers = #tpu.dot_dimension_numbers<[1], [0], [0], [1], [0, 0, 1, 1], [], []>} : vector<8x8xbf16>, vector<8x8xbf16>, vector<8x8xf32> -> vector<8x8xf32>
    %97 = vector.broadcast %94 : vector<8x1xf32> to vector<8x8xf32>
    %98 = arith.mulf %96, %97 : vector<8x8xf32>
    %c0_46 = arith.constant 0 : index
    %c24 = arith.constant 24 : index
    %99 = vector.load %arg32[%c0_46, %c24] : memref<8x32xf32, #tpu.memory_space<vmem>>, vector<8x8xf32>
    tpu.vector_store %arg32[%c0_46, %c24], %98 {strides = array<i32>} : memref<8x32xf32, #tpu.memory_space<vmem>>, vector<8x8xf32>,
    %c0_47 = arith.constant 0 : index
    %c0_48 = arith.constant 0 : index
    %100 = vector.load %arg32[%c0_47, %c0_48] : memref<8x32xf32, #tpu.memory_space<vmem>>, vector<8x32xf32>
    %101 = arith.truncf %100 : vector<8x32xf32> to vector<8x32xbf16>
    %c0_49 = arith.constant 0 : index
    %c0_50 = arith.constant 0 : index
    %102 = vector.load %arg11[%c0_49, %c0_50] : memref<32x32xbf16, #tpu.memory_space<vmem>>, vector<32x32xbf16>
    %cst_51 = arith.constant dense<0.000000e+00> : vector<8x32xf32>
    %103 = tpu.matmul %101, %102, %cst_51 {dimension_numbers = #tpu.dot_dimension_numbers<[1], [0], [0], [1], [0, 0, 1, 1], [], []>} : vector<8x32xbf16>, vector<32x32xbf16>, vector<8x32xf32> -> vector<8x32xf32>
    %c0_52 = arith.constant 0 : index
    %c0_53 = arith.constant 0 : index
    %104 = vector.load %arg12[%c0_52, %c0_53] : memref<1x32xf32, #tpu.memory_space<vmem>>, vector<1x32xf32>
    %105 = vector.broadcast %104 : vector<1x32xf32> to vector<8x32xf32>
    %106 = arith.addf %103, %105 : vector<8x32xf32>
    %107 = arith.extf %1 : vector<8x32xbf16> to vector<8x32xf32>
    %108 = arith.addf %107, %106 : vector<8x32xf32>
    %c0_54 = arith.constant 0 : index
    %c0_55 = arith.constant 0 : index
    %109 = vector.load %arg25[%c0_54, %c0_55] : memref<1x32xf32, #tpu.memory_space<vmem>>, vector<1x32xf32>
    %c0_56 = arith.constant 0 : index
    %c0_57 = arith.constant 0 : index
    %110 = vector.load %arg26[%c0_56, %c0_57] : memref<1x32xf32, #tpu.memory_space<vmem>>, vector<1x32xf32>
    %cst_58 = arith.constant dense<0.000000e+00> : vector<8xf32>
    %111 = vector.multi_reduction <add>, %108, %cst_58 [1] : vector<8x32xf32> to vector<8xf32>
    %112 = vector.shape_cast %111 : vector<8xf32> to vector<8x1xf32>
    %cst_59 = arith.constant 3.200000e+01 : f32
    %113 = vector.broadcast %cst_59 : f32 to vector<8x1xf32>
    %114 = arith.divf %112, %113 : vector<8x1xf32>
    %115 = vector.broadcast %114 : vector<8x1xf32> to vector<8x32xf32>
    %116 = arith.subf %108, %115 : vector<8x32xf32>
    %117 = arith.mulf %116, %116 : vector<8x32xf32>
    %cst_60 = arith.constant dense<0.000000e+00> : vector<8xf32>
    %118 = vector.multi_reduction <add>, %117, %cst_60 [1] : vector<8x32xf32> to vector<8xf32>
    %119 = vector.shape_cast %118 : vector<8xf32> to vector<8x1xf32>
    %cst_61 = arith.constant 3.200000e+01 : f32
    %120 = vector.broadcast %cst_61 : f32 to vector<8x1xf32>
    %121 = arith.divf %119, %120 : vector<8x1xf32>
    %122 = vector.broadcast %114 : vector<8x1xf32> to vector<8x32xf32>
    %123 = arith.subf %108, %122 : vector<8x32xf32>
    %cst_62 = arith.constant 9.99999974E-6 : f32
    %124 = vector.broadcast %cst_62 : f32 to vector<8x1xf32>
    %125 = arith.addf %121, %124 : vector<8x1xf32>
    %126 = math.rsqrt %125 : vector<8x1xf32>
    %127 = vector.broadcast %126 : vector<8x1xf32> to vector<8x32xf32>
    %128 = arith.mulf %123, %127 : vector<8x32xf32>
    %129 = vector.broadcast %109 : vector<1x32xf32> to vector<8x32xf32>
    %130 = arith.mulf %128, %129 : vector<8x32xf32>
    %131 = vector.broadcast %110 : vector<1x32xf32> to vector<8x32xf32>
    %132 = arith.addf %130, %131 : vector<8x32xf32>
    %133 = arith.truncf %132 : vector<8x32xf32> to vector<8x32xbf16>
    %c0_63 = arith.constant 0 : index
    %c0_64 = arith.constant 0 : index
    %134 = vector.load %arg13[%c0_63, %c0_64] : memref<32x32xbf16, #tpu.memory_space<vmem>>, vector<32x32xbf16>
    %cst_65 = arith.constant dense<0.000000e+00> : vector<8x32xf32>
    %135 = tpu.matmul %133, %134, %cst_65 {dimension_numbers = #tpu.dot_dimension_numbers<[1], [0], [0], [1], [0, 0, 1, 1], [], []>} : vector<8x32xbf16>, vector<32x32xbf16>, vector<8x32xf32> -> vector<8x32xf32>
    %c0_66 = arith.constant 0 : index
    %c0_67 = arith.constant 0 : index
    %136 = vector.load %arg14[%c0_66, %c0_67] : memref<1x32xf32, #tpu.memory_space<vmem>>, vector<1x32xf32>
    %137 = vector.broadcast %136 : vector<1x32xf32> to vector<8x32xf32>
    %138 = arith.addf %135, %137 : vector<8x32xf32>
    %139 = arith.truncf %138 : vector<8x32xf32> to vector<8x32xbf16>
    %c0_68 = arith.constant 0 : index
    %c0_69 = arith.constant 0 : index
    %140 = vector.load %arg15[%c0_68, %c0_69] : memref<32x32xbf16, #tpu.memory_space<vmem>>, vector<32x32xbf16>
    %cst_70 = arith.constant dense<0.000000e+00> : vector<8x32xf32>
    %141 = tpu.matmul %5, %140, %cst_70 {dimension_numbers = #tpu.dot_dimension_numbers<[1], [0], [0], [1], [0, 0, 1, 1], [], []>} : vector<8x32xbf16>, vector<32x32xbf16>, vector<8x32xf32> -> vector<8x32xf32>
    %c0_71 = arith.constant 0 : index
    %c0_72 = arith.constant 0 : index
    %142 = vector.load %arg16[%c0_71, %c0_72] : memref<1x32xf32, #tpu.memory_space<vmem>>, vector<1x32xf32>
    %143 = vector.broadcast %142 : vector<1x32xf32> to vector<8x32xf32>
    %144 = arith.addf %141, %143 : vector<8x32xf32>
    %145 = arith.truncf %144 : vector<8x32xf32> to vector<8x32xbf16>
    %c0_73 = arith.constant 0 : index
    %c0_74 = arith.constant 0 : index
    %146 = vector.load %arg17[%c0_73, %c0_74] : memref<32x32xbf16, #tpu.memory_space<vmem>>, vector<32x32xbf16>
    %cst_75 = arith.constant dense<0.000000e+00> : vector<8x32xf32>
    %147 = tpu.matmul %5, %146, %cst_75 {dimension_numbers = #tpu.dot_dimension_numbers<[1], [0], [0], [1], [0, 0, 1, 1], [], []>} : vector<8x32xbf16>, vector<32x32xbf16>, vector<8x32xf32> -> vector<8x32xf32>
    %c0_76 = arith.constant 0 : index
    %c0_77 = arith.constant 0 : index
    %148 = vector.load %arg18[%c0_76, %c0_77] : memref<1x32xf32, #tpu.memory_space<vmem>>, vector<1x32xf32>
    %149 = vector.broadcast %148 : vector<1x32xf32> to vector<8x32xf32>
    %150 = arith.addf %147, %149 : vector<8x32xf32>
    %151 = arith.truncf %150 : vector<8x32xf32> to vector<8x32xbf16>
    %152 = vector.extract_strided_slice %139 {offsets = [0, 0], sizes = [8, 8], strides = [1, 1]} : vector<8x32xbf16> to vector<8x8xbf16>
    %153 = vector.extract_strided_slice %145 {offsets = [0, 0], sizes = [8, 8], strides = [1, 1]} : vector<8x32xbf16> to vector<8x8xbf16>
    %154 = vector.extract_strided_slice %151 {offsets = [0, 0], sizes = [8, 8], strides = [1, 1]} : vector<8x32xbf16> to vector<8x8xbf16>
    %cst_78 = arith.constant dense<0.000000e+00> : vector<8x8xf32>
    %155 = tpu.matmul %152, %153, %cst_78 {dimension_numbers = #tpu.dot_dimension_numbers<[1], [1], [0], [0], [0, 0, 1, 0], [], []>} : vector<8x8xbf16>, vector<8x8xbf16>, vector<8x8xf32> -> vector<8x8xf32>
    %cst_79 = arith.constant 0.353553385 : f32
    %156 = vector.broadcast %cst_79 : f32 to vector<8x8xf32>
    %157 = arith.mulf %155, %156 : vector<8x8xf32>
    %cst_80 = arith.constant dense<0xFF800000> : vector<8xf32>
    %158 = vector.multi_reduction <maximumf>, %157, %cst_80 [1] : vector<8x8xf32> to vector<8xf32>
    %159 = vector.shape_cast %158 : vector<8xf32> to vector<8x1xf32>
    %160 = vector.broadcast %159 : vector<8x1xf32> to vector<8x8xf32>
    %161 = arith.subf %157, %160 : vector<8x8xf32>
    %162 = math.exp %161 : vector<8x8xf32>
    %cst_81 = arith.constant dense<0.000000e+00> : vector<8xf32>
    %163 = vector.multi_reduction <add>, %162, %cst_81 [1] : vector<8x8xf32> to vector<8xf32>
    %164 = vector.shape_cast %163 : vector<8xf32> to vector<8x1xf32>
    %165 = tpu.reciprocal %164 {approx = true} : vector<8x1xf32> -> vector<8x1xf32>
    %166 = arith.truncf %162 : vector<8x8xf32> to vector<8x8xbf16>
    %cst_82 = arith.constant dense<0.000000e+00> : vector<8x8xf32>
    %167 = tpu.matmul %166, %154, %cst_82 {dimension_numbers = #tpu.dot_dimension_numbers<[1], [0], [0], [1], [0, 0, 1, 1], [], []>} : vector<8x8xbf16>, vector<8x8xbf16>, vector<8x8xf32> -> vector<8x8xf32>
    %168 = vector.broadcast %165 : vector<8x1xf32> to vector<8x8xf32>
    %169 = arith.mulf %167, %168 : vector<8x8xf32>
    %c0_83 = arith.constant 0 : index
    %c0_84 = arith.constant 0 : index
    %170 = vector.load %arg32[%c0_83, %c0_84] : memref<8x32xf32, #tpu.memory_space<vmem>>, vector<8x8xf32>
    tpu.vector_store %arg32[%c0_83, %c0_84], %169 {strides = array<i32>} : memref<8x32xf32, #tpu.memory_space<vmem>>, vector<8x8xf32>,
    %171 = vector.extract_strided_slice %139 {offsets = [0, 8], sizes = [8, 8], strides = [1, 1]} : vector<8x32xbf16> to vector<8x8xbf16>
    %172 = vector.extract_strided_slice %145 {offsets = [0, 8], sizes = [8, 8], strides = [1, 1]} : vector<8x32xbf16> to vector<8x8xbf16>
    %173 = vector.extract_strided_slice %151 {offsets = [0, 8], sizes = [8, 8], strides = [1, 1]} : vector<8x32xbf16> to vector<8x8xbf16>
    %cst_85 = arith.constant dense<0.000000e+00> : vector<8x8xf32>
    %174 = tpu.matmul %171, %172, %cst_85 {dimension_numbers = #tpu.dot_dimension_numbers<[1], [1], [0], [0], [0, 0, 1, 0], [], []>} : vector<8x8xbf16>, vector<8x8xbf16>, vector<8x8xf32> -> vector<8x8xf32>
    %cst_86 = arith.constant 0.353553385 : f32
    %175 = vector.broadcast %cst_86 : f32 to vector<8x8xf32>
    %176 = arith.mulf %174, %175 : vector<8x8xf32>
    %cst_87 = arith.constant dense<0xFF800000> : vector<8xf32>
    %177 = vector.multi_reduction <maximumf>, %176, %cst_87 [1] : vector<8x8xf32> to vector<8xf32>
    %178 = vector.shape_cast %177 : vector<8xf32> to vector<8x1xf32>
    %179 = vector.broadcast %178 : vector<8x1xf32> to vector<8x8xf32>
    %180 = arith.subf %176, %179 : vector<8x8xf32>
    %181 = math.exp %180 : vector<8x8xf32>
    %cst_88 = arith.constant dense<0.000000e+00> : vector<8xf32>
    %182 = vector.multi_reduction <add>, %181, %cst_88 [1] : vector<8x8xf32> to vector<8xf32>
    %183 = vector.shape_cast %182 : vector<8xf32> to vector<8x1xf32>
    %184 = tpu.reciprocal %183 {approx = true} : vector<8x1xf32> -> vector<8x1xf32>
    %185 = arith.truncf %181 : vector<8x8xf32> to vector<8x8xbf16>
    %cst_89 = arith.constant dense<0.000000e+00> : vector<8x8xf32>
    %186 = tpu.matmul %185, %173, %cst_89 {dimension_numbers = #tpu.dot_dimension_numbers<[1], [0], [0], [1], [0, 0, 1, 1], [], []>} : vector<8x8xbf16>, vector<8x8xbf16>, vector<8x8xf32> -> vector<8x8xf32>
    %187 = vector.broadcast %184 : vector<8x1xf32> to vector<8x8xf32>
    %188 = arith.mulf %186, %187 : vector<8x8xf32>
    %c0_90 = arith.constant 0 : index
    %c8_91 = arith.constant 8 : index
    %189 = vector.load %arg32[%c0_90, %c8_91] : memref<8x32xf32, #tpu.memory_space<vmem>>, vector<8x8xf32>
    tpu.vector_store %arg32[%c0_90, %c8_91], %188 {strides = array<i32>} : memref<8x32xf32, #tpu.memory_space<vmem>>, vector<8x8xf32>,
    %190 = vector.extract_strided_slice %139 {offsets = [0, 16], sizes = [8, 8], strides = [1, 1]} : vector<8x32xbf16> to vector<8x8xbf16>
    %191 = vector.extract_strided_slice %145 {offsets = [0, 16], sizes = [8, 8], strides = [1, 1]} : vector<8x32xbf16> to vector<8x8xbf16>
    %192 = vector.extract_strided_slice %151 {offsets = [0, 16], sizes = [8, 8], strides = [1, 1]} : vector<8x32xbf16> to vector<8x8xbf16>
    %cst_92 = arith.constant dense<0.000000e+00> : vector<8x8xf32>
    %193 = tpu.matmul %190, %191, %cst_92 {dimension_numbers = #tpu.dot_dimension_numbers<[1], [1], [0], [0], [0, 0, 1, 0], [], []>} : vector<8x8xbf16>, vector<8x8xbf16>, vector<8x8xf32> -> vector<8x8xf32>
    %cst_93 = arith.constant 0.353553385 : f32
    %194 = vector.broadcast %cst_93 : f32 to vector<8x8xf32>
    %195 = arith.mulf %193, %194 : vector<8x8xf32>
    %cst_94 = arith.constant dense<0xFF800000> : vector<8xf32>
    %196 = vector.multi_reduction <maximumf>, %195, %cst_94 [1] : vector<8x8xf32> to vector<8xf32>
    %197 = vector.shape_cast %196 : vector<8xf32> to vector<8x1xf32>
    %198 = vector.broadcast %197 : vector<8x1xf32> to vector<8x8xf32>
    %199 = arith.subf %195, %198 : vector<8x8xf32>
    %200 = math.exp %199 : vector<8x8xf32>
    %cst_95 = arith.constant dense<0.000000e+00> : vector<8xf32>
    %201 = vector.multi_reduction <add>, %200, %cst_95 [1] : vector<8x8xf32> to vector<8xf32>
    %202 = vector.shape_cast %201 : vector<8xf32> to vector<8x1xf32>
    %203 = tpu.reciprocal %202 {approx = true} : vector<8x1xf32> -> vector<8x1xf32>
    %204 = arith.truncf %200 : vector<8x8xf32> to vector<8x8xbf16>
    %cst_96 = arith.constant dense<0.000000e+00> : vector<8x8xf32>
    %205 = tpu.matmul %204, %192, %cst_96 {dimension_numbers = #tpu.dot_dimension_numbers<[1], [0], [0], [1], [0, 0, 1, 1], [], []>} : vector<8x8xbf16>, vector<8x8xbf16>, vector<8x8xf32> -> vector<8x8xf32>
    %206 = vector.broadcast %203 : vector<8x1xf32> to vector<8x8xf32>
    %207 = arith.mulf %205, %206 : vector<8x8xf32>
    %c0_97 = arith.constant 0 : index
    %c16_98 = arith.constant 16 : index
    %208 = vector.load %arg32[%c0_97, %c16_98] : memref<8x32xf32, #tpu.memory_space<vmem>>, vector<8x8xf32>
    tpu.vector_store %arg32[%c0_97, %c16_98], %207 {strides = array<i32>} : memref<8x32xf32, #tpu.memory_space<vmem>>, vector<8x8xf32>,
    %209 = vector.extract_strided_slice %139 {offsets = [0, 24], sizes = [8, 8], strides = [1, 1]} : vector<8x32xbf16> to vector<8x8xbf16>
    %210 = vector.extract_strided_slice %145 {offsets = [0, 24], sizes = [8, 8], strides = [1, 1]} : vector<8x32xbf16> to vector<8x8xbf16>
    %211 = vector.extract_strided_slice %151 {offsets = [0, 24], sizes = [8, 8], strides = [1, 1]} : vector<8x32xbf16> to vector<8x8xbf16>
    %cst_99 = arith.constant dense<0.000000e+00> : vector<8x8xf32>
    %212 = tpu.matmul %209, %210, %cst_99 {dimension_numbers = #tpu.dot_dimension_numbers<[1], [1], [0], [0], [0, 0, 1, 0], [], []>} : vector<8x8xbf16>, vector<8x8xbf16>, vector<8x8xf32> -> vector<8x8xf32>
    %cst_100 = arith.constant 0.353553385 : f32
    %213 = vector.broadcast %cst_100 : f32 to vector<8x8xf32>
    %214 = arith.mulf %212, %213 : vector<8x8xf32>
    %cst_101 = arith.constant dense<0xFF800000> : vector<8xf32>
    %215 = vector.multi_reduction <maximumf>, %214, %cst_101 [1] : vector<8x8xf32> to vector<8xf32>
    %216 = vector.shape_cast %215 : vector<8xf32> to vector<8x1xf32>
    %217 = vector.broadcast %216 : vector<8x1xf32> to vector<8x8xf32>
    %218 = arith.subf %214, %217 : vector<8x8xf32>
    %219 = math.exp %218 : vector<8x8xf32>
    %cst_102 = arith.constant dense<0.000000e+00> : vector<8xf32>
    %220 = vector.multi_reduction <add>, %219, %cst_102 [1] : vector<8x8xf32> to vector<8xf32>
    %221 = vector.shape_cast %220 : vector<8xf32> to vector<8x1xf32>
    %222 = tpu.reciprocal %221 {approx = true} : vector<8x1xf32> -> vector<8x1xf32>
    %223 = arith.truncf %219 : vector<8x8xf32> to vector<8x8xbf16>
    %cst_103 = arith.constant dense<0.000000e+00> : vector<8x8xf32>
    %224 = tpu.matmul %223, %211, %cst_103 {dimension_numbers = #tpu.dot_dimension_numbers<[1], [0], [0], [1], [0, 0, 1, 1], [], []>} : vector<8x8xbf16>, vector<8x8xbf16>, vector<8x8xf32> -> vector<8x8xf32>
    %225 = vector.broadcast %222 : vector<8x1xf32> to vector<8x8xf32>
    %226 = arith.mulf %224, %225 : vector<8x8xf32>
    %c0_104 = arith.constant 0 : index
    %c24_105 = arith.constant 24 : index
    %227 = vector.load %arg32[%c0_104, %c24_105] : memref<8x32xf32, #tpu.memory_space<vmem>>, vector<8x8xf32>
    tpu.vector_store %arg32[%c0_104, %c24_105], %226 {strides = array<i32>} : memref<8x32xf32, #tpu.memory_space<vmem>>, vector<8x8xf32>,
    %c0_106 = arith.constant 0 : index
    %c0_107 = arith.constant 0 : index
    %228 = vector.load %arg32[%c0_106, %c0_107] : memref<8x32xf32, #tpu.memory_space<vmem>>, vector<8x32xf32>
    %229 = arith.truncf %228 : vector<8x32xf32> to vector<8x32xbf16>
    %c0_108 = arith.constant 0 : index
    %c0_109 = arith.constant 0 : index
    %230 = vector.load %arg19[%c0_108, %c0_109] : memref<32x32xbf16, #tpu.memory_space<vmem>>, vector<32x32xbf16>
    %cst_110 = arith.constant dense<0.000000e+00> : vector<8x32xf32>
    %231 = tpu.matmul %229, %230, %cst_110 {dimension_numbers = #tpu.dot_dimension_numbers<[1], [0], [0], [1], [0, 0, 1, 1], [], []>} : vector<8x32xbf16>, vector<32x32xbf16>, vector<8x32xf32> -> vector<8x32xf32>
    %c0_111 = arith.constant 0 : index
    %c0_112 = arith.constant 0 : index
    %232 = vector.load %arg20[%c0_111, %c0_112] : memref<1x32xf32, #tpu.memory_space<vmem>>, vector<1x32xf32>
    %233 = vector.broadcast %232 : vector<1x32xf32> to vector<8x32xf32>
    %234 = arith.addf %231, %233 : vector<8x32xf32>
    %235 = arith.addf %132, %234 : vector<8x32xf32>
    %c0_113 = arith.constant 0 : index
    %c0_114 = arith.constant 0 : index
    %236 = vector.load %arg27[%c0_113, %c0_114] : memref<1x32xf32, #tpu.memory_space<vmem>>, vector<1x32xf32>
    %c0_115 = arith.constant 0 : index
    %c0_116 = arith.constant 0 : index
    %237 = vector.load %arg28[%c0_115, %c0_116] : memref<1x32xf32, #tpu.memory_space<vmem>>, vector<1x32xf32>
    %cst_117 = arith.constant dense<0.000000e+00> : vector<8xf32>
    %238 = vector.multi_reduction <add>, %235, %cst_117 [1] : vector<8x32xf32> to vector<8xf32>
    %239 = vector.shape_cast %238 : vector<8xf32> to vector<8x1xf32>
    %cst_118 = arith.constant 3.200000e+01 : f32
    %240 = vector.broadcast %cst_118 : f32 to vector<8x1xf32>
    %241 = arith.divf %239, %240 : vector<8x1xf32>
    %242 = vector.broadcast %241 : vector<8x1xf32> to vector<8x32xf32>
    %243 = arith.subf %235, %242 : vector<8x32xf32>
    %244 = arith.mulf %243, %243 : vector<8x32xf32>
    %cst_119 = arith.constant dense<0.000000e+00> : vector<8xf32>
    %245 = vector.multi_reduction <add>, %244, %cst_119 [1] : vector<8x32xf32> to vector<8xf32>
    %246 = vector.shape_cast %245 : vector<8xf32> to vector<8x1xf32>
    %cst_120 = arith.constant 3.200000e+01 : f32
    %247 = vector.broadcast %cst_120 : f32 to vector<8x1xf32>
    %248 = arith.divf %246, %247 : vector<8x1xf32>
    %249 = vector.broadcast %241 : vector<8x1xf32> to vector<8x32xf32>
    %250 = arith.subf %235, %249 : vector<8x32xf32>
    %cst_121 = arith.constant 9.99999974E-6 : f32
    %251 = vector.broadcast %cst_121 : f32 to vector<8x1xf32>
    %252 = arith.addf %248, %251 : vector<8x1xf32>
    %253 = math.rsqrt %252 : vector<8x1xf32>
    %254 = vector.broadcast %253 : vector<8x1xf32> to vector<8x32xf32>
    %255 = arith.mulf %250, %254 : vector<8x32xf32>
    %256 = vector.broadcast %236 : vector<1x32xf32> to vector<8x32xf32>
    %257 = arith.mulf %255, %256 : vector<8x32xf32>
    %258 = vector.broadcast %237 : vector<1x32xf32> to vector<8x32xf32>
    %259 = arith.addf %257, %258 : vector<8x32xf32>
    %260 = arith.truncf %259 : vector<8x32xf32> to vector<8x32xbf16>
    %cst_122 = arith.constant 0.000000e+00 : f32
    %261 = vector.broadcast %cst_122 : f32 to vector<8x32xf32>
    %c0_123 = arith.constant 0 : index
    %c0_124 = arith.constant 0 : index
    %262 = vector.load %arg21[%c0_123, %c0_124] : memref<32x64xbf16, #tpu.memory_space<vmem>>, vector<32x64xbf16>
    %cst_125 = arith.constant dense<0.000000e+00> : vector<8x64xf32>
    %263 = tpu.matmul %260, %262, %cst_125 {dimension_numbers = #tpu.dot_dimension_numbers<[1], [0], [0], [1], [0, 0, 1, 1], [], []>} : vector<8x32xbf16>, vector<32x64xbf16>, vector<8x64xf32> -> vector<8x64xf32>
    %c0_126 = arith.constant 0 : index
    %c0_127 = arith.constant 0 : index
    %264 = vector.load %arg22[%c0_126, %c0_127] : memref<1x64xf32, #tpu.memory_space<vmem>>, vector<1x64xf32>
    %265 = vector.broadcast %264 : vector<1x64xf32> to vector<8x64xf32>
    %266 = arith.addf %263, %265 : vector<8x64xf32>
    %cst_128 = arith.constant 0.000000e+00 : f32
    %267 = vector.broadcast %cst_128 : f32 to vector<8x64xf32>
    %268 = arith.maximumf %266, %267 : vector<8x64xf32>
    %269 = arith.truncf %268 : vector<8x64xf32> to vector<8x64xbf16>
    %c0_129 = arith.constant 0 : index
    %c0_130 = arith.constant 0 : index
    %270 = vector.load %arg23[%c0_129, %c0_130] : memref<64x32xbf16, #tpu.memory_space<vmem>>, vector<64x32xbf16>
    %cst_131 = arith.constant dense<0.000000e+00> : vector<8x32xf32>
    %271 = tpu.matmul %269, %270, %cst_131 {dimension_numbers = #tpu.dot_dimension_numbers<[1], [0], [0], [1], [0, 0, 1, 1], [], []>} : vector<8x64xbf16>, vector<64x32xbf16>, vector<8x32xf32> -> vector<8x32xf32>
    %272 = arith.addf %261, %271 : vector<8x32xf32>
    %c0_132 = arith.constant 0 : index
    %c0_133 = arith.constant 0 : index
    %273 = vector.load %arg24[%c0_132, %c0_133] : memref<1x32xf32, #tpu.memory_space<vmem>>, vector<1x32xf32>
    %274 = vector.broadcast %273 : vector<1x32xf32> to vector<8x32xf32>
    %275 = arith.addf %272, %274 : vector<8x32xf32>
    %276 = arith.addf %259, %275 : vector<8x32xf32>
    %c0_134 = arith.constant 0 : index
    %c0_135 = arith.constant 0 : index
    %277 = vector.load %arg29[%c0_134, %c0_135] : memref<1x32xf32, #tpu.memory_space<vmem>>, vector<1x32xf32>
    %c0_136 = arith.constant 0 : index
    %c0_137 = arith.constant 0 : index
    %278 = vector.load %arg30[%c0_136, %c0_137] : memref<1x32xf32, #tpu.memory_space<vmem>>, vector<1x32xf32>
    %cst_138 = arith.constant dense<0.000000e+00> : vector<8xf32>
    %279 = vector.multi_reduction <add>, %276, %cst_138 [1] : vector<8x32xf32> to vector<8xf32>
    %280 = vector.shape_cast %279 : vector<8xf32> to vector<8x1xf32>
    %cst_139 = arith.constant 3.200000e+01 : f32
    %281 = vector.broadcast %cst_139 : f32 to vector<8x1xf32>
    %282 = arith.divf %280, %281 : vector<8x1xf32>
    %283 = vector.broadcast %282 : vector<8x1xf32> to vector<8x32xf32>
    %284 = arith.subf %276, %283 : vector<8x32xf32>
    %285 = arith.mulf %284, %284 : vector<8x32xf32>
    %cst_140 = arith.constant dense<0.000000e+00> : vector<8xf32>
    %286 = vector.multi_reduction <add>, %285, %cst_140 [1] : vector<8x32xf32> to vector<8xf32>
    %287 = vector.shape_cast %286 : vector<8xf32> to vector<8x1xf32>
    %cst_141 = arith.constant 3.200000e+01 : f32
    %288 = vector.broadcast %cst_141 : f32 to vector<8x1xf32>
    %289 = arith.divf %287, %288 : vector<8x1xf32>
    %290 = vector.broadcast %282 : vector<8x1xf32> to vector<8x32xf32>
    %291 = arith.subf %276, %290 : vector<8x32xf32>
    %cst_142 = arith.constant 9.99999974E-6 : f32
    %292 = vector.broadcast %cst_142 : f32 to vector<8x1xf32>
    %293 = arith.addf %289, %292 : vector<8x1xf32>
    %294 = math.rsqrt %293 : vector<8x1xf32>
    %295 = vector.broadcast %294 : vector<8x1xf32> to vector<8x32xf32>
    %296 = arith.mulf %291, %295 : vector<8x32xf32>
    %297 = vector.broadcast %277 : vector<1x32xf32> to vector<8x32xf32>
    %298 = arith.mulf %296, %297 : vector<8x32xf32>
    %299 = vector.broadcast %278 : vector<1x32xf32> to vector<8x32xf32>
    %300 = arith.addf %298, %299 : vector<8x32xf32>
    %c0_143 = arith.constant 0 : index
    %c0_144 = arith.constant 0 : index
    %c0_145 = arith.constant 0 : index
    %301 = vector.load %arg31[%c0_143, %c0_144, %c0_145] : memref<1x8x32xf32, #tpu.memory_space<vmem>>, vector<1x8x32xf32>
    %302 = vector.shape_cast %301 : vector<1x8x32xf32> to vector<8x32xf32>
    %303 = vector.shape_cast %300 : vector<8x32xf32> to vector<1x8x32xf32>
    tpu.vector_store %arg31[%c0_143, %c0_144, %c0_145], %303 {strides = array<i32>} : memref<1x8x32xf32, #tpu.memory_space<vmem>>, vector<1x8x32xf32>,
    return
  }
  func.func @transform_0(%arg0: i32, %arg1: i32) -> (i32, i32, i32) {
    %c0_i32 = arith.constant 0 : i32
    %c0_i32_0 = arith.constant 0 : i32
    return %arg0, %arg1, %c0_i32 : i32, i32, i32
  }
  func.func @transform_1(%arg0: i32, %arg1: i32) -> (i32, i32, i32) {
    %c0_i32 = arith.constant 0 : i32
    %c0_i32_0 = arith.constant 0 : i32
    %c0_i32_1 = arith.constant 0 : i32
    return %arg0, %c0_i32, %c0_i32_0 : i32, i32, i32
  }
  func.func @transform_2(%arg0: i32, %arg1: i32) -> (i32, i32, i32) {
    %c0_i32 = arith.constant 0 : i32
    %c0_i32_0 = arith.constant 0 : i32
    %c0_i32_1 = arith.constant 0 : i32
    return %arg0, %c0_i32, %c0_i32_0 : i32, i32, i32
  }
  func.func @transform_3(%arg0: i32, %arg1: i32) -> (i32, i32) {
    %c0_i32 = arith.constant 0 : i32
    %c0_i32_0 = arith.constant 0 : i32
    %c0_i32_1 = arith.constant 0 : i32
    return %c0_i32, %c0_i32_0 : i32, i32
  }
  func.func @transform_4(%arg0: i32, %arg1: i32) -> (i32, i32) {
    %c0_i32 = arith.constant 0 : i32
    %c0_i32_0 = arith.constant 0 : i32
    %c0_i32_1 = arith.constant 0 : i32
    return %c0_i32, %c0_i32_0 : i32, i32
  }
  func.func @transform_5(%arg0: i32, %arg1: i32) -> (i32, i32) {
    %c0_i32 = arith.constant 0 : i32
    %c0_i32_0 = arith.constant 0 : i32
    %c0_i32_1 = arith.constant 0 : i32
    return %c0_i32, %c0_i32_0 : i32, i32
  }
  func.func @transform_6(%arg0: i32, %arg1: i32) -> (i32, i32) {
    %c0_i32 = arith.constant 0 : i32
    %c0_i32_0 = arith.constant 0 : i32
    %c0_i32_1 = arith.constant 0 : i32
    return %c0_i32, %c0_i32_0 : i32, i32
  }
  func.func @transform_7(%arg0: i32, %arg1: i32) -> (i32, i32) {
    %c0_i32 = arith.constant 0 : i32
    %c0_i32_0 = arith.constant 0 : i32
    %c0_i32_1 = arith.constant 0 : i32
    return %c0_i32, %c0_i32_0 : i32, i32
  }
  func.func @transform_8(%arg0: i32, %arg1: i32) -> (i32, i32) {
    %c0_i32 = arith.constant 0 : i32
    %c0_i32_0 = arith.constant 0 : i32
    %c0_i32_1 = arith.constant 0 : i32
    return %c0_i32, %c0_i32_0 : i32, i32
  }
  func.func @transform_9(%arg0: i32, %arg1: i32) -> (i32, i32) {
    %c0_i32 = arith.constant 0 : i32
    %c0_i32_0 = arith.constant 0 : i32
    %c0_i32_1 = arith.constant 0 : i32
    return %c0_i32, %c0_i32_0 : i32, i32
  }
  func.func @transform_10(%arg0: i32, %arg1: i32) -> (i32, i32) {
    %c0_i32 = arith.constant 0 : i32
    %c0_i32_0 = arith.constant 0 : i32
    %c0_i32_1 = arith.constant 0 : i32
    return %c0_i32, %c0_i32_0 : i32, i32
  }
  func.func @transform_11(%arg0: i32, %arg1: i32) -> (i32, i32) {
    %c0_i32 = arith.constant 0 : i32
    %c0_i32_0 = arith.constant 0 : i32
    %c0_i32_1 = arith.constant 0 : i32
    return %c0_i32, %c0_i32_0 : i32, i32
  }
  func.func @transform_12(%arg0: i32, %arg1: i32) -> (i32, i32) {
    %c0_i32 = arith.constant 0 : i32
    %c0_i32_0 = arith.constant 0 : i32
    %c0_i32_1 = arith.constant 0 : i32
    return %c0_i32, %c0_i32_0 : i32, i32
  }
  func.func @transform_13(%arg0: i32, %arg1: i32) -> (i32, i32) {
    %c0_i32 = arith.constant 0 : i32
    %c0_i32_0 = arith.constant 0 : i32
    %c0_i32_1 = arith.constant 0 : i32
    return %c0_i32, %c0_i32_0 : i32, i32
  }
  func.func @transform_14(%arg0: i32, %arg1: i32) -> (i32, i32) {
    %c0_i32 = arith.constant 0 : i32
    %c0_i32_0 = arith.constant 0 : i32
    %c0_i32_1 = arith.constant 0 : i32
    return %c0_i32, %c0_i32_0 : i32, i32
  }
  func.func @transform_15(%arg0: i32, %arg1: i32) -> (i32, i32) {
    %c0_i32 = arith.constant 0 : i32
    %c0_i32_0 = arith.constant 0 : i32
    %c0_i32_1 = arith.constant 0 : i32
    return %c0_i32, %c0_i32_0 : i32, i32
  }
  func.func @transform_16(%arg0: i32, %arg1: i32) -> (i32, i32) {
    %c0_i32 = arith.constant 0 : i32
    %c0_i32_0 = arith.constant 0 : i32
    %c0_i32_1 = arith.constant 0 : i32
    return %c0_i32, %c0_i32_0 : i32, i32
  }
  func.func @transform_17(%arg0: i32, %arg1: i32) -> (i32, i32) {
    %c0_i32 = arith.constant 0 : i32
    %c0_i32_0 = arith.constant 0 : i32
    %c0_i32_1 = arith.constant 0 : i32
    return %c0_i32, %c0_i32_0 : i32, i32
  }
  func.func @transform_18(%arg0: i32, %arg1: i32) -> (i32, i32) {
    %c0_i32 = arith.constant 0 : i32
    %c0_i32_0 = arith.constant 0 : i32
    %c0_i32_1 = arith.constant 0 : i32
    return %c0_i32, %c0_i32_0 : i32, i32
  }
  func.func @transform_19(%arg0: i32, %arg1: i32) -> (i32, i32) {
    %c0_i32 = arith.constant 0 : i32
    %c0_i32_0 = arith.constant 0 : i32
    %c0_i32_1 = arith.constant 0 : i32
    return %c0_i32, %c0_i32_0 : i32, i32
  }
  func.func @transform_20(%arg0: i32, %arg1: i32) -> (i32, i32) {
    %c0_i32 = arith.constant 0 : i32
    %c0_i32_0 = arith.constant 0 : i32
    %c0_i32_1 = arith.constant 0 : i32
    return %c0_i32, %c0_i32_0 : i32, i32
  }
  func.func @transform_21(%arg0: i32, %arg1: i32) -> (i32, i32) {
    %c0_i32 = arith.constant 0 : i32
    %c0_i32_0 = arith.constant 0 : i32
    %c0_i32_1 = arith.constant 0 : i32
    return %c0_i32, %c0_i32_0 : i32, i32
  }
  func.func @transform_22(%arg0: i32, %arg1: i32) -> (i32, i32) {
    %c0_i32 = arith.constant 0 : i32
    %c0_i32_0 = arith.constant 0 : i32
    %c0_i32_1 = arith.constant 0 : i32
    return %c0_i32, %c0_i32_0 : i32, i32
  }
  func.func @transform_23(%arg0: i32, %arg1: i32) -> (i32, i32) {
    %c0_i32 = arith.constant 0 : i32
    %c0_i32_0 = arith.constant 0 : i32
    %c0_i32_1 = arith.constant 0 : i32
    return %c0_i32, %c0_i32_0 : i32, i32
  }
  func.func @transform_24(%arg0: i32, %arg1: i32) -> (i32, i32) {
    %c0_i32 = arith.constant 0 : i32
    %c0_i32_0 = arith.constant 0 : i32
    %c0_i32_1 = arith.constant 0 : i32
    return %c0_i32, %c0_i32_0 : i32, i32
  }
  func.func @transform_25(%arg0: i32, %arg1: i32) -> (i32, i32) {
    %c0_i32 = arith.constant 0 : i32
    %c0_i32_0 = arith.constant 0 : i32
    %c0_i32_1 = arith.constant 0 : i32
    return %c0_i32, %c0_i32_0 : i32, i32
  }
  func.func @transform_26(%arg0: i32, %arg1: i32) -> (i32, i32) {
    %c0_i32 = arith.constant 0 : i32
    %c0_i32_0 = arith.constant 0 : i32
    %c0_i32_1 = arith.constant 0 : i32
    return %c0_i32, %c0_i32_0 : i32, i32
  }
  func.func @transform_27(%arg0: i32, %arg1: i32) -> (i32, i32) {
    %c0_i32 = arith.constant 0 : i32
    %c0_i32_0 = arith.constant 0 : i32
    %c0_i32_1 = arith.constant 0 : i32
    return %c0_i32, %c0_i32_0 : i32, i32
  }
  func.func @transform_28(%arg0: i32, %arg1: i32) -> (i32, i32) {
    %c0_i32 = arith.constant 0 : i32
    %c0_i32_0 = arith.constant 0 : i32
    %c0_i32_1 = arith.constant 0 : i32
    return %c0_i32, %c0_i32_0 : i32, i32
  }
  func.func @transform_29(%arg0: i32, %arg1: i32) -> (i32, i32, i32) {
    %c0_i32 = arith.constant 0 : i32
    %c0_i32_0 = arith.constant 0 : i32
    return %arg0, %arg1, %c0_i32 : i32, i32, i32
  }
}

module attributes {stable_mosaic.version = 11 : i64} {
  func.func @_decoder_layer_kernel(%arg0: i32, %arg1: i32, %arg2: memref<1x8x32xbf16, #tpu.memory_space<vmem>>, %arg3: memref<1x8x32xbf16, #tpu.memory_space<vmem>>, %arg4: memref<1x8x32xbf16, #tpu.memory_space<vmem>>, %arg5: memref<32x32xbf16, #tpu.memory_space<vmem>>, %arg6: memref<1x32xf32, #tpu.memory_space<vmem>>, %arg7: memref<32x32xbf16, #tpu.memory_space<vmem>>, %arg8: memref<1x32xf32, #tpu.memory_space<vmem>>, %arg9: memref<32x32xbf16, #tpu.memory_space<vmem>>, %arg10: memref<1x32xf32, #tpu.memory_space<vmem>>, %arg11: memref<32x32xbf16, #tpu.memory_space<vmem>>, %arg12: memref<1x32xf32, #tpu.memory_space<vmem>>, %arg13: memref<32x32xbf16, #tpu.memory_space<vmem>>, %arg14: memref<1x32xf32, #tpu.memory_space<vmem>>, %arg15: memref<32x32xbf16, #tpu.memory_space<vmem>>, %arg16: memref<1x32xf32, #tpu.memory_space<vmem>>, %arg17: memref<32x32xbf16, #tpu.memory_space<vmem>>, %arg18: memref<1x32xf32, #tpu.memory_space<vmem>>, %arg19: memref<32x32xbf16, #tpu.memory_space<vmem>>, %arg20: memref<1x32xf32, #tpu.memory_space<vmem>>, %arg21: memref<32x64xbf16, #tpu.memory_space<vmem>>, %arg22: memref<1x64xf32, #tpu.memory_space<vmem>>, %arg23: memref<64x32xbf16, #tpu.memory_space<vmem>>, %arg24: memref<1x32xf32, #tpu.memory_space<vmem>>, %arg25: memref<1x32xf32, #tpu.memory_space<vmem>>, %arg26: memref<1x32xf32, #tpu.memory_space<vmem>>, %arg27: memref<1x32xf32, #tpu.memory_space<vmem>>, %arg28: memref<1x32xf32, #tpu.memory_space<vmem>>, %arg29: memref<1x32xf32, #tpu.memory_space<vmem>>, %arg30: memref<1x32xf32, #tpu.memory_space<vmem>>, %arg31: memref<1x8x32xf32, #tpu.memory_space<vmem>>, %arg32: memref<8x32xf32, #tpu.memory_space<vmem>>) attributes {dimension_semantics = [#tpu.dimension_semantics<parallel>, #tpu.dimension_semantics<parallel>], iteration_bounds = array<i64: 2, 1>, scalar_prefetch = 0 : i64, scratch_operands = 1 : i64, tpu.core_type = #tpu.core_type<tc>, window_params = [{transform_indices = @transform_0, window_bounds = array<i64: 1, 8, 32>}, {transform_indices = @transform_1, window_bounds = array<i64: 1, 8, 32>}, {transform_indices = @transform_2, window_bounds = array<i64: 1, 8, 32>}, {pipeline_mode = #tpu.pipeline_mode<synchronous>, transform_indices = @transform_3, window_bounds = array<i64: 32, 32>}, {pipeline_mode = #tpu.pipeline_mode<synchronous>, transform_indices = @transform_4, window_bounds = array<i64: 1, 32>}, {pipeline_mode = #tpu.pipeline_mode<synchronous>, transform_indices = @transform_5, window_bounds = array<i64: 32, 32>}, {pipeline_mode = #tpu.pipeline_mode<synchronous>, transform_indices = @transform_6, window_bounds = array<i64: 1, 32>}, {pipeline_mode = #tpu.pipeline_mode<synchronous>, transform_indices = @transform_7, window_bounds = array<i64: 32, 32>}, {pipeline_mode = #tpu.pipeline_mode<synchronous>, transform_indices = @transform_8, window_bounds = array<i64: 1, 32>}, {pipeline_mode = #tpu.pipeline_mode<synchronous>, transform_indices = @transform_9, window_bounds = array<i64: 32, 32>}, {pipeline_mode = #tpu.pipeline_mode<synchronous>, transform_indices = @transform_10, window_bounds = array<i64: 1, 32>}, {pipeline_mode = #tpu.pipeline_mode<synchronous>, transform_indices = @transform_11, window_bounds = array<i64: 32, 32>}, {pipeline_mode = #tpu.pipeline_mode<synchronous>, transform_indices = @transform_12, window_bounds = array<i64: 1, 32>}, {pipeline_mode = #tpu.pipeline_mode<synchronous>, transform_indices = @transform_13, window_bounds = array<i64: 32, 32>}, {pipeline_mode = #tpu.pipeline_mode<synchronous>, transform_indices = @transform_14, window_bounds = array<i64: 1, 32>}, {pipeline_mode = #tpu.pipeline_mode<synchronous>, transform_indices = @transform_15, window_bounds = array<i64: 32, 32>}, {pipeline_mode = #tpu.pipeline_mode<synchronous>, transform_indices = @transform_16, window_bounds = array<i64: 1, 32>}, {pipeline_mode = #tpu.pipeline_mode<synchronous>, transform_indices = @transform_17, window_bounds = array<i64: 32, 32>}, {pipeline_mode = #tpu.pipeline_mode<synchronous>, transform_indices = @transform_18, window_bounds = array<i64: 1, 32>}, {pipeline_mode = #tpu.pipeline_mode<synchronous>, transform_indices = @transform_19, window_bounds = array<i64: 32, 64>}, {pipeline_mode = #tpu.pipeline_mode<synchronous>, transform_indices = @transform_20, window_bounds = array<i64: 1, 64>}, {pipeline_mode = #tpu.pipeline_mode<synchronous>, transform_indices = @transform_21, window_bounds = array<i64: 64, 32>}, {pipeline_mode = #tpu.pipeline_mode<synchronous>, transform_indices = @transform_22, window_bounds = array<i64: 1, 32>}, {pipeline_mode = #tpu.pipeline_mode<synchronous>, transform_indices = @transform_23, window_bounds = array<i64: 1, 32>}, {pipeline_mode = #tpu.pipeline_mode<synchronous>, transform_indices = @transform_24, window_bounds = array<i64: 1, 32>}, {pipeline_mode = #tpu.pipeline_mode<synchronous>, transform_indices = @transform_25, window_bounds = array<i64: 1, 32>}, {pipeline_mode = #tpu.pipeline_mode<synchronous>, transform_indices = @transform_26, window_bounds = array<i64: 1, 32>}, {pipeline_mode = #tpu.pipeline_mode<synchronous>, transform_indices = @transform_27, window_bounds = array<i64: 1, 32>}, {pipeline_mode = #tpu.pipeline_mode<synchronous>, transform_indices = @transform_28, window_bounds = array<i64: 1, 32>}, {transform_indices = @transform_29, window_bounds = array<i64: 1, 8, 32>}]} {
    %c0 = arith.constant 0 : index
    %c0_0 = arith.constant 0 : index
    %c0_1 = arith.constant 0 : index
    %0 = vector.load %arg2[%c0, %c0_0, %c0_1] : memref<1x8x32xbf16, #tpu.memory_space<vmem>>, vector<1x8x32xbf16>
    %1 = vector.shape_cast %0 : vector<1x8x32xbf16> to vector<8x32xbf16>
    %c0_2 = arith.constant 0 : index
    %c0_3 = arith.constant 0 : index
    %c0_4 = arith.constant 0 : index
    %2 = vector.load %arg3[%c0_2, %c0_3, %c0_4] : memref<1x8x32xbf16, #tpu.memory_space<vmem>>, vector<1x8x32xbf16>
    %3 = vector.shape_cast %2 : vector<1x8x32xbf16> to vector<8x32xbf16>
    %c0_5 = arith.constant 0 : index
    %c0_6 = arith.constant 0 : index
    %c0_7 = arith.constant 0 : index
    %4 = vector.load %arg4[%c0_5, %c0_6, %c0_7] : memref<1x8x32xbf16, #tpu.memory_space<vmem>>, vector<1x8x32xbf16>
    %5 = vector.shape_cast %4 : vector<1x8x32xbf16> to vector<8x32xbf16>
    %c0_8 = arith.constant 0 : index
    %c0_9 = arith.constant 0 : index
    %6 = vector.load %arg5[%c0_8, %c0_9] : memref<32x32xbf16, #tpu.memory_space<vmem>>, vector<32x32xbf16>
    %cst = arith.constant dense<0.000000e+00> : vector<8x32xf32>
    %7 = tpu.matmul %1, %6, %cst {dimension_numbers = #tpu.dot_dimension_numbers<[1], [0], [0], [1], [0, 0, 1, 1], [], []>} : vector<8x32xbf16>, vector<32x32xbf16>, vector<8x32xf32> -> vector<8x32xf32>
    %c0_10 = arith.constant 0 : index
    %c0_11 = arith.constant 0 : index
    %8 = vector.load %arg6[%c0_10, %c0_11] : memref<1x32xf32, #tpu.memory_space<vmem>>, vector<1x32xf32>
    %9 = vector.broadcast %8 : vector<1x32xf32> to vector<8x32xf32>
    %10 = arith.addf %7, %9 : vector<8x32xf32>
    %11 = arith.truncf %10 : vector<8x32xf32> to vector<8x32xbf16>
    %c0_12 = arith.constant 0 : index
    %c0_13 = arith.constant 0 : index
    %12 = vector.load %arg7[%c0_12, %c0_13] : memref<32x32xbf16, #tpu.memory_space<vmem>>, vector<32x32xbf16>
    %cst_14 = arith.constant dense<0.000000e+00> : vector<8x32xf32>
    %13 = tpu.matmul %3, %12, %cst_14 {dimension_numbers = #tpu.dot_dimension_numbers<[1], [0], [0], [1], [0, 0, 1, 1], [], []>} : vector<8x32xbf16>, vector<32x32xbf16>, vector<8x32xf32> -> vector<8x32xf32>
    %c0_15 = arith.constant 0 : index
    %c0_16 = arith.constant 0 : index
    %14 = vector.load %arg8[%c0_15, %c0_16] : memref<1x32xf32, #tpu.memory_space<vmem>>, vector<1x32xf32>
    %15 = vector.broadcast %14 : vector<1x32xf32> to vector<8x32xf32>
    %16 = arith.addf %13, %15 : vector<8x32xf32>
    %17 = arith.truncf %16 : vector<8x32xf32> to vector<8x32xbf16>
    %c0_17 = arith.constant 0 : index
    %c0_18 = arith.constant 0 : index
    %18 = vector.load %arg9[%c0_17, %c0_18] : memref<32x32xbf16, #tpu.memory_space<vmem>>, vector<32x32xbf16>
    %cst_19 = arith.constant dense<0.000000e+00> : vector<8x32xf32>
    %19 = tpu.matmul %3, %18, %cst_19 {dimension_numbers = #tpu.dot_dimension_numbers<[1], [0], [0], [1], [0, 0, 1, 1], [], []>} : vector<8x32xbf16>, vector<32x32xbf16>, vector<8x32xf32> -> vector<8x32xf32>
    %c0_20 = arith.constant 0 : index
    %c0_21 = arith.constant 0 : index
    %20 = vector.load %arg10[%c0_20, %c0_21] : memref<1x32xf32, #tpu.memory_space<vmem>>, vector<1x32xf32>
    %21 = vector.broadcast %20 : vector<1x32xf32> to vector<8x32xf32>
    %22 = arith.addf %19, %21 : vector<8x32xf32>
    %23 = arith.truncf %22 : vector<8x32xf32> to vector<8x32xbf16>
    %24 = vector.extract_strided_slice %11 {offsets = [0, 0], sizes = [8, 8], strides = [1, 1]} : vector<8x32xbf16> to vector<8x8xbf16>
    %25 = vector.extract_strided_slice %17 {offsets = [0, 0], sizes = [8, 8], strides = [1, 1]} : vector<8x32xbf16> to vector<8x8xbf16>
    %26 = vector.extract_strided_slice %23 {offsets = [0, 0], sizes = [8, 8], strides = [1, 1]} : vector<8x32xbf16> to vector<8x8xbf16>
    %cst_22 = arith.constant dense<0.000000e+00> : vector<8x8xf32>
    %27 = tpu.matmul %24, %25, %cst_22 {dimension_numbers = #tpu.dot_dimension_numbers<[1], [1], [0], [0], [0, 0, 1, 0], [], []>} : vector<8x8xbf16>, vector<8x8xbf16>, vector<8x8xf32> -> vector<8x8xf32>
    %cst_23 = arith.constant 0.353553385 : f32
    %28 = vector.broadcast %cst_23 : f32 to vector<8x8xf32>
    %29 = arith.mulf %27, %28 : vector<8x8xf32>
    %cst_24 = arith.constant dense<0xFF800000> : vector<8xf32>
    %30 = vector.multi_reduction <maximumf>, %29, %cst_24 [1] : vector<8x8xf32> to vector<8xf32>
    %31 = vector.shape_cast %30 : vector<8xf32> to vector<8x1xf32>
    %32 = vector.broadcast %31 : vector<8x1xf32> to vector<8x8xf32>
    %33 = arith.subf %29, %32 : vector<8x8xf32>
    %34 = math.exp %33 : vector<8x8xf32>
    %cst_25 = arith.constant dense<0.000000e+00> : vector<8xf32>
    %35 = vector.multi_reduction <add>, %34, %cst_25 [1] : vector<8x8xf32> to vector<8xf32>
    %36 = vector.shape_cast %35 : vector<8xf32> to vector<8x1xf32>
    %37 = tpu.reciprocal %36 {approx = true} : vector<8x1xf32> -> vector<8x1xf32>
    %38 = arith.truncf %34 : vector<8x8xf32> to vector<8x8xbf16>
    %cst_26 = arith.constant dense<0.000000e+00> : vector<8x8xf32>
    %39 = tpu.matmul %38, %26, %cst_26 {dimension_numbers = #tpu.dot_dimension_numbers<[1], [0], [0], [1], [0, 0, 1, 1], [], []>} : vector<8x8xbf16>, vector<8x8xbf16>, vector<8x8xf32> -> vector<8x8xf32>
    %40 = vector.broadcast %37 : vector<8x1xf32> to vector<8x8xf32>
    %41 = arith.mulf %39, %40 : vector<8x8xf32>
    %c0_27 = arith.constant 0 : index
    %c0_28 = arith.constant 0 : index
    %42 = vector.load %arg32[%c0_27, %c0_28] : memref<8x32xf32, #tpu.memory_space<vmem>>, vector<8x8xf32>
    tpu.vector_store %arg32[%c0_27, %c0_28], %41 {strides = array<i32>} : memref<8x32xf32, #tpu.memory_space<vmem>>, vector<8x8xf32>,
    %43 = vector.extract_strided_slice %11 {offsets = [0, 8], sizes = [8, 8], strides = [1, 1]} : vector<8x32xbf16> to vector<8x8xbf16>
    %44 = vector.extract_strided_slice %17 {offsets = [0, 8], sizes = [8, 8], strides = [1, 1]} : vector<8x32xbf16> to vector<8x8xbf16>
    %45 = vector.extract_strided_slice %23 {offsets = [0, 8], sizes = [8, 8], strides = [1, 1]} : vector<8x32xbf16> to vector<8x8xbf16>
    %cst_29 = arith.constant dense<0.000000e+00> : vector<8x8xf32>
    %46 = tpu.matmul %43, %44, %cst_29 {dimension_numbers = #tpu.dot_dimension_numbers<[1], [1], [0], [0], [0, 0, 1, 0], [], []>} : vector<8x8xbf16>, vector<8x8xbf16>, vector<8x8xf32> -> vector<8x8xf32>
    %cst_30 = arith.constant 0.353553385 : f32
    %47 = vector.broadcast %cst_30 : f32 to vector<8x8xf32>
    %48 = arith.mulf %46, %47 : vector<8x8xf32>
    %cst_31 = arith.constant dense<0xFF800000> : vector<8xf32>
    %49 = vector.multi_reduction <maximumf>, %48, %cst_31 [1] : vector<8x8xf32> to vector<8xf32>
    %50 = vector.shape_cast %49 : vector<8xf32> to vector<8x1xf32>
    %51 = vector.broadcast %50 : vector<8x1xf32> to vector<8x8xf32>
    %52 = arith.subf %48, %51 : vector<8x8xf32>
    %53 = math.exp %52 : vector<8x8xf32>
    %cst_32 = arith.constant dense<0.000000e+00> : vector<8xf32>
    %54 = vector.multi_reduction <add>, %53, %cst_32 [1] : vector<8x8xf32> to vector<8xf32>
    %55 = vector.shape_cast %54 : vector<8xf32> to vector<8x1xf32>
    %56 = tpu.reciprocal %55 {approx = true} : vector<8x1xf32> -> vector<8x1xf32>
    %57 = arith.truncf %53 : vector<8x8xf32> to vector<8x8xbf16>
    %cst_33 = arith.constant dense<0.000000e+00> : vector<8x8xf32>
    %58 = tpu.matmul %57, %45, %cst_33 {dimension_numbers = #tpu.dot_dimension_numbers<[1], [0], [0], [1], [0, 0, 1, 1], [], []>} : vector<8x8xbf16>, vector<8x8xbf16>, vector<8x8xf32> -> vector<8x8xf32>
    %59 = vector.broadcast %56 : vector<8x1xf32> to vector<8x8xf32>
    %60 = arith.mulf %58, %59 : vector<8x8xf32>
    %c0_34 = arith.constant 0 : index
    %c8 = arith.constant 8 : index
    %61 = vector.load %arg32[%c0_34, %c8] : memref<8x32xf32, #tpu.memory_space<vmem>>, vector<8x8xf32>
    tpu.vector_store %arg32[%c0_34, %c8], %60 {strides = array<i32>} : memref<8x32xf32, #tpu.memory_space<vmem>>, vector<8x8xf32>,
    %62 = vector.extract_strided_slice %11 {offsets = [0, 16], sizes = [8, 8], strides = [1, 1]} : vector<8x32xbf16> to vector<8x8xbf16>
    %63 = vector.extract_strided_slice %17 {offsets = [0, 16], sizes = [8, 8], strides = [1, 1]} : vector<8x32xbf16> to vector<8x8xbf16>
    %64 = vector.extract_strided_slice %23 {offsets = [0, 16], sizes = [8, 8], strides = [1, 1]} : vector<8x32xbf16> to vector<8x8xbf16>
    %cst_35 = arith.constant dense<0.000000e+00> : vector<8x8xf32>
    %65 = tpu.matmul %62, %63, %cst_35 {dimension_numbers = #tpu.dot_dimension_numbers<[1], [1], [0], [0], [0, 0, 1, 0], [], []>} : vector<8x8xbf16>, vector<8x8xbf16>, vector<8x8xf32> -> vector<8x8xf32>
    %cst_36 = arith.constant 0.353553385 : f32
    %66 = vector.broadcast %cst_36 : f32 to vector<8x8xf32>
    %67 = arith.mulf %65, %66 : vector<8x8xf32>
    %cst_37 = arith.constant dense<0xFF800000> : vector<8xf32>
    %68 = vector.multi_reduction <maximumf>, %67, %cst_37 [1] : vector<8x8xf32> to vector<8xf32>
    %69 = vector.shape_cast %68 : vector<8xf32> to vector<8x1xf32>
    %70 = vector.broadcast %69 : vector<8x1xf32> to vector<8x8xf32>
    %71 = arith.subf %67, %70 : vector<8x8xf32>
    %72 = math.exp %71 : vector<8x8xf32>
    %cst_38 = arith.constant dense<0.000000e+00> : vector<8xf32>
    %73 = vector.multi_reduction <add>, %72, %cst_38 [1] : vector<8x8xf32> to vector<8xf32>
    %74 = vector.shape_cast %73 : vector<8xf32> to vector<8x1xf32>
    %75 = tpu.reciprocal %74 {approx = true} : vector<8x1xf32> -> vector<8x1xf32>
    %76 = arith.truncf %72 : vector<8x8xf32> to vector<8x8xbf16>
    %cst_39 = arith.constant dense<0.000000e+00> : vector<8x8xf32>
    %77 = tpu.matmul %76, %64, %cst_39 {dimension_numbers = #tpu.dot_dimension_numbers<[1], [0], [0], [1], [0, 0, 1, 1], [], []>} : vector<8x8xbf16>, vector<8x8xbf16>, vector<8x8xf32> -> vector<8x8xf32>
    %78 = vector.broadcast %75 : vector<8x1xf32> to vector<8x8xf32>
    %79 = arith.mulf %77, %78 : vector<8x8xf32>
    %c0_40 = arith.constant 0 : index
    %c16 = arith.constant 16 : index
    %80 = vector.load %arg32[%c0_40, %c16] : memref<8x32xf32, #tpu.memory_space<vmem>>, vector<8x8xf32>
    tpu.vector_store %arg32[%c0_40, %c16], %79 {strides = array<i32>} : memref<8x32xf32, #tpu.memory_space<vmem>>, vector<8x8xf32>,
    %81 = vector.extract_strided_slice %11 {offsets = [0, 24], sizes = [8, 8], strides = [1, 1]} : vector<8x32xbf16> to vector<8x8xbf16>
    %82 = vector.extract_strided_slice %17 {offsets = [0, 24], sizes = [8, 8], strides = [1, 1]} : vector<8x32xbf16> to vector<8x8xbf16>
    %83 = vector.extract_strided_slice %23 {offsets = [0, 24], sizes = [8, 8], strides = [1, 1]} : vector<8x32xbf16> to vector<8x8xbf16>
    %cst_41 = arith.constant dense<0.000000e+00> : vector<8x8xf32>
    %84 = tpu.matmul %81, %82, %cst_41 {dimension_numbers = #tpu.dot_dimension_numbers<[1], [1], [0], [0], [0, 0, 1, 0], [], []>} : vector<8x8xbf16>, vector<8x8xbf16>, vector<8x8xf32> -> vector<8x8xf32>
    %cst_42 = arith.constant 0.353553385 : f32
    %85 = vector.broadcast %cst_42 : f32 to vector<8x8xf32>
    %86 = arith.mulf %84, %85 : vector<8x8xf32>
    %cst_43 = arith.constant dense<0xFF800000> : vector<8xf32>
    %87 = vector.multi_reduction <maximumf>, %86, %cst_43 [1] : vector<8x8xf32> to vector<8xf32>
    %88 = vector.shape_cast %87 : vector<8xf32> to vector<8x1xf32>
    %89 = vector.broadcast %88 : vector<8x1xf32> to vector<8x8xf32>
    %90 = arith.subf %86, %89 : vector<8x8xf32>
    %91 = math.exp %90 : vector<8x8xf32>
    %cst_44 = arith.constant dense<0.000000e+00> : vector<8xf32>
    %92 = vector.multi_reduction <add>, %91, %cst_44 [1] : vector<8x8xf32> to vector<8xf32>
    %93 = vector.shape_cast %92 : vector<8xf32> to vector<8x1xf32>
    %94 = tpu.reciprocal %93 {approx = true} : vector<8x1xf32> -> vector<8x1xf32>
    %95 = arith.truncf %91 : vector<8x8xf32> to vector<8x8xbf16>
    %cst_45 = arith.constant dense<0.000000e+00> : vector<8x8xf32>
    %96 = tpu.matmul %95, %83, %cst_45 {dimension_numbers = #tpu.dot_dimension_numbers<[1], [0], [0], [1], [0, 0, 1, 1], [], []>} : vector<8x8xbf16>, vector<8x8xbf16>, vector<8x8xf32> -> vector<8x8xf32>
    %97 = vector.broadcast %94 : vector<8x1xf32> to vector<8x8xf32>
    %98 = arith.mulf %96, %97 : vector<8x8xf32>
    %c0_46 = arith.constant 0 : index
    %c24 = arith.constant 24 : index
    %99 = vector.load %arg32[%c0_46, %c24] : memref<8x32xf32, #tpu.memory_space<vmem>>, vector<8x8xf32>
    tpu.vector_store %arg32[%c0_46, %c24], %98 {strides = array<i32>} : memref<8x32xf32, #tpu.memory_space<vmem>>, vector<8x8xf32>,
    %c0_47 = arith.constant 0 : index
    %c0_48 = arith.constant 0 : index
    %100 = vector.load %arg32[%c0_47, %c0_48] : memref<8x32xf32, #tpu.memory_space<vmem>>, vector<8x32xf32>
    %101 = arith.truncf %100 : vector<8x32xf32> to vector<8x32xbf16>
    %c0_49 = arith.constant 0 : index
    %c0_50 = arith.constant 0 : index
    %102 = vector.load %arg11[%c0_49, %c0_50] : memref<32x32xbf16, #tpu.memory_space<vmem>>, vector<32x32xbf16>
    %cst_51 = arith.constant dense<0.000000e+00> : vector<8x32xf32>
    %103 = tpu.matmul %101, %102, %cst_51 {dimension_numbers = #tpu.dot_dimension_numbers<[1], [0], [0], [1], [0, 0, 1, 1], [], []>} : vector<8x32xbf16>, vector<32x32xbf16>, vector<8x32xf32> -> vector<8x32xf32>
    %c0_52 = arith.constant 0 : index
    %c0_53 = arith.constant 0 : index
    %104 = vector.load %arg12[%c0_52, %c0_53] : memref<1x32xf32, #tpu.memory_space<vmem>>, vector<1x32xf32>
    %105 = vector.broadcast %104 : vector<1x32xf32> to vector<8x32xf32>
    %106 = arith.addf %103, %105 : vector<8x32xf32>
    %107 = arith.extf %1 : vector<8x32xbf16> to vector<8x32xf32>
    %108 = arith.addf %107, %106 : vector<8x32xf32>
    %c0_54 = arith.constant 0 : index
    %c0_55 = arith.constant 0 : index
    %109 = vector.load %arg25[%c0_54, %c0_55] : memref<1x32xf32, #tpu.memory_space<vmem>>, vector<1x32xf32>
    %c0_56 = arith.constant 0 : index
    %c0_57 = arith.constant 0 : index
    %110 = vector.load %arg26[%c0_56, %c0_57] : memref<1x32xf32, #tpu.memory_space<vmem>>, vector<1x32xf32>
    %cst_58 = arith.constant dense<0.000000e+00> : vector<8xf32>
    %111 = vector.multi_reduction <add>, %108, %cst_58 [1] : vector<8x32xf32> to vector<8xf32>
    %112 = vector.shape_cast %111 : vector<8xf32> to vector<8x1xf32>
    %cst_59 = arith.constant 3.200000e+01 : f32
    %113 = vector.broadcast %cst_59 : f32 to vector<8x1xf32>
    %114 = arith.divf %112, %113 : vector<8x1xf32>
    %115 = vector.broadcast %114 : vector<8x1xf32> to vector<8x32xf32>
    %116 = arith.subf %108, %115 : vector<8x32xf32>
    %117 = arith.mulf %116, %116 : vector<8x32xf32>
    %cst_60 = arith.constant dense<0.000000e+00> : vector<8xf32>
    %118 = vector.multi_reduction <add>, %117, %cst_60 [1] : vector<8x32xf32> to vector<8xf32>
    %119 = vector.shape_cast %118 : vector<8xf32> to vector<8x1xf32>
    %cst_61 = arith.constant 3.200000e+01 : f32
    %120 = vector.broadcast %cst_61 : f32 to vector<8x1xf32>
    %121 = arith.divf %119, %120 : vector<8x1xf32>
    %122 = vector.broadcast %114 : vector<8x1xf32> to vector<8x32xf32>
    %123 = arith.subf %108, %122 : vector<8x32xf32>
    %cst_62 = arith.constant 9.99999974E-6 : f32
    %124 = vector.broadcast %cst_62 : f32 to vector<8x1xf32>
    %125 = arith.addf %121, %124 : vector<8x1xf32>
    %126 = math.rsqrt %125 : vector<8x1xf32>
    %127 = vector.broadcast %126 : vector<8x1xf32> to vector<8x32xf32>
    %128 = arith.mulf %123, %127 : vector<8x32xf32>
    %129 = vector.broadcast %109 : vector<1x32xf32> to vector<8x32xf32>
    %130 = arith.mulf %128, %129 : vector<8x32xf32>
    %131 = vector.broadcast %110 : vector<1x32xf32> to vector<8x32xf32>
    %132 = arith.addf %130, %131 : vector<8x32xf32>
    %133 = arith.truncf %132 : vector<8x32xf32> to vector<8x32xbf16>
    %c0_63 = arith.constant 0 : index
    %c0_64 = arith.constant 0 : index
    %134 = vector.load %arg13[%c0_63, %c0_64] : memref<32x32xbf16, #tpu.memory_space<vmem>>, vector<32x32xbf16>
    %cst_65 = arith.constant dense<0.000000e+00> : vector<8x32xf32>
    %135 = tpu.matmul %133, %134, %cst_65 {dimension_numbers = #tpu.dot_dimension_numbers<[1], [0], [0], [1], [0, 0, 1, 1], [], []>} : vector<8x32xbf16>, vector<32x32xbf16>, vector<8x32xf32> -> vector<8x32xf32>
    %c0_66 = arith.constant 0 : index
    %c0_67 = arith.constant 0 : index
    %136 = vector.load %arg14[%c0_66, %c0_67] : memref<1x32xf32, #tpu.memory_space<vmem>>, vector<1x32xf32>
    %137 = vector.broadcast %136 : vector<1x32xf32> to vector<8x32xf32>
    %138 = arith.addf %135, %137 : vector<8x32xf32>
    %139 = arith.truncf %138 : vector<8x32xf32> to vector<8x32xbf16>
    %c0_68 = arith.constant 0 : index
    %c0_69 = arith.constant 0 : index
    %140 = vector.load %arg15[%c0_68, %c0_69] : memref<32x32xbf16, #tpu.memory_space<vmem>>, vector<32x32xbf16>
    %cst_70 = arith.constant dense<0.000000e+00> : vector<8x32xf32>
    %141 = tpu.matmul %5, %140, %cst_70 {dimension_numbers = #tpu.dot_dimension_numbers<[1], [0], [0], [1], [0, 0, 1, 1], [], []>} : vector<8x32xbf16>, vector<32x32xbf16>, vector<8x32xf32> -> vector<8x32xf32>
    %c0_71 = arith.constant 0 : index
    %c0_72 = arith.constant 0 : index
    %142 = vector.load %arg16[%c0_71, %c0_72] : memref<1x32xf32, #tpu.memory_space<vmem>>, vector<1x32xf32>
    %143 = vector.broadcast %142 : vector<1x32xf32> to vector<8x32xf32>
    %144 = arith.addf %141, %143 : vector<8x32xf32>
    %145 = arith.truncf %144 : vector<8x32xf32> to vector<8x32xbf16>
    %c0_73 = arith.constant 0 : index
    %c0_74 = arith.constant 0 : index
    %146 = vector.load %arg17[%c0_73, %c0_74] : memref<32x32xbf16, #tpu.memory_space<vmem>>, vector<32x32xbf16>
    %cst_75 = arith.constant dense<0.000000e+00> : vector<8x32xf32>
    %147 = tpu.matmul %5, %146, %cst_75 {dimension_numbers = #tpu.dot_dimension_numbers<[1], [0], [0], [1], [0, 0, 1, 1], [], []>} : vector<8x32xbf16>, vector<32x32xbf16>, vector<8x32xf32> -> vector<8x32xf32>
    %c0_76 = arith.constant 0 : index
    %c0_77 = arith.constant 0 : index
    %148 = vector.load %arg18[%c0_76, %c0_77] : memref<1x32xf32, #tpu.memory_space<vmem>>, vector<1x32xf32>
    %149 = vector.broadcast %148 : vector<1x32xf32> to vector<8x32xf32>
    %150 = arith.addf %147, %149 : vector<8x32xf32>
    %151 = arith.truncf %150 : vector<8x32xf32> to vector<8x32xbf16>
    %152 = vector.extract_strided_slice %139 {offsets = [0, 0], sizes = [8, 8], strides = [1, 1]} : vector<8x32xbf16> to vector<8x8xbf16>
    %153 = vector.extract_strided_slice %145 {offsets = [0, 0], sizes = [8, 8], strides = [1, 1]} : vector<8x32xbf16> to vector<8x8xbf16>
    %154 = vector.extract_strided_slice %151 {offsets = [0, 0], sizes = [8, 8], strides = [1, 1]} : vector<8x32xbf16> to vector<8x8xbf16>
    %cst_78 = arith.constant dense<0.000000e+00> : vector<8x8xf32>
    %155 = tpu.matmul %152, %153, %cst_78 {dimension_numbers = #tpu.dot_dimension_numbers<[1], [1], [0], [0], [0, 0, 1, 0], [], []>} : vector<8x8xbf16>, vector<8x8xbf16>, vector<8x8xf32> -> vector<8x8xf32>
    %cst_79 = arith.constant 0.353553385 : f32
    %156 = vector.broadcast %cst_79 : f32 to vector<8x8xf32>
    %157 = arith.mulf %155, %156 : vector<8x8xf32>
    %cst_80 = arith.constant dense<0xFF800000> : vector<8xf32>
    %158 = vector.multi_reduction <maximumf>, %157, %cst_80 [1] : vector<8x8xf32> to vector<8xf32>
    %159 = vector.shape_cast %158 : vector<8xf32> to vector<8x1xf32>
    %160 = vector.broadcast %159 : vector<8x1xf32> to vector<8x8xf32>
    %161 = arith.subf %157, %160 : vector<8x8xf32>
    %162 = math.exp %161 : vector<8x8xf32>
    %cst_81 = arith.constant dense<0.000000e+00> : vector<8xf32>
    %163 = vector.multi_reduction <add>, %162, %cst_81 [1] : vector<8x8xf32> to vector<8xf32>
    %164 = vector.shape_cast %163 : vector<8xf32> to vector<8x1xf32>
    %165 = tpu.reciprocal %164 {approx = true} : vector<8x1xf32> -> vector<8x1xf32>
    %166 = arith.truncf %162 : vector<8x8xf32> to vector<8x8xbf16>
    %cst_82 = arith.constant dense<0.000000e+00> : vector<8x8xf32>
    %167 = tpu.matmul %166, %154, %cst_82 {dimension_numbers = #tpu.dot_dimension_numbers<[1], [0], [0], [1], [0, 0, 1, 1], [], []>} : vector<8x8xbf16>, vector<8x8xbf16>, vector<8x8xf32> -> vector<8x8xf32>
    %168 = vector.broadcast %165 : vector<8x1xf32> to vector<8x8xf32>
    %169 = arith.mulf %167, %168 : vector<8x8xf32>
    %c0_83 = arith.constant 0 : index
    %c0_84 = arith.constant 0 : index
    %170 = vector.load %arg32[%c0_83, %c0_84] : memref<8x32xf32, #tpu.memory_space<vmem>>, vector<8x8xf32>
    tpu.vector_store %arg32[%c0_83, %c0_84], %169 {strides = array<i32>} : memref<8x32xf32, #tpu.memory_space<vmem>>, vector<8x8xf32>,
    %171 = vector.extract_strided_slice %139 {offsets = [0, 8], sizes = [8, 8], strides = [1, 1]} : vector<8x32xbf16> to vector<8x8xbf16>
    %172 = vector.extract_strided_slice %145 {offsets = [0, 8], sizes = [8, 8], strides = [1, 1]} : vector<8x32xbf16> to vector<8x8xbf16>
    %173 = vector.extract_strided_slice %151 {offsets = [0, 8], sizes = [8, 8], strides = [1, 1]} : vector<8x32xbf16> to vector<8x8xbf16>
    %cst_85 = arith.constant dense<0.000000e+00> : vector<8x8xf32>
    %174 = tpu.matmul %171, %172, %cst_85 {dimension_numbers = #tpu.dot_dimension_numbers<[1], [1], [0], [0], [0, 0, 1, 0], [], []>} : vector<8x8xbf16>, vector<8x8xbf16>, vector<8x8xf32> -> vector<8x8xf32>
    %cst_86 = arith.constant 0.353553385 : f32
    %175 = vector.broadcast %cst_86 : f32 to vector<8x8xf32>
    %176 = arith.mulf %174, %175 : vector<8x8xf32>
    %cst_87 = arith.constant dense<0xFF800000> : vector<8xf32>
    %177 = vector.multi_reduction <maximumf>, %176, %cst_87 [1] : vector<8x8xf32> to vector<8xf32>
    %178 = vector.shape_cast %177 : vector<8xf32> to vector<8x1xf32>
    %179 = vector.broadcast %178 : vector<8x1xf32> to vector<8x8xf32>
    %180 = arith.subf %176, %179 : vector<8x8xf32>
    %181 = math.exp %180 : vector<8x8xf32>
    %cst_88 = arith.constant dense<0.000000e+00> : vector<8xf32>
    %182 = vector.multi_reduction <add>, %181, %cst_88 [1] : vector<8x8xf32> to vector<8xf32>
    %183 = vector.shape_cast %182 : vector<8xf32> to vector<8x1xf32>
    %184 = tpu.reciprocal %183 {approx = true} : vector<8x1xf32> -> vector<8x1xf32>
    %185 = arith.truncf %181 : vector<8x8xf32> to vector<8x8xbf16>
    %cst_89 = arith.constant dense<0.000000e+00> : vector<8x8xf32>
    %186 = tpu.matmul %185, %173, %cst_89 {dimension_numbers = #tpu.dot_dimension_numbers<[1], [0], [0], [1], [0, 0, 1, 1], [], []>} : vector<8x8xbf16>, vector<8x8xbf16>, vector<8x8xf32> -> vector<8x8xf32>
    %187 = vector.broadcast %184 : vector<8x1xf32> to vector<8x8xf32>
    %188 = arith.mulf %186, %187 : vector<8x8xf32>
    %c0_90 = arith.constant 0 : index
    %c8_91 = arith.constant 8 : index
    %189 = vector.load %arg32[%c0_90, %c8_91] : memref<8x32xf32, #tpu.memory_space<vmem>>, vector<8x8xf32>
    tpu.vector_store %arg32[%c0_90, %c8_91], %188 {strides = array<i32>} : memref<8x32xf32, #tpu.memory_space<vmem>>, vector<8x8xf32>,
    %190 = vector.extract_strided_slice %139 {offsets = [0, 16], sizes = [8, 8], strides = [1, 1]} : vector<8x32xbf16> to vector<8x8xbf16>
    %191 = vector.extract_strided_slice %145 {offsets = [0, 16], sizes = [8, 8], strides = [1, 1]} : vector<8x32xbf16> to vector<8x8xbf16>
    %192 = vector.extract_strided_slice %151 {offsets = [0, 16], sizes = [8, 8], strides = [1, 1]} : vector<8x32xbf16> to vector<8x8xbf16>
    %cst_92 = arith.constant dense<0.000000e+00> : vector<8x8xf32>
    %193 = tpu.matmul %190, %191, %cst_92 {dimension_numbers = #tpu.dot_dimension_numbers<[1], [1], [0], [0], [0, 0, 1, 0], [], []>} : vector<8x8xbf16>, vector<8x8xbf16>, vector<8x8xf32> -> vector<8x8xf32>
    %cst_93 = arith.constant 0.353553385 : f32
    %194 = vector.broadcast %cst_93 : f32 to vector<8x8xf32>
    %195 = arith.mulf %193, %194 : vector<8x8xf32>
    %cst_94 = arith.constant dense<0xFF800000> : vector<8xf32>
    %196 = vector.multi_reduction <maximumf>, %195, %cst_94 [1] : vector<8x8xf32> to vector<8xf32>
    %197 = vector.shape_cast %196 : vector<8xf32> to vector<8x1xf32>
    %198 = vector.broadcast %197 : vector<8x1xf32> to vector<8x8xf32>
    %199 = arith.subf %195, %198 : vector<8x8xf32>
    %200 = math.exp %199 : vector<8x8xf32>
    %cst_95 = arith.constant dense<0.000000e+00> : vector<8xf32>
    %201 = vector.multi_reduction <add>, %200, %cst_95 [1] : vector<8x8xf32> to vector<8xf32>
    %202 = vector.shape_cast %201 : vector<8xf32> to vector<8x1xf32>
    %203 = tpu.reciprocal %202 {approx = true} : vector<8x1xf32> -> vector<8x1xf32>
    %204 = arith.truncf %200 : vector<8x8xf32> to vector<8x8xbf16>
    %cst_96 = arith.constant dense<0.000000e+00> : vector<8x8xf32>
    %205 = tpu.matmul %204, %192, %cst_96 {dimension_numbers = #tpu.dot_dimension_numbers<[1], [0], [0], [1], [0, 0, 1, 1], [], []>} : vector<8x8xbf16>, vector<8x8xbf16>, vector<8x8xf32> -> vector<8x8xf32>
    %206 = vector.broadcast %203 : vector<8x1xf32> to vector<8x8xf32>
    %207 = arith.mulf %205, %206 : vector<8x8xf32>
    %c0_97 = arith.constant 0 : index
    %c16_98 = arith.constant 16 : index
    %208 = vector.load %arg32[%c0_97, %c16_98] : memref<8x32xf32, #tpu.memory_space<vmem>>, vector<8x8xf32>
    tpu.vector_store %arg32[%c0_97, %c16_98], %207 {strides = array<i32>} : memref<8x32xf32, #tpu.memory_space<vmem>>, vector<8x8xf32>,
    %209 = vector.extract_strided_slice %139 {offsets = [0, 24], sizes = [8, 8], strides = [1, 1]} : vector<8x32xbf16> to vector<8x8xbf16>
    %210 = vector.extract_strided_slice %145 {offsets = [0, 24], sizes = [8, 8], strides = [1, 1]} : vector<8x32xbf16> to vector<8x8xbf16>
    %211 = vector.extract_strided_slice %151 {offsets = [0, 24], sizes = [8, 8], strides = [1, 1]} : vector<8x32xbf16> to vector<8x8xbf16>
    %cst_99 = arith.constant dense<0.000000e+00> : vector<8x8xf32>
    %212 = tpu.matmul %209, %210, %cst_99 {dimension_numbers = #tpu.dot_dimension_numbers<[1], [1], [0], [0], [0, 0, 1, 0], [], []>} : vector<8x8xbf16>, vector<8x8xbf16>, vector<8x8xf32> -> vector<8x8xf32>
    %cst_100 = arith.constant 0.353553385 : f32
    %213 = vector.broadcast %cst_100 : f32 to vector<8x8xf32>
    %214 = arith.mulf %212, %213 : vector<8x8xf32>
    %cst_101 = arith.constant dense<0xFF800000> : vector<8xf32>
    %215 = vector.multi_reduction <maximumf>, %214, %cst_101 [1] : vector<8x8xf32> to vector<8xf32>
    %216 = vector.shape_cast %215 : vector<8xf32> to vector<8x1xf32>
    %217 = vector.broadcast %216 : vector<8x1xf32> to vector<8x8xf32>
    %218 = arith.subf %214, %217 : vector<8x8xf32>
    %219 = math.exp %218 : vector<8x8xf32>
    %cst_102 = arith.constant dense<0.000000e+00> : vector<8xf32>
    %220 = vector.multi_reduction <add>, %219, %cst_102 [1] : vector<8x8xf32> to vector<8xf32>
    %221 = vector.shape_cast %220 : vector<8xf32> to vector<8x1xf32>
    %222 = tpu.reciprocal %221 {approx = true} : vector<8x1xf32> -> vector<8x1xf32>
    %223 = arith.truncf %219 : vector<8x8xf32> to vector<8x8xbf16>
    %cst_103 = arith.constant dense<0.000000e+00> : vector<8x8xf32>
    %224 = tpu.matmul %223, %211, %cst_103 {dimension_numbers = #tpu.dot_dimension_numbers<[1], [0], [0], [1], [0, 0, 1, 1], [], []>} : vector<8x8xbf16>, vector<8x8xbf16>, vector<8x8xf32> -> vector<8x8xf32>
    %225 = vector.broadcast %222 : vector<8x1xf32> to vector<8x8xf32>
    %226 = arith.mulf %224, %225 : vector<8x8xf32>
    %c0_104 = arith.constant 0 : index
    %c24_105 = arith.constant 24 : index
    %227 = vector.load %arg32[%c0_104, %c24_105] : memref<8x32xf32, #tpu.memory_space<vmem>>, vector<8x8xf32>
    tpu.vector_store %arg32[%c0_104, %c24_105], %226 {strides = array<i32>} : memref<8x32xf32, #tpu.memory_space<vmem>>, vector<8x8xf32>,
    %c0_106 = arith.constant 0 : index
    %c0_107 = arith.constant 0 : index
    %228 = vector.load %arg32[%c0_106, %c0_107] : memref<8x32xf32, #tpu.memory_space<vmem>>, vector<8x32xf32>
    %229 = arith.truncf %228 : vector<8x32xf32> to vector<8x32xbf16>
    %c0_108 = arith.constant 0 : index
    %c0_109 = arith.constant 0 : index
    %230 = vector.load %arg19[%c0_108, %c0_109] : memref<32x32xbf16, #tpu.memory_space<vmem>>, vector<32x32xbf16>
    %cst_110 = arith.constant dense<0.000000e+00> : vector<8x32xf32>
    %231 = tpu.matmul %229, %230, %cst_110 {dimension_numbers = #tpu.dot_dimension_numbers<[1], [0], [0], [1], [0, 0, 1, 1], [], []>} : vector<8x32xbf16>, vector<32x32xbf16>, vector<8x32xf32> -> vector<8x32xf32>
    %c0_111 = arith.constant 0 : index
    %c0_112 = arith.constant 0 : index
    %232 = vector.load %arg20[%c0_111, %c0_112] : memref<1x32xf32, #tpu.memory_space<vmem>>, vector<1x32xf32>
    %233 = vector.broadcast %232 : vector<1x32xf32> to vector<8x32xf32>
    %234 = arith.addf %231, %233 : vector<8x32xf32>
    %235 = arith.addf %132, %234 : vector<8x32xf32>
    %c0_113 = arith.constant 0 : index
    %c0_114 = arith.constant 0 : index
    %236 = vector.load %arg27[%c0_113, %c0_114] : memref<1x32xf32, #tpu.memory_space<vmem>>, vector<1x32xf32>
    %c0_115 = arith.constant 0 : index
    %c0_116 = arith.constant 0 : index
    %237 = vector.load %arg28[%c0_115, %c0_116] : memref<1x32xf32, #tpu.memory_space<vmem>>, vector<1x32xf32>
    %cst_117 = arith.constant dense<0.000000e+00> : vector<8xf32>
    %238 = vector.multi_reduction <add>, %235, %cst_117 [1] : vector<8x32xf32> to vector<8xf32>
    %239 = vector.shape_cast %238 : vector<8xf32> to vector<8x1xf32>
    %cst_118 = arith.constant 3.200000e+01 : f32
    %240 = vector.broadcast %cst_118 : f32 to vector<8x1xf32>
    %241 = arith.divf %239, %240 : vector<8x1xf32>
    %242 = vector.broadcast %241 : vector<8x1xf32> to vector<8x32xf32>
    %243 = arith.subf %235, %242 : vector<8x32xf32>
    %244 = arith.mulf %243, %243 : vector<8x32xf32>
    %cst_119 = arith.constant dense<0.000000e+00> : vector<8xf32>
    %245 = vector.multi_reduction <add>, %244, %cst_119 [1] : vector<8x32xf32> to vector<8xf32>
    %246 = vector.shape_cast %245 : vector<8xf32> to vector<8x1xf32>
    %cst_120 = arith.constant 3.200000e+01 : f32
    %247 = vector.broadcast %cst_120 : f32 to vector<8x1xf32>
    %248 = arith.divf %246, %247 : vector<8x1xf32>
    %249 = vector.broadcast %241 : vector<8x1xf32> to vector<8x32xf32>
    %250 = arith.subf %235, %249 : vector<8x32xf32>
    %cst_121 = arith.constant 9.99999974E-6 : f32
    %251 = vector.broadcast %cst_121 : f32 to vector<8x1xf32>
    %252 = arith.addf %248, %251 : vector<8x1xf32>
    %253 = math.rsqrt %252 : vector<8x1xf32>
    %254 = vector.broadcast %253 : vector<8x1xf32> to vector<8x32xf32>
    %255 = arith.mulf %250, %254 : vector<8x32xf32>
    %256 = vector.broadcast %236 : vector<1x32xf32> to vector<8x32xf32>
    %257 = arith.mulf %255, %256 : vector<8x32xf32>
    %258 = vector.broadcast %237 : vector<1x32xf32> to vector<8x32xf32>
    %259 = arith.addf %257, %258 : vector<8x32xf32>
    %260 = arith.truncf %259 : vector<8x32xf32> to vector<8x32xbf16>
    %cst_122 = arith.constant 0.000000e+00 : f32
    %261 = vector.broadcast %cst_122 : f32 to vector<8x32xf32>
    %c0_123 = arith.constant 0 : index
    %c0_124 = arith.constant 0 : index
    %262 = vector.load %arg21[%c0_123, %c0_124] : memref<32x64xbf16, #tpu.memory_space<vmem>>, vector<32x64xbf16>
    %cst_125 = arith.constant dense<0.000000e+00> : vector<8x64xf32>
    %263 = tpu.matmul %260, %262, %cst_125 {dimension_numbers = #tpu.dot_dimension_numbers<[1], [0], [0], [1], [0, 0, 1, 1], [], []>} : vector<8x32xbf16>, vector<32x64xbf16>, vector<8x64xf32> -> vector<8x64xf32>
    %c0_126 = arith.constant 0 : index
    %c0_127 = arith.constant 0 : index
    %264 = vector.load %arg22[%c0_126, %c0_127] : memref<1x64xf32, #tpu.memory_space<vmem>>, vector<1x64xf32>
    %265 = vector.broadcast %264 : vector<1x64xf32> to vector<8x64xf32>
    %266 = arith.addf %263, %265 : vector<8x64xf32>
    %cst_128 = arith.constant 0.000000e+00 : f32
    %267 = vector.broadcast %cst_128 : f32 to vector<8x64xf32>
    %268 = arith.maximumf %266, %267 : vector<8x64xf32>
    %269 = arith.truncf %268 : vector<8x64xf32> to vector<8x64xbf16>
    %c0_129 = arith.constant 0 : index
    %c0_130 = arith.constant 0 : index
    %270 = vector.load %arg23[%c0_129, %c0_130] : memref<64x32xbf16, #tpu.memory_space<vmem>>, vector<64x32xbf16>
    %cst_131 = arith.constant dense<0.000000e+00> : vector<8x32xf32>
    %271 = tpu.matmul %269, %270, %cst_131 {dimension_numbers = #tpu.dot_dimension_numbers<[1], [0], [0], [1], [0, 0, 1, 1], [], []>} : vector<8x64xbf16>, vector<64x32xbf16>, vector<8x32xf32> -> vector<8x32xf32>
    %272 = arith.addf %261, %271 : vector<8x32xf32>
    %c0_132 = arith.constant 0 : index
    %c0_133 = arith.constant 0 : index
    %273 = vector.load %arg24[%c0_132, %c0_133] : memref<1x32xf32, #tpu.memory_space<vmem>>, vector<1x32xf32>
    %274 = vector.broadcast %273 : vector<1x32xf32> to vector<8x32xf32>
    %275 = arith.addf %272, %274 : vector<8x32xf32>
    %276 = arith.addf %259, %275 : vector<8x32xf32>
    %c0_134 = arith.constant 0 : index
    %c0_135 = arith.constant 0 : index
    %277 = vector.load %arg29[%c0_134, %c0_135] : memref<1x32xf32, #tpu.memory_space<vmem>>, vector<1x32xf32>
    %c0_136 = arith.constant 0 : index
    %c0_137 = arith.constant 0 : index
    %278 = vector.load %arg30[%c0_136, %c0_137] : memref<1x32xf32, #tpu.memory_space<vmem>>, vector<1x32xf32>
    %cst_138 = arith.constant dense<0.000000e+00> : vector<8xf32>
    %279 = vector.multi_reduction <add>, %276, %cst_138 [1] : vector<8x32xf32> to vector<8xf32>
    %280 = vector.shape_cast %279 : vector<8xf32> to vector<8x1xf32>
    %cst_139 = arith.constant 3.200000e+01 : f32
    %281 = vector.broadcast %cst_139 : f32 to vector<8x1xf32>
    %282 = arith.divf %280, %281 : vector<8x1xf32>
    %283 = vector.broadcast %282 : vector<8x1xf32> to vector<8x32xf32>
    %284 = arith.subf %276, %283 : vector<8x32xf32>
    %285 = arith.mulf %284, %284 : vector<8x32xf32>
    %cst_140 = arith.constant dense<0.000000e+00> : vector<8xf32>
    %286 = vector.multi_reduction <add>, %285, %cst_140 [1] : vector<8x32xf32> to vector<8xf32>
    %287 = vector.shape_cast %286 : vector<8xf32> to vector<8x1xf32>
    %cst_141 = arith.constant 3.200000e+01 : f32
    %288 = vector.broadcast %cst_141 : f32 to vector<8x1xf32>
    %289 = arith.divf %287, %288 : vector<8x1xf32>
    %290 = vector.broadcast %282 : vector<8x1xf32> to vector<8x32xf32>
    %291 = arith.subf %276, %290 : vector<8x32xf32>
    %cst_142 = arith.constant 9.99999974E-6 : f32
    %292 = vector.broadcast %cst_142 : f32 to vector<8x1xf32>
    %293 = arith.addf %289, %292 : vector<8x1xf32>
    %294 = math.rsqrt %293 : vector<8x1xf32>
    %295 = vector.broadcast %294 : vector<8x1xf32> to vector<8x32xf32>
    %296 = arith.mulf %291, %295 : vector<8x32xf32>
    %297 = vector.broadcast %277 : vector<1x32xf32> to vector<8x32xf32>
    %298 = arith.mulf %296, %297 : vector<8x32xf32>
    %299 = vector.broadcast %278 : vector<1x32xf32> to vector<8x32xf32>
    %300 = arith.addf %298, %299 : vector<8x32xf32>
    %c0_143 = arith.constant 0 : index
    %c0_144 = arith.constant 0 : index
    %c0_145 = arith.constant 0 : index
    %301 = vector.load %arg31[%c0_143, %c0_144, %c0_145] : memref<1x8x32xf32, #tpu.memory_space<vmem>>, vector<1x8x32xf32>
    %302 = vector.shape_cast %301 : vector<1x8x32xf32> to vector<8x32xf32>
    %303 = vector.shape_cast %300 : vector<8x32xf32> to vector<1x8x32xf32>
    tpu.vector_store %arg31[%c0_143, %c0_144, %c0_145], %303 {strides = array<i32>} : memref<1x8x32xf32, #tpu.memory_space<vmem>>, vector<1x8x32xf32>,
    return
  }
  func.func @transform_0(%arg0: i32, %arg1: i32) -> (i32, i32, i32) {
    %c0_i32 = arith.constant 0 : i32
    %c0_i32_0 = arith.constant 0 : i32
    return %arg0, %arg1, %c0_i32 : i32, i32, i32
  }
  func.func @transform_1(%arg0: i32, %arg1: i32) -> (i32, i32, i32) {
    %c0_i32 = arith.constant 0 : i32
    %c0_i32_0 = arith.constant 0 : i32
    %c0_i32_1 = arith.constant 0 : i32
    return %arg0, %c0_i32, %c0_i32_0 : i32, i32, i32
  }
  func.func @transform_2(%arg0: i32, %arg1: i32) -> (i32, i32, i32) {
    %c0_i32 = arith.constant 0 : i32
    %c0_i32_0 = arith.constant 0 : i32
    %c0_i32_1 = arith.constant 0 : i32
    return %arg0, %c0_i32, %c0_i32_0 : i32, i32, i32
  }
  func.func @transform_3(%arg0: i32, %arg1: i32) -> (i32, i32) {
    %c0_i32 = arith.constant 0 : i32
    %c0_i32_0 = arith.constant 0 : i32
    %c0_i32_1 = arith.constant 0 : i32
    return %c0_i32, %c0_i32_0 : i32, i32
  }
  func.func @transform_4(%arg0: i32, %arg1: i32) -> (i32, i32) {
    %c0_i32 = arith.constant 0 : i32
    %c0_i32_0 = arith.constant 0 : i32
    %c0_i32_1 = arith.constant 0 : i32
    return %c0_i32, %c0_i32_0 : i32, i32
  }
  func.func @transform_5(%arg0: i32, %arg1: i32) -> (i32, i32) {
    %c0_i32 = arith.constant 0 : i32
    %c0_i32_0 = arith.constant 0 : i32
    %c0_i32_1 = arith.constant 0 : i32
    return %c0_i32, %c0_i32_0 : i32, i32
  }
  func.func @transform_6(%arg0: i32, %arg1: i32) -> (i32, i32) {
    %c0_i32 = arith.constant 0 : i32
    %c0_i32_0 = arith.constant 0 : i32
    %c0_i32_1 = arith.constant 0 : i32
    return %c0_i32, %c0_i32_0 : i32, i32
  }
  func.func @transform_7(%arg0: i32, %arg1: i32) -> (i32, i32) {
    %c0_i32 = arith.constant 0 : i32
    %c0_i32_0 = arith.constant 0 : i32
    %c0_i32_1 = arith.constant 0 : i32
    return %c0_i32, %c0_i32_0 : i32, i32
  }
  func.func @transform_8(%arg0: i32, %arg1: i32) -> (i32, i32) {
    %c0_i32 = arith.constant 0 : i32
    %c0_i32_0 = arith.constant 0 : i32
    %c0_i32_1 = arith.constant 0 : i32
    return %c0_i32, %c0_i32_0 : i32, i32
  }
  func.func @transform_9(%arg0: i32, %arg1: i32) -> (i32, i32) {
    %c0_i32 = arith.constant 0 : i32
    %c0_i32_0 = arith.constant 0 : i32
    %c0_i32_1 = arith.constant 0 : i32
    return %c0_i32, %c0_i32_0 : i32, i32
  }
  func.func @transform_10(%arg0: i32, %arg1: i32) -> (i32, i32) {
    %c0_i32 = arith.constant 0 : i32
    %c0_i32_0 = arith.constant 0 : i32
    %c0_i32_1 = arith.constant 0 : i32
    return %c0_i32, %c0_i32_0 : i32, i32
  }
  func.func @transform_11(%arg0: i32, %arg1: i32) -> (i32, i32) {
    %c0_i32 = arith.constant 0 : i32
    %c0_i32_0 = arith.constant 0 : i32
    %c0_i32_1 = arith.constant 0 : i32
    return %c0_i32, %c0_i32_0 : i32, i32
  }
  func.func @transform_12(%arg0: i32, %arg1: i32) -> (i32, i32) {
    %c0_i32 = arith.constant 0 : i32
    %c0_i32_0 = arith.constant 0 : i32
    %c0_i32_1 = arith.constant 0 : i32
    return %c0_i32, %c0_i32_0 : i32, i32
  }
  func.func @transform_13(%arg0: i32, %arg1: i32) -> (i32, i32) {
    %c0_i32 = arith.constant 0 : i32
    %c0_i32_0 = arith.constant 0 : i32
    %c0_i32_1 = arith.constant 0 : i32
    return %c0_i32, %c0_i32_0 : i32, i32
  }
  func.func @transform_14(%arg0: i32, %arg1: i32) -> (i32, i32) {
    %c0_i32 = arith.constant 0 : i32
    %c0_i32_0 = arith.constant 0 : i32
    %c0_i32_1 = arith.constant 0 : i32
    return %c0_i32, %c0_i32_0 : i32, i32
  }
  func.func @transform_15(%arg0: i32, %arg1: i32) -> (i32, i32) {
    %c0_i32 = arith.constant 0 : i32
    %c0_i32_0 = arith.constant 0 : i32
    %c0_i32_1 = arith.constant 0 : i32
    return %c0_i32, %c0_i32_0 : i32, i32
  }
  func.func @transform_16(%arg0: i32, %arg1: i32) -> (i32, i32) {
    %c0_i32 = arith.constant 0 : i32
    %c0_i32_0 = arith.constant 0 : i32
    %c0_i32_1 = arith.constant 0 : i32
    return %c0_i32, %c0_i32_0 : i32, i32
  }
  func.func @transform_17(%arg0: i32, %arg1: i32) -> (i32, i32) {
    %c0_i32 = arith.constant 0 : i32
    %c0_i32_0 = arith.constant 0 : i32
    %c0_i32_1 = arith.constant 0 : i32
    return %c0_i32, %c0_i32_0 : i32, i32
  }
  func.func @transform_18(%arg0: i32, %arg1: i32) -> (i32, i32) {
    %c0_i32 = arith.constant 0 : i32
    %c0_i32_0 = arith.constant 0 : i32
    %c0_i32_1 = arith.constant 0 : i32
    return %c0_i32, %c0_i32_0 : i32, i32
  }
  func.func @transform_19(%arg0: i32, %arg1: i32) -> (i32, i32) {
    %c0_i32 = arith.constant 0 : i32
    %c0_i32_0 = arith.constant 0 : i32
    %c0_i32_1 = arith.constant 0 : i32
    return %c0_i32, %c0_i32_0 : i32, i32
  }
  func.func @transform_20(%arg0: i32, %arg1: i32) -> (i32, i32) {
    %c0_i32 = arith.constant 0 : i32
    %c0_i32_0 = arith.constant 0 : i32
    %c0_i32_1 = arith.constant 0 : i32
    return %c0_i32, %c0_i32_0 : i32, i32
  }
  func.func @transform_21(%arg0: i32, %arg1: i32) -> (i32, i32) {
    %c0_i32 = arith.constant 0 : i32
    %c0_i32_0 = arith.constant 0 : i32
    %c0_i32_1 = arith.constant 0 : i32
    return %c0_i32, %c0_i32_0 : i32, i32
  }
  func.func @transform_22(%arg0: i32, %arg1: i32) -> (i32, i32) {
    %c0_i32 = arith.constant 0 : i32
    %c0_i32_0 = arith.constant 0 : i32
    %c0_i32_1 = arith.constant 0 : i32
    return %c0_i32, %c0_i32_0 : i32, i32
  }
  func.func @transform_23(%arg0: i32, %arg1: i32) -> (i32, i32) {
    %c0_i32 = arith.constant 0 : i32
    %c0_i32_0 = arith.constant 0 : i32
    %c0_i32_1 = arith.constant 0 : i32
    return %c0_i32, %c0_i32_0 : i32, i32
  }
  func.func @transform_24(%arg0: i32, %arg1: i32) -> (i32, i32) {
    %c0_i32 = arith.constant 0 : i32
    %c0_i32_0 = arith.constant 0 : i32
    %c0_i32_1 = arith.constant 0 : i32
    return %c0_i32, %c0_i32_0 : i32, i32
  }
  func.func @transform_25(%arg0: i32, %arg1: i32) -> (i32, i32) {
    %c0_i32 = arith.constant 0 : i32
    %c0_i32_0 = arith.constant 0 : i32
    %c0_i32_1 = arith.constant 0 : i32
    return %c0_i32, %c0_i32_0 : i32, i32
  }
  func.func @transform_26(%arg0: i32, %arg1: i32) -> (i32, i32) {
    %c0_i32 = arith.constant 0 : i32
    %c0_i32_0 = arith.constant 0 : i32
    %c0_i32_1 = arith.constant 0 : i32
    return %c0_i32, %c0_i32_0 : i32, i32
  }
  func.func @transform_27(%arg0: i32, %arg1: i32) -> (i32, i32) {
    %c0_i32 = arith.constant 0 : i32
    %c0_i32_0 = arith.constant 0 : i32
    %c0_i32_1 = arith.constant 0 : i32
    return %c0_i32, %c0_i32_0 : i32, i32
  }
  func.func @transform_28(%arg0: i32, %arg1: i32) -> (i32, i32) {
    %c0_i32 = arith.constant 0 : i32
    %c0_i32_0 = arith.constant 0 : i32
    %c0_i32_1 = arith.constant 0 : i32
    return %c0_i32, %c0_i32_0 : i32, i32
  }
  func.func @transform_29(%arg0: i32, %arg1: i32) -> (i32, i32, i32) {
    %c0_i32 = arith.constant 0 : i32
    %c0_i32_0 = arith.constant 0 : i32
    return %arg0, %arg1, %c0_i32 : i32, i32, i32
  }
}

</mosaic_0001>

<llo_original>
// kernel: tpu_custom_call.1
$region0: #{tpu_custom_call.1}
  #allocation0 [shape = 'u32[]', space=smem, size = 0x4, offset = 0x4, fixed_abs, tag = 'smem constant byte address 0x4 - core index']
  #allocation1 [shape = 'u32[144,128]{1,0:T(1,128)}', space=vmem, size = 0x12000, scoped, tag = 'internal scratch']
  #allocation2 [shape = 'f32[8,32]{1,0:T(8,128)}', space=vmem, size = 0x1000, scoped, tag = 'scratch operand']
  %s0 = inlined_call_operand.smem [shape: u32[30], index: -1, kind: input, shape index: {}]
  %s1 = sld [smem:[%s0]]
  %s2 = scalar_lea.smem %s0, 1
  %s3 = sld [smem:[%s2]]
  %s4 = scalar_lea.smem %s0, 2
  %s5 = sld [smem:[%s4]]
  %s6 = scalar_lea.smem %s0, 3
  %s7 = sld [smem:[%s6]]
  %s8 = scalar_lea.smem %s0, 4
  %s9 = sld [smem:[%s8]]
  %s10 = scalar_lea.smem %s0, 5
  %s11 = sld [smem:[%s10]]
  %s12 = scalar_lea.smem %s0, 6
  %s13 = sld [smem:[%s12]]
  %s14 = scalar_lea.smem %s0, 7
  %s15 = sld [smem:[%s14]]
  %s16 = scalar_lea.smem %s0, 8
  %s17 = sld [smem:[%s16]]
  %s18 = scalar_lea.smem %s0, 9
  %s19 = sld [smem:[%s18]]
  %s20 = scalar_lea.smem %s0, 10
  %s21 = sld [smem:[%s20]]
  %s22 = scalar_lea.smem %s0, 11
  %s23 = sld [smem:[%s22]]
  %s24 = scalar_lea.smem %s0, 12
  %s25 = sld [smem:[%s24]]
  %s26 = scalar_lea.smem %s0, 13
  %s27 = sld [smem:[%s26]]
  %s28 = scalar_lea.smem %s0, 14
  %s29 = sld [smem:[%s28]]
  %s30 = scalar_lea.smem %s0, 15
  %s31 = sld [smem:[%s30]]
  %s32 = scalar_lea.smem %s0, 16
  %s33 = sld [smem:[%s32]]
  %s34 = scalar_lea.smem %s0, 17
  %s35 = sld [smem:[%s34]]
  %s36 = scalar_lea.smem %s0, 18
  %s37 = sld [smem:[%s36]]
  %s38 = scalar_lea.smem %s0, 19
  %s39 = sld [smem:[%s38]]
  %s40 = scalar_lea.smem %s0, 20
  %s41 = sld [smem:[%s40]]
  %s42 = scalar_lea.smem %s0, 21
  %s43 = sld [smem:[%s42]]
  %s44 = scalar_lea.smem %s0, 22
  %s45 = sld [smem:[%s44]]
  %s46 = scalar_lea.smem %s0, 23
  %s47 = sld [smem:[%s46]]
  %s48 = scalar_lea.smem %s0, 24
  %s49 = sld [smem:[%s48]]
  %s50 = scalar_lea.smem %s0, 25
  %s51 = sld [smem:[%s50]]
  %s52 = scalar_lea.smem %s0, 26
  %s53 = sld [smem:[%s52]]
  %s54 = scalar_lea.smem %s0, 27
  %s55 = sld [smem:[%s54]]
  %s56 = scalar_lea.smem %s0, 28
  %s57 = sld [smem:[%s56]]
  %s58 = scalar_lea.smem %s0, 29
  %s59 = sld [smem:[%s58]]
  %s60 = sld [smem:[#allocation0]]
  $region201: #{tpu_custom_call.1} parent=0
    _
  %s62 = ssub.s32 1, %s60
  %s63 = scalar_select 0, %s62, %s60
  $region1: #{tpu_custom_call.1} parent=0
    #allocation3 [shape = 'u8[4096]{0}', space=vmem, size = 0x1000, scoped, tag = 'input window, operand 0']
    #allocation4 [shape = 's32[2]{0}', space=sflag, size = 0x8, scoped, tag = 'scoped memory for tpu_custom_call.1']
    #allocation5 [shape = 's32[2]{0}', space=sflag, size = 0x8, scoped, tag = 'scoped memory for tpu_custom_call.1']
    #allocation6 [shape = 'u8[4096]{0}', space=vmem, size = 0x1000, scoped, tag = 'input window, operand 1']
    #allocation7 [shape = 's32[2]{0}', space=sflag, size = 0x8, scoped, tag = 'scoped memory for tpu_custom_call.1']
    #allocation8 [shape = 'u8[4096]{0}', space=vmem, size = 0x1000, scoped, tag = 'input window, operand 2']
    #allocation9 [shape = 'u8[512]{0}', space=vmem, size = 0x400, scoped, tag = 'input window, operand 4, single buffered']
    #allocation10 [shape = 's32[1]{0}', space=sflag, size = 0x4, scoped, tag = 'scoped memory for tpu_custom_call.1']
    #allocation11 [shape = 'u8[512]{0}', space=vmem, size = 0x400, scoped, tag = 'input window, operand 6, single buffered']
    #allocation12 [shape = 'u8[512]{0}', space=vmem, size = 0x400, scoped, tag = 'input window, operand 8, single buffered']
    #allocation13 [shape = 's32[1]{0}', space=sflag, size = 0x4, scoped, tag = 'scoped memory for tpu_custom_call.1']
    #allocation14 [shape = 'u8[512]{0}', space=vmem, size = 0x400, scoped, tag = 'input window, operand 10, single buffered']
    #allocation15 [shape = 'u8[8192]{0}', space=vmem, size = 0x2000, scoped, tag = 'input window, operand 11, single buffered']
    #allocation16 [shape = 's32[1]{0}', space=sflag, size = 0x4, scoped, tag = 'scoped memory for tpu_custom_call.1']
    #allocation17 [shape = 'u8[512]{0}', space=vmem, size = 0x400, scoped, tag = 'input window, operand 12, single buffered']
    #allocation18 [shape = 'u8[512]{0}', space=vmem, size = 0x400, scoped, tag = 'input window, operand 14, single buffered']
    #allocation19 [shape = 's32[1]{0}', space=sflag, size = 0x4, scoped, tag = 'scoped memory for tpu_custom_call.1']
    #allocation20 [shape = 'u8[8192]{0}', space=vmem, size = 0x2000, scoped, tag = 'input window, operand 15, single buffered']
    #allocation21 [shape = 'u8[512]{0}', space=vmem, size = 0x400, scoped, tag = 'input window, operand 16, single buffered']
    #allocation22 [shape = 's32[1]{0}', space=sflag, size = 0x4, scoped, tag = 'scoped memory for tpu_custom_call.1']
    #allocation23 [shape = 'u8[8192]{0}', space=vmem, size = 0x2000, scoped, tag = 'input window, operand 19, single buffered']
    #allocation24 [shape = 'u8[8192]{0}', space=vmem, size = 0x2000, scoped, tag = 'output window, operand 0']
    %64 = vsyncpa [#allocation4], 0
    %s65 = scalar_lea.sflag [#allocation4], 1
    %66 = vsyncpa %s65, 0
    %67 = vsyncpa [#allocation7], 0
    %s68 = scalar_lea.sflag [#allocation7], 1
    %69 = vsyncpa %s68, 0
    %70 = vsyncpa [#allocation10], 0
    %71 = vsyncpa [#allocation13], 0
    %72 = vsyncpa [#allocation16], 0
    %73 = vsyncpa [#allocation19], 0
    %74 = vsyncpa [#allocation22], 0
    %75 = vsyncpa [#allocation5], 0
    %s76 = scalar_lea.sflag [#allocation5], 1
    %77 = vsyncpa %s76, 0
    loop: start=0, step=1, limit=4
    $region2: #{tpu_custom_call.1} parent=1 // loop_pre_header
      _
    $region3: #{tpu_custom_call.1} parent=1 // loop_header
      %s79 = sphi 0, %s83
      %p80 = scmp.ge.s32.totalorder %s79, 4
      %s86 = sphi 0, %s98
      %s87 = sphi 0, %s94
      %s88 = sphi 0, %s86
      %s89 = sphi 0, %s87
      %s90 = sphi 0, %s88
      %s91 = sphi 0, %s89
      %s103 = sphi 0, %s105
      %s106 = sphi 0, %s103
      %s107 = sphi 0, %s106
      %s123 = sphi 0, %s107
      %s129 = sphi 0, %s131
      %s132 = sphi 0, %s129
      %s133 = sphi 0, %s132
      %s149 = sphi 0, %s133
      %s155 = sphi 0, %s157
      %s158 = sphi 0, %s155
      %s159 = sphi 0, %s158
      %s175 = sphi 0, %s159
      %s179 = sphi 0, %s179
      %s181 = sphi 0, %s179
      %s182 = sphi 0, %s181
      %s196 = sphi 0, %s182
      %s200 = sphi 0, %s200
      %s202 = sphi 0, %s200
      %s203 = sphi 0, %s202
      %s217 = sphi 0, %s203
      %s221 = sphi 0, %s221
      %s223 = sphi 0, %s221
      %s224 = sphi 0, %s223
      %s238 = sphi 0, %s224
      %s242 = sphi 0, %s242
      %s244 = sphi 0, %s242
      %s245 = sphi 0, %s244
      %s259 = sphi 0, %s245
      %s263 = sphi 0, %s263
      %s265 = sphi 0, %s263
      %s266 = sphi 0, %s265
      %s280 = sphi 0, %s266
      %s284 = sphi 0, %s284
      %s286 = sphi 0, %s284
      %s287 = sphi 0, %s286
      %s301 = sphi 0, %s287
      %s305 = sphi 0, %s305
      %s307 = sphi 0, %s305
      %s308 = sphi 0, %s307
      %s322 = sphi 0, %s308
      %s326 = sphi 0, %s326
      %s328 = sphi 0, %s326
      %s329 = sphi 0, %s328
      %s343 = sphi 0, %s329
      %s347 = sphi 0, %s347
      %s349 = sphi 0, %s347
      %s350 = sphi 0, %s349
      %s364 = sphi 0, %s350
      %s368 = sphi 0, %s368
      %s370 = sphi 0, %s368
      %s371 = sphi 0, %s370
      %s385 = sphi 0, %s371
      %s389 = sphi 0, %s389
      %s391 = sphi 0, %s389
      %s392 = sphi 0, %s391
      %s406 = sphi 0, %s392
      %s410 = sphi 0, %s410
      %s412 = sphi 0, %s410
      %s413 = sphi 0, %s412
      %s427 = sphi 0, %s413
      %s431 = sphi 0, %s431
      %s433 = sphi 0, %s431
      %s434 = sphi 0, %s433
      %s448 = sphi 0, %s434
      %s452 = sphi 0, %s452
      %s454 = sphi 0, %s452
      %s455 = sphi 0, %s454
      %s469 = sphi 0, %s455
      %s473 = sphi 0, %s473
      %s475 = sphi 0, %s473
      %s476 = sphi 0, %s475
      %s490 = sphi 0, %s476
      %s494 = sphi 0, %s494
      %s496 = sphi 0, %s494
      %s497 = sphi 0, %s496
      %s511 = sphi 0, %s497
      %s515 = sphi 0, %s515
      %s517 = sphi 0, %s515
      %s518 = sphi 0, %s517
      %s532 = sphi 0, %s518
      %s536 = sphi 0, %s536
      %s538 = sphi 0, %s536
      %s539 = sphi 0, %s538
      %s553 = sphi 0, %s539
      %s557 = sphi 0, %s557
      %s559 = sphi 0, %s557
      %s560 = sphi 0, %s559
      %s574 = sphi 0, %s560
      %s578 = sphi 0, %s578
      %s580 = sphi 0, %s578
      %s581 = sphi 0, %s580
      %s595 = sphi 0, %s581
      %s599 = sphi 0, %s599
      %s601 = sphi 0, %s599
      %s602 = sphi 0, %s601
      %s616 = sphi 0, %s602
      %s620 = sphi 0, %s620
      %s622 = sphi 0, %s620
      %s623 = sphi 0, %s622
      %s637 = sphi 0, %s623
      %s641 = sphi 0, %s641
      %s643 = sphi 0, %s641
      %s644 = sphi 0, %s643
      %s658 = sphi 0, %s644
      %s662 = sphi 0, %s662
      %s664 = sphi 0, %s662
      %s665 = sphi 0, %s664
      %s679 = sphi 0, %s665
      %s683 = sphi 0, %s683
      %s685 = sphi 0, %s683
      %s686 = sphi 0, %s685
      %s700 = sphi 0, %s686
      %s704 = sphi 0, %s704
      %s706 = sphi 0, %s704
      %s707 = sphi 0, %s706
      %s721 = sphi 0, %s707
      %s729 = sphi 0, %s731
      %s732 = sphi 0, %s729
      %s733 = sphi 0, %s732
      %s749 = sphi 0, %s733
    $region4: #{tpu_custom_call.1} parent=1 // loop_header_branch
      %82 = sbr.rel (%p80) target = $region8
    $region5: #{tpu_custom_call.1} parent=1 // loop_body
      %s84 = ssub.s32 %s79, 1
      %s85 = ssub.s32 %s79, 2
      %s92 = sadd.s32 1, %s87
      %p93 = scmp.ge.s32.totalorder %s92, 1
      %s94 = scalar_select %p93, 0, %s92
      %s95 = sadd.s32 1, %s86
      %s96 = scalar_select %p93, %s95, %s86
      %p97 = scmp.ge.s32.totalorder %s96, 2
      %s98 = scalar_select %p97, 0, %s96
      %s99 = ssub.s32 %s86, %s98
      %s100 = ssub.s32 %s87, %s94
      %s101 = sor.u32 %s99, %s100
      %p102 = scmp.eq.s32.totalorder %s101, 0
      %s104 = sadd.s32 %s103, 1
      %s105 = scalar_select %p102, %s103, %s104
      %p108 = pneg %p102
      %p109 = scmp.eq.s32.totalorder %s79, 1
      %p110 = por %p108, %p109
      %p111 = scmp.ne.s32.totalorder %s103, %s106
      %p112 = scmp.eq.s32.totalorder %s79, 0
      %p113 = por %p111, %p112
      %p114 = scmp.ne.s32.totalorder %s103, %s106
      %p115 = scmp.eq.s32.totalorder %s84, 1
      %p116 = por %p114, %p115
      %p117 = scmp.ne.s32.totalorder %s106, %s107
      %p118 = scmp.eq.s32.totalorder %s84, 0
      %p119 = por %p117, %p118
      %p120 = scmp.ne.s32.totalorder %s106, %s107
      %p121 = scmp.eq.s32.totalorder %s85, 1
      %p122 = por %p120, %p121
      %p124 = scmp.ne.s32.totalorder %s107, %s123
      %p125 = scmp.eq.s32.totalorder %s85, 0
      %p126 = por %p124, %p125
      %s127 = ssub.s32 %s86, %s98
      %p128 = scmp.eq.s32.totalorder %s127, 0
      %s130 = sadd.s32 %s129, 1
      %s131 = scalar_select %p128, %s129, %s130
      %p134 = pneg %p128
      %p135 = scmp.eq.s32.totalorder %s79, 1
      %p136 = por %p134, %p135
      %p137 = scmp.ne.s32.totalorder %s129, %s132
      %p138 = scmp.eq.s32.totalorder %s79, 0
      %p139 = por %p137, %p138
      %p140 = scmp.ne.s32.totalorder %s129, %s132
      %p141 = scmp.eq.s32.totalorder %s84, 1
      %p142 = por %p140, %p141
      %p143 = scmp.ne.s32.totalorder %s132, %s133
      %p144 = scmp.eq.s32.totalorder %s84, 0
      %p145 = por %p143, %p144
      %p146 = scmp.ne.s32.totalorder %s132, %s133
      %p147 = scmp.eq.s32.totalorder %s85, 1
      %p148 = por %p146, %p147
      %p150 = scmp.ne.s32.totalorder %s133, %s149
      %p151 = scmp.eq.s32.totalorder %s85, 0
      %p152 = por %p150, %p151
      %s153 = ssub.s32 %s86, %s98
      %p154 = scmp.eq.s32.totalorder %s153, 0
      %s156 = sadd.s32 %s155, 1
      %s157 = scalar_select %p154, %s155, %s156
      %p160 = pneg %p154
      %p161 = scmp.eq.s32.totalorder %s79, 1
      %p162 = por %p160, %p161
      %p163 = scmp.ne.s32.totalorder %s155, %s158
      %p164 = scmp.eq.s32.totalorder %s79, 0
      %p165 = por %p163, %p164
      %p166 = scmp.ne.s32.totalorder %s155, %s158
      %p167 = scmp.eq.s32.totalorder %s84, 1
      %p168 = por %p166, %p167
      %p169 = scmp.ne.s32.totalorder %s158, %s159
      %p170 = scmp.eq.s32.totalorder %s84, 0
      %p171 = por %p169, %p170
      %p172 = scmp.ne.s32.totalorder %s158, %s159
      %p173 = scmp.eq.s32.totalorder %s85, 1
      %p174 = por %p172, %p173
      %p176 = scmp.ne.s32.totalorder %s159, %s175
      %p177 = scmp.eq.s32.totalorder %s85, 0
      %p178 = por %p176, %p177
      %s180 = sadd.s32 %s179, 1
      %p183 = scmp.eq.s32.totalorder %s79, 1
      %p184 = scmp.ne.s32.totalorder %s179, %s181
      %p185 = scmp.eq.s32.totalorder %s79, 0
      %p186 = por %p184, %p185
      %p187 = scmp.ne.s32.totalorder %s179, %s181
      %p188 = scmp.eq.s32.totalorder %s84, 1
      %p189 = por %p187, %p188
      %p190 = scmp.ne.s32.totalorder %s181, %s182
      %p191 = scmp.eq.s32.totalorder %s84, 0
      %p192 = por %p190, %p191
      %p193 = scmp.ne.s32.totalorder %s181, %s182
      %p194 = scmp.eq.s32.totalorder %s85, 1
      %p195 = por %p193, %p194
      %p197 = scmp.ne.s32.totalorder %s182, %s196
      %p198 = scmp.eq.s32.totalorder %s85, 0
      %p199 = por %p197, %p198
      %s201 = sadd.s32 %s200, 1
      %p204 = scmp.eq.s32.totalorder %s79, 1
      %p205 = scmp.ne.s32.totalorder %s200, %s202
      %p206 = scmp.eq.s32.totalorder %s79, 0
      %p207 = por %p205, %p206
      %p208 = scmp.ne.s32.totalorder %s200, %s202
      %p209 = scmp.eq.s32.totalorder %s84, 1
      %p210 = por %p208, %p209
      %p211 = scmp.ne.s32.totalorder %s202, %s203
      %p212 = scmp.eq.s32.totalorder %s84, 0
      %p213 = por %p211, %p212
      %p214 = scmp.ne.s32.totalorder %s202, %s203
      %p215 = scmp.eq.s32.totalorder %s85, 1
      %p216 = por %p214, %p215
      %p218 = scmp.ne.s32.totalorder %s203, %s217
      %p219 = scmp.eq.s32.totalorder %s85, 0
      %p220 = por %p218, %p219
      %s222 = sadd.s32 %s221, 1
      %p225 = scmp.eq.s32.totalorder %s79, 1
      %p226 = scmp.ne.s32.totalorder %s221, %s223
      %p227 = scmp.eq.s32.totalorder %s79, 0
      %p228 = por %p226, %p227
      %p229 = scmp.ne.s32.totalorder %s221, %s223
      %p230 = scmp.eq.s32.totalorder %s84, 1
      %p231 = por %p229, %p230
      %p232 = scmp.ne.s32.totalorder %s223, %s224
      %p233 = scmp.eq.s32.totalorder %s84, 0
      %p234 = por %p232, %p233
      %p235 = scmp.ne.s32.totalorder %s223, %s224
      %p236 = scmp.eq.s32.totalorder %s85, 1
      %p237 = por %p235, %p236
      %p239 = scmp.ne.s32.totalorder %s224, %s238
      %p240 = scmp.eq.s32.totalorder %s85, 0
      %p241 = por %p239, %p240
      %s243 = sadd.s32 %s242, 1
      %p246 = scmp.eq.s32.totalorder %s79, 1
      %p247 = scmp.ne.s32.totalorder %s242, %s244
      %p248 = scmp.eq.s32.totalorder %s79, 0
      %p249 = por %p247, %p248
      %p250 = scmp.ne.s32.totalorder %s242, %s244
      %p251 = scmp.eq.s32.totalorder %s84, 1
      %p252 = por %p250, %p251
      %p253 = scmp.ne.s32.totalorder %s244, %s245
      %p254 = scmp.eq.s32.totalorder %s84, 0
      %p255 = por %p253, %p254
      %p256 = scmp.ne.s32.totalorder %s244, %s245
      %p257 = scmp.eq.s32.totalorder %s85, 1
      %p258 = por %p256, %p257
      %p260 = scmp.ne.s32.totalorder %s245, %s259
      %p261 = scmp.eq.s32.totalorder %s85, 0
      %p262 = por %p260, %p261
      %s264 = sadd.s32 %s263, 1
      %p267 = scmp.eq.s32.totalorder %s79, 1
      %p268 = scmp.ne.s32.totalorder %s263, %s265
      %p269 = scmp.eq.s32.totalorder %s79, 0
      %p270 = por %p268, %p269
      %p271 = scmp.ne.s32.totalorder %s263, %s265
      %p272 = scmp.eq.s32.totalorder %s84, 1
      %p273 = por %p271, %p272
      %p274 = scmp.ne.s32.totalorder %s265, %s266
      %p275 = scmp.eq.s32.totalorder %s84, 0
      %p276 = por %p274, %p275
      %p277 = scmp.ne.s32.totalorder %s265, %s266
      %p278 = scmp.eq.s32.totalorder %s85, 1
      %p279 = por %p277, %p278
      %p281 = scmp.ne.s32.totalorder %s266, %s280
      %p282 = scmp.eq.s32.totalorder %s85, 0
      %p283 = por %p281, %p282
      %s285 = sadd.s32 %s284, 1
      %p288 = scmp.eq.s32.totalorder %s79, 1
      %p289 = scmp.ne.s32.totalorder %s284, %s286
      %p290 = scmp.eq.s32.totalorder %s79, 0
      %p291 = por %p289, %p290
      %p292 = scmp.ne.s32.totalorder %s284, %s286
      %p293 = scmp.eq.s32.totalorder %s84, 1
      %p294 = por %p292, %p293
      %p295 = scmp.ne.s32.totalorder %s286, %s287
      %p296 = scmp.eq.s32.totalorder %s84, 0
      %p297 = por %p295, %p296
      %p298 = scmp.ne.s32.totalorder %s286, %s287
      %p299 = scmp.eq.s32.totalorder %s85, 1
      %p300 = por %p298, %p299
      %p302 = scmp.ne.s32.totalorder %s287, %s301
      %p303 = scmp.eq.s32.totalorder %s85, 0
      %p304 = por %p302, %p303
      %s306 = sadd.s32 %s305, 1
      %p309 = scmp.eq.s32.totalorder %s79, 1
      %p310 = scmp.ne.s32.totalorder %s305, %s307
      %p311 = scmp.eq.s32.totalorder %s79, 0
      %p312 = por %p310, %p311
      %p313 = scmp.ne.s32.totalorder %s305, %s307
      %p314 = scmp.eq.s32.totalorder %s84, 1
      %p315 = por %p313, %p314
      %p316 = scmp.ne.s32.totalorder %s307, %s308
      %p317 = scmp.eq.s32.totalorder %s84, 0
      %p318 = por %p316, %p317
      %p319 = scmp.ne.s32.totalorder %s307, %s308
      %p320 = scmp.eq.s32.totalorder %s85, 1
      %p321 = por %p319, %p320
      %p323 = scmp.ne.s32.totalorder %s308, %s322
      %p324 = scmp.eq.s32.totalorder %s85, 0
      %p325 = por %p323, %p324
      %s327 = sadd.s32 %s326, 1
      %p330 = scmp.eq.s32.totalorder %s79, 1
      %p331 = scmp.ne.s32.totalorder %s326, %s328
      %p332 = scmp.eq.s32.totalorder %s79, 0
      %p333 = por %p331, %p332
      %p334 = scmp.ne.s32.totalorder %s326, %s328
      %p335 = scmp.eq.s32.totalorder %s84, 1
      %p336 = por %p334, %p335
      %p337 = scmp.ne.s32.totalorder %s328, %s329
      %p338 = scmp.eq.s32.totalorder %s84, 0
      %p339 = por %p337, %p338
      %p340 = scmp.ne.s32.totalorder %s328, %s329
      %p341 = scmp.eq.s32.totalorder %s85, 1
      %p342 = por %p340, %p341
      %p344 = scmp.ne.s32.totalorder %s329, %s343
      %p345 = scmp.eq.s32.totalorder %s85, 0
      %p346 = por %p344, %p345
      %s348 = sadd.s32 %s347, 1
      %p351 = scmp.eq.s32.totalorder %s79, 1
      %p352 = scmp.ne.s32.totalorder %s347, %s349
      %p353 = scmp.eq.s32.totalorder %s79, 0
      %p354 = por %p352, %p353
      %p355 = scmp.ne.s32.totalorder %s347, %s349
      %p356 = scmp.eq.s32.totalorder %s84, 1
      %p357 = por %p355, %p356
      %p358 = scmp.ne.s32.totalorder %s349, %s350
      %p359 = scmp.eq.s32.totalorder %s84, 0
      %p360 = por %p358, %p359
      %p361 = scmp.ne.s32.totalorder %s349, %s350
      %p362 = scmp.eq.s32.totalorder %s85, 1
      %p363 = por %p361, %p362
      %p365 = scmp.ne.s32.totalorder %s350, %s364
      %p366 = scmp.eq.s32.totalorder %s85, 0
      %p367 = por %p365, %p366
      %s369 = sadd.s32 %s368, 1
      %p372 = scmp.eq.s32.totalorder %s79, 1
      %p373 = scmp.ne.s32.totalorder %s368, %s370
      %p374 = scmp.eq.s32.totalorder %s79, 0
      %p375 = por %p373, %p374
      %p376 = scmp.ne.s32.totalorder %s368, %s370
      %p377 = scmp.eq.s32.totalorder %s84, 1
      %p378 = por %p376, %p377
      %p379 = scmp.ne.s32.totalorder %s370, %s371
      %p380 = scmp.eq.s32.totalorder %s84, 0
      %p381 = por %p379, %p380
      %p382 = scmp.ne.s32.totalorder %s370, %s371
      %p383 = scmp.eq.s32.totalorder %s85, 1
      %p384 = por %p382, %p383
      %p386 = scmp.ne.s32.totalorder %s371, %s385
      %p387 = scmp.eq.s32.totalorder %s85, 0
      %p388 = por %p386, %p387
      %s390 = sadd.s32 %s389, 1
      %p393 = scmp.eq.s32.totalorder %s79, 1
      %p394 = scmp.ne.s32.totalorder %s389, %s391
      %p395 = scmp.eq.s32.totalorder %s79, 0
      %p396 = por %p394, %p395
      %p397 = scmp.ne.s32.totalorder %s389, %s391
      %p398 = scmp.eq.s32.totalorder %s84, 1
      %p399 = por %p397, %p398
      %p400 = scmp.ne.s32.totalorder %s391, %s392
      %p401 = scmp.eq.s32.totalorder %s84, 0
      %p402 = por %p400, %p401
      %p403 = scmp.ne.s32.totalorder %s391, %s392
      %p404 = scmp.eq.s32.totalorder %s85, 1
      %p405 = por %p403, %p404
      %p407 = scmp.ne.s32.totalorder %s392, %s406
      %p408 = scmp.eq.s32.totalorder %s85, 0
      %p409 = por %p407, %p408
      %s411 = sadd.s32 %s410, 1
      %p414 = scmp.eq.s32.totalorder %s79, 1
      %p415 = scmp.ne.s32.totalorder %s410, %s412
      %p416 = scmp.eq.s32.totalorder %s79, 0
      %p417 = por %p415, %p416
      %p418 = scmp.ne.s32.totalorder %s410, %s412
      %p419 = scmp.eq.s32.totalorder %s84, 1
      %p420 = por %p418, %p419
      %p421 = scmp.ne.s32.totalorder %s412, %s413
      %p422 = scmp.eq.s32.totalorder %s84, 0
      %p423 = por %p421, %p422
      %p424 = scmp.ne.s32.totalorder %s412, %s413
      %p425 = scmp.eq.s32.totalorder %s85, 1
      %p426 = por %p424, %p425
      %p428 = scmp.ne.s32.totalorder %s413, %s427
      %p429 = scmp.eq.s32.totalorder %s85, 0
      %p430 = por %p428, %p429
      %s432 = sadd.s32 %s431, 1
      %p435 = scmp.eq.s32.totalorder %s79, 1
      %p436 = scmp.ne.s32.totalorder %s431, %s433
      %p437 = scmp.eq.s32.totalorder %s79, 0
      %p438 = por %p436, %p437
      %p439 = scmp.ne.s32.totalorder %s431, %s433
      %p440 = scmp.eq.s32.totalorder %s84, 1
      %p441 = por %p439, %p440
      %p442 = scmp.ne.s32.totalorder %s433, %s434
      %p443 = scmp.eq.s32.totalorder %s84, 0
      %p444 = por %p442, %p443
      %p445 = scmp.ne.s32.totalorder %s433, %s434
      %p446 = scmp.eq.s32.totalorder %s85, 1
      %p447 = por %p445, %p446
      %p449 = scmp.ne.s32.totalorder %s434, %s448
      %p450 = scmp.eq.s32.totalorder %s85, 0
      %p451 = por %p449, %p450
      %s453 = sadd.s32 %s452, 1
      %p456 = scmp.eq.s32.totalorder %s79, 1
      %p457 = scmp.ne.s32.totalorder %s452, %s454
      %p458 = scmp.eq.s32.totalorder %s79, 0
      %p459 = por %p457, %p458
      %p460 = scmp.ne.s32.totalorder %s452, %s454
      %p461 = scmp.eq.s32.totalorder %s84, 1
      %p462 = por %p460, %p461
      %p463 = scmp.ne.s32.totalorder %s454, %s455
      %p464 = scmp.eq.s32.totalorder %s84, 0
      %p465 = por %p463, %p464
      %p466 = scmp.ne.s32.totalorder %s454, %s455
      %p467 = scmp.eq.s32.totalorder %s85, 1
      %p468 = por %p466, %p467
      %p470 = scmp.ne.s32.totalorder %s455, %s469
      %p471 = scmp.eq.s32.totalorder %s85, 0
      %p472 = por %p470, %p471
      %s474 = sadd.s32 %s473, 1
      %p477 = scmp.eq.s32.totalorder %s79, 1
      %p478 = scmp.ne.s32.totalorder %s473, %s475
      %p479 = scmp.eq.s32.totalorder %s79, 0
      %p480 = por %p478, %p479
      %p481 = scmp.ne.s32.totalorder %s473, %s475
      %p482 = scmp.eq.s32.totalorder %s84, 1
      %p483 = por %p481, %p482
      %p484 = scmp.ne.s32.totalorder %s475, %s476
      %p485 = scmp.eq.s32.totalorder %s84, 0
      %p486 = por %p484, %p485
      %p487 = scmp.ne.s32.totalorder %s475, %s476
      %p488 = scmp.eq.s32.totalorder %s85, 1
      %p489 = por %p487, %p488
      %p491 = scmp.ne.s32.totalorder %s476, %s490
      %p492 = scmp.eq.s32.totalorder %s85, 0
      %p493 = por %p491, %p492
      %s495 = sadd.s32 %s494, 1
      %p498 = scmp.eq.s32.totalorder %s79, 1
      %p499 = scmp.ne.s32.totalorder %s494, %s496
      %p500 = scmp.eq.s32.totalorder %s79, 0
      %p501 = por %p499, %p500
      %p502 = scmp.ne.s32.totalorder %s494, %s496
      %p503 = scmp.eq.s32.totalorder %s84, 1
      %p504 = por %p502, %p503
      %p505 = scmp.ne.s32.totalorder %s496, %s497
      %p506 = scmp.eq.s32.totalorder %s84, 0
      %p507 = por %p505, %p506
      %p508 = scmp.ne.s32.totalorder %s496, %s497
      %p509 = scmp.eq.s32.totalorder %s85, 1
      %p510 = por %p508, %p509
      %p512 = scmp.ne.s32.totalorder %s497, %s511
      %p513 = scmp.eq.s32.totalorder %s85, 0
      %p514 = por %p512, %p513
      %s516 = sadd.s32 %s515, 1
      %p519 = scmp.eq.s32.totalorder %s79, 1
      %p520 = scmp.ne.s32.totalorder %s515, %s517
      %p521 = scmp.eq.s32.totalorder %s79, 0
      %p522 = por %p520, %p521
      %p523 = scmp.ne.s32.totalorder %s515, %s517
      %p524 = scmp.eq.s32.totalorder %s84, 1
      %p525 = por %p523, %p524
      %p526 = scmp.ne.s32.totalorder %s517, %s518
      %p527 = scmp.eq.s32.totalorder %s84, 0
      %p528 = por %p526, %p527
      %p529 = scmp.ne.s32.totalorder %s517, %s518
      %p530 = scmp.eq.s32.totalorder %s85, 1
      %p531 = por %p529, %p530
      %p533 = scmp.ne.s32.totalorder %s518, %s532
      %p534 = scmp.eq.s32.totalorder %s85, 0
      %p535 = por %p533, %p534
      %s537 = sadd.s32 %s536, 1
      %p540 = scmp.eq.s32.totalorder %s79, 1
      %p541 = scmp.ne.s32.totalorder %s536, %s538
      %p542 = scmp.eq.s32.totalorder %s79, 0
      %p543 = por %p541, %p542
      %p544 = scmp.ne.s32.totalorder %s536, %s538
      %p545 = scmp.eq.s32.totalorder %s84, 1
      %p546 = por %p544, %p545
      %p547 = scmp.ne.s32.totalorder %s538, %s539
      %p548 = scmp.eq.s32.totalorder %s84, 0
      %p549 = por %p547, %p548
      %p550 = scmp.ne.s32.totalorder %s538, %s539
      %p551 = scmp.eq.s32.totalorder %s85, 1
      %p552 = por %p550, %p551
      %p554 = scmp.ne.s32.totalorder %s539, %s553
      %p555 = scmp.eq.s32.totalorder %s85, 0
      %p556 = por %p554, %p555
      %s558 = sadd.s32 %s557, 1
      %p561 = scmp.eq.s32.totalorder %s79, 1
      %p562 = scmp.ne.s32.totalorder %s557, %s559
      %p563 = scmp.eq.s32.totalorder %s79, 0
      %p564 = por %p562, %p563
      %p565 = scmp.ne.s32.totalorder %s557, %s559
      %p566 = scmp.eq.s32.totalorder %s84, 1
      %p567 = por %p565, %p566
      %p568 = scmp.ne.s32.totalorder %s559, %s560
      %p569 = scmp.eq.s32.totalorder %s84, 0
      %p570 = por %p568, %p569
      %p571 = scmp.ne.s32.totalorder %s559, %s560
      %p572 = scmp.eq.s32.totalorder %s85, 1
      %p573 = por %p571, %p572
      %p575 = scmp.ne.s32.totalorder %s560, %s574
      %p576 = scmp.eq.s32.totalorder %s85, 0
      %p577 = por %p575, %p576
      %s579 = sadd.s32 %s578, 1
      %p582 = scmp.eq.s32.totalorder %s79, 1
      %p583 = scmp.ne.s32.totalorder %s578, %s580
      %p584 = scmp.eq.s32.totalorder %s79, 0
      %p585 = por %p583, %p584
      %p586 = scmp.ne.s32.totalorder %s578, %s580
      %p587 = scmp.eq.s32.totalorder %s84, 1
      %p588 = por %p586, %p587
      %p589 = scmp.ne.s32.totalorder %s580, %s581
      %p590 = scmp.eq.s32.totalorder %s84, 0
      %p591 = por %p589, %p590
      %p592 = scmp.ne.s32.totalorder %s580, %s581
      %p593 = scmp.eq.s32.totalorder %s85, 1
      %p594 = por %p592, %p593
      %p596 = scmp.ne.s32.totalorder %s581, %s595
      %p597 = scmp.eq.s32.totalorder %s85, 0
      %p598 = por %p596, %p597
      %s600 = sadd.s32 %s599, 1
      %p603 = scmp.eq.s32.totalorder %s79, 1
      %p604 = scmp.ne.s32.totalorder %s599, %s601
      %p605 = scmp.eq.s32.totalorder %s79, 0
      %p606 = por %p604, %p605
      %p607 = scmp.ne.s32.totalorder %s599, %s601
      %p608 = scmp.eq.s32.totalorder %s84, 1
      %p609 = por %p607, %p608
      %p610 = scmp.ne.s32.totalorder %s601, %s602
      %p611 = scmp.eq.s32.totalorder %s84, 0
      %p612 = por %p610, %p611
      %p613 = scmp.ne.s32.totalorder %s601, %s602
      %p614 = scmp.eq.s32.totalorder %s85, 1
      %p615 = por %p613, %p614
      %p617 = scmp.ne.s32.totalorder %s602, %s616
      %p618 = scmp.eq.s32.totalorder %s85, 0
      %p619 = por %p617, %p618
      %s621 = sadd.s32 %s620, 1
      %p624 = scmp.eq.s32.totalorder %s79, 1
      %p625 = scmp.ne.s32.totalorder %s620, %s622
      %p626 = scmp.eq.s32.totalorder %s79, 0
      %p627 = por %p625, %p626
      %p628 = scmp.ne.s32.totalorder %s620, %s622
      %p629 = scmp.eq.s32.totalorder %s84, 1
      %p630 = por %p628, %p629
      %p631 = scmp.ne.s32.totalorder %s622, %s623
      %p632 = scmp.eq.s32.totalorder %s84, 0
      %p633 = por %p631, %p632
      %p634 = scmp.ne.s32.totalorder %s622, %s623
      %p635 = scmp.eq.s32.totalorder %s85, 1
      %p636 = por %p634, %p635
      %p638 = scmp.ne.s32.totalorder %s623, %s637
      %p639 = scmp.eq.s32.totalorder %s85, 0
      %p640 = por %p638, %p639
      %s642 = sadd.s32 %s641, 1
      %p645 = scmp.eq.s32.totalorder %s79, 1
      %p646 = scmp.ne.s32.totalorder %s641, %s643
      %p647 = scmp.eq.s32.totalorder %s79, 0
      %p648 = por %p646, %p647
      %p649 = scmp.ne.s32.totalorder %s641, %s643
      %p650 = scmp.eq.s32.totalorder %s84, 1
      %p651 = por %p649, %p650
      %p652 = scmp.ne.s32.totalorder %s643, %s644
      %p653 = scmp.eq.s32.totalorder %s84, 0
      %p654 = por %p652, %p653
      %p655 = scmp.ne.s32.totalorder %s643, %s644
      %p656 = scmp.eq.s32.totalorder %s85, 1
      %p657 = por %p655, %p656
      %p659 = scmp.ne.s32.totalorder %s644, %s658
      %p660 = scmp.eq.s32.totalorder %s85, 0
      %p661 = por %p659, %p660
      %s663 = sadd.s32 %s662, 1
      %p666 = scmp.eq.s32.totalorder %s79, 1
      %p667 = scmp.ne.s32.totalorder %s662, %s664
      %p668 = scmp.eq.s32.totalorder %s79, 0
      %p669 = por %p667, %p668
      %p670 = scmp.ne.s32.totalorder %s662, %s664
      %p671 = scmp.eq.s32.totalorder %s84, 1
      %p672 = por %p670, %p671
      %p673 = scmp.ne.s32.totalorder %s664, %s665
      %p674 = scmp.eq.s32.totalorder %s84, 0
      %p675 = por %p673, %p674
      %p676 = scmp.ne.s32.totalorder %s664, %s665
      %p677 = scmp.eq.s32.totalorder %s85, 1
      %p678 = por %p676, %p677
      %p680 = scmp.ne.s32.totalorder %s665, %s679
      %p681 = scmp.eq.s32.totalorder %s85, 0
      %p682 = por %p680, %p681
      %s684 = sadd.s32 %s683, 1
      %p687 = scmp.eq.s32.totalorder %s79, 1
      %p688 = scmp.ne.s32.totalorder %s683, %s685
      %p689 = scmp.eq.s32.totalorder %s79, 0
      %p690 = por %p688, %p689
      %p691 = scmp.ne.s32.totalorder %s683, %s685
      %p692 = scmp.eq.s32.totalorder %s84, 1
      %p693 = por %p691, %p692
      %p694 = scmp.ne.s32.totalorder %s685, %s686
      %p695 = scmp.eq.s32.totalorder %s84, 0
      %p696 = por %p694, %p695
      %p697 = scmp.ne.s32.totalorder %s685, %s686
      %p698 = scmp.eq.s32.totalorder %s85, 1
      %p699 = por %p697, %p698
      %p701 = scmp.ne.s32.totalorder %s686, %s700
      %p702 = scmp.eq.s32.totalorder %s85, 0
      %p703 = por %p701, %p702
      %s705 = sadd.s32 %s704, 1
      %p708 = scmp.eq.s32.totalorder %s79, 1
      %p709 = scmp.ne.s32.totalorder %s704, %s706
      %p710 = scmp.eq.s32.totalorder %s79, 0
      %p711 = por %p709, %p710
      %p712 = scmp.ne.s32.totalorder %s704, %s706
      %p713 = scmp.eq.s32.totalorder %s84, 1
      %p714 = por %p712, %p713
      %p715 = scmp.ne.s32.totalorder %s706, %s707
      %p716 = scmp.eq.s32.totalorder %s84, 0
      %p717 = por %p715, %p716
      %p718 = scmp.ne.s32.totalorder %s706, %s707
      %p719 = scmp.eq.s32.totalorder %s85, 1
      %p720 = por %p718, %p719
      %p722 = scmp.ne.s32.totalorder %s707, %s721
      %p723 = scmp.eq.s32.totalorder %s85, 0
      %p724 = por %p722, %p723
      %s725 = ssub.s32 %s86, %s98
      %s726 = ssub.s32 %s87, %s94
      %s727 = sor.u32 %s725, %s726
      %p728 = scmp.eq.s32.totalorder %s727, 0
      %s730 = sadd.s32 %s729, 1
      %s731 = scalar_select %p728, %s729, %s730
      %p734 = pneg %p728
      %p735 = scmp.eq.s32.totalorder %s79, 1
      %p736 = por %p734, %p735
      %p737 = scmp.ne.s32.totalorder %s729, %s732
      %p738 = scmp.eq.s32.totalorder %s79, 0
      %p739 = por %p737, %p738
      %p740 = scmp.ne.s32.totalorder %s729, %s732
      %p741 = scmp.eq.s32.totalorder %s84, 1
      %p742 = por %p740, %p741
      %p743 = scmp.ne.s32.totalorder %s732, %s733
      %p744 = scmp.eq.s32.totalorder %s84, 0
      %p745 = por %p743, %p744
      %p746 = scmp.ne.s32.totalorder %s732, %s733
      %p747 = scmp.eq.s32.totalorder %s85, 1
      %p748 = por %p746, %p747
      %p750 = scmp.ne.s32.totalorder %s733, %s749
      %p751 = scmp.eq.s32.totalorder %s85, 0
      %p752 = por %p750, %p751
      %p753 = scmp.le.s32.totalorder 1, %s79
      %p754 = scmp.lt.s32.totalorder %s79, 3
      %p755 = pnand %p753, %p754
      %p756 = pneg %p755
      // Predicated region
      $region9: #{tpu_custom_call.1} parent=5 // pred_check
        _
      $region10: #{tpu_custom_call.1} parent=5 // pred_check_branch
        %758 = sbr.rel (%p755) target = $region12
      $region11: #{tpu_custom_call.1} parent=5 // pred_region
        %s759 = ssub.s32 %s79, 1
        // Predicated region
        $region13: #{tpu_custom_call.1} parent=11 // pred_check
          %p760 = pneg %p192
        $region14: #{tpu_custom_call.1} parent=11 // pred_check_branch
          %762 = sbr.rel (%p760) target = $region16
        $region15: #{tpu_custom_call.1} parent=11 // pred_region
          _
        $region16: #{tpu_custom_call.1} parent=11 // pred_fallthru
          _
        // Predicated region
        $region17: #{tpu_custom_call.1} parent=11 // pred_check
          %p763 = pneg %p213
        $region18: #{tpu_custom_call.1} parent=11 // pred_check_branch
          %765 = sbr.rel (%p763) target = $region20
        $region19: #{tpu_custom_call.1} parent=11 // pred_region
          %s767 = ssub.s32 16, 16
          %768 = vsyncadd [#allocation10], %s767
          %s770 = sshll.u32 [#allocation9], 4
          %s771 = int_to_ptr.vmem [resolvable:$true] %s770
          %773 = dma.hbm_to_vmem [thread:$0]  %s9, 16, %s771, [#allocation10]
        $region20: #{tpu_custom_call.1} parent=11 // pred_fallthru
          _
        // Predicated region
        $region21: #{tpu_custom_call.1} parent=11 // pred_check
          %p774 = pneg %p234
        $region22: #{tpu_custom_call.1} parent=11 // pred_check_branch
          %776 = sbr.rel (%p774) target = $region24
        $region23: #{tpu_custom_call.1} parent=11 // pred_region
          _
        $region24: #{tpu_custom_call.1} parent=11 // pred_fallthru
          _
        // Predicated region
        $region25: #{tpu_custom_call.1} parent=11 // pred_check
          %p777 = pneg %p255
        $region26: #{tpu_custom_call.1} parent=11 // pred_check_branch
          %779 = sbr.rel (%p777) target = $region28
        $region27: #{tpu_custom_call.1} parent=11 // pred_region
          %s781 = ssub.s32 16, 16
          %782 = vsyncadd [#allocation10], %s781
          %s784 = sshll.u32 [#allocation11], 4
          %s785 = int_to_ptr.vmem [resolvable:$true] %s784
          %787 = dma.hbm_to_vmem [thread:$0]  %s13, 16, %s785, [#allocation10]
        $region28: #{tpu_custom_call.1} parent=11 // pred_fallthru
          _
        // Predicated region
        $region29: #{tpu_custom_call.1} parent=11 // pred_check
          %p788 = pneg %p276
        $region30: #{tpu_custom_call.1} parent=11 // pred_check_branch
          %790 = sbr.rel (%p788) target = $region32
        $region31: #{tpu_custom_call.1} parent=11 // pred_region
          _
        $region32: #{tpu_custom_call.1} parent=11 // pred_fallthru
          _
        // Predicated region
        $region33: #{tpu_custom_call.1} parent=11 // pred_check
          %p791 = pneg %p297
        $region34: #{tpu_custom_call.1} parent=11 // pred_check_branch
          %793 = sbr.rel (%p791) target = $region36
        $region35: #{tpu_custom_call.1} parent=11 // pred_region
          %s795 = ssub.s32 16, 16
          %796 = vsyncadd [#allocation13], %s795
          %s798 = sshll.u32 [#allocation12], 4
          %s799 = int_to_ptr.vmem [resolvable:$true] %s798
          %801 = dma.hbm_to_vmem [thread:$0]  %s17, 16, %s799, [#allocation13]
        $region36: #{tpu_custom_call.1} parent=11 // pred_fallthru
          _
        // Predicated region
        $region37: #{tpu_custom_call.1} parent=11 // pred_check
          %p802 = pneg %p318
        $region38: #{tpu_custom_call.1} parent=11 // pred_check_branch
          %804 = sbr.rel (%p802) target = $region40
        $region39: #{tpu_custom_call.1} parent=11 // pred_region
          _
        $region40: #{tpu_custom_call.1} parent=11 // pred_fallthru
          _
        // Predicated region
        $region41: #{tpu_custom_call.1} parent=11 // pred_check
          %p805 = pneg %p339
        $region42: #{tpu_custom_call.1} parent=11 // pred_check_branch
          %807 = sbr.rel (%p805) target = $region44
        $region43: #{tpu_custom_call.1} parent=11 // pred_region
          %s809 = ssub.s32 16, 16
          %810 = vsyncadd [#allocation13], %s809
          %s812 = sshll.u32 [#allocation14], 4
          %s813 = int_to_ptr.vmem [resolvable:$true] %s812
          %815 = dma.hbm_to_vmem [thread:$0]  %s21, 16, %s813, [#allocation13]
        $region44: #{tpu_custom_call.1} parent=11 // pred_fallthru
          _
        // Predicated region
        $region45: #{tpu_custom_call.1} parent=11 // pred_check
          %p816 = pneg %p360
        $region46: #{tpu_custom_call.1} parent=11 // pred_check_branch
          %818 = sbr.rel (%p816) target = $region48
        $region47: #{tpu_custom_call.1} parent=11 // pred_region
          %s820 = ssub.s32 256, 256
          %821 = vsyncadd [#allocation16], %s820
          %s822 = sshll.u32 [#allocation15], 4
          %s823 = int_to_ptr.vmem [resolvable:$true] %s822
          %828 = dma.hbm_to_vmem [thread:$0]  %s23, 256, %s823, [#allocation16], 64, 64, 4
        $region48: #{tpu_custom_call.1} parent=11 // pred_fallthru
          _
        // Predicated region
        $region49: #{tpu_custom_call.1} parent=11 // pred_check
          %p829 = pneg %p381
        $region50: #{tpu_custom_call.1} parent=11 // pred_check_branch
          %831 = sbr.rel (%p829) target = $region52
        $region51: #{tpu_custom_call.1} parent=11 // pred_region
          %s833 = ssub.s32 16, 16
          %834 = vsyncadd [#allocation16], %s833
          %s836 = sshll.u32 [#allocation17], 4
          %s837 = int_to_ptr.vmem [resolvable:$true] %s836
          %839 = dma.hbm_to_vmem [thread:$0]  %s25, 16, %s837, [#allocation16]
        $region52: #{tpu_custom_call.1} parent=11 // pred_fallthru
          _
        // Predicated region
        $region53: #{tpu_custom_call.1} parent=11 // pred_check
          %p840 = pneg %p402
        $region54: #{tpu_custom_call.1} parent=11 // pred_check_branch
          %842 = sbr.rel (%p840) target = $region56
        $region55: #{tpu_custom_call.1} parent=11 // pred_region
          _
        $region56: #{tpu_custom_call.1} parent=11 // pred_fallthru
          _
        // Predicated region
        $region57: #{tpu_custom_call.1} parent=11 // pred_check
          %p843 = pneg %p423
        $region58: #{tpu_custom_call.1} parent=11 // pred_check_branch
          %845 = sbr.rel (%p843) target = $region60
        $region59: #{tpu_custom_call.1} parent=11 // pred_region
          %s847 = ssub.s32 16, 16
          %848 = vsyncadd [#allocation19], %s847
          %s850 = sshll.u32 [#allocation18], 4
          %s851 = int_to_ptr.vmem [resolvable:$true] %s850
          %853 = dma.hbm_to_vmem [thread:$0]  %s29, 16, %s851, [#allocation19]
        $region60: #{tpu_custom_call.1} parent=11 // pred_fallthru
          _
        // Predicated region
        $region61: #{tpu_custom_call.1} parent=11 // pred_check
          %p854 = pneg %p444
        $region62: #{tpu_custom_call.1} parent=11 // pred_check_branch
          %856 = sbr.rel (%p854) target = $region64
        $region63: #{tpu_custom_call.1} parent=11 // pred_region
          %s858 = ssub.s32 256, 256
          %859 = vsyncadd [#allocation19], %s858
          %s860 = sshll.u32 [#allocation20], 4
          %s861 = int_to_ptr.vmem [resolvable:$true] %s860
          %866 = dma.hbm_to_vmem [thread:$0]  %s31, 256, %s861, [#allocation19], 64, 64, 4
        $region64: #{tpu_custom_call.1} parent=11 // pred_fallthru
          _
        // Predicated region
        $region65: #{tpu_custom_call.1} parent=11 // pred_check
          %p867 = pneg %p465
        $region66: #{tpu_custom_call.1} parent=11 // pred_check_branch
          %869 = sbr.rel (%p867) target = $region68
        $region67: #{tpu_custom_call.1} parent=11 // pred_region
          %s871 = ssub.s32 16, 16
          %872 = vsyncadd [#allocation22], %s871
          %s874 = sshll.u32 [#allocation21], 4
          %s875 = int_to_ptr.vmem [resolvable:$true] %s874
          %877 = dma.hbm_to_vmem [thread:$0]  %s33, 16, %s875, [#allocation22]
        $region68: #{tpu_custom_call.1} parent=11 // pred_fallthru
          _
        // Predicated region
        $region69: #{tpu_custom_call.1} parent=11 // pred_check
          %p878 = pneg %p486
        $region70: #{tpu_custom_call.1} parent=11 // pred_check_branch
          %880 = sbr.rel (%p878) target = $region72
        $region71: #{tpu_custom_call.1} parent=11 // pred_region
          _
        $region72: #{tpu_custom_call.1} parent=11 // pred_fallthru
          _
        // Predicated region
        $region73: #{tpu_custom_call.1} parent=11 // pred_check
          %p881 = pneg %p507
        $region74: #{tpu_custom_call.1} parent=11 // pred_check_branch
          %883 = sbr.rel (%p881) target = $region76
        $region75: #{tpu_custom_call.1} parent=11 // pred_region
          _
        $region76: #{tpu_custom_call.1} parent=11 // pred_fallthru
          _
        // Predicated region
        $region77: #{tpu_custom_call.1} parent=11 // pred_check
          %p884 = pneg %p528
        $region78: #{tpu_custom_call.1} parent=11 // pred_check_branch
          %886 = sbr.rel (%p884) target = $region80
        $region79: #{tpu_custom_call.1} parent=11 // pred_region
          %s888 = ssub.s32 256, 256
          %889 = vsyncadd [#allocation22], %s888
          %s890 = sshll.u32 [#allocation23], 4
          %s891 = int_to_ptr.vmem [resolvable:$true] %s890
          %896 = dma.hbm_to_vmem [thread:$0]  %s39, 256, %s891, [#allocation22], 64, 64, 4
        $region80: #{tpu_custom_call.1} parent=11 // pred_fallthru
          _
        // Predicated region
        $region81: #{tpu_custom_call.1} parent=11 // pred_check
          %p897 = pneg %p549
        $region82: #{tpu_custom_call.1} parent=11 // pred_check_branch
          %899 = sbr.rel (%p897) target = $region84
        $region83: #{tpu_custom_call.1} parent=11 // pred_region
          _
        $region84: #{tpu_custom_call.1} parent=11 // pred_fallthru
          _
        // Predicated region
        $region85: #{tpu_custom_call.1} parent=11 // pred_check
          %p900 = pneg %p570
        $region86: #{tpu_custom_call.1} parent=11 // pred_check_branch
          %902 = sbr.rel (%p900) target = $region88
        $region87: #{tpu_custom_call.1} parent=11 // pred_region
          _
        $region88: #{tpu_custom_call.1} parent=11 // pred_fallthru
          _
        // Predicated region
        $region89: #{tpu_custom_call.1} parent=11 // pred_check
          %p903 = pneg %p591
        $region90: #{tpu_custom_call.1} parent=11 // pred_check_branch
          %905 = sbr.rel (%p903) target = $region92
        $region91: #{tpu_custom_call.1} parent=11 // pred_region
          _
        $region92: #{tpu_custom_call.1} parent=11 // pred_fallthru
          _
        // Predicated region
        $region93: #{tpu_custom_call.1} parent=11 // pred_check
          %p906 = pneg %p612
        $region94: #{tpu_custom_call.1} parent=11 // pred_check_branch
          %908 = sbr.rel (%p906) target = $region96
        $region95: #{tpu_custom_call.1} parent=11 // pred_region
          _
        $region96: #{tpu_custom_call.1} parent=11 // pred_fallthru
          _
        // Predicated region
        $region97: #{tpu_custom_call.1} parent=11 // pred_check
          %p909 = pneg %p633
        $region98: #{tpu_custom_call.1} parent=11 // pred_check_branch
          %911 = sbr.rel (%p909) target = $region100
        $region99: #{tpu_custom_call.1} parent=11 // pred_region
          _
        $region100: #{tpu_custom_call.1} parent=11 // pred_fallthru
          _
        // Predicated region
        $region101: #{tpu_custom_call.1} parent=11 // pred_check
          %p912 = pneg %p654
        $region102: #{tpu_custom_call.1} parent=11 // pred_check_branch
          %914 = sbr.rel (%p912) target = $region104
        $region103: #{tpu_custom_call.1} parent=11 // pred_region
          _
        $region104: #{tpu_custom_call.1} parent=11 // pred_fallthru
          _
        // Predicated region
        $region105: #{tpu_custom_call.1} parent=11 // pred_check
          %p915 = pneg %p675
        $region106: #{tpu_custom_call.1} parent=11 // pred_check_branch
          %917 = sbr.rel (%p915) target = $region108
        $region107: #{tpu_custom_call.1} parent=11 // pred_region
          _
        $region108: #{tpu_custom_call.1} parent=11 // pred_fallthru
          _
        // Predicated region
        $region109: #{tpu_custom_call.1} parent=11 // pred_check
          %p918 = pneg %p696
        $region110: #{tpu_custom_call.1} parent=11 // pred_check_branch
          %920 = sbr.rel (%p918) target = $region112
        $region111: #{tpu_custom_call.1} parent=11 // pred_region
          _
        $region112: #{tpu_custom_call.1} parent=11 // pred_fallthru
          _
        // Predicated region
        $region113: #{tpu_custom_call.1} parent=11 // pred_check
          %p921 = pneg %p717
        $region114: #{tpu_custom_call.1} parent=11 // pred_check_branch
          %923 = sbr.rel (%p921) target = $region116
        $region115: #{tpu_custom_call.1} parent=11 // pred_region
          _
        $region116: #{tpu_custom_call.1} parent=11 // pred_fallthru
          _
      $region12: #{tpu_custom_call.1} parent=5 // pred_fallthru
        _
      %p924 = scmp.lt.s32.totalorder %s79, 2
      // Predicated region
      $region117: #{tpu_custom_call.1} parent=5 // pred_check
        %p925 = pneg %p924
      $region118: #{tpu_custom_call.1} parent=5 // pred_check_branch
        %927 = sbr.rel (%p925) target = $region120
      $region119: #{tpu_custom_call.1} parent=5 // pred_region
        // Predicated region
        $region121: #{tpu_custom_call.1} parent=119 // pred_check
          %p928 = pneg %p113
        $region122: #{tpu_custom_call.1} parent=119 // pred_check_branch
          %930 = sbr.rel (%p928) target = $region124
        $region123: #{tpu_custom_call.1} parent=119 // pred_region
          %s931 = sand.u32 %s103, 1
          %s932 = scalar_lea.sflag [#allocation4], %s931
          %s933 = sand.u32 %s103, 1
          %s934 = smul.addr %s933, 4
          %s935 = scalar_lea.vmem [#allocation3], %s934
          %s937 = ssub.s32 64, 64
          %938 = vsyncadd %s932, %s937
          %s939 = sadd.s32 %s87, %s86
          %s940 = smul.addr %s939, 64
          %s941 = scalar_lea.hbm %s1, %s940
          %s943 = sshll.u32 %s935, 4
          %s944 = int_to_ptr.vmem [resolvable:$true] %s943
          %946 = dma.hbm_to_vmem [thread:$0]  %s941, 64, %s944, %s932
        $region124: #{tpu_custom_call.1} parent=119 // pred_fallthru
          _
        // Predicated region
        $region125: #{tpu_custom_call.1} parent=119 // pred_check
          %p947 = pneg %p139
        $region126: #{tpu_custom_call.1} parent=119 // pred_check_branch
          %949 = sbr.rel (%p947) target = $region128
        $region127: #{tpu_custom_call.1} parent=119 // pred_region
          %s950 = sand.u32 %s79, 1
          %s951 = scalar_lea.sflag [#allocation7], %s950
          %s952 = sand.u32 %s129, 1
          %s953 = smul.addr %s952, 4
          %s954 = scalar_lea.vmem [#allocation6], %s953
          %s956 = ssub.s32 64, 64
          %957 = vsyncadd %s951, %s956
          %s958 = smul.addr %s86, 64
          %s959 = scalar_lea.hbm %s3, %s958
          %s961 = sshll.u32 %s954, 4
          %s962 = int_to_ptr.vmem [resolvable:$true] %s961
          %964 = dma.hbm_to_vmem [thread:$0]  %s959, 64, %s962, %s951
        $region128: #{tpu_custom_call.1} parent=119 // pred_fallthru
          _
        // Predicated region
        $region129: #{tpu_custom_call.1} parent=119 // pred_check
          %p965 = pneg %p165
        $region130: #{tpu_custom_call.1} parent=119 // pred_check_branch
          %967 = sbr.rel (%p965) target = $region132
        $region131: #{tpu_custom_call.1} parent=119 // pred_region
          %s968 = sand.u32 %s79, 1
          %s969 = scalar_lea.sflag [#allocation7], %s968
          %s970 = sand.u32 %s155, 1
          %s971 = smul.addr %s970, 4
          %s972 = scalar_lea.vmem [#allocation8], %s971
          %s974 = ssub.s32 64, 64
          %975 = vsyncadd %s969, %s974
          %s976 = smul.addr %s86, 64
          %s977 = scalar_lea.hbm %s5, %s976
          %s979 = sshll.u32 %s972, 4
          %s980 = int_to_ptr.vmem [resolvable:$true] %s979
          %982 = dma.hbm_to_vmem [thread:$0]  %s977, 64, %s980, %s969
        $region132: #{tpu_custom_call.1} parent=119 // pred_fallthru
          _
      $region120: #{tpu_custom_call.1} parent=5 // pred_fallthru
        _
      %p983 = scmp.le.s32.totalorder 1, %s79
      %p984 = scmp.lt.s32.totalorder %s79, 3
      %p985 = pnand %p983, %p984
      %p986 = pneg %p985
      // Predicated region
      $region133: #{tpu_custom_call.1} parent=5 // pred_check
        _
      $region134: #{tpu_custom_call.1} parent=5 // pred_check_branch
        %988 = sbr.rel (%p985) target = $region136
      $region135: #{tpu_custom_call.1} parent=5 // pred_region
        %s989 = ssub.s32 %s79, 1
        %s990 = sand.u32 %s106, 1
        %s991 = scalar_lea.sflag [#allocation4], %s990
        %s992 = sand.u32 %s106, 1
        %s993 = smul.addr %s992, 4
        %s994 = scalar_lea.vmem [#allocation3], %s993
        // Predicated region
        $region137: #{tpu_custom_call.1} parent=135 // pred_check
          %p995 = pneg %p119
        $region138: #{tpu_custom_call.1} parent=135 // pred_check_branch
          %997 = sbr.rel (%p995) target = $region140
        $region139: #{tpu_custom_call.1} parent=135 // pred_region
          %998 = dma.done %s991, 64
        $region140: #{tpu_custom_call.1} parent=135 // pred_fallthru
          _
        %s999 = sand.u32 %s84, 1
        %s1000 = scalar_lea.sflag [#allocation7], %s999
        %s1001 = sand.u32 %s132, 1
        %s1002 = smul.addr %s1001, 4
        %s1003 = scalar_lea.vmem [#allocation6], %s1002
        // Predicated region
        $region141: #{tpu_custom_call.1} parent=135 // pred_check
          %p1004 = pneg %p145
        $region142: #{tpu_custom_call.1} parent=135 // pred_check_branch
          %1006 = sbr.rel (%p1004) target = $region144
        $region143: #{tpu_custom_call.1} parent=135 // pred_region
          %1007 = dma.done %s1000, 64
        $region144: #{tpu_custom_call.1} parent=135 // pred_fallthru
          _
        %s1008 = sand.u32 %s84, 1
        %s1009 = scalar_lea.sflag [#allocation7], %s1008
        %s1010 = sand.u32 %s158, 1
        %s1011 = smul.addr %s1010, 4
        %s1012 = scalar_lea.vmem [#allocation8], %s1011
        // Predicated region
        $region145: #{tpu_custom_call.1} parent=135 // pred_check
          %p1013 = pneg %p171
        $region146: #{tpu_custom_call.1} parent=135 // pred_check_branch
          %1015 = sbr.rel (%p1013) target = $region148
        $region147: #{tpu_custom_call.1} parent=135 // pred_region
          %1016 = dma.done %s1009, 64
        $region148: #{tpu_custom_call.1} parent=135 // pred_fallthru
          _
        // Predicated region
        $region149: #{tpu_custom_call.1} parent=135 // pred_check
          %p1017 = pneg %p213
        $region150: #{tpu_custom_call.1} parent=135 // pred_check_branch
          %1019 = sbr.rel (%p1017) target = $region152
        $region151: #{tpu_custom_call.1} parent=135 // pred_region
          %1020 = dma.done [#allocation10], 16
        $region152: #{tpu_custom_call.1} parent=135 // pred_fallthru
          _
        // Predicated region
        $region153: #{tpu_custom_call.1} parent=135 // pred_check
          %p1021 = pneg %p255
        $region154: #{tpu_custom_call.1} parent=135 // pred_check_branch
          %1023 = sbr.rel (%p1021) target = $region156
        $region155: #{tpu_custom_call.1} parent=135 // pred_region
          %1024 = dma.done [#allocation10], 16
        $region156: #{tpu_custom_call.1} parent=135 // pred_fallthru
          _
        // Predicated region
        $region157: #{tpu_custom_call.1} parent=135 // pred_check
          %p1025 = pneg %p297
        $region158: #{tpu_custom_call.1} parent=135 // pred_check_branch
          %1027 = sbr.rel (%p1025) target = $region160
        $region159: #{tpu_custom_call.1} parent=135 // pred_region
          %1028 = dma.done [#allocation13], 16
        $region160: #{tpu_custom_call.1} parent=135 // pred_fallthru
          _
        // Predicated region
        $region161: #{tpu_custom_call.1} parent=135 // pred_check
          %p1029 = pneg %p339
        $region162: #{tpu_custom_call.1} parent=135 // pred_check_branch
          %1031 = sbr.rel (%p1029) target = $region164
        $region163: #{tpu_custom_call.1} parent=135 // pred_region
          %1032 = dma.done [#allocation13], 16
        $region164: #{tpu_custom_call.1} parent=135 // pred_fallthru
          _
        // Predicated region
        $region165: #{tpu_custom_call.1} parent=135 // pred_check
          %p1033 = pneg %p360
        $region166: #{tpu_custom_call.1} parent=135 // pred_check_branch
          %1035 = sbr.rel (%p1033) target = $region168
        $region167: #{tpu_custom_call.1} parent=135 // pred_region
          %1036 = dma.done [#allocation16], 256
        $region168: #{tpu_custom_call.1} parent=135 // pred_fallthru
          _
        // Predicated region
        $region169: #{tpu_custom_call.1} parent=135 // pred_check
          %p1037 = pneg %p381
        $region170: #{tpu_custom_call.1} parent=135 // pred_check_branch
          %1039 = sbr.rel (%p1037) target = $region172
        $region171: #{tpu_custom_call.1} parent=135 // pred_region
          %1040 = dma.done [#allocation16], 16
        $region172: #{tpu_custom_call.1} parent=135 // pred_fallthru
          _
        // Predicated region
        $region173: #{tpu_custom_call.1} parent=135 // pred_check
          %p1041 = pneg %p423
        $region174: #{tpu_custom_call.1} parent=135 // pred_check_branch
          %1043 = sbr.rel (%p1041) target = $region176
        $region175: #{tpu_custom_call.1} parent=135 // pred_region
          %1044 = dma.done [#allocation19], 16
        $region176: #{tpu_custom_call.1} parent=135 // pred_fallthru
          _
        // Predicated region
        $region177: #{tpu_custom_call.1} parent=135 // pred_check
          %p1045 = pneg %p444
        $region178: #{tpu_custom_call.1} parent=135 // pred_check_branch
          %1047 = sbr.rel (%p1045) target = $region180
        $region179: #{tpu_custom_call.1} parent=135 // pred_region
          %1048 = dma.done [#allocation19], 256
        $region180: #{tpu_custom_call.1} parent=135 // pred_fallthru
          _
        // Predicated region
        $region181: #{tpu_custom_call.1} parent=135 // pred_check
          %p1049 = pneg %p465
        $region182: #{tpu_custom_call.1} parent=135 // pred_check_branch
          %1051 = sbr.rel (%p1049) target = $region184
        $region183: #{tpu_custom_call.1} parent=135 // pred_region
          %1052 = dma.done [#allocation22], 16
        $region184: #{tpu_custom_call.1} parent=135 // pred_fallthru
          _
        // Predicated region
        $region185: #{tpu_custom_call.1} parent=135 // pred_check
          %p1053 = pneg %p528
        $region186: #{tpu_custom_call.1} parent=135 // pred_check_branch
          %1055 = sbr.rel (%p1053) target = $region188
        $region187: #{tpu_custom_call.1} parent=135 // pred_region
          %1056 = dma.done [#allocation22], 256
        $region188: #{tpu_custom_call.1} parent=135 // pred_fallthru
          _
        %s1057 = sand.u32 %s106, 1
        %s1058 = scalar_lea.sflag [#allocation4], %s1057
        %s1059 = sand.u32 %s106, 1
        %s1060 = smul.addr %s1059, 4
        %s1061 = scalar_lea.vmem [#allocation3], %s1060
        %p1062 = pneg %p119
        %p1063 = pneg %p116
        %s1064 = sand.u32 %s84, 1
        %s1065 = scalar_lea.sflag [#allocation7], %s1064
        %s1066 = sand.u32 %s132, 1
        %s1067 = smul.addr %s1066, 4
        %s1068 = scalar_lea.vmem [#allocation6], %s1067
        %p1069 = pneg %p145
        %p1070 = pneg %p142
        %s1071 = sand.u32 %s84, 1
        %s1072 = scalar_lea.sflag [#allocation7], %s1071
        %s1073 = sand.u32 %s158, 1
        %s1074 = smul.addr %s1073, 4
        %s1075 = scalar_lea.vmem [#allocation8], %s1074
        %p1076 = pneg %p171
        %p1077 = pneg %p168
        %p1078 = pneg %p192
        %p1079 = pneg %p189
        %p1080 = pneg %p213
        %p1081 = pneg %p210
        %p1082 = pneg %p234
        %p1083 = pneg %p231
        %p1084 = pneg %p255
        %p1085 = pneg %p252
        %p1086 = pneg %p276
        %p1087 = pneg %p273
        %p1088 = pneg %p297
        %p1089 = pneg %p294
        %p1090 = pneg %p318
        %p1091 = pneg %p315
        %p1092 = pneg %p339
        %p1093 = pneg %p336
        %p1094 = pneg %p360
        %p1095 = pneg %p357
        %p1096 = pneg %p381
        %p1097 = pneg %p378
        %p1098 = pneg %p402
        %p1099 = pneg %p399
        %p1100 = pneg %p423
        %p1101 = pneg %p420
        %p1102 = pneg %p444
        %p1103 = pneg %p441
        %p1104 = pneg %p465
        %p1105 = pneg %p462
        %p1106 = pneg %p486
        %p1107 = pneg %p483
        %p1108 = pneg %p507
        %p1109 = pneg %p504
        %p1110 = pneg %p528
        %p1111 = pneg %p525
        %p1112 = pneg %p549
        %p1113 = pneg %p546
        %p1114 = pneg %p570
        %p1115 = pneg %p567
        %p1116 = pneg %p591
        %p1117 = pneg %p588
        %p1118 = pneg %p612
        %p1119 = pneg %p609
        %p1120 = pneg %p633
        %p1121 = pneg %p630
        %p1122 = pneg %p654
        %p1123 = pneg %p651
        %p1124 = pneg %p675
        %p1125 = pneg %p672
        %p1126 = pneg %p696
        %p1127 = pneg %p693
        %p1128 = pneg %p717
        %p1129 = pneg %p714
        %p1130 = pneg %p745
        %p1131 = pneg %p742
        %s1132 = sand.u32 %s732, 1
        %s1133 = scalar_lea.sflag [#allocation5], %s1132
        %s1134 = sand.u32 %s732, 1
        %s1135 = smul.addr %s1134, 8
        %s1136 = scalar_lea.vmem [#allocation24], %s1135
        %v1138 = vld [vmem:[%s994] sm:$0xf]
        %v1139 = vld [vmem:[%s1003] sm:$0xf]
        %v1140 = vld [vmem:[%s1012] sm:$0xf]
        %v1141 = vld [vmem:[%s7] sm:$0xf]
        %v1142 = vld [vmem:[%s7 + $0x4] sm:$0xf]
        %v1143 = vld [vmem:[%s7 + $0x8] sm:$0xf]
        %v1144 = vld [vmem:[%s7 + $0xc] sm:$0xf]
        %v1145 = vld [vmem:[#allocation9] sm:$0x1]
        %v1147 = vlaneseq
        %v1148 = vshrl.u32 %v1147, 7
        %v1149 = vsub.s32 0, %v1148
        %v1150 = vrot.slane %v1145, %v1149
        %v1156 = vunpack.c.l.b16 %v1141
        %v1157 = vunpack.c.l.b16 %v1142
        %v1158 = vunpack.c.l.b16 %v1143
        %v1159 = vunpack.c.l.b16 %v1144
        %v1160 = vpack.c.b16 %v1157, %v1156
        %v1161 = vpack.c.b16 %v1159, %v1158
        %vm1164 = vcmask 261120
        %v1166 = vsel %vm1164, %v1138, 0
        %1168 = vmatprep.subr.bf16.mxu0 0
        %1169 = vmatpush1.bf16.msra.mxu0 %v1160
        %1170 = vmatprep.subr.bf16.mxu0 0
        %1171 = vmatpush1.bf16.msra.mxu0 %v1161
        %1172 = vmatprep.subr.bf16.mxu0 0
        %1173 = vmatpush1.bf16.msra.mxu0 0
        %1174 = vmatprep.subr.bf16.mxu0 0
        %1175 = vmatpush1.bf16.msra.mxu0 0
        %1176 = vmatprep.subr.bf16.mxu0 0
        %1177 = vmatpush1.bf16.msra.mxu0 0
        %1178 = vmatprep.subr.bf16.mxu0 0
        %1179 = vmatpush1.bf16.msra.mxu0 0
        %1180 = vmatprep.subr.bf16.mxu0 0
        %1181 = vmatpush1.bf16.msra.mxu0 0
        %1182 = vmatprep.subr.bf16.mxu0 0
        %1183 = vmatpush1.bf16.msra.mxu0 0
        %1184 = vmatprep.subr.bf16.mxu0 0
        %1185 = vmatpush1.bf16.msra.mxu0 0
        %1186 = vmatprep.subr.bf16.mxu0 0
        %1187 = vmatpush1.bf16.msra.mxu0 0
        %1188 = vmatprep.subr.bf16.mxu0 0
        %1189 = vmatpush1.bf16.msra.mxu0 0
        %1190 = vmatprep.subr.bf16.mxu0 0
        %1191 = vmatpush1.bf16.msra.mxu0 0
        %1192 = vmatprep.subr.bf16.mxu0 0
        %1193 = vmatpush1.bf16.msra.mxu0 0
        %1194 = vmatprep.subr.bf16.mxu0 0
        %1195 = vmatpush1.bf16.msra.mxu0 0
        %1196 = vmatprep.subr.bf16.mxu0 0
        %1197 = vmatpush1.bf16.msra.mxu0 0
        %1198 = vmatprep.subr.bf16.mxu0 0
        %1199 = vmatpush1.bf16.msra.mxu0 0
        %1200 = vmatprep.mubr.bf16.mxu0 0
        %1201 = vmatmul.mubr.bf16.gmra.mrb[0].mxu0 %v1166
        %v1202 = vpop.f32.mrb[0].mxu0
        %v1203 = vadd.f32 %v1150, %v1202
        %v1204 = vpop.f32.mrb[0].mxu0
        %v1205 = vpop.f32.mrb[0].mxu0
        %v1206 = vpop.f32.mrb[0].mxu0
        %1207 = vdwg.mxu0
        %v1208 = vpack.c.bf16 %v1203, %v1203
        %v1209 = vld [vmem:[%s11] sm:$0xf]
        %v1210 = vld [vmem:[%s11 + $0x4] sm:$0xf]
        %v1211 = vld [vmem:[%s11 + $0x8] sm:$0xf]
        %v1212 = vld [vmem:[%s11 + $0xc] sm:$0xf]
        %v1213 = vld [vmem:[#allocation11] sm:$0x1]
        %v1215 = vlaneseq
        %v1216 = vshrl.u32 %v1215, 7
        %v1217 = vsub.s32 0, %v1216
        %v1218 = vrot.slane %v1213, %v1217
        %v1224 = vunpack.c.l.b16 %v1209
        %v1225 = vunpack.c.l.b16 %v1210
        %v1226 = vunpack.c.l.b16 %v1211
        %v1227 = vunpack.c.l.b16 %v1212
        %v1228 = vpack.c.b16 %v1225, %v1224
        %v1229 = vpack.c.b16 %v1227, %v1226
        %v1233 = vsel %vm1164, %v1139, 0
        %1235 = vmatprep.subr.bf16.mxu0 0
        %1236 = vmatpush1.bf16.msra.mxu0 %v1228
        %1237 = vmatprep.subr.bf16.mxu0 0
        %1238 = vmatpush1.bf16.msra.mxu0 %v1229
        %1239 = vmatprep.subr.bf16.mxu0 0
        %1240 = vmatpush1.bf16.msra.mxu0 0
        %1241 = vmatprep.subr.bf16.mxu0 0
        %1242 = vmatpush1.bf16.msra.mxu0 0
        %1243 = vmatprep.subr.bf16.mxu0 0
        %1244 = vmatpush1.bf16.msra.mxu0 0
        %1245 = vmatprep.subr.bf16.mxu0 0
        %1246 = vmatpush1.bf16.msra.mxu0 0
        %1247 = vmatprep.subr.bf16.mxu0 0
        %1248 = vmatpush1.bf16.msra.mxu0 0
        %1249 = vmatprep.subr.bf16.mxu0 0
        %1250 = vmatpush1.bf16.msra.mxu0 0
        %1251 = vmatprep.subr.bf16.mxu0 0
        %1252 = vmatpush1.bf16.msra.mxu0 0
        %1253 = vmatprep.subr.bf16.mxu0 0
        %1254 = vmatpush1.bf16.msra.mxu0 0
        %1255 = vmatprep.subr.bf16.mxu0 0
        %1256 = vmatpush1.bf16.msra.mxu0 0
        %1257 = vmatprep.subr.bf16.mxu0 0
        %1258 = vmatpush1.bf16.msra.mxu0 0
        %1259 = vmatprep.subr.bf16.mxu0 0
        %1260 = vmatpush1.bf16.msra.mxu0 0
        %1261 = vmatprep.subr.bf16.mxu0 0
        %1262 = vmatpush1.bf16.msra.mxu0 0
        %1263 = vmatprep.subr.bf16.mxu0 0
        %1264 = vmatpush1.bf16.msra.mxu0 0
        %1265 = vmatprep.subr.bf16.mxu0 0
        %1266 = vmatpush1.bf16.msra.mxu0 0
        %1267 = vmatprep.mubr.bf16.mxu0 0
        %1268 = vmatmul.mubr.bf16.gmra.mrb[0].mxu0 %v1233
        %v1269 = vpop.f32.mrb[0].mxu0
        %v1270 = vadd.f32 %v1218, %v1269
        %v1271 = vpop.f32.mrb[0].mxu0
        %v1272 = vpop.f32.mrb[0].mxu0
        %v1273 = vpop.f32.mrb[0].mxu0
        %1274 = vdwg.mxu0
        %v1275 = vpack.c.bf16 %v1270, %v1270
        %v1276 = vld [vmem:[%s15] sm:$0xf]
        %v1277 = vld [vmem:[%s15 + $0x4] sm:$0xf]
        %v1278 = vld [vmem:[%s15 + $0x8] sm:$0xf]
        %v1279 = vld [vmem:[%s15 + $0xc] sm:$0xf]
        %v1280 = vld [vmem:[#allocation12] sm:$0x1]
        %v1282 = vlaneseq
        %v1283 = vshrl.u32 %v1282, 7
        %v1284 = vsub.s32 0, %v1283
        %v1285 = vrot.slane %v1280, %v1284
        %v1291 = vunpack.c.l.b16 %v1276
        %v1292 = vunpack.c.l.b16 %v1277
        %v1293 = vunpack.c.l.b16 %v1278
        %v1294 = vunpack.c.l.b16 %v1279
        %v1295 = vpack.c.b16 %v1292, %v1291
        %v1296 = vpack.c.b16 %v1294, %v1293
        %1299 = vmatprep.subr.bf16.mxu0 0
        %1300 = vmatpush1.bf16.msra.mxu0 %v1295
        %1301 = vmatprep.subr.bf16.mxu0 0
        %1302 = vmatpush1.bf16.msra.mxu0 %v1296
        %1303 = vmatprep.subr.bf16.mxu0 0
        %1304 = vmatpush1.bf16.msra.mxu0 0
        %1305 = vmatprep.subr.bf16.mxu0 0
        %1306 = vmatpush1.bf16.msra.mxu0 0
        %1307 = vmatprep.subr.bf16.mxu0 0
        %1308 = vmatpush1.bf16.msra.mxu0 0
        %1309 = vmatprep.subr.bf16.mxu0 0
        %1310 = vmatpush1.bf16.msra.mxu0 0
        %1311 = vmatprep.subr.bf16.mxu0 0
        %1312 = vmatpush1.bf16.msra.mxu0 0
        %1313 = vmatprep.subr.bf16.mxu0 0
        %1314 = vmatpush1.bf16.msra.mxu0 0
        %1315 = vmatprep.subr.bf16.mxu0 0
        %1316 = vmatpush1.bf16.msra.mxu0 0
        %1317 = vmatprep.subr.bf16.mxu0 0
        %1318 = vmatpush1.bf16.msra.mxu0 0
        %1319 = vmatprep.subr.bf16.mxu0 0
        %1320 = vmatpush1.bf16.msra.mxu0 0
        %1321 = vmatprep.subr.bf16.mxu0 0
        %1322 = vmatpush1.bf16.msra.mxu0 0
        %1323 = vmatprep.subr.bf16.mxu0 0
        %1324 = vmatpush1.bf16.msra.mxu0 0
        %1325 = vmatprep.subr.bf16.mxu0 0
        %1326 = vmatpush1.bf16.msra.mxu0 0
        %1327 = vmatprep.subr.bf16.mxu0 0
        %1328 = vmatpush1.bf16.msra.mxu0 0
        %1329 = vmatprep.subr.bf16.mxu0 0
        %1330 = vmatpush1.bf16.msra.mxu0 0
        %1331 = vmatprep.mubr.bf16.mxu0 0
        %1332 = vmatmul.mubr.bf16.gmra.mrb[0].mxu0 %v1233
        %v1333 = vpop.f32.mrb[0].mxu0
        %v1334 = vadd.f32 %v1285, %v1333
        %v1335 = vpop.f32.mrb[0].mxu0
        %v1336 = vpop.f32.mrb[0].mxu0
        %v1337 = vpop.f32.mrb[0].mxu0
        %1338 = vdwg.mxu0
        %v1339 = vpack.c.bf16 %v1334, %v1334
        %vm1340 = vcmask 64512
        %v1342 = vsel %vm1340, %v1208, 0
        %v1345 = vsel %vm1340, %v1275, 0
        %1347 = vmatprep.subr.bf16.mxu0 0
        %1348 = vmatpush1.bf16.xpose.msra.mxu0 %v1345
        %1349 = vmatprep.subr.bf16.mxu0 0
        %1350 = vmatpush1.bf16.xpose.msra.mxu0 0
        %1351 = vmatprep.subr.bf16.mxu0 0
        %1352 = vmatpush1.bf16.xpose.msra.mxu0 0
        %1353 = vmatprep.subr.bf16.mxu0 0
        %1354 = vmatpush1.bf16.xpose.msra.mxu0 0
        %1355 = vmatprep.subr.bf16.mxu0 0
        %1356 = vmatpush1.bf16.xpose.msra.mxu0 0
        %1357 = vmatprep.subr.bf16.mxu0 0
        %1358 = vmatpush1.bf16.xpose.msra.mxu0 0
        %1359 = vmatprep.subr.bf16.mxu0 0
        %1360 = vmatpush1.bf16.xpose.msra.mxu0 0
        %1361 = vmatprep.subr.bf16.mxu0 0
        %1362 = vmatpush1.bf16.xpose.msra.mxu0 0
        %1363 = vmatprep.subr.bf16.mxu0 0
        %1364 = vmatpush1.bf16.xpose.msra.mxu0 0
        %1365 = vmatprep.subr.bf16.mxu0 0
        %1366 = vmatpush1.bf16.xpose.msra.mxu0 0
        %1367 = vmatprep.subr.bf16.mxu0 0
        %1368 = vmatpush1.bf16.xpose.msra.mxu0 0
        %1369 = vmatprep.subr.bf16.mxu0 0
        %1370 = vmatpush1.bf16.xpose.msra.mxu0 0
        %1371 = vmatprep.subr.bf16.mxu0 0
        %1372 = vmatpush1.bf16.xpose.msra.mxu0 0
        %1373 = vmatprep.subr.bf16.mxu0 0
        %1374 = vmatpush1.bf16.xpose.msra.mxu0 0
        %1375 = vmatprep.subr.bf16.mxu0 0
        %1376 = vmatpush1.bf16.xpose.msra.mxu0 0
        %1377 = vmatprep.subr.bf16.mxu0 0
        %1378 = vmatpush1.bf16.xpose.msra.mxu0 0
        %1379 = vmatprep.mubr.bf16.mxu0 0
        %1380 = vmatmul.mubr.bf16.gmra.mrb[0].mxu0 %v1342
        %v1381 = vpop.f32.mrb[0].mxu0
        %v1382 = vadd.f32 0.0, %v1381
        %v1383 = vpop.f32.mrb[0].mxu0
        %v1384 = vpop.f32.mrb[0].mxu0
        %v1385 = vpop.f32.mrb[0].mxu0
        %1386 = vdwg.mxu0
        %v1387 = vmul.f32 %v1382, 0.35355338
        %v1388 = vsel %vm1340, %v1387, -inf
        %1389 = vmax.xlane.f32.xlu0 %v1388
        %v1390 = vpop.xlane.xlu0 %1389
        %v1391 = vsub.f32 %v1387, %v1390
        %v1392 = vmul.f32 %v1391, 1.442695
        %v1393 = vpow.pop %v1392
        %v1394 = vsel %vm1340, %v1393, 0.0
        %1395 = vadd.xlane.f32.xlu0 %v1394
        %v1396 = vpop.xlane.xlu0 %1395
        %v1397 = vrcp.pop %v1396
        %v1398 = vpack.c.bf16 %v1393, %v1393
        %v1400 = vsel %vm1340, %v1398, 0
        %vm1402 = vcmask 1043456
        %v1404 = vsel %vm1402, %v1339, 0
        %1406 = vmatprep.subr.bf16.mxu0 0
        %1407 = vmatpush1.bf16.msra.mxu0 %v1404
        %1408 = vmatprep.subr.bf16.mxu0 0
        %1409 = vmatpush1.bf16.msra.mxu0 0
        %1410 = vmatprep.subr.bf16.mxu0 0
        %1411 = vmatpush1.bf16.msra.mxu0 0
        %1412 = vmatprep.subr.bf16.mxu0 0
        %1413 = vmatpush1.bf16.msra.mxu0 0
        %1414 = vmatprep.subr.bf16.mxu0 0
        %1415 = vmatpush1.bf16.msra.mxu0 0
        %1416 = vmatprep.subr.bf16.mxu0 0
        %1417 = vmatpush1.bf16.msra.mxu0 0
        %1418 = vmatprep.subr.bf16.mxu0 0
        %1419 = vmatpush1.bf16.msra.mxu0 0
        %1420 = vmatprep.subr.bf16.mxu0 0
        %1421 = vmatpush1.bf16.msra.mxu0 0
        %1422 = vmatprep.subr.bf16.mxu0 0
        %1423 = vmatpush1.bf16.msra.mxu0 0
        %1424 = vmatprep.subr.bf16.mxu0 0
        %1425 = vmatpush1.bf16.msra.mxu0 0
        %1426 = vmatprep.subr.bf16.mxu0 0
        %1427 = vmatpush1.bf16.msra.mxu0 0
        %1428 = vmatprep.subr.bf16.mxu0 0
        %1429 = vmatpush1.bf16.msra.mxu0 0
        %1430 = vmatprep.subr.bf16.mxu0 0
        %1431 = vmatpush1.bf16.msra.mxu0 0
        %1432 = vmatprep.subr.bf16.mxu0 0
        %1433 = vmatpush1.bf16.msra.mxu0 0
        %1434 = vmatprep.subr.bf16.mxu0 0
        %1435 = vmatpush1.bf16.msra.mxu0 0
        %1436 = vmatprep.subr.bf16.mxu0 0
        %1437 = vmatpush1.bf16.msra.mxu0 0
        %1438 = vmatprep.mubr.bf16.mxu0 0
        %1439 = vmatmul.mubr.bf16.gmra.mrb[0].mxu0 %v1400
        %v1440 = vpop.f32.mrb[0].mxu0
        %v1441 = vadd.f32 0.0, %v1440
        %v1442 = vpop.f32.mrb[0].mxu0
        %v1443 = vpop.f32.mrb[0].mxu0
        %v1444 = vpop.f32.mrb[0].mxu0
        %1445 = vdwg.mxu0
        %v1446 = vmul.f32 %v1441, %v1397
        %1447 = vst.msk [vmem:[#allocation2] sm:$0xff] %vm1340, %v1446
        %1449 = vrot.lane.b32.xlu0 %v1208, 120
        %v1450 = vpop.permute.xlu0 %1449
        %1452 = vrot.lane.b32.xlu0 %v1275, 120
        %v1453 = vpop.permute.xlu0 %1452
        %v1455 = vsel %vm1340, %v1450, 0
        %v1458 = vsel %vm1340, %v1453, 0
        %1460 = vmatprep.subr.bf16.mxu0 0
        %1461 = vmatpush1.bf16.xpose.msra.mxu0 %v1458
        %1462 = vmatprep.subr.bf16.mxu0 0
        %1463 = vmatpush1.bf16.xpose.msra.mxu0 0
        %1464 = vmatprep.subr.bf16.mxu0 0
        %1465 = vmatpush1.bf16.xpose.msra.mxu0 0
        %1466 = vmatprep.subr.bf16.mxu0 0
        %1467 = vmatpush1.bf16.xpose.msra.mxu0 0
        %1468 = vmatprep.subr.bf16.mxu0 0
        %1469 = vmatpush1.bf16.xpose.msra.mxu0 0
        %1470 = vmatprep.subr.bf16.mxu0 0
        %1471 = vmatpush1.bf16.xpose.msra.mxu0 0
        %1472 = vmatprep.subr.bf16.mxu0 0
        %1473 = vmatpush1.bf16.xpose.msra.mxu0 0
        %1474 = vmatprep.subr.bf16.mxu0 0
        %1475 = vmatpush1.bf16.xpose.msra.mxu0 0
        %1476 = vmatprep.subr.bf16.mxu0 0
        %1477 = vmatpush1.bf16.xpose.msra.mxu0 0
        %1478 = vmatprep.subr.bf16.mxu0 0
        %1479 = vmatpush1.bf16.xpose.msra.mxu0 0
        %1480 = vmatprep.subr.bf16.mxu0 0
        %1481 = vmatpush1.bf16.xpose.msra.mxu0 0
        %1482 = vmatprep.subr.bf16.mxu0 0
        %1483 = vmatpush1.bf16.xpose.msra.mxu0 0
        %1484 = vmatprep.subr.bf16.mxu0 0
        %1485 = vmatpush1.bf16.xpose.msra.mxu0 0
        %1486 = vmatprep.subr.bf16.mxu0 0
        %1487 = vmatpush1.bf16.xpose.msra.mxu0 0
        %1488 = vmatprep.subr.bf16.mxu0 0
        %1489 = vmatpush1.bf16.xpose.msra.mxu0 0
        %1490 = vmatprep.subr.bf16.mxu0 0
        %1491 = vmatpush1.bf16.xpose.msra.mxu0 0
        %1492 = vmatprep.mubr.bf16.mxu0 0
        %1493 = vmatmul.mubr.bf16.gmra.mrb[0].mxu0 %v1455
        %v1494 = vpop.f32.mrb[0].mxu0
        %v1495 = vadd.f32 0.0, %v1494
        %v1496 = vpop.f32.mrb[0].mxu0
        %v1497 = vpop.f32.mrb[0].mxu0
        %v1498 = vpop.f32.mrb[0].mxu0
        %1499 = vdwg.mxu0
        %v1500 = vmul.f32 %v1495, 0.35355338
        %v1501 = vsel %vm1340, %v1500, -inf
        %1502 = vmax.xlane.f32.xlu0 %v1501
        %v1503 = vpop.xlane.xlu0 %1502
        %v1504 = vsub.f32 %v1500, %v1503
        %v1505 = vmul.f32 %v1504, 1.442695
        %v1506 = vpow.pop %v1505
        %v1507 = vsel %vm1340, %v1506, 0.0
        %1508 = vadd.xlane.f32.xlu0 %v1507
        %v1509 = vpop.xlane.xlu0 %1508
        %v1510 = vrcp.pop %v1509
        %v1511 = vpack.c.bf16 %v1506, %v1506
        %1513 = vrot.lane.b32.xlu0 %v1339, 120
        %v1514 = vpop.permute.xlu0 %1513
        %v1516 = vsel %vm1340, %v1511, 0
        %v1519 = vsel %vm1402, %v1514, 0
        %1521 = vmatprep.subr.bf16.mxu0 0
        %1522 = vmatpush1.bf16.msra.mxu0 %v1519
        %1523 = vmatprep.subr.bf16.mxu0 0
        %1524 = vmatpush1.bf16.msra.mxu0 0
        %1525 = vmatprep.subr.bf16.mxu0 0
        %1526 = vmatpush1.bf16.msra.mxu0 0
        %1527 = vmatprep.subr.bf16.mxu0 0
        %1528 = vmatpush1.bf16.msra.mxu0 0
        %1529 = vmatprep.subr.bf16.mxu0 0
        %1530 = vmatpush1.bf16.msra.mxu0 0
        %1531 = vmatprep.subr.bf16.mxu0 0
        %1532 = vmatpush1.bf16.msra.mxu0 0
        %1533 = vmatprep.subr.bf16.mxu0 0
        %1534 = vmatpush1.bf16.msra.mxu0 0
        %1535 = vmatprep.subr.bf16.mxu0 0
        %1536 = vmatpush1.bf16.msra.mxu0 0
        %1537 = vmatprep.subr.bf16.mxu0 0
        %1538 = vmatpush1.bf16.msra.mxu0 0
        %1539 = vmatprep.subr.bf16.mxu0 0
        %1540 = vmatpush1.bf16.msra.mxu0 0
        %1541 = vmatprep.subr.bf16.mxu0 0
        %1542 = vmatpush1.bf16.msra.mxu0 0
        %1543 = vmatprep.subr.bf16.mxu0 0
        %1544 = vmatpush1.bf16.msra.mxu0 0
        %1545 = vmatprep.subr.bf16.mxu0 0
        %1546 = vmatpush1.bf16.msra.mxu0 0
        %1547 = vmatprep.subr.bf16.mxu0 0
        %1548 = vmatpush1.bf16.msra.mxu0 0
        %1549 = vmatprep.subr.bf16.mxu0 0
        %1550 = vmatpush1.bf16.msra.mxu0 0
        %1551 = vmatprep.subr.bf16.mxu0 0
        %1552 = vmatpush1.bf16.msra.mxu0 0
        %1553 = vmatprep.mubr.bf16.mxu0 0
        %1554 = vmatmul.mubr.bf16.gmra.mrb[0].mxu0 %v1516
        %v1555 = vpop.f32.mrb[0].mxu0
        %v1556 = vadd.f32 0.0, %v1555
        %v1557 = vpop.f32.mrb[0].mxu0
        %v1558 = vpop.f32.mrb[0].mxu0
        %v1559 = vpop.f32.mrb[0].mxu0
        %1560 = vdwg.mxu0
        %v1561 = vmul.f32 %v1556, %v1510
        %1563 = vrot.lane.b32.xlu0 %v1561, 8
        %v1564 = vpop.permute.xlu0 %1563
        %vm1566 = vcmask 130112
        %1567 = vst.msk [vmem:[#allocation2] sm:$0xff] %vm1566, %v1564
        %1568 = vrot.lane.b32.xlu0 %v1208, 112
        %v1569 = vpop.permute.xlu0 %1568
        %1570 = vrot.lane.b32.xlu0 %v1275, 112
        %v1571 = vpop.permute.xlu0 %1570
        %v1573 = vsel %vm1340, %v1569, 0
        %v1576 = vsel %vm1340, %v1571, 0
        %1578 = vmatprep.subr.bf16.mxu0 0
        %1579 = vmatpush1.bf16.xpose.msra.mxu0 %v1576
        %1580 = vmatprep.subr.bf16.mxu0 0
        %1581 = vmatpush1.bf16.xpose.msra.mxu0 0
        %1582 = vmatprep.subr.bf16.mxu0 0
        %1583 = vmatpush1.bf16.xpose.msra.mxu0 0
        %1584 = vmatprep.subr.bf16.mxu0 0
        %1585 = vmatpush1.bf16.xpose.msra.mxu0 0
        %1586 = vmatprep.subr.bf16.mxu0 0
        %1587 = vmatpush1.bf16.xpose.msra.mxu0 0
        %1588 = vmatprep.subr.bf16.mxu0 0
        %1589 = vmatpush1.bf16.xpose.msra.mxu0 0
        %1590 = vmatprep.subr.bf16.mxu0 0
        %1591 = vmatpush1.bf16.xpose.msra.mxu0 0
        %1592 = vmatprep.subr.bf16.mxu0 0
        %1593 = vmatpush1.bf16.xpose.msra.mxu0 0
        %1594 = vmatprep.subr.bf16.mxu0 0
        %1595 = vmatpush1.bf16.xpose.msra.mxu0 0
        %1596 = vmatprep.subr.bf16.mxu0 0
        %1597 = vmatpush1.bf16.xpose.msra.mxu0 0
        %1598 = vmatprep.subr.bf16.mxu0 0
        %1599 = vmatpush1.bf16.xpose.msra.mxu0 0
        %1600 = vmatprep.subr.bf16.mxu0 0
        %1601 = vmatpush1.bf16.xpose.msra.mxu0 0
        %1602 = vmatprep.subr.bf16.mxu0 0
        %1603 = vmatpush1.bf16.xpose.msra.mxu0 0
        %1604 = vmatprep.subr.bf16.mxu0 0
        %1605 = vmatpush1.bf16.xpose.msra.mxu0 0
        %1606 = vmatprep.subr.bf16.mxu0 0
        %1607 = vmatpush1.bf16.xpose.msra.mxu0 0
        %1608 = vmatprep.subr.bf16.mxu0 0
        %1609 = vmatpush1.bf16.xpose.msra.mxu0 0
        %1610 = vmatprep.mubr.bf16.mxu0 0
        %1611 = vmatmul.mubr.bf16.gmra.mrb[0].mxu0 %v1573
        %v1612 = vpop.f32.mrb[0].mxu0
        %v1613 = vadd.f32 0.0, %v1612
        %v1614 = vpop.f32.mrb[0].mxu0
        %v1615 = vpop.f32.mrb[0].mxu0
        %v1616 = vpop.f32.mrb[0].mxu0
        %1617 = vdwg.mxu0
        %v1618 = vmul.f32 %v1613, 0.35355338
        %v1619 = vsel %vm1340, %v1618, -inf
        %1620 = vmax.xlane.f32.xlu0 %v1619
        %v1621 = vpop.xlane.xlu0 %1620
        %v1622 = vsub.f32 %v1618, %v1621
        %v1623 = vmul.f32 %v1622, 1.442695
        %v1624 = vpow.pop %v1623
        %v1625 = vsel %vm1340, %v1624, 0.0
        %1626 = vadd.xlane.f32.xlu0 %v1625
        %v1627 = vpop.xlane.xlu0 %1626
        %v1628 = vrcp.pop %v1627
        %v1629 = vpack.c.bf16 %v1624, %v1624
        %1630 = vrot.lane.b32.xlu0 %v1339, 112
        %v1631 = vpop.permute.xlu0 %1630
        %v1633 = vsel %vm1340, %v1629, 0
        %v1636 = vsel %vm1402, %v1631, 0
        %1638 = vmatprep.subr.bf16.mxu0 0
        %1639 = vmatpush1.bf16.msra.mxu0 %v1636
        %1640 = vmatprep.subr.bf16.mxu0 0
        %1641 = vmatpush1.bf16.msra.mxu0 0
        %1642 = vmatprep.subr.bf16.mxu0 0
        %1643 = vmatpush1.bf16.msra.mxu0 0
        %1644 = vmatprep.subr.bf16.mxu0 0
        %1645 = vmatpush1.bf16.msra.mxu0 0
        %1646 = vmatprep.subr.bf16.mxu0 0
        %1647 = vmatpush1.bf16.msra.mxu0 0
        %1648 = vmatprep.subr.bf16.mxu0 0
        %1649 = vmatpush1.bf16.msra.mxu0 0
        %1650 = vmatprep.subr.bf16.mxu0 0
        %1651 = vmatpush1.bf16.msra.mxu0 0
        %1652 = vmatprep.subr.bf16.mxu0 0
        %1653 = vmatpush1.bf16.msra.mxu0 0
        %1654 = vmatprep.subr.bf16.mxu0 0
        %1655 = vmatpush1.bf16.msra.mxu0 0
        %1656 = vmatprep.subr.bf16.mxu0 0
        %1657 = vmatpush1.bf16.msra.mxu0 0
        %1658 = vmatprep.subr.bf16.mxu0 0
        %1659 = vmatpush1.bf16.msra.mxu0 0
        %1660 = vmatprep.subr.bf16.mxu0 0
        %1661 = vmatpush1.bf16.msra.mxu0 0
        %1662 = vmatprep.subr.bf16.mxu0 0
        %1663 = vmatpush1.bf16.msra.mxu0 0
        %1664 = vmatprep.subr.bf16.mxu0 0
        %1665 = vmatpush1.bf16.msra.mxu0 0
        %1666 = vmatprep.subr.bf16.mxu0 0
        %1667 = vmatpush1.bf16.msra.mxu0 0
        %1668 = vmatprep.subr.bf16.mxu0 0
        %1669 = vmatpush1.bf16.msra.mxu0 0
        %1670 = vmatprep.mubr.bf16.mxu0 0
        %1671 = vmatmul.mubr.bf16.gmra.mrb[0].mxu0 %v1633
        %v1672 = vpop.f32.mrb[0].mxu0
        %v1673 = vadd.f32 0.0, %v1672
        %v1674 = vpop.f32.mrb[0].mxu0
        %v1675 = vpop.f32.mrb[0].mxu0
        %v1676 = vpop.f32.mrb[0].mxu0
        %1677 = vdwg.mxu0
        %v1678 = vmul.f32 %v1673, %v1628
        %1680 = vrot.lane.b32.xlu0 %v1678, 16
        %v1681 = vpop.permute.xlu0 %1680
        %vm1683 = vcmask 195712
        %1684 = vst.msk [vmem:[#allocation2] sm:$0xff] %vm1683, %v1681
        %1685 = vrot.lane.b32.xlu0 %v1208, 104
        %v1686 = vpop.permute.xlu0 %1685
        %1687 = vrot.lane.b32.xlu0 %v1275, 104
        %v1688 = vpop.permute.xlu0 %1687
        %v1690 = vsel %vm1340, %v1686, 0
        %v1693 = vsel %vm1340, %v1688, 0
        %1695 = vmatprep.subr.bf16.mxu0 0
        %1696 = vmatpush1.bf16.xpose.msra.mxu0 %v1693
        %1697 = vmatprep.subr.bf16.mxu0 0
        %1698 = vmatpush1.bf16.xpose.msra.mxu0 0
        %1699 = vmatprep.subr.bf16.mxu0 0
        %1700 = vmatpush1.bf16.xpose.msra.mxu0 0
        %1701 = vmatprep.subr.bf16.mxu0 0
        %1702 = vmatpush1.bf16.xpose.msra.mxu0 0
        %1703 = vmatprep.subr.bf16.mxu0 0
        %1704 = vmatpush1.bf16.xpose.msra.mxu0 0
        %1705 = vmatprep.subr.bf16.mxu0 0
        %1706 = vmatpush1.bf16.xpose.msra.mxu0 0
        %1707 = vmatprep.subr.bf16.mxu0 0
        %1708 = vmatpush1.bf16.xpose.msra.mxu0 0
        %1709 = vmatprep.subr.bf16.mxu0 0
        %1710 = vmatpush1.bf16.xpose.msra.mxu0 0
        %1711 = vmatprep.subr.bf16.mxu0 0
        %1712 = vmatpush1.bf16.xpose.msra.mxu0 0
        %1713 = vmatprep.subr.bf16.mxu0 0
        %1714 = vmatpush1.bf16.xpose.msra.mxu0 0
        %1715 = vmatprep.subr.bf16.mxu0 0
        %1716 = vmatpush1.bf16.xpose.msra.mxu0 0
        %1717 = vmatprep.subr.bf16.mxu0 0
        %1718 = vmatpush1.bf16.xpose.msra.mxu0 0
        %1719 = vmatprep.subr.bf16.mxu0 0
        %1720 = vmatpush1.bf16.xpose.msra.mxu0 0
        %1721 = vmatprep.subr.bf16.mxu0 0
        %1722 = vmatpush1.bf16.xpose.msra.mxu0 0
        %1723 = vmatprep.subr.bf16.mxu0 0
        %1724 = vmatpush1.bf16.xpose.msra.mxu0 0
        %1725 = vmatprep.subr.bf16.mxu0 0
        %1726 = vmatpush1.bf16.xpose.msra.mxu0 0
        %1727 = vmatprep.mubr.bf16.mxu0 0
        %1728 = vmatmul.mubr.bf16.gmra.mrb[0].mxu0 %v1690
        %v1729 = vpop.f32.mrb[0].mxu0
        %v1730 = vadd.f32 0.0, %v1729
        %v1731 = vpop.f32.mrb[0].mxu0
        %v1732 = vpop.f32.mrb[0].mxu0
        %v1733 = vpop.f32.mrb[0].mxu0
        %1734 = vdwg.mxu0
        %v1735 = vmul.f32 %v1730, 0.35355338
        %v1736 = vsel %vm1340, %v1735, -inf
        %1737 = vmax.xlane.f32.xlu0 %v1736
        %v1738 = vpop.xlane.xlu0 %1737
        %v1739 = vsub.f32 %v1735, %v1738
        %v1740 = vmul.f32 %v1739, 1.442695
        %v1741 = vpow.pop %v1740
        %v1742 = vsel %vm1340, %v1741, 0.0
        %1743 = vadd.xlane.f32.xlu0 %v1742
        %v1744 = vpop.xlane.xlu0 %1743
        %v1745 = vrcp.pop %v1744
        %v1746 = vpack.c.bf16 %v1741, %v1741
        %1747 = vrot.lane.b32.xlu0 %v1339, 104
        %v1748 = vpop.permute.xlu0 %1747
        %v1750 = vsel %vm1340, %v1746, 0
        %v1753 = vsel %vm1402, %v1748, 0
        %1755 = vmatprep.subr.bf16.mxu0 0
        %1756 = vmatpush1.bf16.msra.mxu0 %v1753
        %1757 = vmatprep.subr.bf16.mxu0 0
        %1758 = vmatpush1.bf16.msra.mxu0 0
        %1759 = vmatprep.subr.bf16.mxu0 0
        %1760 = vmatpush1.bf16.msra.mxu0 0
        %1761 = vmatprep.subr.bf16.mxu0 0
        %1762 = vmatpush1.bf16.msra.mxu0 0
        %1763 = vmatprep.subr.bf16.mxu0 0
        %1764 = vmatpush1.bf16.msra.mxu0 0
        %1765 = vmatprep.subr.bf16.mxu0 0
        %1766 = vmatpush1.bf16.msra.mxu0 0
        %1767 = vmatprep.subr.bf16.mxu0 0
        %1768 = vmatpush1.bf16.msra.mxu0 0
        %1769 = vmatprep.subr.bf16.mxu0 0
        %1770 = vmatpush1.bf16.msra.mxu0 0
        %1771 = vmatprep.subr.bf16.mxu0 0
        %1772 = vmatpush1.bf16.msra.mxu0 0
        %1773 = vmatprep.subr.bf16.mxu0 0
        %1774 = vmatpush1.bf16.msra.mxu0 0
        %1775 = vmatprep.subr.bf16.mxu0 0
        %1776 = vmatpush1.bf16.msra.mxu0 0
        %1777 = vmatprep.subr.bf16.mxu0 0
        %1778 = vmatpush1.bf16.msra.mxu0 0
        %1779 = vmatprep.subr.bf16.mxu0 0
        %1780 = vmatpush1.bf16.msra.mxu0 0
        %1781 = vmatprep.subr.bf16.mxu0 0
        %1782 = vmatpush1.bf16.msra.mxu0 0
        %1783 = vmatprep.subr.bf16.mxu0 0
        %1784 = vmatpush1.bf16.msra.mxu0 0
        %1785 = vmatprep.subr.bf16.mxu0 0
        %1786 = vmatpush1.bf16.msra.mxu0 0
        %1787 = vmatprep.mubr.bf16.mxu0 0
        %1788 = vmatmul.mubr.bf16.gmra.mrb[0].mxu0 %v1750
        %v1789 = vpop.f32.mrb[0].mxu0
        %v1790 = vadd.f32 0.0, %v1789
        %v1791 = vpop.f32.mrb[0].mxu0
        %v1792 = vpop.f32.mrb[0].mxu0
        %v1793 = vpop.f32.mrb[0].mxu0
        %1794 = vdwg.mxu0
        %v1795 = vmul.f32 %v1790, %v1745
        %1797 = vrot.lane.b32.xlu0 %v1795, 24
        %v1798 = vpop.permute.xlu0 %1797
        %vm1800 = vcmask 261312
        %1801 = vst.msk [vmem:[#allocation2] sm:$0xff] %vm1800, %v1798
        %v1802 = vld [vmem:[#allocation2] sm:$0xff]
        %v1803 = vpack.c.bf16 %v1802, %v1802
        %v1804 = vld [vmem:[%s19] sm:$0xf]
        %v1805 = vld [vmem:[%s19 + $0x4] sm:$0xf]
        %v1806 = vld [vmem:[%s19 + $0x8] sm:$0xf]
        %v1807 = vld [vmem:[%s19 + $0xc] sm:$0xf]
        %v1808 = vld [vmem:[#allocation14] sm:$0x1]
        %v1810 = vlaneseq
        %v1811 = vshrl.u32 %v1810, 7
        %v1812 = vsub.s32 0, %v1811
        %v1813 = vrot.slane %v1808, %v1812
        %v1819 = vunpack.c.l.b16 %v1804
        %v1820 = vunpack.c.l.b16 %v1805
        %v1821 = vunpack.c.l.b16 %v1806
        %v1822 = vunpack.c.l.b16 %v1807
        %v1823 = vpack.c.b16 %v1820, %v1819
        %v1824 = vpack.c.b16 %v1822, %v1821
        %v1828 = vsel %vm1164, %v1803, 0
        %1830 = vmatprep.subr.bf16.mxu0 0
        %1831 = vmatpush1.bf16.msra.mxu0 %v1823
        %1832 = vmatprep.subr.bf16.mxu0 0
        %1833 = vmatpush1.bf16.msra.mxu0 %v1824
        %1834 = vmatprep.subr.bf16.mxu0 0
        %1835 = vmatpush1.bf16.msra.mxu0 0
        %1836 = vmatprep.subr.bf16.mxu0 0
        %1837 = vmatpush1.bf16.msra.mxu0 0
        %1838 = vmatprep.subr.bf16.mxu0 0
        %1839 = vmatpush1.bf16.msra.mxu0 0
        %1840 = vmatprep.subr.bf16.mxu0 0
        %1841 = vmatpush1.bf16.msra.mxu0 0
        %1842 = vmatprep.subr.bf16.mxu0 0
        %1843 = vmatpush1.bf16.msra.mxu0 0
        %1844 = vmatprep.subr.bf16.mxu0 0
        %1845 = vmatpush1.bf16.msra.mxu0 0
        %1846 = vmatprep.subr.bf16.mxu0 0
        %1847 = vmatpush1.bf16.msra.mxu0 0
        %1848 = vmatprep.subr.bf16.mxu0 0
        %1849 = vmatpush1.bf16.msra.mxu0 0
        %1850 = vmatprep.subr.bf16.mxu0 0
        %1851 = vmatpush1.bf16.msra.mxu0 0
        %1852 = vmatprep.subr.bf16.mxu0 0
        %1853 = vmatpush1.bf16.msra.mxu0 0
        %1854 = vmatprep.subr.bf16.mxu0 0
        %1855 = vmatpush1.bf16.msra.mxu0 0
        %1856 = vmatprep.subr.bf16.mxu0 0
        %1857 = vmatpush1.bf16.msra.mxu0 0
        %1858 = vmatprep.subr.bf16.mxu0 0
        %1859 = vmatpush1.bf16.msra.mxu0 0
        %1860 = vmatprep.subr.bf16.mxu0 0
        %1861 = vmatpush1.bf16.msra.mxu0 0
        %1862 = vmatprep.mubr.bf16.mxu0 0
        %1863 = vmatmul.mubr.bf16.gmra.mrb[0].mxu0 %v1828
        %v1864 = vpop.f32.mrb[0].mxu0
        %v1865 = vadd.f32 %v1813, %v1864
        %v1866 = vpop.f32.mrb[0].mxu0
        %v1867 = vpop.f32.mrb[0].mxu0
        %v1868 = vpop.f32.mrb[0].mxu0
        %1869 = vdwg.mxu0
        %v1870 = vunpack.c.l.bf16 %v1138
        %v1871 = vadd.f32 %v1870, %v1865
        %v1872 = vld [vmem:[%s47] sm:$0x1]
        %v1873 = vld [vmem:[%s49] sm:$0x1]
        %v1874 = vsel %vm1164, %v1871, 0.0
        %1875 = vadd.xlane.f32.xlu0 %v1874
        %v1876 = vpop.xlane.xlu0 %1875
        %v1877 = vrcp.pop 32.0
        %v1878 = vmul.f32 %v1876, %v1877
        %v1879 = vsub.f32 %v1871, %v1878
        %v1880 = vmul.f32 %v1879, %v1879
        %v1881 = vsel %vm1164, %v1880, 0.0
        %1882 = vadd.xlane.f32.xlu0 %v1881
        %v1883 = vpop.xlane.xlu0 %1882
        %v1884 = vmul.f32 %v1883, %v1877
        %v1885 = vadd.f32 %v1884, 1e-05
        %v1886 = vrsqrt.pop %v1885
        %v1887 = vmul.f32 %v1879, %v1886
        %v1889 = vlaneseq
        %v1890 = vshrl.u32 %v1889, 7
        %v1891 = vsub.s32 0, %v1890
        %v1892 = vrot.slane %v1872, %v1891
        %v1894 = vmul.f32 %v1887, %v1892
        %v1896 = vlaneseq
        %v1897 = vshrl.u32 %v1896, 7
        %v1898 = vsub.s32 0, %v1897
        %v1899 = vrot.slane %v1873, %v1898
        %v1901 = vadd.f32 %v1894, %v1899
        %v1902 = vpack.c.bf16 %v1901, %v1901
        %v1903 = vld [vmem:[#allocation15] sm:$0xf]
        %v1904 = vld [vmem:[#allocation15 + $0x4] sm:$0xf]
        %v1905 = vld [vmem:[#allocation15 + $0x8] sm:$0xf]
        %v1906 = vld [vmem:[#allocation15 + $0xc] sm:$0xf]
        %v1907 = vld [vmem:[#allocation17] sm:$0x1]
        %v1909 = vlaneseq
        %v1910 = vshrl.u32 %v1909, 7
        %v1911 = vsub.s32 0, %v1910
        %v1912 = vrot.slane %v1907, %v1911
        %v1918 = vunpack.c.l.b16 %v1903
        %v1919 = vunpack.c.l.b16 %v1904
        %v1920 = vunpack.c.l.b16 %v1905
        %v1921 = vunpack.c.l.b16 %v1906
        %v1922 = vpack.c.b16 %v1919, %v1918
        %v1923 = vpack.c.b16 %v1921, %v1920
        %v1927 = vsel %vm1164, %v1902, 0
        %1929 = vmatprep.subr.bf16.mxu0 0
        %1930 = vmatpush1.bf16.msra.mxu0 %v1922
        %1931 = vmatprep.subr.bf16.mxu0 0
        %1932 = vmatpush1.bf16.msra.mxu0 %v1923
        %1933 = vmatprep.subr.bf16.mxu0 0
        %1934 = vmatpush1.bf16.msra.mxu0 0
        %1935 = vmatprep.subr.bf16.mxu0 0
        %1936 = vmatpush1.bf16.msra.mxu0 0
        %1937 = vmatprep.subr.bf16.mxu0 0
        %1938 = vmatpush1.bf16.msra.mxu0 0
        %1939 = vmatprep.subr.bf16.mxu0 0
        %1940 = vmatpush1.bf16.msra.mxu0 0
        %1941 = vmatprep.subr.bf16.mxu0 0
        %1942 = vmatpush1.bf16.msra.mxu0 0
        %1943 = vmatprep.subr.bf16.mxu0 0
        %1944 = vmatpush1.bf16.msra.mxu0 0
        %1945 = vmatprep.subr.bf16.mxu0 0
        %1946 = vmatpush1.bf16.msra.mxu0 0
        %1947 = vmatprep.subr.bf16.mxu0 0
        %1948 = vmatpush1.bf16.msra.mxu0 0
        %1949 = vmatprep.subr.bf16.mxu0 0
        %1950 = vmatpush1.bf16.msra.mxu0 0
        %1951 = vmatprep.subr.bf16.mxu0 0
        %1952 = vmatpush1.bf16.msra.mxu0 0
        %1953 = vmatprep.subr.bf16.mxu0 0
        %1954 = vmatpush1.bf16.msra.mxu0 0
        %1955 = vmatprep.subr.bf16.mxu0 0
        %1956 = vmatpush1.bf16.msra.mxu0 0
        %1957 = vmatprep.subr.bf16.mxu0 0
        %1958 = vmatpush1.bf16.msra.mxu0 0
        %1959 = vmatprep.subr.bf16.mxu0 0
        %1960 = vmatpush1.bf16.msra.mxu0 0
        %1961 = vmatprep.mubr.bf16.mxu0 0
        %1962 = vmatmul.mubr.bf16.gmra.mrb[0].mxu0 %v1927
        %v1963 = vpop.f32.mrb[0].mxu0
        %v1964 = vadd.f32 %v1912, %v1963
        %v1965 = vpop.f32.mrb[0].mxu0
        %v1966 = vpop.f32.mrb[0].mxu0
        %v1967 = vpop.f32.mrb[0].mxu0
        %1968 = vdwg.mxu0
        %v1969 = vpack.c.bf16 %v1964, %v1964
        %v1970 = vld [vmem:[%s27] sm:$0xf]
        %v1971 = vld [vmem:[%s27 + $0x4] sm:$0xf]
        %v1972 = vld [vmem:[%s27 + $0x8] sm:$0xf]
        %v1973 = vld [vmem:[%s27 + $0xc] sm:$0xf]
        %v1974 = vld [vmem:[#allocation18] sm:$0x1]
        %v1976 = vlaneseq
        %v1977 = vshrl.u32 %v1976, 7
        %v1978 = vsub.s32 0, %v1977
        %v1979 = vrot.slane %v1974, %v1978
        %v1985 = vunpack.c.l.b16 %v1970
        %v1986 = vunpack.c.l.b16 %v1971
        %v1987 = vunpack.c.l.b16 %v1972
        %v1988 = vunpack.c.l.b16 %v1973
        %v1989 = vpack.c.b16 %v1986, %v1985
        %v1990 = vpack.c.b16 %v1988, %v1987
        %v1994 = vsel %vm1164, %v1140, 0
        %1996 = vmatprep.subr.bf16.mxu0 0
        %1997 = vmatpush1.bf16.msra.mxu0 %v1989
        %1998 = vmatprep.subr.bf16.mxu0 0
        %1999 = vmatpush1.bf16.msra.mxu0 %v1990
        %2000 = vmatprep.subr.bf16.mxu0 0
        %2001 = vmatpush1.bf16.msra.mxu0 0
        %2002 = vmatprep.subr.bf16.mxu0 0
        %2003 = vmatpush1.bf16.msra.mxu0 0
        %2004 = vmatprep.subr.bf16.mxu0 0
        %2005 = vmatpush1.bf16.msra.mxu0 0
        %2006 = vmatprep.subr.bf16.mxu0 0
        %2007 = vmatpush1.bf16.msra.mxu0 0
        %2008 = vmatprep.subr.bf16.mxu0 0
        %2009 = vmatpush1.bf16.msra.mxu0 0
        %2010 = vmatprep.subr.bf16.mxu0 0
        %2011 = vmatpush1.bf16.msra.mxu0 0
        %2012 = vmatprep.subr.bf16.mxu0 0
        %2013 = vmatpush1.bf16.msra.mxu0 0
        %2014 = vmatprep.subr.bf16.mxu0 0
        %2015 = vmatpush1.bf16.msra.mxu0 0
        %2016 = vmatprep.subr.bf16.mxu0 0
        %2017 = vmatpush1.bf16.msra.mxu0 0
        %2018 = vmatprep.subr.bf16.mxu0 0
        %2019 = vmatpush1.bf16.msra.mxu0 0
        %2020 = vmatprep.subr.bf16.mxu0 0
        %2021 = vmatpush1.bf16.msra.mxu0 0
        %2022 = vmatprep.subr.bf16.mxu0 0
        %2023 = vmatpush1.bf16.msra.mxu0 0
        %2024 = vmatprep.subr.bf16.mxu0 0
        %2025 = vmatpush1.bf16.msra.mxu0 0
        %2026 = vmatprep.subr.bf16.mxu0 0
        %2027 = vmatpush1.bf16.msra.mxu0 0
        %2028 = vmatprep.mubr.bf16.mxu0 0
        %2029 = vmatmul.mubr.bf16.gmra.mrb[0].mxu0 %v1994
        %v2030 = vpop.f32.mrb[0].mxu0
        %v2031 = vadd.f32 %v1979, %v2030
        %v2032 = vpop.f32.mrb[0].mxu0
        %v2033 = vpop.f32.mrb[0].mxu0
        %v2034 = vpop.f32.mrb[0].mxu0
        %2035 = vdwg.mxu0
        %v2036 = vpack.c.bf16 %v2031, %v2031
        %v2037 = vld [vmem:[#allocation20] sm:$0xf]
        %v2038 = vld [vmem:[#allocation20 + $0x4] sm:$0xf]
        %v2039 = vld [vmem:[#allocation20 + $0x8] sm:$0xf]
        %v2040 = vld [vmem:[#allocation20 + $0xc] sm:$0xf]
        %v2041 = vld [vmem:[#allocation21] sm:$0x1]
        %v2043 = vlaneseq
        %v2044 = vshrl.u32 %v2043, 7
        %v2045 = vsub.s32 0, %v2044
        %v2046 = vrot.slane %v2041, %v2045
        %v2052 = vunpack.c.l.b16 %v2037
        %v2053 = vunpack.c.l.b16 %v2038
        %v2054 = vunpack.c.l.b16 %v2039
        %v2055 = vunpack.c.l.b16 %v2040
        %v2056 = vpack.c.b16 %v2053, %v2052
        %v2057 = vpack.c.b16 %v2055, %v2054
        %2060 = vmatprep.subr.bf16.mxu0 0
        %2061 = vmatpush1.bf16.msra.mxu0 %v2056
        %2062 = vmatprep.subr.bf16.mxu0 0
        %2063 = vmatpush1.bf16.msra.mxu0 %v2057
        %2064 = vmatprep.subr.bf16.mxu0 0
        %2065 = vmatpush1.bf16.msra.mxu0 0
        %2066 = vmatprep.subr.bf16.mxu0 0
        %2067 = vmatpush1.bf16.msra.mxu0 0
        %2068 = vmatprep.subr.bf16.mxu0 0
        %2069 = vmatpush1.bf16.msra.mxu0 0
        %2070 = vmatprep.subr.bf16.mxu0 0
        %2071 = vmatpush1.bf16.msra.mxu0 0
        %2072 = vmatprep.subr.bf16.mxu0 0
        %2073 = vmatpush1.bf16.msra.mxu0 0
        %2074 = vmatprep.subr.bf16.mxu0 0
        %2075 = vmatpush1.bf16.msra.mxu0 0
        %2076 = vmatprep.subr.bf16.mxu0 0
        %2077 = vmatpush1.bf16.msra.mxu0 0
        %2078 = vmatprep.subr.bf16.mxu0 0
        %2079 = vmatpush1.bf16.msra.mxu0 0
        %2080 = vmatprep.subr.bf16.mxu0 0
        %2081 = vmatpush1.bf16.msra.mxu0 0
        %2082 = vmatprep.subr.bf16.mxu0 0
        %2083 = vmatpush1.bf16.msra.mxu0 0
        %2084 = vmatprep.subr.bf16.mxu0 0
        %2085 = vmatpush1.bf16.msra.mxu0 0
        %2086 = vmatprep.subr.bf16.mxu0 0
        %2087 = vmatpush1.bf16.msra.mxu0 0
        %2088 = vmatprep.subr.bf16.mxu0 0
        %2089 = vmatpush1.bf16.msra.mxu0 0
        %2090 = vmatprep.subr.bf16.mxu0 0
        %2091 = vmatpush1.bf16.msra.mxu0 0
        %2092 = vmatprep.mubr.bf16.mxu0 0
        %2093 = vmatmul.mubr.bf16.gmra.mrb[0].mxu0 %v1994
        %v2094 = vpop.f32.mrb[0].mxu0
        %v2095 = vadd.f32 %v2046, %v2094
        %v2096 = vpop.f32.mrb[0].mxu0
        %v2097 = vpop.f32.mrb[0].mxu0
        %v2098 = vpop.f32.mrb[0].mxu0
        %2099 = vdwg.mxu0
        %v2100 = vpack.c.bf16 %v2095, %v2095
        %v2102 = vsel %vm1340, %v1969, 0
        %v2105 = vsel %vm1340, %v2036, 0
        %2107 = vmatprep.subr.bf16.mxu0 0
        %2108 = vmatpush1.bf16.xpose.msra.mxu0 %v2105
        %2109 = vmatprep.subr.bf16.mxu0 0
        %2110 = vmatpush1.bf16.xpose.msra.mxu0 0
        %2111 = vmatprep.subr.bf16.mxu0 0
        %2112 = vmatpush1.bf16.xpose.msra.mxu0 0
        %2113 = vmatprep.subr.bf16.mxu0 0
        %2114 = vmatpush1.bf16.xpose.msra.mxu0 0
        %2115 = vmatprep.subr.bf16.mxu0 0
        %2116 = vmatpush1.bf16.xpose.msra.mxu0 0
        %2117 = vmatprep.subr.bf16.mxu0 0
        %2118 = vmatpush1.bf16.xpose.msra.mxu0 0
        %2119 = vmatprep.subr.bf16.mxu0 0
        %2120 = vmatpush1.bf16.xpose.msra.mxu0 0
        %2121 = vmatprep.subr.bf16.mxu0 0
        %2122 = vmatpush1.bf16.xpose.msra.mxu0 0
        %2123 = vmatprep.subr.bf16.mxu0 0
        %2124 = vmatpush1.bf16.xpose.msra.mxu0 0
        %2125 = vmatprep.subr.bf16.mxu0 0
        %2126 = vmatpush1.bf16.xpose.msra.mxu0 0
        %2127 = vmatprep.subr.bf16.mxu0 0
        %2128 = vmatpush1.bf16.xpose.msra.mxu0 0
        %2129 = vmatprep.subr.bf16.mxu0 0
        %2130 = vmatpush1.bf16.xpose.msra.mxu0 0
        %2131 = vmatprep.subr.bf16.mxu0 0
        %2132 = vmatpush1.bf16.xpose.msra.mxu0 0
        %2133 = vmatprep.subr.bf16.mxu0 0
        %2134 = vmatpush1.bf16.xpose.msra.mxu0 0
        %2135 = vmatprep.subr.bf16.mxu0 0
        %2136 = vmatpush1.bf16.xpose.msra.mxu0 0
        %2137 = vmatprep.subr.bf16.mxu0 0
        %2138 = vmatpush1.bf16.xpose.msra.mxu0 0
        %2139 = vmatprep.mubr.bf16.mxu0 0
        %2140 = vmatmul.mubr.bf16.gmra.mrb[0].mxu0 %v2102
        %v2141 = vpop.f32.mrb[0].mxu0
        %v2142 = vadd.f32 0.0, %v2141
        %v2143 = vpop.f32.mrb[0].mxu0
        %v2144 = vpop.f32.mrb[0].mxu0
        %v2145 = vpop.f32.mrb[0].mxu0
        %2146 = vdwg.mxu0
        %v2147 = vmul.f32 %v2142, 0.35355338
        %v2148 = vsel %vm1340, %v2147, -inf
        %2149 = vmax.xlane.f32.xlu0 %v2148
        %v2150 = vpop.xlane.xlu0 %2149
        %v2151 = vsub.f32 %v2147, %v2150
        %v2152 = vmul.f32 %v2151, 1.442695
        %v2153 = vpow.pop %v2152
        %v2154 = vsel %vm1340, %v2153, 0.0
        %2155 = vadd.xlane.f32.xlu0 %v2154
        %v2156 = vpop.xlane.xlu0 %2155
        %v2157 = vrcp.pop %v2156
        %v2158 = vpack.c.bf16 %v2153, %v2153
        %v2160 = vsel %vm1340, %v2158, 0
        %v2163 = vsel %vm1402, %v2100, 0
        %2165 = vmatprep.subr.bf16.mxu0 0
        %2166 = vmatpush1.bf16.msra.mxu0 %v2163
        %2167 = vmatprep.subr.bf16.mxu0 0
        %2168 = vmatpush1.bf16.msra.mxu0 0
        %2169 = vmatprep.subr.bf16.mxu0 0
        %2170 = vmatpush1.bf16.msra.mxu0 0
        %2171 = vmatprep.subr.bf16.mxu0 0
        %2172 = vmatpush1.bf16.msra.mxu0 0
        %2173 = vmatprep.subr.bf16.mxu0 0
        %2174 = vmatpush1.bf16.msra.mxu0 0
        %2175 = vmatprep.subr.bf16.mxu0 0
        %2176 = vmatpush1.bf16.msra.mxu0 0
        %2177 = vmatprep.subr.bf16.mxu0 0
        %2178 = vmatpush1.bf16.msra.mxu0 0
        %2179 = vmatprep.subr.bf16.mxu0 0
        %2180 = vmatpush1.bf16.msra.mxu0 0
        %2181 = vmatprep.subr.bf16.mxu0 0
        %2182 = vmatpush1.bf16.msra.mxu0 0
        %2183 = vmatprep.subr.bf16.mxu0 0
        %2184 = vmatpush1.bf16.msra.mxu0 0
        %2185 = vmatprep.subr.bf16.mxu0 0
        %2186 = vmatpush1.bf16.msra.mxu0 0
        %2187 = vmatprep.subr.bf16.mxu0 0
        %2188 = vmatpush1.bf16.msra.mxu0 0
        %2189 = vmatprep.subr.bf16.mxu0 0
        %2190 = vmatpush1.bf16.msra.mxu0 0
        %2191 = vmatprep.subr.bf16.mxu0 0
        %2192 = vmatpush1.bf16.msra.mxu0 0
        %2193 = vmatprep.subr.bf16.mxu0 0
        %2194 = vmatpush1.bf16.msra.mxu0 0
        %2195 = vmatprep.subr.bf16.mxu0 0
        %2196 = vmatpush1.bf16.msra.mxu0 0
        %2197 = vmatprep.mubr.bf16.mxu0 0
        %2198 = vmatmul.mubr.bf16.gmra.mrb[0].mxu0 %v2160
        %v2199 = vpop.f32.mrb[0].mxu0
        %v2200 = vadd.f32 0.0, %v2199
        %v2201 = vpop.f32.mrb[0].mxu0
        %v2202 = vpop.f32.mrb[0].mxu0
        %v2203 = vpop.f32.mrb[0].mxu0
        %2204 = vdwg.mxu0
        %v2205 = vmul.f32 %v2200, %v2157
        %2206 = vst.msk [vmem:[#allocation2] sm:$0xff] %vm1340, %v2205
        %2208 = vrot.lane.b32.xlu0 %v1969, 120
        %v2209 = vpop.permute.xlu0 %2208
        %2211 = vrot.lane.b32.xlu0 %v2036, 120
        %v2212 = vpop.permute.xlu0 %2211
        %v2214 = vsel %vm1340, %v2209, 0
        %v2217 = vsel %vm1340, %v2212, 0
        %2219 = vmatprep.subr.bf16.mxu0 0
        %2220 = vmatpush1.bf16.xpose.msra.mxu0 %v2217
        %2221 = vmatprep.subr.bf16.mxu0 0
        %2222 = vmatpush1.bf16.xpose.msra.mxu0 0
        %2223 = vmatprep.subr.bf16.mxu0 0
        %2224 = vmatpush1.bf16.xpose.msra.mxu0 0
        %2225 = vmatprep.subr.bf16.mxu0 0
        %2226 = vmatpush1.bf16.xpose.msra.mxu0 0
        %2227 = vmatprep.subr.bf16.mxu0 0
        %2228 = vmatpush1.bf16.xpose.msra.mxu0 0
        %2229 = vmatprep.subr.bf16.mxu0 0
        %2230 = vmatpush1.bf16.xpose.msra.mxu0 0
        %2231 = vmatprep.subr.bf16.mxu0 0
        %2232 = vmatpush1.bf16.xpose.msra.mxu0 0
        %2233 = vmatprep.subr.bf16.mxu0 0
        %2234 = vmatpush1.bf16.xpose.msra.mxu0 0
        %2235 = vmatprep.subr.bf16.mxu0 0
        %2236 = vmatpush1.bf16.xpose.msra.mxu0 0
        %2237 = vmatprep.subr.bf16.mxu0 0
        %2238 = vmatpush1.bf16.xpose.msra.mxu0 0
        %2239 = vmatprep.subr.bf16.mxu0 0
        %2240 = vmatpush1.bf16.xpose.msra.mxu0 0
        %2241 = vmatprep.subr.bf16.mxu0 0
        %2242 = vmatpush1.bf16.xpose.msra.mxu0 0
        %2243 = vmatprep.subr.bf16.mxu0 0
        %2244 = vmatpush1.bf16.xpose.msra.mxu0 0
        %2245 = vmatprep.subr.bf16.mxu0 0
        %2246 = vmatpush1.bf16.xpose.msra.mxu0 0
        %2247 = vmatprep.subr.bf16.mxu0 0
        %2248 = vmatpush1.bf16.xpose.msra.mxu0 0
        %2249 = vmatprep.subr.bf16.mxu0 0
        %2250 = vmatpush1.bf16.xpose.msra.mxu0 0
        %2251 = vmatprep.mubr.bf16.mxu0 0
        %2252 = vmatmul.mubr.bf16.gmra.mrb[0].mxu0 %v2214
        %v2253 = vpop.f32.mrb[0].mxu0
        %v2254 = vadd.f32 0.0, %v2253
        %v2255 = vpop.f32.mrb[0].mxu0
        %v2256 = vpop.f32.mrb[0].mxu0
        %v2257 = vpop.f32.mrb[0].mxu0
        %2258 = vdwg.mxu0
        %v2259 = vmul.f32 %v2254, 0.35355338
        %v2260 = vsel %vm1340, %v2259, -inf
        %2261 = vmax.xlane.f32.xlu0 %v2260
        %v2262 = vpop.xlane.xlu0 %2261
        %v2263 = vsub.f32 %v2259, %v2262
        %v2264 = vmul.f32 %v2263, 1.442695
        %v2265 = vpow.pop %v2264
        %v2266 = vsel %vm1340, %v2265, 0.0
        %2267 = vadd.xlane.f32.xlu0 %v2266
        %v2268 = vpop.xlane.xlu0 %2267
        %v2269 = vrcp.pop %v2268
        %v2270 = vpack.c.bf16 %v2265, %v2265
        %2272 = vrot.lane.b32.xlu0 %v2100, 120
        %v2273 = vpop.permute.xlu0 %2272
        %v2275 = vsel %vm1340, %v2270, 0
        %v2278 = vsel %vm1402, %v2273, 0
        %2280 = vmatprep.subr.bf16.mxu0 0
        %2281 = vmatpush1.bf16.msra.mxu0 %v2278
        %2282 = vmatprep.subr.bf16.mxu0 0
        %2283 = vmatpush1.bf16.msra.mxu0 0
        %2284 = vmatprep.subr.bf16.mxu0 0
        %2285 = vmatpush1.bf16.msra.mxu0 0
        %2286 = vmatprep.subr.bf16.mxu0 0
        %2287 = vmatpush1.bf16.msra.mxu0 0
        %2288 = vmatprep.subr.bf16.mxu0 0
        %2289 = vmatpush1.bf16.msra.mxu0 0
        %2290 = vmatprep.subr.bf16.mxu0 0
        %2291 = vmatpush1.bf16.msra.mxu0 0
        %2292 = vmatprep.subr.bf16.mxu0 0
        %2293 = vmatpush1.bf16.msra.mxu0 0
        %2294 = vmatprep.subr.bf16.mxu0 0
        %2295 = vmatpush1.bf16.msra.mxu0 0
        %2296 = vmatprep.subr.bf16.mxu0 0
        %2297 = vmatpush1.bf16.msra.mxu0 0
        %2298 = vmatprep.subr.bf16.mxu0 0
        %2299 = vmatpush1.bf16.msra.mxu0 0
        %2300 = vmatprep.subr.bf16.mxu0 0
        %2301 = vmatpush1.bf16.msra.mxu0 0
        %2302 = vmatprep.subr.bf16.mxu0 0
        %2303 = vmatpush1.bf16.msra.mxu0 0
        %2304 = vmatprep.subr.bf16.mxu0 0
        %2305 = vmatpush1.bf16.msra.mxu0 0
        %2306 = vmatprep.subr.bf16.mxu0 0
        %2307 = vmatpush1.bf16.msra.mxu0 0
        %2308 = vmatprep.subr.bf16.mxu0 0
        %2309 = vmatpush1.bf16.msra.mxu0 0
        %2310 = vmatprep.subr.bf16.mxu0 0
        %2311 = vmatpush1.bf16.msra.mxu0 0
        %2312 = vmatprep.mubr.bf16.mxu0 0
        %2313 = vmatmul.mubr.bf16.gmra.mrb[0].mxu0 %v2275
        %v2314 = vpop.f32.mrb[0].mxu0
        %v2315 = vadd.f32 0.0, %v2314
        %v2316 = vpop.f32.mrb[0].mxu0
        %v2317 = vpop.f32.mrb[0].mxu0
        %v2318 = vpop.f32.mrb[0].mxu0
        %2319 = vdwg.mxu0
        %v2320 = vmul.f32 %v2315, %v2269
        %2322 = vrot.lane.b32.xlu0 %v2320, 8
        %v2323 = vpop.permute.xlu0 %2322
        %2325 = vst.msk [vmem:[#allocation2] sm:$0xff] %vm1566, %v2323
        %2326 = vrot.lane.b32.xlu0 %v1969, 112
        %v2327 = vpop.permute.xlu0 %2326
        %2328 = vrot.lane.b32.xlu0 %v2036, 112
        %v2329 = vpop.permute.xlu0 %2328
        %v2331 = vsel %vm1340, %v2327, 0
        %v2334 = vsel %vm1340, %v2329, 0
        %2336 = vmatprep.subr.bf16.mxu0 0
        %2337 = vmatpush1.bf16.xpose.msra.mxu0 %v2334
        %2338 = vmatprep.subr.bf16.mxu0 0
        %2339 = vmatpush1.bf16.xpose.msra.mxu0 0
        %2340 = vmatprep.subr.bf16.mxu0 0
        %2341 = vmatpush1.bf16.xpose.msra.mxu0 0
        %2342 = vmatprep.subr.bf16.mxu0 0
        %2343 = vmatpush1.bf16.xpose.msra.mxu0 0
        %2344 = vmatprep.subr.bf16.mxu0 0
        %2345 = vmatpush1.bf16.xpose.msra.mxu0 0
        %2346 = vmatprep.subr.bf16.mxu0 0
        %2347 = vmatpush1.bf16.xpose.msra.mxu0 0
        %2348 = vmatprep.subr.bf16.mxu0 0
        %2349 = vmatpush1.bf16.xpose.msra.mxu0 0
        %2350 = vmatprep.subr.bf16.mxu0 0
        %2351 = vmatpush1.bf16.xpose.msra.mxu0 0
        %2352 = vmatprep.subr.bf16.mxu0 0
        %2353 = vmatpush1.bf16.xpose.msra.mxu0 0
        %2354 = vmatprep.subr.bf16.mxu0 0
        %2355 = vmatpush1.bf16.xpose.msra.mxu0 0
        %2356 = vmatprep.subr.bf16.mxu0 0
        %2357 = vmatpush1.bf16.xpose.msra.mxu0 0
        %2358 = vmatprep.subr.bf16.mxu0 0
        %2359 = vmatpush1.bf16.xpose.msra.mxu0 0
        %2360 = vmatprep.subr.bf16.mxu0 0
        %2361 = vmatpush1.bf16.xpose.msra.mxu0 0
        %2362 = vmatprep.subr.bf16.mxu0 0
        %2363 = vmatpush1.bf16.xpose.msra.mxu0 0
        %2364 = vmatprep.subr.bf16.mxu0 0
        %2365 = vmatpush1.bf16.xpose.msra.mxu0 0
        %2366 = vmatprep.subr.bf16.mxu0 0
        %2367 = vmatpush1.bf16.xpose.msra.mxu0 0
        %2368 = vmatprep.mubr.bf16.mxu0 0
        %2369 = vmatmul.mubr.bf16.gmra.mrb[0].mxu0 %v2331
        %v2370 = vpop.f32.mrb[0].mxu0
        %v2371 = vadd.f32 0.0, %v2370
        %v2372 = vpop.f32.mrb[0].mxu0
        %v2373 = vpop.f32.mrb[0].mxu0
        %v2374 = vpop.f32.mrb[0].mxu0
        %2375 = vdwg.mxu0
        %v2376 = vmul.f32 %v2371, 0.35355338
        %v2377 = vsel %vm1340, %v2376, -inf
        %2378 = vmax.xlane.f32.xlu0 %v2377
        %v2379 = vpop.xlane.xlu0 %2378
        %v2380 = vsub.f32 %v2376, %v2379
        %v2381 = vmul.f32 %v2380, 1.442695
        %v2382 = vpow.pop %v2381
        %v2383 = vsel %vm1340, %v2382, 0.0
        %2384 = vadd.xlane.f32.xlu0 %v2383
        %v2385 = vpop.xlane.xlu0 %2384
        %v2386 = vrcp.pop %v2385
        %v2387 = vpack.c.bf16 %v2382, %v2382
        %2388 = vrot.lane.b32.xlu0 %v2100, 112
        %v2389 = vpop.permute.xlu0 %2388
        %v2391 = vsel %vm1340, %v2387, 0
        %v2394 = vsel %vm1402, %v2389, 0
        %2396 = vmatprep.subr.bf16.mxu0 0
        %2397 = vmatpush1.bf16.msra.mxu0 %v2394
        %2398 = vmatprep.subr.bf16.mxu0 0
        %2399 = vmatpush1.bf16.msra.mxu0 0
        %2400 = vmatprep.subr.bf16.mxu0 0
        %2401 = vmatpush1.bf16.msra.mxu0 0
        %2402 = vmatprep.subr.bf16.mxu0 0
        %2403 = vmatpush1.bf16.msra.mxu0 0
        %2404 = vmatprep.subr.bf16.mxu0 0
        %2405 = vmatpush1.bf16.msra.mxu0 0
        %2406 = vmatprep.subr.bf16.mxu0 0
        %2407 = vmatpush1.bf16.msra.mxu0 0
        %2408 = vmatprep.subr.bf16.mxu0 0
        %2409 = vmatpush1.bf16.msra.mxu0 0
        %2410 = vmatprep.subr.bf16.mxu0 0
        %2411 = vmatpush1.bf16.msra.mxu0 0
        %2412 = vmatprep.subr.bf16.mxu0 0
        %2413 = vmatpush1.bf16.msra.mxu0 0
        %2414 = vmatprep.subr.bf16.mxu0 0
        %2415 = vmatpush1.bf16.msra.mxu0 0
        %2416 = vmatprep.subr.bf16.mxu0 0
        %2417 = vmatpush1.bf16.msra.mxu0 0
        %2418 = vmatprep.subr.bf16.mxu0 0
        %2419 = vmatpush1.bf16.msra.mxu0 0
        %2420 = vmatprep.subr.bf16.mxu0 0
        %2421 = vmatpush1.bf16.msra.mxu0 0
        %2422 = vmatprep.subr.bf16.mxu0 0
        %2423 = vmatpush1.bf16.msra.mxu0 0
        %2424 = vmatprep.subr.bf16.mxu0 0
        %2425 = vmatpush1.bf16.msra.mxu0 0
        %2426 = vmatprep.subr.bf16.mxu0 0
        %2427 = vmatpush1.bf16.msra.mxu0 0
        %2428 = vmatprep.mubr.bf16.mxu0 0
        %2429 = vmatmul.mubr.bf16.gmra.mrb[0].mxu0 %v2391
        %v2430 = vpop.f32.mrb[0].mxu0
        %v2431 = vadd.f32 0.0, %v2430
        %v2432 = vpop.f32.mrb[0].mxu0
        %v2433 = vpop.f32.mrb[0].mxu0
        %v2434 = vpop.f32.mrb[0].mxu0
        %2435 = vdwg.mxu0
        %v2436 = vmul.f32 %v2431, %v2386
        %2438 = vrot.lane.b32.xlu0 %v2436, 16
        %v2439 = vpop.permute.xlu0 %2438
        %2441 = vst.msk [vmem:[#allocation2] sm:$0xff] %vm1683, %v2439
        %2442 = vrot.lane.b32.xlu0 %v1969, 104
        %v2443 = vpop.permute.xlu0 %2442
        %2444 = vrot.lane.b32.xlu0 %v2036, 104
        %v2445 = vpop.permute.xlu0 %2444
        %v2447 = vsel %vm1340, %v2443, 0
        %v2450 = vsel %vm1340, %v2445, 0
        %2452 = vmatprep.subr.bf16.mxu0 0
        %2453 = vmatpush1.bf16.xpose.msra.mxu0 %v2450
        %2454 = vmatprep.subr.bf16.mxu0 0
        %2455 = vmatpush1.bf16.xpose.msra.mxu0 0
        %2456 = vmatprep.subr.bf16.mxu0 0
        %2457 = vmatpush1.bf16.xpose.msra.mxu0 0
        %2458 = vmatprep.subr.bf16.mxu0 0
        %2459 = vmatpush1.bf16.xpose.msra.mxu0 0
        %2460 = vmatprep.subr.bf16.mxu0 0
        %2461 = vmatpush1.bf16.xpose.msra.mxu0 0
        %2462 = vmatprep.subr.bf16.mxu0 0
        %2463 = vmatpush1.bf16.xpose.msra.mxu0 0
        %2464 = vmatprep.subr.bf16.mxu0 0
        %2465 = vmatpush1.bf16.xpose.msra.mxu0 0
        %2466 = vmatprep.subr.bf16.mxu0 0
        %2467 = vmatpush1.bf16.xpose.msra.mxu0 0
        %2468 = vmatprep.subr.bf16.mxu0 0
        %2469 = vmatpush1.bf16.xpose.msra.mxu0 0
        %2470 = vmatprep.subr.bf16.mxu0 0
        %2471 = vmatpush1.bf16.xpose.msra.mxu0 0
        %2472 = vmatprep.subr.bf16.mxu0 0
        %2473 = vmatpush1.bf16.xpose.msra.mxu0 0
        %2474 = vmatprep.subr.bf16.mxu0 0
        %2475 = vmatpush1.bf16.xpose.msra.mxu0 0
        %2476 = vmatprep.subr.bf16.mxu0 0
        %2477 = vmatpush1.bf16.xpose.msra.mxu0 0
        %2478 = vmatprep.subr.bf16.mxu0 0
        %2479 = vmatpush1.bf16.xpose.msra.mxu0 0
        %2480 = vmatprep.subr.bf16.mxu0 0
        %2481 = vmatpush1.bf16.xpose.msra.mxu0 0
        %2482 = vmatprep.subr.bf16.mxu0 0
        %2483 = vmatpush1.bf16.xpose.msra.mxu0 0
        %2484 = vmatprep.mubr.bf16.mxu0 0
        %2485 = vmatmul.mubr.bf16.gmra.mrb[0].mxu0 %v2447
        %v2486 = vpop.f32.mrb[0].mxu0
        %v2487 = vadd.f32 0.0, %v2486
        %v2488 = vpop.f32.mrb[0].mxu0
        %v2489 = vpop.f32.mrb[0].mxu0
        %v2490 = vpop.f32.mrb[0].mxu0
        %2491 = vdwg.mxu0
        %v2492 = vmul.f32 %v2487, 0.35355338
        %v2493 = vsel %vm1340, %v2492, -inf
        %2494 = vmax.xlane.f32.xlu0 %v2493
        %v2495 = vpop.xlane.xlu0 %2494
        %v2496 = vsub.f32 %v2492, %v2495
        %v2497 = vmul.f32 %v2496, 1.442695
        %v2498 = vpow.pop %v2497
        %v2499 = vsel %vm1340, %v2498, 0.0
        %2500 = vadd.xlane.f32.xlu0 %v2499
        %v2501 = vpop.xlane.xlu0 %2500
        %v2502 = vrcp.pop %v2501
        %v2503 = vpack.c.bf16 %v2498, %v2498
        %2504 = vrot.lane.b32.xlu0 %v2100, 104
        %v2505 = vpop.permute.xlu0 %2504
        %v2507 = vsel %vm1340, %v2503, 0
        %v2510 = vsel %vm1402, %v2505, 0
        %2512 = vmatprep.subr.bf16.mxu0 0
        %2513 = vmatpush1.bf16.msra.mxu0 %v2510
        %2514 = vmatprep.subr.bf16.mxu0 0
        %2515 = vmatpush1.bf16.msra.mxu0 0
        %2516 = vmatprep.subr.bf16.mxu0 0
        %2517 = vmatpush1.bf16.msra.mxu0 0
        %2518 = vmatprep.subr.bf16.mxu0 0
        %2519 = vmatpush1.bf16.msra.mxu0 0
        %2520 = vmatprep.subr.bf16.mxu0 0
        %2521 = vmatpush1.bf16.msra.mxu0 0
        %2522 = vmatprep.subr.bf16.mxu0 0
        %2523 = vmatpush1.bf16.msra.mxu0 0
        %2524 = vmatprep.subr.bf16.mxu0 0
        %2525 = vmatpush1.bf16.msra.mxu0 0
        %2526 = vmatprep.subr.bf16.mxu0 0
        %2527 = vmatpush1.bf16.msra.mxu0 0
        %2528 = vmatprep.subr.bf16.mxu0 0
        %2529 = vmatpush1.bf16.msra.mxu0 0
        %2530 = vmatprep.subr.bf16.mxu0 0
        %2531 = vmatpush1.bf16.msra.mxu0 0
        %2532 = vmatprep.subr.bf16.mxu0 0
        %2533 = vmatpush1.bf16.msra.mxu0 0
        %2534 = vmatprep.subr.bf16.mxu0 0
        %2535 = vmatpush1.bf16.msra.mxu0 0
        %2536 = vmatprep.subr.bf16.mxu0 0
        %2537 = vmatpush1.bf16.msra.mxu0 0
        %2538 = vmatprep.subr.bf16.mxu0 0
        %2539 = vmatpush1.bf16.msra.mxu0 0
        %2540 = vmatprep.subr.bf16.mxu0 0
        %2541 = vmatpush1.bf16.msra.mxu0 0
        %2542 = vmatprep.subr.bf16.mxu0 0
        %2543 = vmatpush1.bf16.msra.mxu0 0
        %2544 = vmatprep.mubr.bf16.mxu0 0
        %2545 = vmatmul.mubr.bf16.gmra.mrb[0].mxu0 %v2507
        %v2546 = vpop.f32.mrb[0].mxu0
        %v2547 = vadd.f32 0.0, %v2546
        %v2548 = vpop.f32.mrb[0].mxu0
        %v2549 = vpop.f32.mrb[0].mxu0
        %v2550 = vpop.f32.mrb[0].mxu0
        %2551 = vdwg.mxu0
        %v2552 = vmul.f32 %v2547, %v2502
        %2554 = vrot.lane.b32.xlu0 %v2552, 24
        %v2555 = vpop.permute.xlu0 %2554
        %2557 = vst.msk [vmem:[#allocation2] sm:$0xff] %vm1800, %v2555
        %v2558 = vld [vmem:[#allocation2] sm:$0xff]
        %v2559 = vpack.c.bf16 %v2558, %v2558
        %v2560 = vld [vmem:[%s35] sm:$0xf]
        %v2561 = vld [vmem:[%s35 + $0x4] sm:$0xf]
        %v2562 = vld [vmem:[%s35 + $0x8] sm:$0xf]
        %v2563 = vld [vmem:[%s35 + $0xc] sm:$0xf]
        %v2564 = vld [vmem:[%s37] sm:$0x1]
        %v2566 = vlaneseq
        %v2567 = vshrl.u32 %v2566, 7
        %v2568 = vsub.s32 0, %v2567
        %v2569 = vrot.slane %v2564, %v2568
        %v2575 = vunpack.c.l.b16 %v2560
        %v2576 = vunpack.c.l.b16 %v2561
        %v2577 = vunpack.c.l.b16 %v2562
        %v2578 = vunpack.c.l.b16 %v2563
        %v2579 = vpack.c.b16 %v2576, %v2575
        %v2580 = vpack.c.b16 %v2578, %v2577
        %v2584 = vsel %vm1164, %v2559, 0
        %2586 = vmatprep.subr.bf16.mxu0 0
        %2587 = vmatpush1.bf16.msra.mxu0 %v2579
        %2588 = vmatprep.subr.bf16.mxu0 0
        %2589 = vmatpush1.bf16.msra.mxu0 %v2580
        %2590 = vmatprep.subr.bf16.mxu0 0
        %2591 = vmatpush1.bf16.msra.mxu0 0
        %2592 = vmatprep.subr.bf16.mxu0 0
        %2593 = vmatpush1.bf16.msra.mxu0 0
        %2594 = vmatprep.subr.bf16.mxu0 0
        %2595 = vmatpush1.bf16.msra.mxu0 0
        %2596 = vmatprep.subr.bf16.mxu0 0
        %2597 = vmatpush1.bf16.msra.mxu0 0
        %2598 = vmatprep.subr.bf16.mxu0 0
        %2599 = vmatpush1.bf16.msra.mxu0 0
        %2600 = vmatprep.subr.bf16.mxu0 0
        %2601 = vmatpush1.bf16.msra.mxu0 0
        %2602 = vmatprep.subr.bf16.mxu0 0
        %2603 = vmatpush1.bf16.msra.mxu0 0
        %2604 = vmatprep.subr.bf16.mxu0 0
        %2605 = vmatpush1.bf16.msra.mxu0 0
        %2606 = vmatprep.subr.bf16.mxu0 0
        %2607 = vmatpush1.bf16.msra.mxu0 0
        %2608 = vmatprep.subr.bf16.mxu0 0
        %2609 = vmatpush1.bf16.msra.mxu0 0
        %2610 = vmatprep.subr.bf16.mxu0 0
        %2611 = vmatpush1.bf16.msra.mxu0 0
        %2612 = vmatprep.subr.bf16.mxu0 0
        %2613 = vmatpush1.bf16.msra.mxu0 0
        %2614 = vmatprep.subr.bf16.mxu0 0
        %2615 = vmatpush1.bf16.msra.mxu0 0
        %2616 = vmatprep.subr.bf16.mxu0 0
        %2617 = vmatpush1.bf16.msra.mxu0 0
        %2618 = vmatprep.mubr.bf16.mxu0 0
        %2619 = vmatmul.mubr.bf16.gmra.mrb[0].mxu0 %v2584
        %v2620 = vpop.f32.mrb[0].mxu0
        %v2621 = vadd.f32 %v2569, %v2620
        %v2622 = vpop.f32.mrb[0].mxu0
        %v2623 = vpop.f32.mrb[0].mxu0
        %v2624 = vpop.f32.mrb[0].mxu0
        %2625 = vdwg.mxu0
        %v2626 = vadd.f32 %v1901, %v2621
        %v2627 = vld [vmem:[%s51] sm:$0x1]
        %v2628 = vld [vmem:[%s53] sm:$0x1]
        %v2629 = vsel %vm1164, %v2626, 0.0
        %2630 = vadd.xlane.f32.xlu0 %v2629
        %v2631 = vpop.xlane.xlu0 %2630
        %v2632 = vmul.f32 %v2631, %v1877
        %v2633 = vsub.f32 %v2626, %v2632
        %v2634 = vmul.f32 %v2633, %v2633
        %v2635 = vsel %vm1164, %v2634, 0.0
        %2636 = vadd.xlane.f32.xlu0 %v2635
        %v2637 = vpop.xlane.xlu0 %2636
        %v2638 = vmul.f32 %v2637, %v1877
        %v2639 = vadd.f32 %v2638, 1e-05
        %v2640 = vrsqrt.pop %v2639
        %v2641 = vmul.f32 %v2633, %v2640
        %v2643 = vlaneseq
        %v2644 = vshrl.u32 %v2643, 7
        %v2645 = vsub.s32 0, %v2644
        %v2646 = vrot.slane %v2627, %v2645
        %v2648 = vmul.f32 %v2641, %v2646
        %v2650 = vlaneseq
        %v2651 = vshrl.u32 %v2650, 7
        %v2652 = vsub.s32 0, %v2651
        %v2653 = vrot.slane %v2628, %v2652
        %v2655 = vadd.f32 %v2648, %v2653
        %v2656 = vpack.c.bf16 %v2655, %v2655
        %v2657 = vld [vmem:[#allocation23] sm:$0xf]
        %v2658 = vld [vmem:[#allocation23 + $0x4] sm:$0xf]
        %v2659 = vld [vmem:[#allocation23 + $0x8] sm:$0xf]
        %v2660 = vld [vmem:[#allocation23 + $0xc] sm:$0xf]
        %v2661 = vld [vmem:[%s41] sm:$0x1]
        %v2663 = vlaneseq
        %v2664 = vshrl.u32 %v2663, 7
        %v2665 = vsub.s32 0, %v2664
        %v2666 = vrot.slane %v2661, %v2665
        %v2672 = vunpack.c.l.b16 %v2657
        %v2673 = vunpack.c.l.b16 %v2658
        %v2674 = vunpack.c.l.b16 %v2659
        %v2675 = vunpack.c.l.b16 %v2660
        %v2676 = vpack.c.b16 %v2673, %v2672
        %v2677 = vpack.c.b16 %v2675, %v2674
        %v2681 = vsel %vm1164, %v2656, 0
        %2683 = vmatprep.subr.bf16.mxu0 0
        %2684 = vmatpush1.bf16.msra.mxu0 %v2676
        %2685 = vmatprep.subr.bf16.mxu0 0
        %2686 = vmatpush1.bf16.msra.mxu0 %v2677
        %2687 = vmatprep.subr.bf16.mxu0 0
        %2688 = vmatpush1.bf16.msra.mxu0 0
        %2689 = vmatprep.subr.bf16.mxu0 0
        %2690 = vmatpush1.bf16.msra.mxu0 0
        %2691 = vmatprep.subr.bf16.mxu0 0
        %2692 = vmatpush1.bf16.msra.mxu0 0
        %2693 = vmatprep.subr.bf16.mxu0 0
        %2694 = vmatpush1.bf16.msra.mxu0 0
        %2695 = vmatprep.subr.bf16.mxu0 0
        %2696 = vmatpush1.bf16.msra.mxu0 0
        %2697 = vmatprep.subr.bf16.mxu0 0
        %2698 = vmatpush1.bf16.msra.mxu0 0
        %2699 = vmatprep.subr.bf16.mxu0 0
        %2700 = vmatpush1.bf16.msra.mxu0 0
        %2701 = vmatprep.subr.bf16.mxu0 0
        %2702 = vmatpush1.bf16.msra.mxu0 0
        %2703 = vmatprep.subr.bf16.mxu0 0
        %2704 = vmatpush1.bf16.msra.mxu0 0
        %2705 = vmatprep.subr.bf16.mxu0 0
        %2706 = vmatpush1.bf16.msra.mxu0 0
        %2707 = vmatprep.subr.bf16.mxu0 0
        %2708 = vmatpush1.bf16.msra.mxu0 0
        %2709 = vmatprep.subr.bf16.mxu0 0
        %2710 = vmatpush1.bf16.msra.mxu0 0
        %2711 = vmatprep.subr.bf16.mxu0 0
        %2712 = vmatpush1.bf16.msra.mxu0 0
        %2713 = vmatprep.subr.bf16.mxu0 0
        %2714 = vmatpush1.bf16.msra.mxu0 0
        %2715 = vmatprep.mubr.bf16.mxu0 0
        %2716 = vmatmul.mubr.bf16.gmra.mrb[0].mxu0 %v2681
        %v2717 = vpop.f32.mrb[0].mxu0
        %v2718 = vadd.f32 %v2666, %v2717
        %v2719 = vpop.f32.mrb[0].mxu0
        %v2720 = vpop.f32.mrb[0].mxu0
        %v2721 = vpop.f32.mrb[0].mxu0
        %2722 = vdwg.mxu0
        %v2723 = vmax.f32 %v2718, 0.0
        %v2724 = vpack.c.bf16 %v2723, %v2723
        %v2725 = vld [vmem:[%s43] sm:$0xf]
        %v2726 = vld [vmem:[%s43 + $0x4] sm:$0xf]
        %v2727 = vld [vmem:[%s43 + $0x8] sm:$0xf]
        %v2728 = vld [vmem:[%s43 + $0xc] sm:$0xf]
        %v2729 = vld [vmem:[%s43 + $0x10] sm:$0xf]
        %v2730 = vld [vmem:[%s43 + $0x14] sm:$0xf]
        %v2731 = vld [vmem:[%s43 + $0x18] sm:$0xf]
        %v2732 = vld [vmem:[%s43 + $0x1c] sm:$0xf]
        %v2733 = vld [vmem:[%s45] sm:$0x1]
        %v2735 = vlaneseq
        %v2736 = vshrl.u32 %v2735, 7
        %v2737 = vsub.s32 0, %v2736
        %v2738 = vrot.slane %v2733, %v2737
        %v2748 = vunpack.c.l.b16 %v2725
        %v2749 = vunpack.c.l.b16 %v2726
        %v2750 = vunpack.c.l.b16 %v2727
        %v2751 = vunpack.c.l.b16 %v2728
        %v2752 = vunpack.c.l.b16 %v2729
        %v2753 = vunpack.c.l.b16 %v2730
        %v2754 = vunpack.c.l.b16 %v2731
        %v2755 = vunpack.c.l.b16 %v2732
        %v2756 = vpack.c.b16 %v2749, %v2748
        %v2757 = vpack.c.b16 %v2751, %v2750
        %v2758 = vpack.c.b16 %v2753, %v2752
        %v2759 = vpack.c.b16 %v2755, %v2754
        %vm2764 = vcmask 523264
        %v2766 = vsel %vm2764, %v2724, 0
        %2768 = vmatprep.subr.bf16.mxu0 0
        %2769 = vmatpush1.bf16.msra.mxu0 %v2756
        %2770 = vmatprep.subr.bf16.mxu0 0
        %2771 = vmatpush1.bf16.msra.mxu0 %v2757
        %2772 = vmatprep.subr.bf16.mxu0 0
        %2773 = vmatpush1.bf16.msra.mxu0 %v2758
        %2774 = vmatprep.subr.bf16.mxu0 0
        %2775 = vmatpush1.bf16.msra.mxu0 %v2759
        %2776 = vmatprep.subr.bf16.mxu0 0
        %2777 = vmatpush1.bf16.msra.mxu0 0
        %2778 = vmatprep.subr.bf16.mxu0 0
        %2779 = vmatpush1.bf16.msra.mxu0 0
        %2780 = vmatprep.subr.bf16.mxu0 0
        %2781 = vmatpush1.bf16.msra.mxu0 0
        %2782 = vmatprep.subr.bf16.mxu0 0
        %2783 = vmatpush1.bf16.msra.mxu0 0
        %2784 = vmatprep.subr.bf16.mxu0 0
        %2785 = vmatpush1.bf16.msra.mxu0 0
        %2786 = vmatprep.subr.bf16.mxu0 0
        %2787 = vmatpush1.bf16.msra.mxu0 0
        %2788 = vmatprep.subr.bf16.mxu0 0
        %2789 = vmatpush1.bf16.msra.mxu0 0
        %2790 = vmatprep.subr.bf16.mxu0 0
        %2791 = vmatpush1.bf16.msra.mxu0 0
        %2792 = vmatprep.subr.bf16.mxu0 0
        %2793 = vmatpush1.bf16.msra.mxu0 0
        %2794 = vmatprep.subr.bf16.mxu0 0
        %2795 = vmatpush1.bf16.msra.mxu0 0
        %2796 = vmatprep.subr.bf16.mxu0 0
        %2797 = vmatpush1.bf16.msra.mxu0 0
        %2798 = vmatprep.subr.bf16.mxu0 0
        %2799 = vmatpush1.bf16.msra.mxu0 0
        %2800 = vmatprep.mubr.bf16.mxu0 0
        %2801 = vmatmul.mubr.bf16.gmra.mrb[0].mxu0 %v2766
        %v2802 = vpop.f32.mrb[0].mxu0
        %v2803 = vadd.f32 %v2738, %v2802
        %v2804 = vpop.f32.mrb[0].mxu0
        %v2805 = vpop.f32.mrb[0].mxu0
        %v2806 = vpop.f32.mrb[0].mxu0
        %2807 = vdwg.mxu0
        %v2808 = vadd.f32 %v2655, %v2803
        %v2809 = vld [vmem:[%s55] sm:$0x1]
        %v2810 = vld [vmem:[%s57] sm:$0x1]
        %v2811 = vsel %vm1164, %v2808, 0.0
        %2812 = vadd.xlane.f32.xlu0 %v2811
        %v2813 = vpop.xlane.xlu0 %2812
        %v2814 = vmul.f32 %v2813, %v1877
        %v2815 = vsub.f32 %v2808, %v2814
        %v2816 = vmul.f32 %v2815, %v2815
        %v2817 = vsel %vm1164, %v2816, 0.0
        %2818 = vadd.xlane.f32.xlu0 %v2817
        %v2819 = vpop.xlane.xlu0 %2818
        %v2820 = vmul.f32 %v2819, %v1877
        %v2821 = vadd.f32 %v2820, 1e-05
        %v2822 = vrsqrt.pop %v2821
        %v2823 = vmul.f32 %v2815, %v2822
        %v2825 = vlaneseq
        %v2826 = vshrl.u32 %v2825, 7
        %v2827 = vsub.s32 0, %v2826
        %v2828 = vrot.slane %v2809, %v2827
        %v2830 = vmul.f32 %v2823, %v2828
        %v2832 = vlaneseq
        %v2833 = vshrl.u32 %v2832, 7
        %v2834 = vsub.s32 0, %v2833
        %v2835 = vrot.slane %v2810, %v2834
        %v2837 = vadd.f32 %v2830, %v2835
        %2838 = vst.msk [vmem:[%s1136] sm:$0xff] %vm1164, %v2837
        %s2839 = sand.u32 %s732, 1
        %s2840 = scalar_lea.sflag [#allocation5], %s2839
        %s2841 = sand.u32 %s732, 1
        %s2842 = smul.addr %s2841, 8
        %s2843 = scalar_lea.vmem [#allocation24], %s2842
        // Predicated region
        $region189: #{tpu_custom_call.1} parent=135 // pred_check
          %p2844 = pneg %p742
        $region190: #{tpu_custom_call.1} parent=135 // pred_check_branch
          %2846 = sbr.rel (%p2844) target = $region192
        $region191: #{tpu_custom_call.1} parent=135 // pred_region
          %s2848 = ssub.s32 128, 128
          %2849 = vsyncadd %s2840, %s2848
          %s2850 = sadd.s32 %s89, %s88
          %s2851 = smul.addr %s2850, 128
          %s2852 = scalar_lea.hbm %s59, %s2851
          %s2854 = sshll.u32 %s2843, 4
          %s2855 = int_to_ptr.vmem [resolvable:$true] %s2854
          %2857 = dma.vmem_to_hbm [thread:$0]  %s2855, 128, %s2852, %s2840
        $region192: #{tpu_custom_call.1} parent=135 // pred_fallthru
          _
      $region136: #{tpu_custom_call.1} parent=5 // pred_fallthru
        _
      %p2858 = scmp.le.s32.totalorder 2, %s79
      // Predicated region
      $region193: #{tpu_custom_call.1} parent=5 // pred_check
        %p2859 = pneg %p2858
      $region194: #{tpu_custom_call.1} parent=5 // pred_check_branch
        %2861 = sbr.rel (%p2859) target = $region196
      $region195: #{tpu_custom_call.1} parent=5 // pred_region
        %s2862 = ssub.s32 %s79, 2
        // Predicated region
        $region197: #{tpu_custom_call.1} parent=195 // pred_check
          %p2863 = pneg %p748
        $region198: #{tpu_custom_call.1} parent=195 // pred_check_branch
          %2865 = sbr.rel (%p2863) target = $region200
        $region199: #{tpu_custom_call.1} parent=195 // pred_region
          %s2866 = sand.u32 %s733, 1
          %s2867 = scalar_lea.sflag [#allocation5], %s2866
          %s2868 = sand.u32 %s733, 1
          %s2869 = smul.addr %s2868, 8
          %s2870 = scalar_lea.vmem [#allocation24], %s2869
          %2871 = dma.done %s2867, 128
        $region200: #{tpu_custom_call.1} parent=195 // pred_fallthru
          _
      $region196: #{tpu_custom_call.1} parent=5 // pred_fallthru
        _
    $region6: #{tpu_custom_call.1} parent=1 // loop_footer
      %s83 = sadd.s32 1, %s79
    $region7: #{tpu_custom_call.1} parent=1 // loop_footer_branch
      %78 = sbr.rel target = $region3
    $region8: #{tpu_custom_call.1} parent=1 // loop_exit
      _
    %2872 = vsyncpa [#allocation4], 1
    %s2873 = scalar_lea.sflag [#allocation4], 1
    %2874 = vsyncpa %s2873, 1
    %2875 = vsyncpa [#allocation7], 1
    %s2876 = scalar_lea.sflag [#allocation7], 1
    %2877 = vsyncpa %s2876, 1
    %2878 = vsyncpa [#allocation10], 1
    %2879 = vsyncpa [#allocation13], 1
    %2880 = vsyncpa [#allocation16], 1
    %2881 = vsyncpa [#allocation19], 1
    %2882 = vsyncpa [#allocation22], 1
    %2883 = vsyncpa [#allocation5], 1
    %s2884 = scalar_lea.sflag [#allocation5], 1
    %2885 = vsyncpa %s2884, 1

// kernel: tpu_custom_call.1
$region0: #{tpu_custom_call.1}
  #allocation0 [shape = 'u32[]', space=smem, size = 0x4, offset = 0x4, fixed_abs, tag = 'smem constant byte address 0x4 - core index']
  #allocation1 [shape = 'u32[144,128]{1,0:T(1,128)}', space=vmem, size = 0x12000, scoped, tag = 'internal scratch']
  #allocation2 [shape = 'f32[8,32]{1,0:T(8,128)}', space=vmem, size = 0x1000, scoped, tag = 'scratch operand']
  %s0 = inlined_call_operand.smem [shape: u32[30], index: -1, kind: input, shape index: {}]
  %s1 = sld [smem:[%s0]]
  %s2 = scalar_lea.smem %s0, 1
  %s3 = sld [smem:[%s2]]
  %s4 = scalar_lea.smem %s0, 2
  %s5 = sld [smem:[%s4]]
  %s6 = scalar_lea.smem %s0, 3
  %s7 = sld [smem:[%s6]]
  %s8 = scalar_lea.smem %s0, 4
  %s9 = sld [smem:[%s8]]
  %s10 = scalar_lea.smem %s0, 5
  %s11 = sld [smem:[%s10]]
  %s12 = scalar_lea.smem %s0, 6
  %s13 = sld [smem:[%s12]]
  %s14 = scalar_lea.smem %s0, 7
  %s15 = sld [smem:[%s14]]
  %s16 = scalar_lea.smem %s0, 8
  %s17 = sld [smem:[%s16]]
  %s18 = scalar_lea.smem %s0, 9
  %s19 = sld [smem:[%s18]]
  %s20 = scalar_lea.smem %s0, 10
  %s21 = sld [smem:[%s20]]
  %s22 = scalar_lea.smem %s0, 11
  %s23 = sld [smem:[%s22]]
  %s24 = scalar_lea.smem %s0, 12
  %s25 = sld [smem:[%s24]]
  %s26 = scalar_lea.smem %s0, 13
  %s27 = sld [smem:[%s26]]
  %s28 = scalar_lea.smem %s0, 14
  %s29 = sld [smem:[%s28]]
  %s30 = scalar_lea.smem %s0, 15
  %s31 = sld [smem:[%s30]]
  %s32 = scalar_lea.smem %s0, 16
  %s33 = sld [smem:[%s32]]
  %s34 = scalar_lea.smem %s0, 17
  %s35 = sld [smem:[%s34]]
  %s36 = scalar_lea.smem %s0, 18
  %s37 = sld [smem:[%s36]]
  %s38 = scalar_lea.smem %s0, 19
  %s39 = sld [smem:[%s38]]
  %s40 = scalar_lea.smem %s0, 20
  %s41 = sld [smem:[%s40]]
  %s42 = scalar_lea.smem %s0, 21
  %s43 = sld [smem:[%s42]]
  %s44 = scalar_lea.smem %s0, 22
  %s45 = sld [smem:[%s44]]
  %s46 = scalar_lea.smem %s0, 23
  %s47 = sld [smem:[%s46]]
  %s48 = scalar_lea.smem %s0, 24
  %s49 = sld [smem:[%s48]]
  %s50 = scalar_lea.smem %s0, 25
  %s51 = sld [smem:[%s50]]
  %s52 = scalar_lea.smem %s0, 26
  %s53 = sld [smem:[%s52]]
  %s54 = scalar_lea.smem %s0, 27
  %s55 = sld [smem:[%s54]]
  %s56 = scalar_lea.smem %s0, 28
  %s57 = sld [smem:[%s56]]
  %s58 = scalar_lea.smem %s0, 29
  %s59 = sld [smem:[%s58]]
  %s60 = sld [smem:[#allocation0]]
  $region201: #{tpu_custom_call.1} parent=0
    _
  %s62 = ssub.s32 1, %s60
  %s63 = scalar_select 0, %s62, %s60
  $region1: #{tpu_custom_call.1} parent=0
    #allocation3 [shape = 'u8[4096]{0}', space=vmem, size = 0x1000, scoped, tag = 'input window, operand 0']
    #allocation4 [shape = 's32[2]{0}', space=sflag, size = 0x8, scoped, tag = 'scoped memory for tpu_custom_call.1']
    #allocation5 [shape = 's32[2]{0}', space=sflag, size = 0x8, scoped, tag = 'scoped memory for tpu_custom_call.1']
    #allocation6 [shape = 'u8[4096]{0}', space=vmem, size = 0x1000, scoped, tag = 'input window, operand 1']
    #allocation7 [shape = 's32[2]{0}', space=sflag, size = 0x8, scoped, tag = 'scoped memory for tpu_custom_call.1']
    #allocation8 [shape = 'u8[4096]{0}', space=vmem, size = 0x1000, scoped, tag = 'input window, operand 2']
    #allocation9 [shape = 'u8[512]{0}', space=vmem, size = 0x400, scoped, tag = 'input window, operand 4, single buffered']
    #allocation10 [shape = 's32[1]{0}', space=sflag, size = 0x4, scoped, tag = 'scoped memory for tpu_custom_call.1']
    #allocation11 [shape = 'u8[512]{0}', space=vmem, size = 0x400, scoped, tag = 'input window, operand 6, single buffered']
    #allocation12 [shape = 'u8[512]{0}', space=vmem, size = 0x400, scoped, tag = 'input window, operand 8, single buffered']
    #allocation13 [shape = 's32[1]{0}', space=sflag, size = 0x4, scoped, tag = 'scoped memory for tpu_custom_call.1']
    #allocation14 [shape = 'u8[512]{0}', space=vmem, size = 0x400, scoped, tag = 'input window, operand 10, single buffered']
    #allocation15 [shape = 'u8[8192]{0}', space=vmem, size = 0x2000, scoped, tag = 'input window, operand 11, single buffered']
    #allocation16 [shape = 's32[1]{0}', space=sflag, size = 0x4, scoped, tag = 'scoped memory for tpu_custom_call.1']
    #allocation17 [shape = 'u8[512]{0}', space=vmem, size = 0x400, scoped, tag = 'input window, operand 12, single buffered']
    #allocation18 [shape = 'u8[512]{0}', space=vmem, size = 0x400, scoped, tag = 'input window, operand 14, single buffered']
    #allocation19 [shape = 's32[1]{0}', space=sflag, size = 0x4, scoped, tag = 'scoped memory for tpu_custom_call.1']
    #allocation20 [shape = 'u8[8192]{0}', space=vmem, size = 0x2000, scoped, tag = 'input window, operand 15, single buffered']
    #allocation21 [shape = 'u8[512]{0}', space=vmem, size = 0x400, scoped, tag = 'input window, operand 16, single buffered']
    #allocation22 [shape = 's32[1]{0}', space=sflag, size = 0x4, scoped, tag = 'scoped memory for tpu_custom_call.1']
    #allocation23 [shape = 'u8[8192]{0}', space=vmem, size = 0x2000, scoped, tag = 'input window, operand 19, single buffered']
    #allocation24 [shape = 'u8[8192]{0}', space=vmem, size = 0x2000, scoped, tag = 'output window, operand 0']
    %64 = vsyncpa [#allocation4], 0
    %s65 = scalar_lea.sflag [#allocation4], 1
    %66 = vsyncpa %s65, 0
    %67 = vsyncpa [#allocation7], 0
    %s68 = scalar_lea.sflag [#allocation7], 1
    %69 = vsyncpa %s68, 0
    %70 = vsyncpa [#allocation10], 0
    %71 = vsyncpa [#allocation13], 0
    %72 = vsyncpa [#allocation16], 0
    %73 = vsyncpa [#allocation19], 0
    %74 = vsyncpa [#allocation22], 0
    %75 = vsyncpa [#allocation5], 0
    %s76 = scalar_lea.sflag [#allocation5], 1
    %77 = vsyncpa %s76, 0
    loop: start=0, step=1, limit=4
    $region2: #{tpu_custom_call.1} parent=1 // loop_pre_header
      _
    $region3: #{tpu_custom_call.1} parent=1 // loop_header
      %s79 = sphi 0, %s83
      %p80 = scmp.ge.s32.totalorder %s79, 4
      %s86 = sphi 0, %s98
      %s87 = sphi 0, %s94
      %s88 = sphi 0, %s86
      %s89 = sphi 0, %s87
      %s90 = sphi 0, %s88
      %s91 = sphi 0, %s89
      %s103 = sphi 0, %s105
      %s106 = sphi 0, %s103
      %s107 = sphi 0, %s106
      %s123 = sphi 0, %s107
      %s129 = sphi 0, %s131
      %s132 = sphi 0, %s129
      %s133 = sphi 0, %s132
      %s149 = sphi 0, %s133
      %s155 = sphi 0, %s157
      %s158 = sphi 0, %s155
      %s159 = sphi 0, %s158
      %s175 = sphi 0, %s159
      %s179 = sphi 0, %s179
      %s181 = sphi 0, %s179
      %s182 = sphi 0, %s181
      %s196 = sphi 0, %s182
      %s200 = sphi 0, %s200
      %s202 = sphi 0, %s200
      %s203 = sphi 0, %s202
      %s217 = sphi 0, %s203
      %s221 = sphi 0, %s221
      %s223 = sphi 0, %s221
      %s224 = sphi 0, %s223
      %s238 = sphi 0, %s224
      %s242 = sphi 0, %s242
      %s244 = sphi 0, %s242
      %s245 = sphi 0, %s244
      %s259 = sphi 0, %s245
      %s263 = sphi 0, %s263
      %s265 = sphi 0, %s263
      %s266 = sphi 0, %s265
      %s280 = sphi 0, %s266
      %s284 = sphi 0, %s284
      %s286 = sphi 0, %s284
      %s287 = sphi 0, %s286
      %s301 = sphi 0, %s287
      %s305 = sphi 0, %s305
      %s307 = sphi 0, %s305
      %s308 = sphi 0, %s307
      %s322 = sphi 0, %s308
      %s326 = sphi 0, %s326
      %s328 = sphi 0, %s326
      %s329 = sphi 0, %s328
      %s343 = sphi 0, %s329
      %s347 = sphi 0, %s347
      %s349 = sphi 0, %s347
      %s350 = sphi 0, %s349
      %s364 = sphi 0, %s350
      %s368 = sphi 0, %s368
      %s370 = sphi 0, %s368
      %s371 = sphi 0, %s370
      %s385 = sphi 0, %s371
      %s389 = sphi 0, %s389
      %s391 = sphi 0, %s389
      %s392 = sphi 0, %s391
      %s406 = sphi 0, %s392
      %s410 = sphi 0, %s410
      %s412 = sphi 0, %s410
      %s413 = sphi 0, %s412
      %s427 = sphi 0, %s413
      %s431 = sphi 0, %s431
      %s433 = sphi 0, %s431
      %s434 = sphi 0, %s433
      %s448 = sphi 0, %s434
      %s452 = sphi 0, %s452
      %s454 = sphi 0, %s452
      %s455 = sphi 0, %s454
      %s469 = sphi 0, %s455
      %s473 = sphi 0, %s473
      %s475 = sphi 0, %s473
      %s476 = sphi 0, %s475
      %s490 = sphi 0, %s476
      %s494 = sphi 0, %s494
      %s496 = sphi 0, %s494
      %s497 = sphi 0, %s496
      %s511 = sphi 0, %s497
      %s515 = sphi 0, %s515
      %s517 = sphi 0, %s515
      %s518 = sphi 0, %s517
      %s532 = sphi 0, %s518
      %s536 = sphi 0, %s536
      %s538 = sphi 0, %s536
      %s539 = sphi 0, %s538
      %s553 = sphi 0, %s539
      %s557 = sphi 0, %s557
      %s559 = sphi 0, %s557
      %s560 = sphi 0, %s559
      %s574 = sphi 0, %s560
      %s578 = sphi 0, %s578
      %s580 = sphi 0, %s578
      %s581 = sphi 0, %s580
      %s595 = sphi 0, %s581
      %s599 = sphi 0, %s599
      %s601 = sphi 0, %s599
      %s602 = sphi 0, %s601
      %s616 = sphi 0, %s602
      %s620 = sphi 0, %s620
      %s622 = sphi 0, %s620
      %s623 = sphi 0, %s622
      %s637 = sphi 0, %s623
      %s641 = sphi 0, %s641
      %s643 = sphi 0, %s641
      %s644 = sphi 0, %s643
      %s658 = sphi 0, %s644
      %s662 = sphi 0, %s662
      %s664 = sphi 0, %s662
      %s665 = sphi 0, %s664
      %s679 = sphi 0, %s665
      %s683 = sphi 0, %s683
      %s685 = sphi 0, %s683
      %s686 = sphi 0, %s685
      %s700 = sphi 0, %s686
      %s704 = sphi 0, %s704
      %s706 = sphi 0, %s704
      %s707 = sphi 0, %s706
      %s721 = sphi 0, %s707
      %s729 = sphi 0, %s731
      %s732 = sphi 0, %s729
      %s733 = sphi 0, %s732
      %s749 = sphi 0, %s733
    $region4: #{tpu_custom_call.1} parent=1 // loop_header_branch
      %82 = sbr.rel (%p80) target = $region8
    $region5: #{tpu_custom_call.1} parent=1 // loop_body
      %s84 = ssub.s32 %s79, 1
      %s85 = ssub.s32 %s79, 2
      %s92 = sadd.s32 1, %s87
      %p93 = scmp.ge.s32.totalorder %s92, 1
      %s94 = scalar_select %p93, 0, %s92
      %s95 = sadd.s32 1, %s86
      %s96 = scalar_select %p93, %s95, %s86
      %p97 = scmp.ge.s32.totalorder %s96, 2
      %s98 = scalar_select %p97, 0, %s96
      %s99 = ssub.s32 %s86, %s98
      %s100 = ssub.s32 %s87, %s94
      %s101 = sor.u32 %s99, %s100
      %p102 = scmp.eq.s32.totalorder %s101, 0
      %s104 = sadd.s32 %s103, 1
      %s105 = scalar_select %p102, %s103, %s104
      %p108 = pneg %p102
      %p109 = scmp.eq.s32.totalorder %s79, 1
      %p110 = por %p108, %p109
      %p111 = scmp.ne.s32.totalorder %s103, %s106
      %p112 = scmp.eq.s32.totalorder %s79, 0
      %p113 = por %p111, %p112
      %p114 = scmp.ne.s32.totalorder %s103, %s106
      %p115 = scmp.eq.s32.totalorder %s84, 1
      %p116 = por %p114, %p115
      %p117 = scmp.ne.s32.totalorder %s106, %s107
      %p118 = scmp.eq.s32.totalorder %s84, 0
      %p119 = por %p117, %p118
      %p120 = scmp.ne.s32.totalorder %s106, %s107
      %p121 = scmp.eq.s32.totalorder %s85, 1
      %p122 = por %p120, %p121
      %p124 = scmp.ne.s32.totalorder %s107, %s123
      %p125 = scmp.eq.s32.totalorder %s85, 0
      %p126 = por %p124, %p125
      %s127 = ssub.s32 %s86, %s98
      %p128 = scmp.eq.s32.totalorder %s127, 0
      %s130 = sadd.s32 %s129, 1
      %s131 = scalar_select %p128, %s129, %s130
      %p134 = pneg %p128
      %p135 = scmp.eq.s32.totalorder %s79, 1
      %p136 = por %p134, %p135
      %p137 = scmp.ne.s32.totalorder %s129, %s132
      %p138 = scmp.eq.s32.totalorder %s79, 0
      %p139 = por %p137, %p138
      %p140 = scmp.ne.s32.totalorder %s129, %s132
      %p141 = scmp.eq.s32.totalorder %s84, 1
      %p142 = por %p140, %p141
      %p143 = scmp.ne.s32.totalorder %s132, %s133
      %p144 = scmp.eq.s32.totalorder %s84, 0
      %p145 = por %p143, %p144
      %p146 = scmp.ne.s32.totalorder %s132, %s133
      %p147 = scmp.eq.s32.totalorder %s85, 1
      %p148 = por %p146, %p147
      %p150 = scmp.ne.s32.totalorder %s133, %s149
      %p151 = scmp.eq.s32.totalorder %s85, 0
      %p152 = por %p150, %p151
      %s153 = ssub.s32 %s86, %s98
      %p154 = scmp.eq.s32.totalorder %s153, 0
      %s156 = sadd.s32 %s155, 1
      %s157 = scalar_select %p154, %s155, %s156
      %p160 = pneg %p154
      %p161 = scmp.eq.s32.totalorder %s79, 1
      %p162 = por %p160, %p161
      %p163 = scmp.ne.s32.totalorder %s155, %s158
      %p164 = scmp.eq.s32.totalorder %s79, 0
      %p165 = por %p163, %p164
      %p166 = scmp.ne.s32.totalorder %s155, %s158
      %p167 = scmp.eq.s32.totalorder %s84, 1
      %p168 = por %p166, %p167
      %p169 = scmp.ne.s32.totalorder %s158, %s159
      %p170 = scmp.eq.s32.totalorder %s84, 0
      %p171 = por %p169, %p170
      %p172 = scmp.ne.s32.totalorder %s158, %s159
      %p173 = scmp.eq.s32.totalorder %s85, 1
      %p174 = por %p172, %p173
      %p176 = scmp.ne.s32.totalorder %s159, %s175
      %p177 = scmp.eq.s32.totalorder %s85, 0
      %p178 = por %p176, %p177
      %s180 = sadd.s32 %s179, 1
      %p183 = scmp.eq.s32.totalorder %s79, 1
      %p184 = scmp.ne.s32.totalorder %s179, %s181
      %p185 = scmp.eq.s32.totalorder %s79, 0
      %p186 = por %p184, %p185
      %p187 = scmp.ne.s32.totalorder %s179, %s181
      %p188 = scmp.eq.s32.totalorder %s84, 1
      %p189 = por %p187, %p188
      %p190 = scmp.ne.s32.totalorder %s181, %s182
      %p191 = scmp.eq.s32.totalorder %s84, 0
      %p192 = por %p190, %p191
      %p193 = scmp.ne.s32.totalorder %s181, %s182
      %p194 = scmp.eq.s32.totalorder %s85, 1
      %p195 = por %p193, %p194
      %p197 = scmp.ne.s32.totalorder %s182, %s196
      %p198 = scmp.eq.s32.totalorder %s85, 0
      %p199 = por %p197, %p198
      %s201 = sadd.s32 %s200, 1
      %p204 = scmp.eq.s32.totalorder %s79, 1
      %p205 = scmp.ne.s32.totalorder %s200, %s202
      %p206 = scmp.eq.s32.totalorder %s79, 0
      %p207 = por %p205, %p206
      %p208 = scmp.ne.s32.totalorder %s200, %s202
      %p209 = scmp.eq.s32.totalorder %s84, 1
      %p210 = por %p208, %p209
      %p211 = scmp.ne.s32.totalorder %s202, %s203
      %p212 = scmp.eq.s32.totalorder %s84, 0
      %p213 = por %p211, %p212
      %p214 = scmp.ne.s32.totalorder %s202, %s203
      %p215 = scmp.eq.s32.totalorder %s85, 1
      %p216 = por %p214, %p215
      %p218 = scmp.ne.s32.totalorder %s203, %s217
      %p219 = scmp.eq.s32.totalorder %s85, 0
      %p220 = por %p218, %p219
      %s222 = sadd.s32 %s221, 1
      %p225 = scmp.eq.s32.totalorder %s79, 1
      %p226 = scmp.ne.s32.totalorder %s221, %s223
      %p227 = scmp.eq.s32.totalorder %s79, 0
      %p228 = por %p226, %p227
      %p229 = scmp.ne.s32.totalorder %s221, %s223
      %p230 = scmp.eq.s32.totalorder %s84, 1
      %p231 = por %p229, %p230
      %p232 = scmp.ne.s32.totalorder %s223, %s224
      %p233 = scmp.eq.s32.totalorder %s84, 0
      %p234 = por %p232, %p233
      %p235 = scmp.ne.s32.totalorder %s223, %s224
      %p236 = scmp.eq.s32.totalorder %s85, 1
      %p237 = por %p235, %p236
      %p239 = scmp.ne.s32.totalorder %s224, %s238
      %p240 = scmp.eq.s32.totalorder %s85, 0
      %p241 = por %p239, %p240
      %s243 = sadd.s32 %s242, 1
      %p246 = scmp.eq.s32.totalorder %s79, 1
      %p247 = scmp.ne.s32.totalorder %s242, %s244
      %p248 = scmp.eq.s32.totalorder %s79, 0
      %p249 = por %p247, %p248
      %p250 = scmp.ne.s32.totalorder %s242, %s244
      %p251 = scmp.eq.s32.totalorder %s84, 1
      %p252 = por %p250, %p251
      %p253 = scmp.ne.s32.totalorder %s244, %s245
      %p254 = scmp.eq.s32.totalorder %s84, 0
      %p255 = por %p253, %p254
      %p256 = scmp.ne.s32.totalorder %s244, %s245
      %p257 = scmp.eq.s32.totalorder %s85, 1
      %p258 = por %p256, %p257
      %p260 = scmp.ne.s32.totalorder %s245, %s259
      %p261 = scmp.eq.s32.totalorder %s85, 0
      %p262 = por %p260, %p261
      %s264 = sadd.s32 %s263, 1
      %p267 = scmp.eq.s32.totalorder %s79, 1
      %p268 = scmp.ne.s32.totalorder %s263, %s265
      %p269 = scmp.eq.s32.totalorder %s79, 0
      %p270 = por %p268, %p269
      %p271 = scmp.ne.s32.totalorder %s263, %s265
      %p272 = scmp.eq.s32.totalorder %s84, 1
      %p273 = por %p271, %p272
      %p274 = scmp.ne.s32.totalorder %s265, %s266
      %p275 = scmp.eq.s32.totalorder %s84, 0
      %p276 = por %p274, %p275
      %p277 = scmp.ne.s32.totalorder %s265, %s266
      %p278 = scmp.eq.s32.totalorder %s85, 1
      %p279 = por %p277, %p278
      %p281 = scmp.ne.s32.totalorder %s266, %s280
      %p282 = scmp.eq.s32.totalorder %s85, 0
      %p283 = por %p281, %p282
      %s285 = sadd.s32 %s284, 1
      %p288 = scmp.eq.s32.totalorder %s79, 1
      %p289 = scmp.ne.s32.totalorder %s284, %s286
      %p290 = scmp.eq.s32.totalorder %s79, 0
      %p291 = por %p289, %p290
      %p292 = scmp.ne.s32.totalorder %s284, %s286
      %p293 = scmp.eq.s32.totalorder %s84, 1
      %p294 = por %p292, %p293
      %p295 = scmp.ne.s32.totalorder %s286, %s287
      %p296 = scmp.eq.s32.totalorder %s84, 0
      %p297 = por %p295, %p296
      %p298 = scmp.ne.s32.totalorder %s286, %s287
      %p299 = scmp.eq.s32.totalorder %s85, 1
      %p300 = por %p298, %p299
      %p302 = scmp.ne.s32.totalorder %s287, %s301
      %p303 = scmp.eq.s32.totalorder %s85, 0
      %p304 = por %p302, %p303
      %s306 = sadd.s32 %s305, 1
      %p309 = scmp.eq.s32.totalorder %s79, 1
      %p310 = scmp.ne.s32.totalorder %s305, %s307
      %p311 = scmp.eq.s32.totalorder %s79, 0
      %p312 = por %p310, %p311
      %p313 = scmp.ne.s32.totalorder %s305, %s307
      %p314 = scmp.eq.s32.totalorder %s84, 1
      %p315 = por %p313, %p314
      %p316 = scmp.ne.s32.totalorder %s307, %s308
      %p317 = scmp.eq.s32.totalorder %s84, 0
      %p318 = por %p316, %p317
      %p319 = scmp.ne.s32.totalorder %s307, %s308
      %p320 = scmp.eq.s32.totalorder %s85, 1
      %p321 = por %p319, %p320
      %p323 = scmp.ne.s32.totalorder %s308, %s322
      %p324 = scmp.eq.s32.totalorder %s85, 0
      %p325 = por %p323, %p324
      %s327 = sadd.s32 %s326, 1
      %p330 = scmp.eq.s32.totalorder %s79, 1
      %p331 = scmp.ne.s32.totalorder %s326, %s328
      %p332 = scmp.eq.s32.totalorder %s79, 0
      %p333 = por %p331, %p332
      %p334 = scmp.ne.s32.totalorder %s326, %s328
      %p335 = scmp.eq.s32.totalorder %s84, 1
      %p336 = por %p334, %p335
      %p337 = scmp.ne.s32.totalorder %s328, %s329
      %p338 = scmp.eq.s32.totalorder %s84, 0
      %p339 = por %p337, %p338
      %p340 = scmp.ne.s32.totalorder %s328, %s329
      %p341 = scmp.eq.s32.totalorder %s85, 1
      %p342 = por %p340, %p341
      %p344 = scmp.ne.s32.totalorder %s329, %s343
      %p345 = scmp.eq.s32.totalorder %s85, 0
      %p346 = por %p344, %p345
      %s348 = sadd.s32 %s347, 1
      %p351 = scmp.eq.s32.totalorder %s79, 1
      %p352 = scmp.ne.s32.totalorder %s347, %s349
      %p353 = scmp.eq.s32.totalorder %s79, 0
      %p354 = por %p352, %p353
      %p355 = scmp.ne.s32.totalorder %s347, %s349
      %p356 = scmp.eq.s32.totalorder %s84, 1
      %p357 = por %p355, %p356
      %p358 = scmp.ne.s32.totalorder %s349, %s350
      %p359 = scmp.eq.s32.totalorder %s84, 0
      %p360 = por %p358, %p359
      %p361 = scmp.ne.s32.totalorder %s349, %s350
      %p362 = scmp.eq.s32.totalorder %s85, 1
      %p363 = por %p361, %p362
      %p365 = scmp.ne.s32.totalorder %s350, %s364
      %p366 = scmp.eq.s32.totalorder %s85, 0
      %p367 = por %p365, %p366
      %s369 = sadd.s32 %s368, 1
      %p372 = scmp.eq.s32.totalorder %s79, 1
      %p373 = scmp.ne.s32.totalorder %s368, %s370
      %p374 = scmp.eq.s32.totalorder %s79, 0
      %p375 = por %p373, %p374
      %p376 = scmp.ne.s32.totalorder %s368, %s370
      %p377 = scmp.eq.s32.totalorder %s84, 1
      %p378 = por %p376, %p377
      %p379 = scmp.ne.s32.totalorder %s370, %s371
      %p380 = scmp.eq.s32.totalorder %s84, 0
      %p381 = por %p379, %p380
      %p382 = scmp.ne.s32.totalorder %s370, %s371
      %p383 = scmp.eq.s32.totalorder %s85, 1
      %p384 = por %p382, %p383
      %p386 = scmp.ne.s32.totalorder %s371, %s385
      %p387 = scmp.eq.s32.totalorder %s85, 0
      %p388 = por %p386, %p387
      %s390 = sadd.s32 %s389, 1
      %p393 = scmp.eq.s32.totalorder %s79, 1
      %p394 = scmp.ne.s32.totalorder %s389, %s391
      %p395 = scmp.eq.s32.totalorder %s79, 0
      %p396 = por %p394, %p395
      %p397 = scmp.ne.s32.totalorder %s389, %s391
      %p398 = scmp.eq.s32.totalorder %s84, 1
      %p399 = por %p397, %p398
      %p400 = scmp.ne.s32.totalorder %s391, %s392
      %p401 = scmp.eq.s32.totalorder %s84, 0
      %p402 = por %p400, %p401
      %p403 = scmp.ne.s32.totalorder %s391, %s392
      %p404 = scmp.eq.s32.totalorder %s85, 1
      %p405 = por %p403, %p404
      %p407 = scmp.ne.s32.totalorder %s392, %s406
      %p408 = scmp.eq.s32.totalorder %s85, 0
      %p409 = por %p407, %p408
      %s411 = sadd.s32 %s410, 1
      %p414 = scmp.eq.s32.totalorder %s79, 1
      %p415 = scmp.ne.s32.totalorder %s410, %s412
      %p416 = scmp.eq.s32.totalorder %s79, 0
      %p417 = por %p415, %p416
      %p418 = scmp.ne.s32.totalorder %s410, %s412
      %p419 = scmp.eq.s32.totalorder %s84, 1
      %p420 = por %p418, %p419
      %p421 = scmp.ne.s32.totalorder %s412, %s413
      %p422 = scmp.eq.s32.totalorder %s84, 0
      %p423 = por %p421, %p422
      %p424 = scmp.ne.s32.totalorder %s412, %s413
      %p425 = scmp.eq.s32.totalorder %s85, 1
      %p426 = por %p424, %p425
      %p428 = scmp.ne.s32.totalorder %s413, %s427
      %p429 = scmp.eq.s32.totalorder %s85, 0
      %p430 = por %p428, %p429
      %s432 = sadd.s32 %s431, 1
      %p435 = scmp.eq.s32.totalorder %s79, 1
      %p436 = scmp.ne.s32.totalorder %s431, %s433
      %p437 = scmp.eq.s32.totalorder %s79, 0
      %p438 = por %p436, %p437
      %p439 = scmp.ne.s32.totalorder %s431, %s433
      %p440 = scmp.eq.s32.totalorder %s84, 1
      %p441 = por %p439, %p440
      %p442 = scmp.ne.s32.totalorder %s433, %s434
      %p443 = scmp.eq.s32.totalorder %s84, 0
      %p444 = por %p442, %p443
      %p445 = scmp.ne.s32.totalorder %s433, %s434
      %p446 = scmp.eq.s32.totalorder %s85, 1
      %p447 = por %p445, %p446
      %p449 = scmp.ne.s32.totalorder %s434, %s448
      %p450 = scmp.eq.s32.totalorder %s85, 0
      %p451 = por %p449, %p450
      %s453 = sadd.s32 %s452, 1
      %p456 = scmp.eq.s32.totalorder %s79, 1
      %p457 = scmp.ne.s32.totalorder %s452, %s454
      %p458 = scmp.eq.s32.totalorder %s79, 0
      %p459 = por %p457, %p458
      %p460 = scmp.ne.s32.totalorder %s452, %s454
      %p461 = scmp.eq.s32.totalorder %s84, 1
      %p462 = por %p460, %p461
      %p463 = scmp.ne.s32.totalorder %s454, %s455
      %p464 = scmp.eq.s32.totalorder %s84, 0
      %p465 = por %p463, %p464
      %p466 = scmp.ne.s32.totalorder %s454, %s455
      %p467 = scmp.eq.s32.totalorder %s85, 1
      %p468 = por %p466, %p467
      %p470 = scmp.ne.s32.totalorder %s455, %s469
      %p471 = scmp.eq.s32.totalorder %s85, 0
      %p472 = por %p470, %p471
      %s474 = sadd.s32 %s473, 1
      %p477 = scmp.eq.s32.totalorder %s79, 1
      %p478 = scmp.ne.s32.totalorder %s473, %s475
      %p479 = scmp.eq.s32.totalorder %s79, 0
      %p480 = por %p478, %p479
      %p481 = scmp.ne.s32.totalorder %s473, %s475
      %p482 = scmp.eq.s32.totalorder %s84, 1
      %p483 = por %p481, %p482
      %p484 = scmp.ne.s32.totalorder %s475, %s476
      %p485 = scmp.eq.s32.totalorder %s84, 0
      %p486 = por %p484, %p485
      %p487 = scmp.ne.s32.totalorder %s475, %s476
      %p488 = scmp.eq.s32.totalorder %s85, 1
      %p489 = por %p487, %p488
      %p491 = scmp.ne.s32.totalorder %s476, %s490
      %p492 = scmp.eq.s32.totalorder %s85, 0
      %p493 = por %p491, %p492
      %s495 = sadd.s32 %s494, 1
      %p498 = scmp.eq.s32.totalorder %s79, 1
      %p499 = scmp.ne.s32.totalorder %s494, %s496
      %p500 = scmp.eq.s32.totalorder %s79, 0
      %p501 = por %p499, %p500
      %p502 = scmp.ne.s32.totalorder %s494, %s496
      %p503 = scmp.eq.s32.totalorder %s84, 1
      %p504 = por %p502, %p503
      %p505 = scmp.ne.s32.totalorder %s496, %s497
      %p506 = scmp.eq.s32.totalorder %s84, 0
      %p507 = por %p505, %p506
      %p508 = scmp.ne.s32.totalorder %s496, %s497
      %p509 = scmp.eq.s32.totalorder %s85, 1
      %p510 = por %p508, %p509
      %p512 = scmp.ne.s32.totalorder %s497, %s511
      %p513 = scmp.eq.s32.totalorder %s85, 0
      %p514 = por %p512, %p513
      %s516 = sadd.s32 %s515, 1
      %p519 = scmp.eq.s32.totalorder %s79, 1
      %p520 = scmp.ne.s32.totalorder %s515, %s517
      %p521 = scmp.eq.s32.totalorder %s79, 0
      %p522 = por %p520, %p521
      %p523 = scmp.ne.s32.totalorder %s515, %s517
      %p524 = scmp.eq.s32.totalorder %s84, 1
      %p525 = por %p523, %p524
      %p526 = scmp.ne.s32.totalorder %s517, %s518
      %p527 = scmp.eq.s32.totalorder %s84, 0
      %p528 = por %p526, %p527
      %p529 = scmp.ne.s32.totalorder %s517, %s518
      %p530 = scmp.eq.s32.totalorder %s85, 1
      %p531 = por %p529, %p530
      %p533 = scmp.ne.s32.totalorder %s518, %s532
      %p534 = scmp.eq.s32.totalorder %s85, 0
      %p535 = por %p533, %p534
      %s537 = sadd.s32 %s536, 1
      %p540 = scmp.eq.s32.totalorder %s79, 1
      %p541 = scmp.ne.s32.totalorder %s536, %s538
      %p542 = scmp.eq.s32.totalorder %s79, 0
      %p543 = por %p541, %p542
      %p544 = scmp.ne.s32.totalorder %s536, %s538
      %p545 = scmp.eq.s32.totalorder %s84, 1
      %p546 = por %p544, %p545
      %p547 = scmp.ne.s32.totalorder %s538, %s539
      %p548 = scmp.eq.s32.totalorder %s84, 0
      %p549 = por %p547, %p548
      %p550 = scmp.ne.s32.totalorder %s538, %s539
      %p551 = scmp.eq.s32.totalorder %s85, 1
      %p552 = por %p550, %p551
      %p554 = scmp.ne.s32.totalorder %s539, %s553
      %p555 = scmp.eq.s32.totalorder %s85, 0
      %p556 = por %p554, %p555
      %s558 = sadd.s32 %s557, 1
      %p561 = scmp.eq.s32.totalorder %s79, 1
      %p562 = scmp.ne.s32.totalorder %s557, %s559
      %p563 = scmp.eq.s32.totalorder %s79, 0
      %p564 = por %p562, %p563
      %p565 = scmp.ne.s32.totalorder %s557, %s559
      %p566 = scmp.eq.s32.totalorder %s84, 1
      %p567 = por %p565, %p566
      %p568 = scmp.ne.s32.totalorder %s559, %s560
      %p569 = scmp.eq.s32.totalorder %s84, 0
      %p570 = por %p568, %p569
      %p571 = scmp.ne.s32.totalorder %s559, %s560
      %p572 = scmp.eq.s32.totalorder %s85, 1
      %p573 = por %p571, %p572
      %p575 = scmp.ne.s32.totalorder %s560, %s574
      %p576 = scmp.eq.s32.totalorder %s85, 0
      %p577 = por %p575, %p576
      %s579 = sadd.s32 %s578, 1
      %p582 = scmp.eq.s32.totalorder %s79, 1
      %p583 = scmp.ne.s32.totalorder %s578, %s580
      %p584 = scmp.eq.s32.totalorder %s79, 0
      %p585 = por %p583, %p584
      %p586 = scmp.ne.s32.totalorder %s578, %s580
      %p587 = scmp.eq.s32.totalorder %s84, 1
      %p588 = por %p586, %p587
      %p589 = scmp.ne.s32.totalorder %s580, %s581
      %p590 = scmp.eq.s32.totalorder %s84, 0
      %p591 = por %p589, %p590
      %p592 = scmp.ne.s32.totalorder %s580, %s581
      %p593 = scmp.eq.s32.totalorder %s85, 1
      %p594 = por %p592, %p593
      %p596 = scmp.ne.s32.totalorder %s581, %s595
      %p597 = scmp.eq.s32.totalorder %s85, 0
      %p598 = por %p596, %p597
      %s600 = sadd.s32 %s599, 1
      %p603 = scmp.eq.s32.totalorder %s79, 1
      %p604 = scmp.ne.s32.totalorder %s599, %s601
      %p605 = scmp.eq.s32.totalorder %s79, 0
      %p606 = por %p604, %p605
      %p607 = scmp.ne.s32.totalorder %s599, %s601
      %p608 = scmp.eq.s32.totalorder %s84, 1
      %p609 = por %p607, %p608
      %p610 = scmp.ne.s32.totalorder %s601, %s602
      %p611 = scmp.eq.s32.totalorder %s84, 0
      %p612 = por %p610, %p611
      %p613 = scmp.ne.s32.totalorder %s601, %s602
      %p614 = scmp.eq.s32.totalorder %s85, 1
      %p615 = por %p613, %p614
      %p617 = scmp.ne.s32.totalorder %s602, %s616
      %p618 = scmp.eq.s32.totalorder %s85, 0
      %p619 = por %p617, %p618
      %s621 = sadd.s32 %s620, 1
      %p624 = scmp.eq.s32.totalorder %s79, 1
      %p625 = scmp.ne.s32.totalorder %s620, %s622
      %p626 = scmp.eq.s32.totalorder %s79, 0
      %p627 = por %p625, %p626
      %p628 = scmp.ne.s32.totalorder %s620, %s622
      %p629 = scmp.eq.s32.totalorder %s84, 1
      %p630 = por %p628, %p629
      %p631 = scmp.ne.s32.totalorder %s622, %s623
      %p632 = scmp.eq.s32.totalorder %s84, 0
      %p633 = por %p631, %p632
      %p634 = scmp.ne.s32.totalorder %s622, %s623
      %p635 = scmp.eq.s32.totalorder %s85, 1
      %p636 = por %p634, %p635
      %p638 = scmp.ne.s32.totalorder %s623, %s637
      %p639 = scmp.eq.s32.totalorder %s85, 0
      %p640 = por %p638, %p639
      %s642 = sadd.s32 %s641, 1
      %p645 = scmp.eq.s32.totalorder %s79, 1
      %p646 = scmp.ne.s32.totalorder %s641, %s643
      %p647 = scmp.eq.s32.totalorder %s79, 0
      %p648 = por %p646, %p647
      %p649 = scmp.ne.s32.totalorder %s641, %s643
      %p650 = scmp.eq.s32.totalorder %s84, 1
      %p651 = por %p649, %p650
      %p652 = scmp.ne.s32.totalorder %s643, %s644
      %p653 = scmp.eq.s32.totalorder %s84, 0
      %p654 = por %p652, %p653
      %p655 = scmp.ne.s32.totalorder %s643, %s644
      %p656 = scmp.eq.s32.totalorder %s85, 1
      %p657 = por %p655, %p656
      %p659 = scmp.ne.s32.totalorder %s644, %s658
      %p660 = scmp.eq.s32.totalorder %s85, 0
      %p661 = por %p659, %p660
      %s663 = sadd.s32 %s662, 1
      %p666 = scmp.eq.s32.totalorder %s79, 1
      %p667 = scmp.ne.s32.totalorder %s662, %s664
      %p668 = scmp.eq.s32.totalorder %s79, 0
      %p669 = por %p667, %p668
      %p670 = scmp.ne.s32.totalorder %s662, %s664
      %p671 = scmp.eq.s32.totalorder %s84, 1
      %p672 = por %p670, %p671
      %p673 = scmp.ne.s32.totalorder %s664, %s665
      %p674 = scmp.eq.s32.totalorder %s84, 0
      %p675 = por %p673, %p674
      %p676 = scmp.ne.s32.totalorder %s664, %s665
      %p677 = scmp.eq.s32.totalorder %s85, 1
      %p678 = por %p676, %p677
      %p680 = scmp.ne.s32.totalorder %s665, %s679
      %p681 = scmp.eq.s32.totalorder %s85, 0
      %p682 = por %p680, %p681
      %s684 = sadd.s32 %s683, 1
      %p687 = scmp.eq.s32.totalorder %s79, 1
      %p688 = scmp.ne.s32.totalorder %s683, %s685
      %p689 = scmp.eq.s32.totalorder %s79, 0
      %p690 = por %p688, %p689
      %p691 = scmp.ne.s32.totalorder %s683, %s685
      %p692 = scmp.eq.s32.totalorder %s84, 1
      %p693 = por %p691, %p692
      %p694 = scmp.ne.s32.totalorder %s685, %s686
      %p695 = scmp.eq.s32.totalorder %s84, 0
      %p696 = por %p694, %p695
      %p697 = scmp.ne.s32.totalorder %s685, %s686
      %p698 = scmp.eq.s32.totalorder %s85, 1
      %p699 = por %p697, %p698
      %p701 = scmp.ne.s32.totalorder %s686, %s700
      %p702 = scmp.eq.s32.totalorder %s85, 0
      %p703 = por %p701, %p702
      %s705 = sadd.s32 %s704, 1
      %p708 = scmp.eq.s32.totalorder %s79, 1
      %p709 = scmp.ne.s32.totalorder %s704, %s706
      %p710 = scmp.eq.s32.totalorder %s79, 0
      %p711 = por %p709, %p710
      %p712 = scmp.ne.s32.totalorder %s704, %s706
      %p713 = scmp.eq.s32.totalorder %s84, 1
      %p714 = por %p712, %p713
      %p715 = scmp.ne.s32.totalorder %s706, %s707
      %p716 = scmp.eq.s32.totalorder %s84, 0
      %p717 = por %p715, %p716
      %p718 = scmp.ne.s32.totalorder %s706, %s707
      %p719 = scmp.eq.s32.totalorder %s85, 1
      %p720 = por %p718, %p719
      %p722 = scmp.ne.s32.totalorder %s707, %s721
      %p723 = scmp.eq.s32.totalorder %s85, 0
      %p724 = por %p722, %p723
      %s725 = ssub.s32 %s86, %s98
      %s726 = ssub.s32 %s87, %s94
      %s727 = sor.u32 %s725, %s726
      %p728 = scmp.eq.s32.totalorder %s727, 0
      %s730 = sadd.s32 %s729, 1
      %s731 = scalar_select %p728, %s729, %s730
      %p734 = pneg %p728
      %p735 = scmp.eq.s32.totalorder %s79, 1
      %p736 = por %p734, %p735
      %p737 = scmp.ne.s32.totalorder %s729, %s732
      %p738 = scmp.eq.s32.totalorder %s79, 0
      %p739 = por %p737, %p738
      %p740 = scmp.ne.s32.totalorder %s729, %s732
      %p741 = scmp.eq.s32.totalorder %s84, 1
      %p742 = por %p740, %p741
      %p743 = scmp.ne.s32.totalorder %s732, %s733
      %p744 = scmp.eq.s32.totalorder %s84, 0
      %p745 = por %p743, %p744
      %p746 = scmp.ne.s32.totalorder %s732, %s733
      %p747 = scmp.eq.s32.totalorder %s85, 1
      %p748 = por %p746, %p747
      %p750 = scmp.ne.s32.totalorder %s733, %s749
      %p751 = scmp.eq.s32.totalorder %s85, 0
      %p752 = por %p750, %p751
      %p753 = scmp.le.s32.totalorder 1, %s79
      %p754 = scmp.lt.s32.totalorder %s79, 3
      %p755 = pnand %p753, %p754
      %p756 = pneg %p755
      // Predicated region
      $region9: #{tpu_custom_call.1} parent=5 // pred_check
        _
      $region10: #{tpu_custom_call.1} parent=5 // pred_check_branch
        %758 = sbr.rel (%p755) target = $region12
      $region11: #{tpu_custom_call.1} parent=5 // pred_region
        %s759 = ssub.s32 %s79, 1
        // Predicated region
        $region13: #{tpu_custom_call.1} parent=11 // pred_check
          %p760 = pneg %p192
        $region14: #{tpu_custom_call.1} parent=11 // pred_check_branch
          %762 = sbr.rel (%p760) target = $region16
        $region15: #{tpu_custom_call.1} parent=11 // pred_region
          _
        $region16: #{tpu_custom_call.1} parent=11 // pred_fallthru
          _
        // Predicated region
        $region17: #{tpu_custom_call.1} parent=11 // pred_check
          %p763 = pneg %p213
        $region18: #{tpu_custom_call.1} parent=11 // pred_check_branch
          %765 = sbr.rel (%p763) target = $region20
        $region19: #{tpu_custom_call.1} parent=11 // pred_region
          %s767 = ssub.s32 16, 16
          %768 = vsyncadd [#allocation10], %s767
          %s770 = sshll.u32 [#allocation9], 4
          %s771 = int_to_ptr.vmem [resolvable:$true] %s770
          %773 = dma.hbm_to_vmem [thread:$0]  %s9, 16, %s771, [#allocation10]
        $region20: #{tpu_custom_call.1} parent=11 // pred_fallthru
          _
        // Predicated region
        $region21: #{tpu_custom_call.1} parent=11 // pred_check
          %p774 = pneg %p234
        $region22: #{tpu_custom_call.1} parent=11 // pred_check_branch
          %776 = sbr.rel (%p774) target = $region24
        $region23: #{tpu_custom_call.1} parent=11 // pred_region
          _
        $region24: #{tpu_custom_call.1} parent=11 // pred_fallthru
          _
        // Predicated region
        $region25: #{tpu_custom_call.1} parent=11 // pred_check
          %p777 = pneg %p255
        $region26: #{tpu_custom_call.1} parent=11 // pred_check_branch
          %779 = sbr.rel (%p777) target = $region28
        $region27: #{tpu_custom_call.1} parent=11 // pred_region
          %s781 = ssub.s32 16, 16
          %782 = vsyncadd [#allocation10], %s781
          %s784 = sshll.u32 [#allocation11], 4
          %s785 = int_to_ptr.vmem [resolvable:$true] %s784
          %787 = dma.hbm_to_vmem [thread:$0]  %s13, 16, %s785, [#allocation10]
        $region28: #{tpu_custom_call.1} parent=11 // pred_fallthru
          _
        // Predicated region
        $region29: #{tpu_custom_call.1} parent=11 // pred_check
          %p788 = pneg %p276
        $region30: #{tpu_custom_call.1} parent=11 // pred_check_branch
          %790 = sbr.rel (%p788) target = $region32
        $region31: #{tpu_custom_call.1} parent=11 // pred_region
          _
        $region32: #{tpu_custom_call.1} parent=11 // pred_fallthru
          _
        // Predicated region
        $region33: #{tpu_custom_call.1} parent=11 // pred_check
          %p791 = pneg %p297
        $region34: #{tpu_custom_call.1} parent=11 // pred_check_branch
          %793 = sbr.rel (%p791) target = $region36
        $region35: #{tpu_custom_call.1} parent=11 // pred_region
          %s795 = ssub.s32 16, 16
          %796 = vsyncadd [#allocation13], %s795
          %s798 = sshll.u32 [#allocation12], 4
          %s799 = int_to_ptr.vmem [resolvable:$true] %s798
          %801 = dma.hbm_to_vmem [thread:$0]  %s17, 16, %s799, [#allocation13]
        $region36: #{tpu_custom_call.1} parent=11 // pred_fallthru
          _
        // Predicated region
        $region37: #{tpu_custom_call.1} parent=11 // pred_check
          %p802 = pneg %p318
        $region38: #{tpu_custom_call.1} parent=11 // pred_check_branch
          %804 = sbr.rel (%p802) target = $region40
        $region39: #{tpu_custom_call.1} parent=11 // pred_region
          _
        $region40: #{tpu_custom_call.1} parent=11 // pred_fallthru
          _
        // Predicated region
        $region41: #{tpu_custom_call.1} parent=11 // pred_check
          %p805 = pneg %p339
        $region42: #{tpu_custom_call.1} parent=11 // pred_check_branch
          %807 = sbr.rel (%p805) target = $region44
        $region43: #{tpu_custom_call.1} parent=11 // pred_region
          %s809 = ssub.s32 16, 16
          %810 = vsyncadd [#allocation13], %s809
          %s812 = sshll.u32 [#allocation14], 4
          %s813 = int_to_ptr.vmem [resolvable:$true] %s812
          %815 = dma.hbm_to_vmem [thread:$0]  %s21, 16, %s813, [#allocation13]
        $region44: #{tpu_custom_call.1} parent=11 // pred_fallthru
          _
        // Predicated region
        $region45: #{tpu_custom_call.1} parent=11 // pred_check
          %p816 = pneg %p360
        $region46: #{tpu_custom_call.1} parent=11 // pred_check_branch
          %818 = sbr.rel (%p816) target = $region48
        $region47: #{tpu_custom_call.1} parent=11 // pred_region
          %s820 = ssub.s32 256, 256
          %821 = vsyncadd [#allocation16], %s820
          %s822 = sshll.u32 [#allocation15], 4
          %s823 = int_to_ptr.vmem [resolvable:$true] %s822
          %828 = dma.hbm_to_vmem [thread:$0]  %s23, 256, %s823, [#allocation16], 64, 64, 4
        $region48: #{tpu_custom_call.1} parent=11 // pred_fallthru
          _
        // Predicated region
        $region49: #{tpu_custom_call.1} parent=11 // pred_check
          %p829 = pneg %p381
        $region50: #{tpu_custom_call.1} parent=11 // pred_check_branch
          %831 = sbr.rel (%p829) target = $region52
        $region51: #{tpu_custom_call.1} parent=11 // pred_region
          %s833 = ssub.s32 16, 16
          %834 = vsyncadd [#allocation16], %s833
          %s836 = sshll.u32 [#allocation17], 4
          %s837 = int_to_ptr.vmem [resolvable:$true] %s836
          %839 = dma.hbm_to_vmem [thread:$0]  %s25, 16, %s837, [#allocation16]
        $region52: #{tpu_custom_call.1} parent=11 // pred_fallthru
          _
        // Predicated region
        $region53: #{tpu_custom_call.1} parent=11 // pred_check
          %p840 = pneg %p402
        $region54: #{tpu_custom_call.1} parent=11 // pred_check_branch
          %842 = sbr.rel (%p840) target = $region56
        $region55: #{tpu_custom_call.1} parent=11 // pred_region
          _
        $region56: #{tpu_custom_call.1} parent=11 // pred_fallthru
          _
        // Predicated region
        $region57: #{tpu_custom_call.1} parent=11 // pred_check
          %p843 = pneg %p423
        $region58: #{tpu_custom_call.1} parent=11 // pred_check_branch
          %845 = sbr.rel (%p843) target = $region60
        $region59: #{tpu_custom_call.1} parent=11 // pred_region
          %s847 = ssub.s32 16, 16
          %848 = vsyncadd [#allocation19], %s847
          %s850 = sshll.u32 [#allocation18], 4
          %s851 = int_to_ptr.vmem [resolvable:$true] %s850
          %853 = dma.hbm_to_vmem [thread:$0]  %s29, 16, %s851, [#allocation19]
        $region60: #{tpu_custom_call.1} parent=11 // pred_fallthru
          _
        // Predicated region
        $region61: #{tpu_custom_call.1} parent=11 // pred_check
          %p854 = pneg %p444
        $region62: #{tpu_custom_call.1} parent=11 // pred_check_branch
          %856 = sbr.rel (%p854) target = $region64
        $region63: #{tpu_custom_call.1} parent=11 // pred_region
          %s858 = ssub.s32 256, 256
          %859 = vsyncadd [#allocation19], %s858
          %s860 = sshll.u32 [#allocation20], 4
          %s861 = int_to_ptr.vmem [resolvable:$true] %s860
          %866 = dma.hbm_to_vmem [thread:$0]  %s31, 256, %s861, [#allocation19], 64, 64, 4
        $region64: #{tpu_custom_call.1} parent=11 // pred_fallthru
          _
        // Predicated region
        $region65: #{tpu_custom_call.1} parent=11 // pred_check
          %p867 = pneg %p465
        $region66: #{tpu_custom_call.1} parent=11 // pred_check_branch
          %869 = sbr.rel (%p867) target = $region68
        $region67: #{tpu_custom_call.1} parent=11 // pred_region
          %s871 = ssub.s32 16, 16
          %872 = vsyncadd [#allocation22], %s871
          %s874 = sshll.u32 [#allocation21], 4
          %s875 = int_to_ptr.vmem [resolvable:$true] %s874
          %877 = dma.hbm_to_vmem [thread:$0]  %s33, 16, %s875, [#allocation22]
        $region68: #{tpu_custom_call.1} parent=11 // pred_fallthru
          _
        // Predicated region
        $region69: #{tpu_custom_call.1} parent=11 // pred_check
          %p878 = pneg %p486
        $region70: #{tpu_custom_call.1} parent=11 // pred_check_branch
          %880 = sbr.rel (%p878) target = $region72
        $region71: #{tpu_custom_call.1} parent=11 // pred_region
          _
        $region72: #{tpu_custom_call.1} parent=11 // pred_fallthru
          _
        // Predicated region
        $region73: #{tpu_custom_call.1} parent=11 // pred_check
          %p881 = pneg %p507
        $region74: #{tpu_custom_call.1} parent=11 // pred_check_branch
          %883 = sbr.rel (%p881) target = $region76
        $region75: #{tpu_custom_call.1} parent=11 // pred_region
          _
        $region76: #{tpu_custom_call.1} parent=11 // pred_fallthru
          _
        // Predicated region
        $region77: #{tpu_custom_call.1} parent=11 // pred_check
          %p884 = pneg %p528
        $region78: #{tpu_custom_call.1} parent=11 // pred_check_branch
          %886 = sbr.rel (%p884) target = $region80
        $region79: #{tpu_custom_call.1} parent=11 // pred_region
          %s888 = ssub.s32 256, 256
          %889 = vsyncadd [#allocation22], %s888
          %s890 = sshll.u32 [#allocation23], 4
          %s891 = int_to_ptr.vmem [resolvable:$true] %s890
          %896 = dma.hbm_to_vmem [thread:$0]  %s39, 256, %s891, [#allocation22], 64, 64, 4
        $region80: #{tpu_custom_call.1} parent=11 // pred_fallthru
          _
        // Predicated region
        $region81: #{tpu_custom_call.1} parent=11 // pred_check
          %p897 = pneg %p549
        $region82: #{tpu_custom_call.1} parent=11 // pred_check_branch
          %899 = sbr.rel (%p897) target = $region84
        $region83: #{tpu_custom_call.1} parent=11 // pred_region
          _
        $region84: #{tpu_custom_call.1} parent=11 // pred_fallthru
          _
        // Predicated region
        $region85: #{tpu_custom_call.1} parent=11 // pred_check
          %p900 = pneg %p570
        $region86: #{tpu_custom_call.1} parent=11 // pred_check_branch
          %902 = sbr.rel (%p900) target = $region88
        $region87: #{tpu_custom_call.1} parent=11 // pred_region
          _
        $region88: #{tpu_custom_call.1} parent=11 // pred_fallthru
          _
        // Predicated region
        $region89: #{tpu_custom_call.1} parent=11 // pred_check
          %p903 = pneg %p591
        $region90: #{tpu_custom_call.1} parent=11 // pred_check_branch
          %905 = sbr.rel (%p903) target = $region92
        $region91: #{tpu_custom_call.1} parent=11 // pred_region
          _
        $region92: #{tpu_custom_call.1} parent=11 // pred_fallthru
          _
        // Predicated region
        $region93: #{tpu_custom_call.1} parent=11 // pred_check
          %p906 = pneg %p612
        $region94: #{tpu_custom_call.1} parent=11 // pred_check_branch
          %908 = sbr.rel (%p906) target = $region96
        $region95: #{tpu_custom_call.1} parent=11 // pred_region
          _
        $region96: #{tpu_custom_call.1} parent=11 // pred_fallthru
          _
        // Predicated region
        $region97: #{tpu_custom_call.1} parent=11 // pred_check
          %p909 = pneg %p633
        $region98: #{tpu_custom_call.1} parent=11 // pred_check_branch
          %911 = sbr.rel (%p909) target = $region100
        $region99: #{tpu_custom_call.1} parent=11 // pred_region
          _
        $region100: #{tpu_custom_call.1} parent=11 // pred_fallthru
          _
        // Predicated region
        $region101: #{tpu_custom_call.1} parent=11 // pred_check
          %p912 = pneg %p654
        $region102: #{tpu_custom_call.1} parent=11 // pred_check_branch
          %914 = sbr.rel (%p912) target = $region104
        $region103: #{tpu_custom_call.1} parent=11 // pred_region
          _
        $region104: #{tpu_custom_call.1} parent=11 // pred_fallthru
          _
        // Predicated region
        $region105: #{tpu_custom_call.1} parent=11 // pred_check
          %p915 = pneg %p675
        $region106: #{tpu_custom_call.1} parent=11 // pred_check_branch
          %917 = sbr.rel (%p915) target = $region108
        $region107: #{tpu_custom_call.1} parent=11 // pred_region
          _
        $region108: #{tpu_custom_call.1} parent=11 // pred_fallthru
          _
        // Predicated region
        $region109: #{tpu_custom_call.1} parent=11 // pred_check
          %p918 = pneg %p696
        $region110: #{tpu_custom_call.1} parent=11 // pred_check_branch
          %920 = sbr.rel (%p918) target = $region112
        $region111: #{tpu_custom_call.1} parent=11 // pred_region
          _
        $region112: #{tpu_custom_call.1} parent=11 // pred_fallthru
          _
        // Predicated region
        $region113: #{tpu_custom_call.1} parent=11 // pred_check
          %p921 = pneg %p717
        $region114: #{tpu_custom_call.1} parent=11 // pred_check_branch
          %923 = sbr.rel (%p921) target = $region116
        $region115: #{tpu_custom_call.1} parent=11 // pred_region
          _
        $region116: #{tpu_custom_call.1} parent=11 // pred_fallthru
          _
      $region12: #{tpu_custom_call.1} parent=5 // pred_fallthru
        _
      %p924 = scmp.lt.s32.totalorder %s79, 2
      // Predicated region
      $region117: #{tpu_custom_call.1} parent=5 // pred_check
        %p925 = pneg %p924
      $region118: #{tpu_custom_call.1} parent=5 // pred_check_branch
        %927 = sbr.rel (%p925) target = $region120
      $region119: #{tpu_custom_call.1} parent=5 // pred_region
        // Predicated region
        $region121: #{tpu_custom_call.1} parent=119 // pred_check
          %p928 = pneg %p113
        $region122: #{tpu_custom_call.1} parent=119 // pred_check_branch
          %930 = sbr.rel (%p928) target = $region124
        $region123: #{tpu_custom_call.1} parent=119 // pred_region
          %s931 = sand.u32 %s103, 1
          %s932 = scalar_lea.sflag [#allocation4], %s931
          %s933 = sand.u32 %s103, 1
          %s934 = smul.addr %s933, 4
          %s935 = scalar_lea.vmem [#allocation3], %s934
          %s937 = ssub.s32 64, 64
          %938 = vsyncadd %s932, %s937
          %s939 = sadd.s32 %s87, %s86
          %s940 = smul.addr %s939, 64
          %s941 = scalar_lea.hbm %s1, %s940
          %s943 = sshll.u32 %s935, 4
          %s944 = int_to_ptr.vmem [resolvable:$true] %s943
          %946 = dma.hbm_to_vmem [thread:$0]  %s941, 64, %s944, %s932
        $region124: #{tpu_custom_call.1} parent=119 // pred_fallthru
          _
        // Predicated region
        $region125: #{tpu_custom_call.1} parent=119 // pred_check
          %p947 = pneg %p139
        $region126: #{tpu_custom_call.1} parent=119 // pred_check_branch
          %949 = sbr.rel (%p947) target = $region128
        $region127: #{tpu_custom_call.1} parent=119 // pred_region
          %s950 = sand.u32 %s79, 1
          %s951 = scalar_lea.sflag [#allocation7], %s950
          %s952 = sand.u32 %s129, 1
          %s953 = smul.addr %s952, 4
          %s954 = scalar_lea.vmem [#allocation6], %s953
          %s956 = ssub.s32 64, 64
          %957 = vsyncadd %s951, %s956
          %s958 = smul.addr %s86, 64
          %s959 = scalar_lea.hbm %s3, %s958
          %s961 = sshll.u32 %s954, 4
          %s962 = int_to_ptr.vmem [resolvable:$true] %s961
          %964 = dma.hbm_to_vmem [thread:$0]  %s959, 64, %s962, %s951
        $region128: #{tpu_custom_call.1} parent=119 // pred_fallthru
          _
        // Predicated region
        $region129: #{tpu_custom_call.1} parent=119 // pred_check
          %p965 = pneg %p165
        $region130: #{tpu_custom_call.1} parent=119 // pred_check_branch
          %967 = sbr.rel (%p965) target = $region132
        $region131: #{tpu_custom_call.1} parent=119 // pred_region
          %s968 = sand.u32 %s79, 1
          %s969 = scalar_lea.sflag [#allocation7], %s968
          %s970 = sand.u32 %s155, 1
          %s971 = smul.addr %s970, 4
          %s972 = scalar_lea.vmem [#allocation8], %s971
          %s974 = ssub.s32 64, 64
          %975 = vsyncadd %s969, %s974
          %s976 = smul.addr %s86, 64
          %s977 = scalar_lea.hbm %s5, %s976
          %s979 = sshll.u32 %s972, 4
          %s980 = int_to_ptr.vmem [resolvable:$true] %s979
          %982 = dma.hbm_to_vmem [thread:$0]  %s977, 64, %s980, %s969
        $region132: #{tpu_custom_call.1} parent=119 // pred_fallthru
          _
      $region120: #{tpu_custom_call.1} parent=5 // pred_fallthru
        _
      %p983 = scmp.le.s32.totalorder 1, %s79
      %p984 = scmp.lt.s32.totalorder %s79, 3
      %p985 = pnand %p983, %p984
      %p986 = pneg %p985
      // Predicated region
      $region133: #{tpu_custom_call.1} parent=5 // pred_check
        _
      $region134: #{tpu_custom_call.1} parent=5 // pred_check_branch
        %988 = sbr.rel (%p985) target = $region136
      $region135: #{tpu_custom_call.1} parent=5 // pred_region
        %s989 = ssub.s32 %s79, 1
        %s990 = sand.u32 %s106, 1
        %s991 = scalar_lea.sflag [#allocation4], %s990
        %s992 = sand.u32 %s106, 1
        %s993 = smul.addr %s992, 4
        %s994 = scalar_lea.vmem [#allocation3], %s993
        // Predicated region
        $region137: #{tpu_custom_call.1} parent=135 // pred_check
          %p995 = pneg %p119
        $region138: #{tpu_custom_call.1} parent=135 // pred_check_branch
          %997 = sbr.rel (%p995) target = $region140
        $region139: #{tpu_custom_call.1} parent=135 // pred_region
          %998 = dma.done %s991, 64
        $region140: #{tpu_custom_call.1} parent=135 // pred_fallthru
          _
        %s999 = sand.u32 %s84, 1
        %s1000 = scalar_lea.sflag [#allocation7], %s999
        %s1001 = sand.u32 %s132, 1
        %s1002 = smul.addr %s1001, 4
        %s1003 = scalar_lea.vmem [#allocation6], %s1002
        // Predicated region
        $region141: #{tpu_custom_call.1} parent=135 // pred_check
          %p1004 = pneg %p145
        $region142: #{tpu_custom_call.1} parent=135 // pred_check_branch
          %1006 = sbr.rel (%p1004) target = $region144
        $region143: #{tpu_custom_call.1} parent=135 // pred_region
          %1007 = dma.done %s1000, 64
        $region144: #{tpu_custom_call.1} parent=135 // pred_fallthru
          _
        %s1008 = sand.u32 %s84, 1
        %s1009 = scalar_lea.sflag [#allocation7], %s1008
        %s1010 = sand.u32 %s158, 1
        %s1011 = smul.addr %s1010, 4
        %s1012 = scalar_lea.vmem [#allocation8], %s1011
        // Predicated region
        $region145: #{tpu_custom_call.1} parent=135 // pred_check
          %p1013 = pneg %p171
        $region146: #{tpu_custom_call.1} parent=135 // pred_check_branch
          %1015 = sbr.rel (%p1013) target = $region148
        $region147: #{tpu_custom_call.1} parent=135 // pred_region
          %1016 = dma.done %s1009, 64
        $region148: #{tpu_custom_call.1} parent=135 // pred_fallthru
          _
        // Predicated region
        $region149: #{tpu_custom_call.1} parent=135 // pred_check
          %p1017 = pneg %p213
        $region150: #{tpu_custom_call.1} parent=135 // pred_check_branch
          %1019 = sbr.rel (%p1017) target = $region152
        $region151: #{tpu_custom_call.1} parent=135 // pred_region
          %1020 = dma.done [#allocation10], 16
        $region152: #{tpu_custom_call.1} parent=135 // pred_fallthru
          _
        // Predicated region
        $region153: #{tpu_custom_call.1} parent=135 // pred_check
          %p1021 = pneg %p255
        $region154: #{tpu_custom_call.1} parent=135 // pred_check_branch
          %1023 = sbr.rel (%p1021) target = $region156
        $region155: #{tpu_custom_call.1} parent=135 // pred_region
          %1024 = dma.done [#allocation10], 16
        $region156: #{tpu_custom_call.1} parent=135 // pred_fallthru
          _
        // Predicated region
        $region157: #{tpu_custom_call.1} parent=135 // pred_check
          %p1025 = pneg %p297
        $region158: #{tpu_custom_call.1} parent=135 // pred_check_branch
          %1027 = sbr.rel (%p1025) target = $region160
        $region159: #{tpu_custom_call.1} parent=135 // pred_region
          %1028 = dma.done [#allocation13], 16
        $region160: #{tpu_custom_call.1} parent=135 // pred_fallthru
          _
        // Predicated region
        $region161: #{tpu_custom_call.1} parent=135 // pred_check
          %p1029 = pneg %p339
        $region162: #{tpu_custom_call.1} parent=135 // pred_check_branch
          %1031 = sbr.rel (%p1029) target = $region164
        $region163: #{tpu_custom_call.1} parent=135 // pred_region
          %1032 = dma.done [#allocation13], 16
        $region164: #{tpu_custom_call.1} parent=135 // pred_fallthru
          _
        // Predicated region
        $region165: #{tpu_custom_call.1} parent=135 // pred_check
          %p1033 = pneg %p360
        $region166: #{tpu_custom_call.1} parent=135 // pred_check_branch
          %1035 = sbr.rel (%p1033) target = $region168
        $region167: #{tpu_custom_call.1} parent=135 // pred_region
          %1036 = dma.done [#allocation16], 256
        $region168: #{tpu_custom_call.1} parent=135 // pred_fallthru
          _
        // Predicated region
        $region169: #{tpu_custom_call.1} parent=135 // pred_check
          %p1037 = pneg %p381
        $region170: #{tpu_custom_call.1} parent=135 // pred_check_branch
          %1039 = sbr.rel (%p1037) target = $region172
        $region171: #{tpu_custom_call.1} parent=135 // pred_region
          %1040 = dma.done [#allocation16], 16
        $region172: #{tpu_custom_call.1} parent=135 // pred_fallthru
          _
        // Predicated region
        $region173: #{tpu_custom_call.1} parent=135 // pred_check
          %p1041 = pneg %p423
        $region174: #{tpu_custom_call.1} parent=135 // pred_check_branch
          %1043 = sbr.rel (%p1041) target = $region176
        $region175: #{tpu_custom_call.1} parent=135 // pred_region
          %1044 = dma.done [#allocation19], 16
        $region176: #{tpu_custom_call.1} parent=135 // pred_fallthru
          _
        // Predicated region
        $region177: #{tpu_custom_call.1} parent=135 // pred_check
          %p1045 = pneg %p444
        $region178: #{tpu_custom_call.1} parent=135 // pred_check_branch
          %1047 = sbr.rel (%p1045) target = $region180
        $region179: #{tpu_custom_call.1} parent=135 // pred_region
          %1048 = dma.done [#allocation19], 256
        $region180: #{tpu_custom_call.1} parent=135 // pred_fallthru
          _
        // Predicated region
        $region181: #{tpu_custom_call.1} parent=135 // pred_check
          %p1049 = pneg %p465
        $region182: #{tpu_custom_call.1} parent=135 // pred_check_branch
          %1051 = sbr.rel (%p1049) target = $region184
        $region183: #{tpu_custom_call.1} parent=135 // pred_region
          %1052 = dma.done [#allocation22], 16
        $region184: #{tpu_custom_call.1} parent=135 // pred_fallthru
          _
        // Predicated region
        $region185: #{tpu_custom_call.1} parent=135 // pred_check
          %p1053 = pneg %p528
        $region186: #{tpu_custom_call.1} parent=135 // pred_check_branch
          %1055 = sbr.rel (%p1053) target = $region188
        $region187: #{tpu_custom_call.1} parent=135 // pred_region
          %1056 = dma.done [#allocation22], 256
        $region188: #{tpu_custom_call.1} parent=135 // pred_fallthru
          _
        %s1057 = sand.u32 %s106, 1
        %s1058 = scalar_lea.sflag [#allocation4], %s1057
        %s1059 = sand.u32 %s106, 1
        %s1060 = smul.addr %s1059, 4
        %s1061 = scalar_lea.vmem [#allocation3], %s1060
        %p1062 = pneg %p119
        %p1063 = pneg %p116
        %s1064 = sand.u32 %s84, 1
        %s1065 = scalar_lea.sflag [#allocation7], %s1064
        %s1066 = sand.u32 %s132, 1
        %s1067 = smul.addr %s1066, 4
        %s1068 = scalar_lea.vmem [#allocation6], %s1067
        %p1069 = pneg %p145
        %p1070 = pneg %p142
        %s1071 = sand.u32 %s84, 1
        %s1072 = scalar_lea.sflag [#allocation7], %s1071
        %s1073 = sand.u32 %s158, 1
        %s1074 = smul.addr %s1073, 4
        %s1075 = scalar_lea.vmem [#allocation8], %s1074
        %p1076 = pneg %p171
        %p1077 = pneg %p168
        %p1078 = pneg %p192
        %p1079 = pneg %p189
        %p1080 = pneg %p213
        %p1081 = pneg %p210
        %p1082 = pneg %p234
        %p1083 = pneg %p231
        %p1084 = pneg %p255
        %p1085 = pneg %p252
        %p1086 = pneg %p276
        %p1087 = pneg %p273
        %p1088 = pneg %p297
        %p1089 = pneg %p294
        %p1090 = pneg %p318
        %p1091 = pneg %p315
        %p1092 = pneg %p339
        %p1093 = pneg %p336
        %p1094 = pneg %p360
        %p1095 = pneg %p357
        %p1096 = pneg %p381
        %p1097 = pneg %p378
        %p1098 = pneg %p402
        %p1099 = pneg %p399
        %p1100 = pneg %p423
        %p1101 = pneg %p420
        %p1102 = pneg %p444
        %p1103 = pneg %p441
        %p1104 = pneg %p465
        %p1105 = pneg %p462
        %p1106 = pneg %p486
        %p1107 = pneg %p483
        %p1108 = pneg %p507
        %p1109 = pneg %p504
        %p1110 = pneg %p528
        %p1111 = pneg %p525
        %p1112 = pneg %p549
        %p1113 = pneg %p546
        %p1114 = pneg %p570
        %p1115 = pneg %p567
        %p1116 = pneg %p591
        %p1117 = pneg %p588
        %p1118 = pneg %p612
        %p1119 = pneg %p609
        %p1120 = pneg %p633
        %p1121 = pneg %p630
        %p1122 = pneg %p654
        %p1123 = pneg %p651
        %p1124 = pneg %p675
        %p1125 = pneg %p672
        %p1126 = pneg %p696
        %p1127 = pneg %p693
        %p1128 = pneg %p717
        %p1129 = pneg %p714
        %p1130 = pneg %p745
        %p1131 = pneg %p742
        %s1132 = sand.u32 %s732, 1
        %s1133 = scalar_lea.sflag [#allocation5], %s1132
        %s1134 = sand.u32 %s732, 1
        %s1135 = smul.addr %s1134, 8
        %s1136 = scalar_lea.vmem [#allocation24], %s1135
        %v1138 = vld [vmem:[%s994] sm:$0xf]
        %v1139 = vld [vmem:[%s1003] sm:$0xf]
        %v1140 = vld [vmem:[%s1012] sm:$0xf]
        %v1141 = vld [vmem:[%s7] sm:$0xf]
        %v1142 = vld [vmem:[%s7 + $0x4] sm:$0xf]
        %v1143 = vld [vmem:[%s7 + $0x8] sm:$0xf]
        %v1144 = vld [vmem:[%s7 + $0xc] sm:$0xf]
        %v1145 = vld [vmem:[#allocation9] sm:$0x1]
        %v1147 = vlaneseq
        %v1148 = vshrl.u32 %v1147, 7
        %v1149 = vsub.s32 0, %v1148
        %v1150 = vrot.slane %v1145, %v1149
        %v1156 = vunpack.c.l.b16 %v1141
        %v1157 = vunpack.c.l.b16 %v1142
        %v1158 = vunpack.c.l.b16 %v1143
        %v1159 = vunpack.c.l.b16 %v1144
        %v1160 = vpack.c.b16 %v1157, %v1156
        %v1161 = vpack.c.b16 %v1159, %v1158
        %vm1164 = vcmask 261120
        %v1166 = vsel %vm1164, %v1138, 0
        %1168 = vmatprep.subr.bf16.mxu0 0
        %1169 = vmatpush1.bf16.msra.mxu0 %v1160
        %1170 = vmatprep.subr.bf16.mxu0 0
        %1171 = vmatpush1.bf16.msra.mxu0 %v1161
        %1172 = vmatprep.subr.bf16.mxu0 0
        %1173 = vmatpush1.bf16.msra.mxu0 0
        %1174 = vmatprep.subr.bf16.mxu0 0
        %1175 = vmatpush1.bf16.msra.mxu0 0
        %1176 = vmatprep.subr.bf16.mxu0 0
        %1177 = vmatpush1.bf16.msra.mxu0 0
        %1178 = vmatprep.subr.bf16.mxu0 0
        %1179 = vmatpush1.bf16.msra.mxu0 0
        %1180 = vmatprep.subr.bf16.mxu0 0
        %1181 = vmatpush1.bf16.msra.mxu0 0
        %1182 = vmatprep.subr.bf16.mxu0 0
        %1183 = vmatpush1.bf16.msra.mxu0 0
        %1184 = vmatprep.subr.bf16.mxu0 0
        %1185 = vmatpush1.bf16.msra.mxu0 0
        %1186 = vmatprep.subr.bf16.mxu0 0
        %1187 = vmatpush1.bf16.msra.mxu0 0
        %1188 = vmatprep.subr.bf16.mxu0 0
        %1189 = vmatpush1.bf16.msra.mxu0 0
        %1190 = vmatprep.subr.bf16.mxu0 0
        %1191 = vmatpush1.bf16.msra.mxu0 0
        %1192 = vmatprep.subr.bf16.mxu0 0
        %1193 = vmatpush1.bf16.msra.mxu0 0
        %1194 = vmatprep.subr.bf16.mxu0 0
        %1195 = vmatpush1.bf16.msra.mxu0 0
        %1196 = vmatprep.subr.bf16.mxu0 0
        %1197 = vmatpush1.bf16.msra.mxu0 0
        %1198 = vmatprep.subr.bf16.mxu0 0
        %1199 = vmatpush1.bf16.msra.mxu0 0
        %1200 = vmatprep.mubr.bf16.mxu0 0
        %1201 = vmatmul.mubr.bf16.gmra.mrb[0].mxu0 %v1166
        %v1202 = vpop.f32.mrb[0].mxu0
        %v1203 = vadd.f32 %v1150, %v1202
        %v1204 = vpop.f32.mrb[0].mxu0
        %v1205 = vpop.f32.mrb[0].mxu0
        %v1206 = vpop.f32.mrb[0].mxu0
        %1207 = vdwg.mxu0
        %v1208 = vpack.c.bf16 %v1203, %v1203
        %v1209 = vld [vmem:[%s11] sm:$0xf]
        %v1210 = vld [vmem:[%s11 + $0x4] sm:$0xf]
        %v1211 = vld [vmem:[%s11 + $0x8] sm:$0xf]
        %v1212 = vld [vmem:[%s11 + $0xc] sm:$0xf]
        %v1213 = vld [vmem:[#allocation11] sm:$0x1]
        %v1215 = vlaneseq
        %v1216 = vshrl.u32 %v1215, 7
        %v1217 = vsub.s32 0, %v1216
        %v1218 = vrot.slane %v1213, %v1217
        %v1224 = vunpack.c.l.b16 %v1209
        %v1225 = vunpack.c.l.b16 %v1210
        %v1226 = vunpack.c.l.b16 %v1211
        %v1227 = vunpack.c.l.b16 %v1212
        %v1228 = vpack.c.b16 %v1225, %v1224
        %v1229 = vpack.c.b16 %v1227, %v1226
        %v1233 = vsel %vm1164, %v1139, 0
        %1235 = vmatprep.subr.bf16.mxu0 0
        %1236 = vmatpush1.bf16.msra.mxu0 %v1228
        %1237 = vmatprep.subr.bf16.mxu0 0
        %1238 = vmatpush1.bf16.msra.mxu0 %v1229
        %1239 = vmatprep.subr.bf16.mxu0 0
        %1240 = vmatpush1.bf16.msra.mxu0 0
        %1241 = vmatprep.subr.bf16.mxu0 0
        %1242 = vmatpush1.bf16.msra.mxu0 0
        %1243 = vmatprep.subr.bf16.mxu0 0
        %1244 = vmatpush1.bf16.msra.mxu0 0
        %1245 = vmatprep.subr.bf16.mxu0 0
        %1246 = vmatpush1.bf16.msra.mxu0 0
        %1247 = vmatprep.subr.bf16.mxu0 0
        %1248 = vmatpush1.bf16.msra.mxu0 0
        %1249 = vmatprep.subr.bf16.mxu0 0
        %1250 = vmatpush1.bf16.msra.mxu0 0
        %1251 = vmatprep.subr.bf16.mxu0 0
        %1252 = vmatpush1.bf16.msra.mxu0 0
        %1253 = vmatprep.subr.bf16.mxu0 0
        %1254 = vmatpush1.bf16.msra.mxu0 0
        %1255 = vmatprep.subr.bf16.mxu0 0
        %1256 = vmatpush1.bf16.msra.mxu0 0
        %1257 = vmatprep.subr.bf16.mxu0 0
        %1258 = vmatpush1.bf16.msra.mxu0 0
        %1259 = vmatprep.subr.bf16.mxu0 0
        %1260 = vmatpush1.bf16.msra.mxu0 0
        %1261 = vmatprep.subr.bf16.mxu0 0
        %1262 = vmatpush1.bf16.msra.mxu0 0
        %1263 = vmatprep.subr.bf16.mxu0 0
        %1264 = vmatpush1.bf16.msra.mxu0 0
        %1265 = vmatprep.subr.bf16.mxu0 0
        %1266 = vmatpush1.bf16.msra.mxu0 0
        %1267 = vmatprep.mubr.bf16.mxu0 0
        %1268 = vmatmul.mubr.bf16.gmra.mrb[0].mxu0 %v1233
        %v1269 = vpop.f32.mrb[0].mxu0
        %v1270 = vadd.f32 %v1218, %v1269
        %v1271 = vpop.f32.mrb[0].mxu0
        %v1272 = vpop.f32.mrb[0].mxu0
        %v1273 = vpop.f32.mrb[0].mxu0
        %1274 = vdwg.mxu0
        %v1275 = vpack.c.bf16 %v1270, %v1270
        %v1276 = vld [vmem:[%s15] sm:$0xf]
        %v1277 = vld [vmem:[%s15 + $0x4] sm:$0xf]
        %v1278 = vld [vmem:[%s15 + $0x8] sm:$0xf]
        %v1279 = vld [vmem:[%s15 + $0xc] sm:$0xf]
        %v1280 = vld [vmem:[#allocation12] sm:$0x1]
        %v1282 = vlaneseq
        %v1283 = vshrl.u32 %v1282, 7
        %v1284 = vsub.s32 0, %v1283
        %v1285 = vrot.slane %v1280, %v1284
        %v1291 = vunpack.c.l.b16 %v1276
        %v1292 = vunpack.c.l.b16 %v1277
        %v1293 = vunpack.c.l.b16 %v1278
        %v1294 = vunpack.c.l.b16 %v1279
        %v1295 = vpack.c.b16 %v1292, %v1291
        %v1296 = vpack.c.b16 %v1294, %v1293
        %1299 = vmatprep.subr.bf16.mxu0 0
        %1300 = vmatpush1.bf16.msra.mxu0 %v1295
        %1301 = vmatprep.subr.bf16.mxu0 0
        %1302 = vmatpush1.bf16.msra.mxu0 %v1296
        %1303 = vmatprep.subr.bf16.mxu0 0
        %1304 = vmatpush1.bf16.msra.mxu0 0
        %1305 = vmatprep.subr.bf16.mxu0 0
        %1306 = vmatpush1.bf16.msra.mxu0 0
        %1307 = vmatprep.subr.bf16.mxu0 0
        %1308 = vmatpush1.bf16.msra.mxu0 0
        %1309 = vmatprep.subr.bf16.mxu0 0
        %1310 = vmatpush1.bf16.msra.mxu0 0
        %1311 = vmatprep.subr.bf16.mxu0 0
        %1312 = vmatpush1.bf16.msra.mxu0 0
        %1313 = vmatprep.subr.bf16.mxu0 0
        %1314 = vmatpush1.bf16.msra.mxu0 0
        %1315 = vmatprep.subr.bf16.mxu0 0
        %1316 = vmatpush1.bf16.msra.mxu0 0
        %1317 = vmatprep.subr.bf16.mxu0 0
        %1318 = vmatpush1.bf16.msra.mxu0 0
        %1319 = vmatprep.subr.bf16.mxu0 0
        %1320 = vmatpush1.bf16.msra.mxu0 0
        %1321 = vmatprep.subr.bf16.mxu0 0
        %1322 = vmatpush1.bf16.msra.mxu0 0
        %1323 = vmatprep.subr.bf16.mxu0 0
        %1324 = vmatpush1.bf16.msra.mxu0 0
        %1325 = vmatprep.subr.bf16.mxu0 0
        %1326 = vmatpush1.bf16.msra.mxu0 0
        %1327 = vmatprep.subr.bf16.mxu0 0
        %1328 = vmatpush1.bf16.msra.mxu0 0
        %1329 = vmatprep.subr.bf16.mxu0 0
        %1330 = vmatpush1.bf16.msra.mxu0 0
        %1331 = vmatprep.mubr.bf16.mxu0 0
        %1332 = vmatmul.mubr.bf16.gmra.mrb[0].mxu0 %v1233
        %v1333 = vpop.f32.mrb[0].mxu0
        %v1334 = vadd.f32 %v1285, %v1333
        %v1335 = vpop.f32.mrb[0].mxu0
        %v1336 = vpop.f32.mrb[0].mxu0
        %v1337 = vpop.f32.mrb[0].mxu0
        %1338 = vdwg.mxu0
        %v1339 = vpack.c.bf16 %v1334, %v1334
        %vm1340 = vcmask 64512
        %v1342 = vsel %vm1340, %v1208, 0
        %v1345 = vsel %vm1340, %v1275, 0
        %1347 = vmatprep.subr.bf16.mxu0 0
        %1348 = vmatpush1.bf16.xpose.msra.mxu0 %v1345
        %1349 = vmatprep.subr.bf16.mxu0 0
        %1350 = vmatpush1.bf16.xpose.msra.mxu0 0
        %1351 = vmatprep.subr.bf16.mxu0 0
        %1352 = vmatpush1.bf16.xpose.msra.mxu0 0
        %1353 = vmatprep.subr.bf16.mxu0 0
        %1354 = vmatpush1.bf16.xpose.msra.mxu0 0
        %1355 = vmatprep.subr.bf16.mxu0 0
        %1356 = vmatpush1.bf16.xpose.msra.mxu0 0
        %1357 = vmatprep.subr.bf16.mxu0 0
        %1358 = vmatpush1.bf16.xpose.msra.mxu0 0
        %1359 = vmatprep.subr.bf16.mxu0 0
        %1360 = vmatpush1.bf16.xpose.msra.mxu0 0
        %1361 = vmatprep.subr.bf16.mxu0 0
        %1362 = vmatpush1.bf16.xpose.msra.mxu0 0
        %1363 = vmatprep.subr.bf16.mxu0 0
        %1364 = vmatpush1.bf16.xpose.msra.mxu0 0
        %1365 = vmatprep.subr.bf16.mxu0 0
        %1366 = vmatpush1.bf16.xpose.msra.mxu0 0
        %1367 = vmatprep.subr.bf16.mxu0 0
        %1368 = vmatpush1.bf16.xpose.msra.mxu0 0
        %1369 = vmatprep.subr.bf16.mxu0 0
        %1370 = vmatpush1.bf16.xpose.msra.mxu0 0
        %1371 = vmatprep.subr.bf16.mxu0 0
        %1372 = vmatpush1.bf16.xpose.msra.mxu0 0
        %1373 = vmatprep.subr.bf16.mxu0 0
        %1374 = vmatpush1.bf16.xpose.msra.mxu0 0
        %1375 = vmatprep.subr.bf16.mxu0 0
        %1376 = vmatpush1.bf16.xpose.msra.mxu0 0
        %1377 = vmatprep.subr.bf16.mxu0 0
        %1378 = vmatpush1.bf16.xpose.msra.mxu0 0
        %1379 = vmatprep.mubr.bf16.mxu0 0
        %1380 = vmatmul.mubr.bf16.gmra.mrb[0].mxu0 %v1342
        %v1381 = vpop.f32.mrb[0].mxu0
        %v1382 = vadd.f32 0.0, %v1381
        %v1383 = vpop.f32.mrb[0].mxu0
        %v1384 = vpop.f32.mrb[0].mxu0
        %v1385 = vpop.f32.mrb[0].mxu0
        %1386 = vdwg.mxu0
        %v1387 = vmul.f32 %v1382, 0.35355338
        %v1388 = vsel %vm1340, %v1387, -inf
        %1389 = vmax.xlane.f32.xlu0 %v1388
        %v1390 = vpop.xlane.xlu0 %1389
        %v1391 = vsub.f32 %v1387, %v1390
        %v1392 = vmul.f32 %v1391, 1.442695
        %v1393 = vpow.pop %v1392
        %v1394 = vsel %vm1340, %v1393, 0.0
        %1395 = vadd.xlane.f32.xlu0 %v1394
        %v1396 = vpop.xlane.xlu0 %1395
        %v1397 = vrcp.pop %v1396
        %v1398 = vpack.c.bf16 %v1393, %v1393
        %v1400 = vsel %vm1340, %v1398, 0
        %vm1402 = vcmask 1043456
        %v1404 = vsel %vm1402, %v1339, 0
        %1406 = vmatprep.subr.bf16.mxu0 0
        %1407 = vmatpush1.bf16.msra.mxu0 %v1404
        %1408 = vmatprep.subr.bf16.mxu0 0
        %1409 = vmatpush1.bf16.msra.mxu0 0
        %1410 = vmatprep.subr.bf16.mxu0 0
        %1411 = vmatpush1.bf16.msra.mxu0 0
        %1412 = vmatprep.subr.bf16.mxu0 0
        %1413 = vmatpush1.bf16.msra.mxu0 0
        %1414 = vmatprep.subr.bf16.mxu0 0
        %1415 = vmatpush1.bf16.msra.mxu0 0
        %1416 = vmatprep.subr.bf16.mxu0 0
        %1417 = vmatpush1.bf16.msra.mxu0 0
        %1418 = vmatprep.subr.bf16.mxu0 0
        %1419 = vmatpush1.bf16.msra.mxu0 0
        %1420 = vmatprep.subr.bf16.mxu0 0
        %1421 = vmatpush1.bf16.msra.mxu0 0
        %1422 = vmatprep.subr.bf16.mxu0 0
        %1423 = vmatpush1.bf16.msra.mxu0 0
        %1424 = vmatprep.subr.bf16.mxu0 0
        %1425 = vmatpush1.bf16.msra.mxu0 0
        %1426 = vmatprep.subr.bf16.mxu0 0
        %1427 = vmatpush1.bf16.msra.mxu0 0
        %1428 = vmatprep.subr.bf16.mxu0 0
        %1429 = vmatpush1.bf16.msra.mxu0 0
        %1430 = vmatprep.subr.bf16.mxu0 0
        %1431 = vmatpush1.bf16.msra.mxu0 0
        %1432 = vmatprep.subr.bf16.mxu0 0
        %1433 = vmatpush1.bf16.msra.mxu0 0
        %1434 = vmatprep.subr.bf16.mxu0 0
        %1435 = vmatpush1.bf16.msra.mxu0 0
        %1436 = vmatprep.subr.bf16.mxu0 0
        %1437 = vmatpush1.bf16.msra.mxu0 0
        %1438 = vmatprep.mubr.bf16.mxu0 0
        %1439 = vmatmul.mubr.bf16.gmra.mrb[0].mxu0 %v1400
        %v1440 = vpop.f32.mrb[0].mxu0
        %v1441 = vadd.f32 0.0, %v1440
        %v1442 = vpop.f32.mrb[0].mxu0
        %v1443 = vpop.f32.mrb[0].mxu0
        %v1444 = vpop.f32.mrb[0].mxu0
        %1445 = vdwg.mxu0
        %v1446 = vmul.f32 %v1441, %v1397
        %1447 = vst.msk [vmem:[#allocation2] sm:$0xff] %vm1340, %v1446
        %1449 = vrot.lane.b32.xlu0 %v1208, 120
        %v1450 = vpop.permute.xlu0 %1449
        %1452 = vrot.lane.b32.xlu0 %v1275, 120
        %v1453 = vpop.permute.xlu0 %1452
        %v1455 = vsel %vm1340, %v1450, 0
        %v1458 = vsel %vm1340, %v1453, 0
        %1460 = vmatprep.subr.bf16.mxu0 0
        %1461 = vmatpush1.bf16.xpose.msra.mxu0 %v1458
        %1462 = vmatprep.subr.bf16.mxu0 0
        %1463 = vmatpush1.bf16.xpose.msra.mxu0 0
        %1464 = vmatprep.subr.bf16.mxu0 0
        %1465 = vmatpush1.bf16.xpose.msra.mxu0 0
        %1466 = vmatprep.subr.bf16.mxu0 0
        %1467 = vmatpush1.bf16.xpose.msra.mxu0 0
        %1468 = vmatprep.subr.bf16.mxu0 0
        %1469 = vmatpush1.bf16.xpose.msra.mxu0 0
        %1470 = vmatprep.subr.bf16.mxu0 0
        %1471 = vmatpush1.bf16.xpose.msra.mxu0 0
        %1472 = vmatprep.subr.bf16.mxu0 0
        %1473 = vmatpush1.bf16.xpose.msra.mxu0 0
        %1474 = vmatprep.subr.bf16.mxu0 0
        %1475 = vmatpush1.bf16.xpose.msra.mxu0 0
        %1476 = vmatprep.subr.bf16.mxu0 0
        %1477 = vmatpush1.bf16.xpose.msra.mxu0 0
        %1478 = vmatprep.subr.bf16.mxu0 0
        %1479 = vmatpush1.bf16.xpose.msra.mxu0 0
        %1480 = vmatprep.subr.bf16.mxu0 0
        %1481 = vmatpush1.bf16.xpose.msra.mxu0 0
        %1482 = vmatprep.subr.bf16.mxu0 0
        %1483 = vmatpush1.bf16.xpose.msra.mxu0 0
        %1484 = vmatprep.subr.bf16.mxu0 0
        %1485 = vmatpush1.bf16.xpose.msra.mxu0 0
        %1486 = vmatprep.subr.bf16.mxu0 0
        %1487 = vmatpush1.bf16.xpose.msra.mxu0 0
        %1488 = vmatprep.subr.bf16.mxu0 0
        %1489 = vmatpush1.bf16.xpose.msra.mxu0 0
        %1490 = vmatprep.subr.bf16.mxu0 0
        %1491 = vmatpush1.bf16.xpose.msra.mxu0 0
        %1492 = vmatprep.mubr.bf16.mxu0 0
        %1493 = vmatmul.mubr.bf16.gmra.mrb[0].mxu0 %v1455
        %v1494 = vpop.f32.mrb[0].mxu0
        %v1495 = vadd.f32 0.0, %v1494
        %v1496 = vpop.f32.mrb[0].mxu0
        %v1497 = vpop.f32.mrb[0].mxu0
        %v1498 = vpop.f32.mrb[0].mxu0
        %1499 = vdwg.mxu0
        %v1500 = vmul.f32 %v1495, 0.35355338
        %v1501 = vsel %vm1340, %v1500, -inf
        %1502 = vmax.xlane.f32.xlu0 %v1501
        %v1503 = vpop.xlane.xlu0 %1502
        %v1504 = vsub.f32 %v1500, %v1503
        %v1505 = vmul.f32 %v1504, 1.442695
        %v1506 = vpow.pop %v1505
        %v1507 = vsel %vm1340, %v1506, 0.0
        %1508 = vadd.xlane.f32.xlu0 %v1507
        %v1509 = vpop.xlane.xlu0 %1508
        %v1510 = vrcp.pop %v1509
        %v1511 = vpack.c.bf16 %v1506, %v1506
        %1513 = vrot.lane.b32.xlu0 %v1339, 120
        %v1514 = vpop.permute.xlu0 %1513
        %v1516 = vsel %vm1340, %v1511, 0
        %v1519 = vsel %vm1402, %v1514, 0
        %1521 = vmatprep.subr.bf16.mxu0 0
        %1522 = vmatpush1.bf16.msra.mxu0 %v1519
        %1523 = vmatprep.subr.bf16.mxu0 0
        %1524 = vmatpush1.bf16.msra.mxu0 0
        %1525 = vmatprep.subr.bf16.mxu0 0
        %1526 = vmatpush1.bf16.msra.mxu0 0
        %1527 = vmatprep.subr.bf16.mxu0 0
        %1528 = vmatpush1.bf16.msra.mxu0 0
        %1529 = vmatprep.subr.bf16.mxu0 0
        %1530 = vmatpush1.bf16.msra.mxu0 0
        %1531 = vmatprep.subr.bf16.mxu0 0
        %1532 = vmatpush1.bf16.msra.mxu0 0
        %1533 = vmatprep.subr.bf16.mxu0 0
        %1534 = vmatpush1.bf16.msra.mxu0 0
        %1535 = vmatprep.subr.bf16.mxu0 0
        %1536 = vmatpush1.bf16.msra.mxu0 0
        %1537 = vmatprep.subr.bf16.mxu0 0
        %1538 = vmatpush1.bf16.msra.mxu0 0
        %1539 = vmatprep.subr.bf16.mxu0 0
        %1540 = vmatpush1.bf16.msra.mxu0 0
        %1541 = vmatprep.subr.bf16.mxu0 0
        %1542 = vmatpush1.bf16.msra.mxu0 0
        %1543 = vmatprep.subr.bf16.mxu0 0
        %1544 = vmatpush1.bf16.msra.mxu0 0
        %1545 = vmatprep.subr.bf16.mxu0 0
        %1546 = vmatpush1.bf16.msra.mxu0 0
        %1547 = vmatprep.subr.bf16.mxu0 0
        %1548 = vmatpush1.bf16.msra.mxu0 0
        %1549 = vmatprep.subr.bf16.mxu0 0
        %1550 = vmatpush1.bf16.msra.mxu0 0
        %1551 = vmatprep.subr.bf16.mxu0 0
        %1552 = vmatpush1.bf16.msra.mxu0 0
        %1553 = vmatprep.mubr.bf16.mxu0 0
        %1554 = vmatmul.mubr.bf16.gmra.mrb[0].mxu0 %v1516
        %v1555 = vpop.f32.mrb[0].mxu0
        %v1556 = vadd.f32 0.0, %v1555
        %v1557 = vpop.f32.mrb[0].mxu0
        %v1558 = vpop.f32.mrb[0].mxu0
        %v1559 = vpop.f32.mrb[0].mxu0
        %1560 = vdwg.mxu0
        %v1561 = vmul.f32 %v1556, %v1510
        %1563 = vrot.lane.b32.xlu0 %v1561, 8
        %v1564 = vpop.permute.xlu0 %1563
        %vm1566 = vcmask 130112
        %1567 = vst.msk [vmem:[#allocation2] sm:$0xff] %vm1566, %v1564
        %1568 = vrot.lane.b32.xlu0 %v1208, 112
        %v1569 = vpop.permute.xlu0 %1568
        %1570 = vrot.lane.b32.xlu0 %v1275, 112
        %v1571 = vpop.permute.xlu0 %1570
        %v1573 = vsel %vm1340, %v1569, 0
        %v1576 = vsel %vm1340, %v1571, 0
        %1578 = vmatprep.subr.bf16.mxu0 0
        %1579 = vmatpush1.bf16.xpose.msra.mxu0 %v1576
        %1580 = vmatprep.subr.bf16.mxu0 0
        %1581 = vmatpush1.bf16.xpose.msra.mxu0 0
        %1582 = vmatprep.subr.bf16.mxu0 0
        %1583 = vmatpush1.bf16.xpose.msra.mxu0 0
        %1584 = vmatprep.subr.bf16.mxu0 0
        %1585 = vmatpush1.bf16.xpose.msra.mxu0 0
        %1586 = vmatprep.subr.bf16.mxu0 0
        %1587 = vmatpush1.bf16.xpose.msra.mxu0 0
        %1588 = vmatprep.subr.bf16.mxu0 0
        %1589 = vmatpush1.bf16.xpose.msra.mxu0 0
        %1590 = vmatprep.subr.bf16.mxu0 0
        %1591 = vmatpush1.bf16.xpose.msra.mxu0 0
        %1592 = vmatprep.subr.bf16.mxu0 0
        %1593 = vmatpush1.bf16.xpose.msra.mxu0 0
        %1594 = vmatprep.subr.bf16.mxu0 0
        %1595 = vmatpush1.bf16.xpose.msra.mxu0 0
        %1596 = vmatprep.subr.bf16.mxu0 0
        %1597 = vmatpush1.bf16.xpose.msra.mxu0 0
        %1598 = vmatprep.subr.bf16.mxu0 0
        %1599 = vmatpush1.bf16.xpose.msra.mxu0 0
        %1600 = vmatprep.subr.bf16.mxu0 0
        %1601 = vmatpush1.bf16.xpose.msra.mxu0 0
        %1602 = vmatprep.subr.bf16.mxu0 0
        %1603 = vmatpush1.bf16.xpose.msra.mxu0 0
        %1604 = vmatprep.subr.bf16.mxu0 0
        %1605 = vmatpush1.bf16.xpose.msra.mxu0 0
        %1606 = vmatprep.subr.bf16.mxu0 0
        %1607 = vmatpush1.bf16.xpose.msra.mxu0 0
        %1608 = vmatprep.subr.bf16.mxu0 0
        %1609 = vmatpush1.bf16.xpose.msra.mxu0 0
        %1610 = vmatprep.mubr.bf16.mxu0 0
        %1611 = vmatmul.mubr.bf16.gmra.mrb[0].mxu0 %v1573
        %v1612 = vpop.f32.mrb[0].mxu0
        %v1613 = vadd.f32 0.0, %v1612
        %v1614 = vpop.f32.mrb[0].mxu0
        %v1615 = vpop.f32.mrb[0].mxu0
        %v1616 = vpop.f32.mrb[0].mxu0
        %1617 = vdwg.mxu0
        %v1618 = vmul.f32 %v1613, 0.35355338
        %v1619 = vsel %vm1340, %v1618, -inf
        %1620 = vmax.xlane.f32.xlu0 %v1619
        %v1621 = vpop.xlane.xlu0 %1620
        %v1622 = vsub.f32 %v1618, %v1621
        %v1623 = vmul.f32 %v1622, 1.442695
        %v1624 = vpow.pop %v1623
        %v1625 = vsel %vm1340, %v1624, 0.0
        %1626 = vadd.xlane.f32.xlu0 %v1625
        %v1627 = vpop.xlane.xlu0 %1626
        %v1628 = vrcp.pop %v1627
        %v1629 = vpack.c.bf16 %v1624, %v1624
        %1630 = vrot.lane.b32.xlu0 %v1339, 112
        %v1631 = vpop.permute.xlu0 %1630
        %v1633 = vsel %vm1340, %v1629, 0
        %v1636 = vsel %vm1402, %v1631, 0
        %1638 = vmatprep.subr.bf16.mxu0 0
        %1639 = vmatpush1.bf16.msra.mxu0 %v1636
        %1640 = vmatprep.subr.bf16.mxu0 0
        %1641 = vmatpush1.bf16.msra.mxu0 0
        %1642 = vmatprep.subr.bf16.mxu0 0
        %1643 = vmatpush1.bf16.msra.mxu0 0
        %1644 = vmatprep.subr.bf16.mxu0 0
        %1645 = vmatpush1.bf16.msra.mxu0 0
        %1646 = vmatprep.subr.bf16.mxu0 0
        %1647 = vmatpush1.bf16.msra.mxu0 0
        %1648 = vmatprep.subr.bf16.mxu0 0
        %1649 = vmatpush1.bf16.msra.mxu0 0
        %1650 = vmatprep.subr.bf16.mxu0 0
        %1651 = vmatpush1.bf16.msra.mxu0 0
        %1652 = vmatprep.subr.bf16.mxu0 0
        %1653 = vmatpush1.bf16.msra.mxu0 0
        %1654 = vmatprep.subr.bf16.mxu0 0
        %1655 = vmatpush1.bf16.msra.mxu0 0
        %1656 = vmatprep.subr.bf16.mxu0 0
        %1657 = vmatpush1.bf16.msra.mxu0 0
        %1658 = vmatprep.subr.bf16.mxu0 0
        %1659 = vmatpush1.bf16.msra.mxu0 0
        %1660 = vmatprep.subr.bf16.mxu0 0
        %1661 = vmatpush1.bf16.msra.mxu0 0
        %1662 = vmatprep.subr.bf16.mxu0 0
        %1663 = vmatpush1.bf16.msra.mxu0 0
        %1664 = vmatprep.subr.bf16.mxu0 0
        %1665 = vmatpush1.bf16.msra.mxu0 0
        %1666 = vmatprep.subr.bf16.mxu0 0
        %1667 = vmatpush1.bf16.msra.mxu0 0
        %1668 = vmatprep.subr.bf16.mxu0 0
        %1669 = vmatpush1.bf16.msra.mxu0 0
        %1670 = vmatprep.mubr.bf16.mxu0 0
        %1671 = vmatmul.mubr.bf16.gmra.mrb[0].mxu0 %v1633
        %v1672 = vpop.f32.mrb[0].mxu0
        %v1673 = vadd.f32 0.0, %v1672
        %v1674 = vpop.f32.mrb[0].mxu0
        %v1675 = vpop.f32.mrb[0].mxu0
        %v1676 = vpop.f32.mrb[0].mxu0
        %1677 = vdwg.mxu0
        %v1678 = vmul.f32 %v1673, %v1628
        %1680 = vrot.lane.b32.xlu0 %v1678, 16
        %v1681 = vpop.permute.xlu0 %1680
        %vm1683 = vcmask 195712
        %1684 = vst.msk [vmem:[#allocation2] sm:$0xff] %vm1683, %v1681
        %1685 = vrot.lane.b32.xlu0 %v1208, 104
        %v1686 = vpop.permute.xlu0 %1685
        %1687 = vrot.lane.b32.xlu0 %v1275, 104
        %v1688 = vpop.permute.xlu0 %1687
        %v1690 = vsel %vm1340, %v1686, 0
        %v1693 = vsel %vm1340, %v1688, 0
        %1695 = vmatprep.subr.bf16.mxu0 0
        %1696 = vmatpush1.bf16.xpose.msra.mxu0 %v1693
        %1697 = vmatprep.subr.bf16.mxu0 0
        %1698 = vmatpush1.bf16.xpose.msra.mxu0 0
        %1699 = vmatprep.subr.bf16.mxu0 0
        %1700 = vmatpush1.bf16.xpose.msra.mxu0 0
        %1701 = vmatprep.subr.bf16.mxu0 0
        %1702 = vmatpush1.bf16.xpose.msra.mxu0 0
        %1703 = vmatprep.subr.bf16.mxu0 0
        %1704 = vmatpush1.bf16.xpose.msra.mxu0 0
        %1705 = vmatprep.subr.bf16.mxu0 0
        %1706 = vmatpush1.bf16.xpose.msra.mxu0 0
        %1707 = vmatprep.subr.bf16.mxu0 0
        %1708 = vmatpush1.bf16.xpose.msra.mxu0 0
        %1709 = vmatprep.subr.bf16.mxu0 0
        %1710 = vmatpush1.bf16.xpose.msra.mxu0 0
        %1711 = vmatprep.subr.bf16.mxu0 0
        %1712 = vmatpush1.bf16.xpose.msra.mxu0 0
        %1713 = vmatprep.subr.bf16.mxu0 0
        %1714 = vmatpush1.bf16.xpose.msra.mxu0 0
        %1715 = vmatprep.subr.bf16.mxu0 0
        %1716 = vmatpush1.bf16.xpose.msra.mxu0 0
        %1717 = vmatprep.subr.bf16.mxu0 0
        %1718 = vmatpush1.bf16.xpose.msra.mxu0 0
        %1719 = vmatprep.subr.bf16.mxu0 0
        %1720 = vmatpush1.bf16.xpose.msra.mxu0 0
        %1721 = vmatprep.subr.bf16.mxu0 0
        %1722 = vmatpush1.bf16.xpose.msra.mxu0 0
        %1723 = vmatprep.subr.bf16.mxu0 0
        %1724 = vmatpush1.bf16.xpose.msra.mxu0 0
        %1725 = vmatprep.subr.bf16.mxu0 0
        %1726 = vmatpush1.bf16.xpose.msra.mxu0 0
        %1727 = vmatprep.mubr.bf16.mxu0 0
        %1728 = vmatmul.mubr.bf16.gmra.mrb[0].mxu0 %v1690
        %v1729 = vpop.f32.mrb[0].mxu0
        %v1730 = vadd.f32 0.0, %v1729
        %v1731 = vpop.f32.mrb[0].mxu0
        %v1732 = vpop.f32.mrb[0].mxu0
        %v1733 = vpop.f32.mrb[0].mxu0
        %1734 = vdwg.mxu0
        %v1735 = vmul.f32 %v1730, 0.35355338
        %v1736 = vsel %vm1340, %v1735, -inf
        %1737 = vmax.xlane.f32.xlu0 %v1736
        %v1738 = vpop.xlane.xlu0 %1737
        %v1739 = vsub.f32 %v1735, %v1738
        %v1740 = vmul.f32 %v1739, 1.442695
        %v1741 = vpow.pop %v1740
        %v1742 = vsel %vm1340, %v1741, 0.0
        %1743 = vadd.xlane.f32.xlu0 %v1742
        %v1744 = vpop.xlane.xlu0 %1743
        %v1745 = vrcp.pop %v1744
        %v1746 = vpack.c.bf16 %v1741, %v1741
        %1747 = vrot.lane.b32.xlu0 %v1339, 104
        %v1748 = vpop.permute.xlu0 %1747
        %v1750 = vsel %vm1340, %v1746, 0
        %v1753 = vsel %vm1402, %v1748, 0
        %1755 = vmatprep.subr.bf16.mxu0 0
        %1756 = vmatpush1.bf16.msra.mxu0 %v1753
        %1757 = vmatprep.subr.bf16.mxu0 0
        %1758 = vmatpush1.bf16.msra.mxu0 0
        %1759 = vmatprep.subr.bf16.mxu0 0
        %1760 = vmatpush1.bf16.msra.mxu0 0
        %1761 = vmatprep.subr.bf16.mxu0 0
        %1762 = vmatpush1.bf16.msra.mxu0 0
        %1763 = vmatprep.subr.bf16.mxu0 0
        %1764 = vmatpush1.bf16.msra.mxu0 0
        %1765 = vmatprep.subr.bf16.mxu0 0
        %1766 = vmatpush1.bf16.msra.mxu0 0
        %1767 = vmatprep.subr.bf16.mxu0 0
        %1768 = vmatpush1.bf16.msra.mxu0 0
        %1769 = vmatprep.subr.bf16.mxu0 0
        %1770 = vmatpush1.bf16.msra.mxu0 0
        %1771 = vmatprep.subr.bf16.mxu0 0
        %1772 = vmatpush1.bf16.msra.mxu0 0
        %1773 = vmatprep.subr.bf16.mxu0 0
        %1774 = vmatpush1.bf16.msra.mxu0 0
        %1775 = vmatprep.subr.bf16.mxu0 0
        %1776 = vmatpush1.bf16.msra.mxu0 0
        %1777 = vmatprep.subr.bf16.mxu0 0
        %1778 = vmatpush1.bf16.msra.mxu0 0
        %1779 = vmatprep.subr.bf16.mxu0 0
        %1780 = vmatpush1.bf16.msra.mxu0 0
        %1781 = vmatprep.subr.bf16.mxu0 0
        %1782 = vmatpush1.bf16.msra.mxu0 0
        %1783 = vmatprep.subr.bf16.mxu0 0
        %1784 = vmatpush1.bf16.msra.mxu0 0
        %1785 = vmatprep.subr.bf16.mxu0 0
        %1786 = vmatpush1.bf16.msra.mxu0 0
        %1787 = vmatprep.mubr.bf16.mxu0 0
        %1788 = vmatmul.mubr.bf16.gmra.mrb[0].mxu0 %v1750
        %v1789 = vpop.f32.mrb[0].mxu0
        %v1790 = vadd.f32 0.0, %v1789
        %v1791 = vpop.f32.mrb[0].mxu0
        %v1792 = vpop.f32.mrb[0].mxu0
        %v1793 = vpop.f32.mrb[0].mxu0
        %1794 = vdwg.mxu0
        %v1795 = vmul.f32 %v1790, %v1745
        %1797 = vrot.lane.b32.xlu0 %v1795, 24
        %v1798 = vpop.permute.xlu0 %1797
        %vm1800 = vcmask 261312
        %1801 = vst.msk [vmem:[#allocation2] sm:$0xff] %vm1800, %v1798
        %v1802 = vld [vmem:[#allocation2] sm:$0xff]
        %v1803 = vpack.c.bf16 %v1802, %v1802
        %v1804 = vld [vmem:[%s19] sm:$0xf]
        %v1805 = vld [vmem:[%s19 + $0x4] sm:$0xf]
        %v1806 = vld [vmem:[%s19 + $0x8] sm:$0xf]
        %v1807 = vld [vmem:[%s19 + $0xc] sm:$0xf]
        %v1808 = vld [vmem:[#allocation14] sm:$0x1]
        %v1810 = vlaneseq
        %v1811 = vshrl.u32 %v1810, 7
        %v1812 = vsub.s32 0, %v1811
        %v1813 = vrot.slane %v1808, %v1812
        %v1819 = vunpack.c.l.b16 %v1804
        %v1820 = vunpack.c.l.b16 %v1805
        %v1821 = vunpack.c.l.b16 %v1806
        %v1822 = vunpack.c.l.b16 %v1807
        %v1823 = vpack.c.b16 %v1820, %v1819
        %v1824 = vpack.c.b16 %v1822, %v1821
        %v1828 = vsel %vm1164, %v1803, 0
        %1830 = vmatprep.subr.bf16.mxu0 0
        %1831 = vmatpush1.bf16.msra.mxu0 %v1823
        %1832 = vmatprep.subr.bf16.mxu0 0
        %1833 = vmatpush1.bf16.msra.mxu0 %v1824
        %1834 = vmatprep.subr.bf16.mxu0 0
        %1835 = vmatpush1.bf16.msra.mxu0 0
        %1836 = vmatprep.subr.bf16.mxu0 0
        %1837 = vmatpush1.bf16.msra.mxu0 0
        %1838 = vmatprep.subr.bf16.mxu0 0
        %1839 = vmatpush1.bf16.msra.mxu0 0
        %1840 = vmatprep.subr.bf16.mxu0 0
        %1841 = vmatpush1.bf16.msra.mxu0 0
        %1842 = vmatprep.subr.bf16.mxu0 0
        %1843 = vmatpush1.bf16.msra.mxu0 0
        %1844 = vmatprep.subr.bf16.mxu0 0
        %1845 = vmatpush1.bf16.msra.mxu0 0
        %1846 = vmatprep.subr.bf16.mxu0 0
        %1847 = vmatpush1.bf16.msra.mxu0 0
        %1848 = vmatprep.subr.bf16.mxu0 0
        %1849 = vmatpush1.bf16.msra.mxu0 0
        %1850 = vmatprep.subr.bf16.mxu0 0
        %1851 = vmatpush1.bf16.msra.mxu0 0
        %1852 = vmatprep.subr.bf16.mxu0 0
        %1853 = vmatpush1.bf16.msra.mxu0 0
        %1854 = vmatprep.subr.bf16.mxu0 0
        %1855 = vmatpush1.bf16.msra.mxu0 0
        %1856 = vmatprep.subr.bf16.mxu0 0
        %1857 = vmatpush1.bf16.msra.mxu0 0
        %1858 = vmatprep.subr.bf16.mxu0 0
        %1859 = vmatpush1.bf16.msra.mxu0 0
        %1860 = vmatprep.subr.bf16.mxu0 0
        %1861 = vmatpush1.bf16.msra.mxu0 0
        %1862 = vmatprep.mubr.bf16.mxu0 0
        %1863 = vmatmul.mubr.bf16.gmra.mrb[0].mxu0 %v1828
        %v1864 = vpop.f32.mrb[0].mxu0
        %v1865 = vadd.f32 %v1813, %v1864
        %v1866 = vpop.f32.mrb[0].mxu0
        %v1867 = vpop.f32.mrb[0].mxu0
        %v1868 = vpop.f32.mrb[0].mxu0
        %1869 = vdwg.mxu0
        %v1870 = vunpack.c.l.bf16 %v1138
        %v1871 = vadd.f32 %v1870, %v1865
        %v1872 = vld [vmem:[%s47] sm:$0x1]
        %v1873 = vld [vmem:[%s49] sm:$0x1]
        %v1874 = vsel %vm1164, %v1871, 0.0
        %1875 = vadd.xlane.f32.xlu0 %v1874
        %v1876 = vpop.xlane.xlu0 %1875
        %v1877 = vrcp.pop 32.0
        %v1878 = vmul.f32 %v1876, %v1877
        %v1879 = vsub.f32 %v1871, %v1878
        %v1880 = vmul.f32 %v1879, %v1879
        %v1881 = vsel %vm1164, %v1880, 0.0
        %1882 = vadd.xlane.f32.xlu0 %v1881
        %v1883 = vpop.xlane.xlu0 %1882
        %v1884 = vmul.f32 %v1883, %v1877
        %v1885 = vadd.f32 %v1884, 1e-05
        %v1886 = vrsqrt.pop %v1885
        %v1887 = vmul.f32 %v1879, %v1886
        %v1889 = vlaneseq
        %v1890 = vshrl.u32 %v1889, 7
        %v1891 = vsub.s32 0, %v1890
        %v1892 = vrot.slane %v1872, %v1891
        %v1894 = vmul.f32 %v1887, %v1892
        %v1896 = vlaneseq
        %v1897 = vshrl.u32 %v1896, 7
        %v1898 = vsub.s32 0, %v1897
        %v1899 = vrot.slane %v1873, %v1898
        %v1901 = vadd.f32 %v1894, %v1899
        %v1902 = vpack.c.bf16 %v1901, %v1901
        %v1903 = vld [vmem:[#allocation15] sm:$0xf]
        %v1904 = vld [vmem:[#allocation15 + $0x4] sm:$0xf]
        %v1905 = vld [vmem:[#allocation15 + $0x8] sm:$0xf]
        %v1906 = vld [vmem:[#allocation15 + $0xc] sm:$0xf]
        %v1907 = vld [vmem:[#allocation17] sm:$0x1]
        %v1909 = vlaneseq
        %v1910 = vshrl.u32 %v1909, 7
        %v1911 = vsub.s32 0, %v1910
        %v1912 = vrot.slane %v1907, %v1911
        %v1918 = vunpack.c.l.b16 %v1903
        %v1919 = vunpack.c.l.b16 %v1904
        %v1920 = vunpack.c.l.b16 %v1905
        %v1921 = vunpack.c.l.b16 %v1906
        %v1922 = vpack.c.b16 %v1919, %v1918
        %v1923 = vpack.c.b16 %v1921, %v1920
        %v1927 = vsel %vm1164, %v1902, 0
        %1929 = vmatprep.subr.bf16.mxu0 0
        %1930 = vmatpush1.bf16.msra.mxu0 %v1922
        %1931 = vmatprep.subr.bf16.mxu0 0
        %1932 = vmatpush1.bf16.msra.mxu0 %v1923
        %1933 = vmatprep.subr.bf16.mxu0 0
        %1934 = vmatpush1.bf16.msra.mxu0 0
        %1935 = vmatprep.subr.bf16.mxu0 0
        %1936 = vmatpush1.bf16.msra.mxu0 0
        %1937 = vmatprep.subr.bf16.mxu0 0
        %1938 = vmatpush1.bf16.msra.mxu0 0
        %1939 = vmatprep.subr.bf16.mxu0 0
        %1940 = vmatpush1.bf16.msra.mxu0 0
        %1941 = vmatprep.subr.bf16.mxu0 0
        %1942 = vmatpush1.bf16.msra.mxu0 0
        %1943 = vmatprep.subr.bf16.mxu0 0
        %1944 = vmatpush1.bf16.msra.mxu0 0
        %1945 = vmatprep.subr.bf16.mxu0 0
        %1946 = vmatpush1.bf16.msra.mxu0 0
        %1947 = vmatprep.subr.bf16.mxu0 0
        %1948 = vmatpush1.bf16.msra.mxu0 0
        %1949 = vmatprep.subr.bf16.mxu0 0
        %1950 = vmatpush1.bf16.msra.mxu0 0
        %1951 = vmatprep.subr.bf16.mxu0 0
        %1952 = vmatpush1.bf16.msra.mxu0 0
        %1953 = vmatprep.subr.bf16.mxu0 0
        %1954 = vmatpush1.bf16.msra.mxu0 0
        %1955 = vmatprep.subr.bf16.mxu0 0
        %1956 = vmatpush1.bf16.msra.mxu0 0
        %1957 = vmatprep.subr.bf16.mxu0 0
        %1958 = vmatpush1.bf16.msra.mxu0 0
        %1959 = vmatprep.subr.bf16.mxu0 0
        %1960 = vmatpush1.bf16.msra.mxu0 0
        %1961 = vmatprep.mubr.bf16.mxu0 0
        %1962 = vmatmul.mubr.bf16.gmra.mrb[0].mxu0 %v1927
        %v1963 = vpop.f32.mrb[0].mxu0
        %v1964 = vadd.f32 %v1912, %v1963
        %v1965 = vpop.f32.mrb[0].mxu0
        %v1966 = vpop.f32.mrb[0].mxu0
        %v1967 = vpop.f32.mrb[0].mxu0
        %1968 = vdwg.mxu0
        %v1969 = vpack.c.bf16 %v1964, %v1964
        %v1970 = vld [vmem:[%s27] sm:$0xf]
        %v1971 = vld [vmem:[%s27 + $0x4] sm:$0xf]
        %v1972 = vld [vmem:[%s27 + $0x8] sm:$0xf]
        %v1973 = vld [vmem:[%s27 + $0xc] sm:$0xf]
        %v1974 = vld [vmem:[#allocation18] sm:$0x1]
        %v1976 = vlaneseq
        %v1977 = vshrl.u32 %v1976, 7
        %v1978 = vsub.s32 0, %v1977
        %v1979 = vrot.slane %v1974, %v1978
        %v1985 = vunpack.c.l.b16 %v1970
        %v1986 = vunpack.c.l.b16 %v1971
        %v1987 = vunpack.c.l.b16 %v1972
        %v1988 = vunpack.c.l.b16 %v1973
        %v1989 = vpack.c.b16 %v1986, %v1985
        %v1990 = vpack.c.b16 %v1988, %v1987
        %v1994 = vsel %vm1164, %v1140, 0
        %1996 = vmatprep.subr.bf16.mxu0 0
        %1997 = vmatpush1.bf16.msra.mxu0 %v1989
        %1998 = vmatprep.subr.bf16.mxu0 0
        %1999 = vmatpush1.bf16.msra.mxu0 %v1990
        %2000 = vmatprep.subr.bf16.mxu0 0
        %2001 = vmatpush1.bf16.msra.mxu0 0
        %2002 = vmatprep.subr.bf16.mxu0 0
        %2003 = vmatpush1.bf16.msra.mxu0 0
        %2004 = vmatprep.subr.bf16.mxu0 0
        %2005 = vmatpush1.bf16.msra.mxu0 0
        %2006 = vmatprep.subr.bf16.mxu0 0
        %2007 = vmatpush1.bf16.msra.mxu0 0
        %2008 = vmatprep.subr.bf16.mxu0 0
        %2009 = vmatpush1.bf16.msra.mxu0 0
        %2010 = vmatprep.subr.bf16.mxu0 0
        %2011 = vmatpush1.bf16.msra.mxu0 0
        %2012 = vmatprep.subr.bf16.mxu0 0
        %2013 = vmatpush1.bf16.msra.mxu0 0
        %2014 = vmatprep.subr.bf16.mxu0 0
        %2015 = vmatpush1.bf16.msra.mxu0 0
        %2016 = vmatprep.subr.bf16.mxu0 0
        %2017 = vmatpush1.bf16.msra.mxu0 0
        %2018 = vmatprep.subr.bf16.mxu0 0
        %2019 = vmatpush1.bf16.msra.mxu0 0
        %2020 = vmatprep.subr.bf16.mxu0 0
        %2021 = vmatpush1.bf16.msra.mxu0 0
        %2022 = vmatprep.subr.bf16.mxu0 0
        %2023 = vmatpush1.bf16.msra.mxu0 0
        %2024 = vmatprep.subr.bf16.mxu0 0
        %2025 = vmatpush1.bf16.msra.mxu0 0
        %2026 = vmatprep.subr.bf16.mxu0 0
        %2027 = vmatpush1.bf16.msra.mxu0 0
        %2028 = vmatprep.mubr.bf16.mxu0 0
        %2029 = vmatmul.mubr.bf16.gmra.mrb[0].mxu0 %v1994
        %v2030 = vpop.f32.mrb[0].mxu0
        %v2031 = vadd.f32 %v1979, %v2030
        %v2032 = vpop.f32.mrb[0].mxu0
        %v2033 = vpop.f32.mrb[0].mxu0
        %v2034 = vpop.f32.mrb[0].mxu0
        %2035 = vdwg.mxu0
        %v2036 = vpack.c.bf16 %v2031, %v2031
        %v2037 = vld [vmem:[#allocation20] sm:$0xf]
        %v2038 = vld [vmem:[#allocation20 + $0x4] sm:$0xf]
        %v2039 = vld [vmem:[#allocation20 + $0x8] sm:$0xf]
        %v2040 = vld [vmem:[#allocation20 + $0xc] sm:$0xf]
        %v2041 = vld [vmem:[#allocation21] sm:$0x1]
        %v2043 = vlaneseq
        %v2044 = vshrl.u32 %v2043, 7
        %v2045 = vsub.s32 0, %v2044
        %v2046 = vrot.slane %v2041, %v2045
        %v2052 = vunpack.c.l.b16 %v2037
        %v2053 = vunpack.c.l.b16 %v2038
        %v2054 = vunpack.c.l.b16 %v2039
        %v2055 = vunpack.c.l.b16 %v2040
        %v2056 = vpack.c.b16 %v2053, %v2052
        %v2057 = vpack.c.b16 %v2055, %v2054
        %2060 = vmatprep.subr.bf16.mxu0 0
        %2061 = vmatpush1.bf16.msra.mxu0 %v2056
        %2062 = vmatprep.subr.bf16.mxu0 0
        %2063 = vmatpush1.bf16.msra.mxu0 %v2057
        %2064 = vmatprep.subr.bf16.mxu0 0
        %2065 = vmatpush1.bf16.msra.mxu0 0
        %2066 = vmatprep.subr.bf16.mxu0 0
        %2067 = vmatpush1.bf16.msra.mxu0 0
        %2068 = vmatprep.subr.bf16.mxu0 0
        %2069 = vmatpush1.bf16.msra.mxu0 0
        %2070 = vmatprep.subr.bf16.mxu0 0
        %2071 = vmatpush1.bf16.msra.mxu0 0
        %2072 = vmatprep.subr.bf16.mxu0 0
        %2073 = vmatpush1.bf16.msra.mxu0 0
        %2074 = vmatprep.subr.bf16.mxu0 0
        %2075 = vmatpush1.bf16.msra.mxu0 0
        %2076 = vmatprep.subr.bf16.mxu0 0
        %2077 = vmatpush1.bf16.msra.mxu0 0
        %2078 = vmatprep.subr.bf16.mxu0 0
        %2079 = vmatpush1.bf16.msra.mxu0 0
        %2080 = vmatprep.subr.bf16.mxu0 0
        %2081 = vmatpush1.bf16.msra.mxu0 0
        %2082 = vmatprep.subr.bf16.mxu0 0
        %2083 = vmatpush1.bf16.msra.mxu0 0
        %2084 = vmatprep.subr.bf16.mxu0 0
        %2085 = vmatpush1.bf16.msra.mxu0 0
        %2086 = vmatprep.subr.bf16.mxu0 0
        %2087 = vmatpush1.bf16.msra.mxu0 0
        %2088 = vmatprep.subr.bf16.mxu0 0
        %2089 = vmatpush1.bf16.msra.mxu0 0
        %2090 = vmatprep.subr.bf16.mxu0 0
        %2091 = vmatpush1.bf16.msra.mxu0 0
        %2092 = vmatprep.mubr.bf16.mxu0 0
        %2093 = vmatmul.mubr.bf16.gmra.mrb[0].mxu0 %v1994
        %v2094 = vpop.f32.mrb[0].mxu0
        %v2095 = vadd.f32 %v2046, %v2094
        %v2096 = vpop.f32.mrb[0].mxu0
        %v2097 = vpop.f32.mrb[0].mxu0
        %v2098 = vpop.f32.mrb[0].mxu0
        %2099 = vdwg.mxu0
        %v2100 = vpack.c.bf16 %v2095, %v2095
        %v2102 = vsel %vm1340, %v1969, 0
        %v2105 = vsel %vm1340, %v2036, 0
        %2107 = vmatprep.subr.bf16.mxu0 0
        %2108 = vmatpush1.bf16.xpose.msra.mxu0 %v2105
        %2109 = vmatprep.subr.bf16.mxu0 0
        %2110 = vmatpush1.bf16.xpose.msra.mxu0 0
        %2111 = vmatprep.subr.bf16.mxu0 0
        %2112 = vmatpush1.bf16.xpose.msra.mxu0 0
        %2113 = vmatprep.subr.bf16.mxu0 0
        %2114 = vmatpush1.bf16.xpose.msra.mxu0 0
        %2115 = vmatprep.subr.bf16.mxu0 0
        %2116 = vmatpush1.bf16.xpose.msra.mxu0 0
        %2117 = vmatprep.subr.bf16.mxu0 0
        %2118 = vmatpush1.bf16.xpose.msra.mxu0 0
        %2119 = vmatprep.subr.bf16.mxu0 0
        %2120 = vmatpush1.bf16.xpose.msra.mxu0 0
        %2121 = vmatprep.subr.bf16.mxu0 0
        %2122 = vmatpush1.bf16.xpose.msra.mxu0 0
        %2123 = vmatprep.subr.bf16.mxu0 0
        %2124 = vmatpush1.bf16.xpose.msra.mxu0 0
        %2125 = vmatprep.subr.bf16.mxu0 0
        %2126 = vmatpush1.bf16.xpose.msra.mxu0 0
        %2127 = vmatprep.subr.bf16.mxu0 0
        %2128 = vmatpush1.bf16.xpose.msra.mxu0 0
        %2129 = vmatprep.subr.bf16.mxu0 0
        %2130 = vmatpush1.bf16.xpose.msra.mxu0 0
        %2131 = vmatprep.subr.bf16.mxu0 0
        %2132 = vmatpush1.bf16.xpose.msra.mxu0 0
        %2133 = vmatprep.subr.bf16.mxu0 0
        %2134 = vmatpush1.bf16.xpose.msra.mxu0 0
        %2135 = vmatprep.subr.bf16.mxu0 0
        %2136 = vmatpush1.bf16.xpose.msra.mxu0 0
        %2137 = vmatprep.subr.bf16.mxu0 0
        %2138 = vmatpush1.bf16.xpose.msra.mxu0 0
        %2139 = vmatprep.mubr.bf16.mxu0 0
        %2140 = vmatmul.mubr.bf16.gmra.mrb[0].mxu0 %v2102
        %v2141 = vpop.f32.mrb[0].mxu0
        %v2142 = vadd.f32 0.0, %v2141
        %v2143 = vpop.f32.mrb[0].mxu0
        %v2144 = vpop.f32.mrb[0].mxu0
        %v2145 = vpop.f32.mrb[0].mxu0
        %2146 = vdwg.mxu0
        %v2147 = vmul.f32 %v2142, 0.35355338
        %v2148 = vsel %vm1340, %v2147, -inf
        %2149 = vmax.xlane.f32.xlu0 %v2148
        %v2150 = vpop.xlane.xlu0 %2149
        %v2151 = vsub.f32 %v2147, %v2150
        %v2152 = vmul.f32 %v2151, 1.442695
        %v2153 = vpow.pop %v2152
        %v2154 = vsel %vm1340, %v2153, 0.0
        %2155 = vadd.xlane.f32.xlu0 %v2154
        %v2156 = vpop.xlane.xlu0 %2155
        %v2157 = vrcp.pop %v2156
        %v2158 = vpack.c.bf16 %v2153, %v2153
        %v2160 = vsel %vm1340, %v2158, 0
        %v2163 = vsel %vm1402, %v2100, 0
        %2165 = vmatprep.subr.bf16.mxu0 0
        %2166 = vmatpush1.bf16.msra.mxu0 %v2163
        %2167 = vmatprep.subr.bf16.mxu0 0
        %2168 = vmatpush1.bf16.msra.mxu0 0
        %2169 = vmatprep.subr.bf16.mxu0 0
        %2170 = vmatpush1.bf16.msra.mxu0 0
        %2171 = vmatprep.subr.bf16.mxu0 0
        %2172 = vmatpush1.bf16.msra.mxu0 0
        %2173 = vmatprep.subr.bf16.mxu0 0
        %2174 = vmatpush1.bf16.msra.mxu0 0
        %2175 = vmatprep.subr.bf16.mxu0 0
        %2176 = vmatpush1.bf16.msra.mxu0 0
        %2177 = vmatprep.subr.bf16.mxu0 0
        %2178 = vmatpush1.bf16.msra.mxu0 0
        %2179 = vmatprep.subr.bf16.mxu0 0
        %2180 = vmatpush1.bf16.msra.mxu0 0
        %2181 = vmatprep.subr.bf16.mxu0 0
        %2182 = vmatpush1.bf16.msra.mxu0 0
        %2183 = vmatprep.subr.bf16.mxu0 0
        %2184 = vmatpush1.bf16.msra.mxu0 0
        %2185 = vmatprep.subr.bf16.mxu0 0
        %2186 = vmatpush1.bf16.msra.mxu0 0
        %2187 = vmatprep.subr.bf16.mxu0 0
        %2188 = vmatpush1.bf16.msra.mxu0 0
        %2189 = vmatprep.subr.bf16.mxu0 0
        %2190 = vmatpush1.bf16.msra.mxu0 0
        %2191 = vmatprep.subr.bf16.mxu0 0
        %2192 = vmatpush1.bf16.msra.mxu0 0
        %2193 = vmatprep.subr.bf16.mxu0 0
        %2194 = vmatpush1.bf16.msra.mxu0 0
        %2195 = vmatprep.subr.bf16.mxu0 0
        %2196 = vmatpush1.bf16.msra.mxu0 0
        %2197 = vmatprep.mubr.bf16.mxu0 0
        %2198 = vmatmul.mubr.bf16.gmra.mrb[0].mxu0 %v2160
        %v2199 = vpop.f32.mrb[0].mxu0
        %v2200 = vadd.f32 0.0, %v2199
        %v2201 = vpop.f32.mrb[0].mxu0
        %v2202 = vpop.f32.mrb[0].mxu0
        %v2203 = vpop.f32.mrb[0].mxu0
        %2204 = vdwg.mxu0
        %v2205 = vmul.f32 %v2200, %v2157
        %2206 = vst.msk [vmem:[#allocation2] sm:$0xff] %vm1340, %v2205
        %2208 = vrot.lane.b32.xlu0 %v1969, 120
        %v2209 = vpop.permute.xlu0 %2208
        %2211 = vrot.lane.b32.xlu0 %v2036, 120
        %v2212 = vpop.permute.xlu0 %2211
        %v2214 = vsel %vm1340, %v2209, 0
        %v2217 = vsel %vm1340, %v2212, 0
        %2219 = vmatprep.subr.bf16.mxu0 0
        %2220 = vmatpush1.bf16.xpose.msra.mxu0 %v2217
        %2221 = vmatprep.subr.bf16.mxu0 0
        %2222 = vmatpush1.bf16.xpose.msra.mxu0 0
        %2223 = vmatprep.subr.bf16.mxu0 0
        %2224 = vmatpush1.bf16.xpose.msra.mxu0 0
        %2225 = vmatprep.subr.bf16.mxu0 0
        %2226 = vmatpush1.bf16.xpose.msra.mxu0 0
        %2227 = vmatprep.subr.bf16.mxu0 0
        %2228 = vmatpush1.bf16.xpose.msra.mxu0 0
        %2229 = vmatprep.subr.bf16.mxu0 0
        %2230 = vmatpush1.bf16.xpose.msra.mxu0 0
        %2231 = vmatprep.subr.bf16.mxu0 0
        %2232 = vmatpush1.bf16.xpose.msra.mxu0 0
        %2233 = vmatprep.subr.bf16.mxu0 0
        %2234 = vmatpush1.bf16.xpose.msra.mxu0 0
        %2235 = vmatprep.subr.bf16.mxu0 0
        %2236 = vmatpush1.bf16.xpose.msra.mxu0 0
        %2237 = vmatprep.subr.bf16.mxu0 0
        %2238 = vmatpush1.bf16.xpose.msra.mxu0 0
        %2239 = vmatprep.subr.bf16.mxu0 0
        %2240 = vmatpush1.bf16.xpose.msra.mxu0 0
        %2241 = vmatprep.subr.bf16.mxu0 0
        %2242 = vmatpush1.bf16.xpose.msra.mxu0 0
        %2243 = vmatprep.subr.bf16.mxu0 0
        %2244 = vmatpush1.bf16.xpose.msra.mxu0 0
        %2245 = vmatprep.subr.bf16.mxu0 0
        %2246 = vmatpush1.bf16.xpose.msra.mxu0 0
        %2247 = vmatprep.subr.bf16.mxu0 0
        %2248 = vmatpush1.bf16.xpose.msra.mxu0 0
        %2249 = vmatprep.subr.bf16.mxu0 0
        %2250 = vmatpush1.bf16.xpose.msra.mxu0 0
        %2251 = vmatprep.mubr.bf16.mxu0 0
        %2252 = vmatmul.mubr.bf16.gmra.mrb[0].mxu0 %v2214
        %v2253 = vpop.f32.mrb[0].mxu0
        %v2254 = vadd.f32 0.0, %v2253
        %v2255 = vpop.f32.mrb[0].mxu0
        %v2256 = vpop.f32.mrb[0].mxu0
        %v2257 = vpop.f32.mrb[0].mxu0
        %2258 = vdwg.mxu0
        %v2259 = vmul.f32 %v2254, 0.35355338
        %v2260 = vsel %vm1340, %v2259, -inf
        %2261 = vmax.xlane.f32.xlu0 %v2260
        %v2262 = vpop.xlane.xlu0 %2261
        %v2263 = vsub.f32 %v2259, %v2262
        %v2264 = vmul.f32 %v2263, 1.442695
        %v2265 = vpow.pop %v2264
        %v2266 = vsel %vm1340, %v2265, 0.0
        %2267 = vadd.xlane.f32.xlu0 %v2266
        %v2268 = vpop.xlane.xlu0 %2267
        %v2269 = vrcp.pop %v2268
        %v2270 = vpack.c.bf16 %v2265, %v2265
        %2272 = vrot.lane.b32.xlu0 %v2100, 120
        %v2273 = vpop.permute.xlu0 %2272
        %v2275 = vsel %vm1340, %v2270, 0
        %v2278 = vsel %vm1402, %v2273, 0
        %2280 = vmatprep.subr.bf16.mxu0 0
        %2281 = vmatpush1.bf16.msra.mxu0 %v2278
        %2282 = vmatprep.subr.bf16.mxu0 0
        %2283 = vmatpush1.bf16.msra.mxu0 0
        %2284 = vmatprep.subr.bf16.mxu0 0
        %2285 = vmatpush1.bf16.msra.mxu0 0
        %2286 = vmatprep.subr.bf16.mxu0 0
        %2287 = vmatpush1.bf16.msra.mxu0 0
        %2288 = vmatprep.subr.bf16.mxu0 0
        %2289 = vmatpush1.bf16.msra.mxu0 0
        %2290 = vmatprep.subr.bf16.mxu0 0
        %2291 = vmatpush1.bf16.msra.mxu0 0
        %2292 = vmatprep.subr.bf16.mxu0 0
        %2293 = vmatpush1.bf16.msra.mxu0 0
        %2294 = vmatprep.subr.bf16.mxu0 0
        %2295 = vmatpush1.bf16.msra.mxu0 0
        %2296 = vmatprep.subr.bf16.mxu0 0
        %2297 = vmatpush1.bf16.msra.mxu0 0
        %2298 = vmatprep.subr.bf16.mxu0 0
        %2299 = vmatpush1.bf16.msra.mxu0 0
        %2300 = vmatprep.subr.bf16.mxu0 0
        %2301 = vmatpush1.bf16.msra.mxu0 0
        %2302 = vmatprep.subr.bf16.mxu0 0
        %2303 = vmatpush1.bf16.msra.mxu0 0
        %2304 = vmatprep.subr.bf16.mxu0 0
        %2305 = vmatpush1.bf16.msra.mxu0 0
        %2306 = vmatprep.subr.bf16.mxu0 0
        %2307 = vmatpush1.bf16.msra.mxu0 0
        %2308 = vmatprep.subr.bf16.mxu0 0
        %2309 = vmatpush1.bf16.msra.mxu0 0
        %2310 = vmatprep.subr.bf16.mxu0 0
        %2311 = vmatpush1.bf16.msra.mxu0 0
        %2312 = vmatprep.mubr.bf16.mxu0 0
        %2313 = vmatmul.mubr.bf16.gmra.mrb[0].mxu0 %v2275
        %v2314 = vpop.f32.mrb[0].mxu0
        %v2315 = vadd.f32 0.0, %v2314
        %v2316 = vpop.f32.mrb[0].mxu0
        %v2317 = vpop.f32.mrb[0].mxu0
        %v2318 = vpop.f32.mrb[0].mxu0
        %2319 = vdwg.mxu0
        %v2320 = vmul.f32 %v2315, %v2269
        %2322 = vrot.lane.b32.xlu0 %v2320, 8
        %v2323 = vpop.permute.xlu0 %2322
        %2325 = vst.msk [vmem:[#allocation2] sm:$0xff] %vm1566, %v2323
        %2326 = vrot.lane.b32.xlu0 %v1969, 112
        %v2327 = vpop.permute.xlu0 %2326
        %2328 = vrot.lane.b32.xlu0 %v2036, 112
        %v2329 = vpop.permute.xlu0 %2328
        %v2331 = vsel %vm1340, %v2327, 0
        %v2334 = vsel %vm1340, %v2329, 0
        %2336 = vmatprep.subr.bf16.mxu0 0
        %2337 = vmatpush1.bf16.xpose.msra.mxu0 %v2334
        %2338 = vmatprep.subr.bf16.mxu0 0
        %2339 = vmatpush1.bf16.xpose.msra.mxu0 0
        %2340 = vmatprep.subr.bf16.mxu0 0
        %2341 = vmatpush1.bf16.xpose.msra.mxu0 0
        %2342 = vmatprep.subr.bf16.mxu0 0
        %2343 = vmatpush1.bf16.xpose.msra.mxu0 0
        %2344 = vmatprep.subr.bf16.mxu0 0
        %2345 = vmatpush1.bf16.xpose.msra.mxu0 0
        %2346 = vmatprep.subr.bf16.mxu0 0
        %2347 = vmatpush1.bf16.xpose.msra.mxu0 0
        %2348 = vmatprep.subr.bf16.mxu0 0
        %2349 = vmatpush1.bf16.xpose.msra.mxu0 0
        %2350 = vmatprep.subr.bf16.mxu0 0
        %2351 = vmatpush1.bf16.xpose.msra.mxu0 0
        %2352 = vmatprep.subr.bf16.mxu0 0
        %2353 = vmatpush1.bf16.xpose.msra.mxu0 0
        %2354 = vmatprep.subr.bf16.mxu0 0
        %2355 = vmatpush1.bf16.xpose.msra.mxu0 0
        %2356 = vmatprep.subr.bf16.mxu0 0
        %2357 = vmatpush1.bf16.xpose.msra.mxu0 0
        %2358 = vmatprep.subr.bf16.mxu0 0
        %2359 = vmatpush1.bf16.xpose.msra.mxu0 0
        %2360 = vmatprep.subr.bf16.mxu0 0
        %2361 = vmatpush1.bf16.xpose.msra.mxu0 0
        %2362 = vmatprep.subr.bf16.mxu0 0
        %2363 = vmatpush1.bf16.xpose.msra.mxu0 0
        %2364 = vmatprep.subr.bf16.mxu0 0
        %2365 = vmatpush1.bf16.xpose.msra.mxu0 0
        %2366 = vmatprep.subr.bf16.mxu0 0
        %2367 = vmatpush1.bf16.xpose.msra.mxu0 0
        %2368 = vmatprep.mubr.bf16.mxu0 0
        %2369 = vmatmul.mubr.bf16.gmra.mrb[0].mxu0 %v2331
        %v2370 = vpop.f32.mrb[0].mxu0
        %v2371 = vadd.f32 0.0, %v2370
        %v2372 = vpop.f32.mrb[0].mxu0
        %v2373 = vpop.f32.mrb[0].mxu0
        %v2374 = vpop.f32.mrb[0].mxu0
        %2375 = vdwg.mxu0
        %v2376 = vmul.f32 %v2371, 0.35355338
        %v2377 = vsel %vm1340, %v2376, -inf
        %2378 = vmax.xlane.f32.xlu0 %v2377
        %v2379 = vpop.xlane.xlu0 %2378
        %v2380 = vsub.f32 %v2376, %v2379
        %v2381 = vmul.f32 %v2380, 1.442695
        %v2382 = vpow.pop %v2381
        %v2383 = vsel %vm1340, %v2382, 0.0
        %2384 = vadd.xlane.f32.xlu0 %v2383
        %v2385 = vpop.xlane.xlu0 %2384
        %v2386 = vrcp.pop %v2385
        %v2387 = vpack.c.bf16 %v2382, %v2382
        %2388 = vrot.lane.b32.xlu0 %v2100, 112
        %v2389 = vpop.permute.xlu0 %2388
        %v2391 = vsel %vm1340, %v2387, 0
        %v2394 = vsel %vm1402, %v2389, 0
        %2396 = vmatprep.subr.bf16.mxu0 0
        %2397 = vmatpush1.bf16.msra.mxu0 %v2394
        %2398 = vmatprep.subr.bf16.mxu0 0
        %2399 = vmatpush1.bf16.msra.mxu0 0
        %2400 = vmatprep.subr.bf16.mxu0 0
        %2401 = vmatpush1.bf16.msra.mxu0 0
        %2402 = vmatprep.subr.bf16.mxu0 0
        %2403 = vmatpush1.bf16.msra.mxu0 0
        %2404 = vmatprep.subr.bf16.mxu0 0
        %2405 = vmatpush1.bf16.msra.mxu0 0
        %2406 = vmatprep.subr.bf16.mxu0 0
        %2407 = vmatpush1.bf16.msra.mxu0 0
        %2408 = vmatprep.subr.bf16.mxu0 0
        %2409 = vmatpush1.bf16.msra.mxu0 0
        %2410 = vmatprep.subr.bf16.mxu0 0
        %2411 = vmatpush1.bf16.msra.mxu0 0
        %2412 = vmatprep.subr.bf16.mxu0 0
        %2413 = vmatpush1.bf16.msra.mxu0 0
        %2414 = vmatprep.subr.bf16.mxu0 0
        %2415 = vmatpush1.bf16.msra.mxu0 0
        %2416 = vmatprep.subr.bf16.mxu0 0
        %2417 = vmatpush1.bf16.msra.mxu0 0
        %2418 = vmatprep.subr.bf16.mxu0 0
        %2419 = vmatpush1.bf16.msra.mxu0 0
        %2420 = vmatprep.subr.bf16.mxu0 0
        %2421 = vmatpush1.bf16.msra.mxu0 0
        %2422 = vmatprep.subr.bf16.mxu0 0
        %2423 = vmatpush1.bf16.msra.mxu0 0
        %2424 = vmatprep.subr.bf16.mxu0 0
        %2425 = vmatpush1.bf16.msra.mxu0 0
        %2426 = vmatprep.subr.bf16.mxu0 0
        %2427 = vmatpush1.bf16.msra.mxu0 0
        %2428 = vmatprep.mubr.bf16.mxu0 0
        %2429 = vmatmul.mubr.bf16.gmra.mrb[0].mxu0 %v2391
        %v2430 = vpop.f32.mrb[0].mxu0
        %v2431 = vadd.f32 0.0, %v2430
        %v2432 = vpop.f32.mrb[0].mxu0
        %v2433 = vpop.f32.mrb[0].mxu0
        %v2434 = vpop.f32.mrb[0].mxu0
        %2435 = vdwg.mxu0
        %v2436 = vmul.f32 %v2431, %v2386
        %2438 = vrot.lane.b32.xlu0 %v2436, 16
        %v2439 = vpop.permute.xlu0 %2438
        %2441 = vst.msk [vmem:[#allocation2] sm:$0xff] %vm1683, %v2439
        %2442 = vrot.lane.b32.xlu0 %v1969, 104
        %v2443 = vpop.permute.xlu0 %2442
        %2444 = vrot.lane.b32.xlu0 %v2036, 104
        %v2445 = vpop.permute.xlu0 %2444
        %v2447 = vsel %vm1340, %v2443, 0
        %v2450 = vsel %vm1340, %v2445, 0
        %2452 = vmatprep.subr.bf16.mxu0 0
        %2453 = vmatpush1.bf16.xpose.msra.mxu0 %v2450
        %2454 = vmatprep.subr.bf16.mxu0 0
        %2455 = vmatpush1.bf16.xpose.msra.mxu0 0
        %2456 = vmatprep.subr.bf16.mxu0 0
        %2457 = vmatpush1.bf16.xpose.msra.mxu0 0
        %2458 = vmatprep.subr.bf16.mxu0 0
        %2459 = vmatpush1.bf16.xpose.msra.mxu0 0
        %2460 = vmatprep.subr.bf16.mxu0 0
        %2461 = vmatpush1.bf16.xpose.msra.mxu0 0
        %2462 = vmatprep.subr.bf16.mxu0 0
        %2463 = vmatpush1.bf16.xpose.msra.mxu0 0
        %2464 = vmatprep.subr.bf16.mxu0 0
        %2465 = vmatpush1.bf16.xpose.msra.mxu0 0
        %2466 = vmatprep.subr.bf16.mxu0 0
        %2467 = vmatpush1.bf16.xpose.msra.mxu0 0
        %2468 = vmatprep.subr.bf16.mxu0 0
        %2469 = vmatpush1.bf16.xpose.msra.mxu0 0
        %2470 = vmatprep.subr.bf16.mxu0 0
        %2471 = vmatpush1.bf16.xpose.msra.mxu0 0
        %2472 = vmatprep.subr.bf16.mxu0 0
        %2473 = vmatpush1.bf16.xpose.msra.mxu0 0
        %2474 = vmatprep.subr.bf16.mxu0 0
        %2475 = vmatpush1.bf16.xpose.msra.mxu0 0
        %2476 = vmatprep.subr.bf16.mxu0 0
        %2477 = vmatpush1.bf16.xpose.msra.mxu0 0
        %2478 = vmatprep.subr.bf16.mxu0 0
        %2479 = vmatpush1.bf16.xpose.msra.mxu0 0
        %2480 = vmatprep.subr.bf16.mxu0 0
        %2481 = vmatpush1.bf16.xpose.msra.mxu0 0
        %2482 = vmatprep.subr.bf16.mxu0 0
        %2483 = vmatpush1.bf16.xpose.msra.mxu0 0
        %2484 = vmatprep.mubr.bf16.mxu0 0
        %2485 = vmatmul.mubr.bf16.gmra.mrb[0].mxu0 %v2447
        %v2486 = vpop.f32.mrb[0].mxu0
        %v2487 = vadd.f32 0.0, %v2486
        %v2488 = vpop.f32.mrb[0].mxu0
        %v2489 = vpop.f32.mrb[0].mxu0
        %v2490 = vpop.f32.mrb[0].mxu0
        %2491 = vdwg.mxu0
        %v2492 = vmul.f32 %v2487, 0.35355338
        %v2493 = vsel %vm1340, %v2492, -inf
        %2494 = vmax.xlane.f32.xlu0 %v2493
        %v2495 = vpop.xlane.xlu0 %2494
        %v2496 = vsub.f32 %v2492, %v2495
        %v2497 = vmul.f32 %v2496, 1.442695
        %v2498 = vpow.pop %v2497
        %v2499 = vsel %vm1340, %v2498, 0.0
        %2500 = vadd.xlane.f32.xlu0 %v2499
        %v2501 = vpop.xlane.xlu0 %2500
        %v2502 = vrcp.pop %v2501
        %v2503 = vpack.c.bf16 %v2498, %v2498
        %2504 = vrot.lane.b32.xlu0 %v2100, 104
        %v2505 = vpop.permute.xlu0 %2504
        %v2507 = vsel %vm1340, %v2503, 0
        %v2510 = vsel %vm1402, %v2505, 0
        %2512 = vmatprep.subr.bf16.mxu0 0
        %2513 = vmatpush1.bf16.msra.mxu0 %v2510
        %2514 = vmatprep.subr.bf16.mxu0 0
        %2515 = vmatpush1.bf16.msra.mxu0 0
        %2516 = vmatprep.subr.bf16.mxu0 0
        %2517 = vmatpush1.bf16.msra.mxu0 0
        %2518 = vmatprep.subr.bf16.mxu0 0
        %2519 = vmatpush1.bf16.msra.mxu0 0
        %2520 = vmatprep.subr.bf16.mxu0 0
        %2521 = vmatpush1.bf16.msra.mxu0 0
        %2522 = vmatprep.subr.bf16.mxu0 0
        %2523 = vmatpush1.bf16.msra.mxu0 0
        %2524 = vmatprep.subr.bf16.mxu0 0
        %2525 = vmatpush1.bf16.msra.mxu0 0
        %2526 = vmatprep.subr.bf16.mxu0 0
        %2527 = vmatpush1.bf16.msra.mxu0 0
        %2528 = vmatprep.subr.bf16.mxu0 0
        %2529 = vmatpush1.bf16.msra.mxu0 0
        %2530 = vmatprep.subr.bf16.mxu0 0
        %2531 = vmatpush1.bf16.msra.mxu0 0
        %2532 = vmatprep.subr.bf16.mxu0 0
        %2533 = vmatpush1.bf16.msra.mxu0 0
        %2534 = vmatprep.subr.bf16.mxu0 0
        %2535 = vmatpush1.bf16.msra.mxu0 0
        %2536 = vmatprep.subr.bf16.mxu0 0
        %2537 = vmatpush1.bf16.msra.mxu0 0
        %2538 = vmatprep.subr.bf16.mxu0 0
        %2539 = vmatpush1.bf16.msra.mxu0 0
        %2540 = vmatprep.subr.bf16.mxu0 0
        %2541 = vmatpush1.bf16.msra.mxu0 0
        %2542 = vmatprep.subr.bf16.mxu0 0
        %2543 = vmatpush1.bf16.msra.mxu0 0
        %2544 = vmatprep.mubr.bf16.mxu0 0
        %2545 = vmatmul.mubr.bf16.gmra.mrb[0].mxu0 %v2507
        %v2546 = vpop.f32.mrb[0].mxu0
        %v2547 = vadd.f32 0.0, %v2546
        %v2548 = vpop.f32.mrb[0].mxu0
        %v2549 = vpop.f32.mrb[0].mxu0
        %v2550 = vpop.f32.mrb[0].mxu0
        %2551 = vdwg.mxu0
        %v2552 = vmul.f32 %v2547, %v2502
        %2554 = vrot.lane.b32.xlu0 %v2552, 24
        %v2555 = vpop.permute.xlu0 %2554
        %2557 = vst.msk [vmem:[#allocation2] sm:$0xff] %vm1800, %v2555
        %v2558 = vld [vmem:[#allocation2] sm:$0xff]
        %v2559 = vpack.c.bf16 %v2558, %v2558
        %v2560 = vld [vmem:[%s35] sm:$0xf]
        %v2561 = vld [vmem:[%s35 + $0x4] sm:$0xf]
        %v2562 = vld [vmem:[%s35 + $0x8] sm:$0xf]
        %v2563 = vld [vmem:[%s35 + $0xc] sm:$0xf]
        %v2564 = vld [vmem:[%s37] sm:$0x1]
        %v2566 = vlaneseq
        %v2567 = vshrl.u32 %v2566, 7
        %v2568 = vsub.s32 0, %v2567
        %v2569 = vrot.slane %v2564, %v2568
        %v2575 = vunpack.c.l.b16 %v2560
        %v2576 = vunpack.c.l.b16 %v2561
        %v2577 = vunpack.c.l.b16 %v2562
        %v2578 = vunpack.c.l.b16 %v2563
        %v2579 = vpack.c.b16 %v2576, %v2575
        %v2580 = vpack.c.b16 %v2578, %v2577
        %v2584 = vsel %vm1164, %v2559, 0
        %2586 = vmatprep.subr.bf16.mxu0 0
        %2587 = vmatpush1.bf16.msra.mxu0 %v2579
        %2588 = vmatprep.subr.bf16.mxu0 0
        %2589 = vmatpush1.bf16.msra.mxu0 %v2580
        %2590 = vmatprep.subr.bf16.mxu0 0
        %2591 = vmatpush1.bf16.msra.mxu0 0
        %2592 = vmatprep.subr.bf16.mxu0 0
        %2593 = vmatpush1.bf16.msra.mxu0 0
        %2594 = vmatprep.subr.bf16.mxu0 0
        %2595 = vmatpush1.bf16.msra.mxu0 0
        %2596 = vmatprep.subr.bf16.mxu0 0
        %2597 = vmatpush1.bf16.msra.mxu0 0
        %2598 = vmatprep.subr.bf16.mxu0 0
        %2599 = vmatpush1.bf16.msra.mxu0 0
        %2600 = vmatprep.subr.bf16.mxu0 0
        %2601 = vmatpush1.bf16.msra.mxu0 0
        %2602 = vmatprep.subr.bf16.mxu0 0
        %2603 = vmatpush1.bf16.msra.mxu0 0
        %2604 = vmatprep.subr.bf16.mxu0 0
        %2605 = vmatpush1.bf16.msra.mxu0 0
        %2606 = vmatprep.subr.bf16.mxu0 0
        %2607 = vmatpush1.bf16.msra.mxu0 0
        %2608 = vmatprep.subr.bf16.mxu0 0
        %2609 = vmatpush1.bf16.msra.mxu0 0
        %2610 = vmatprep.subr.bf16.mxu0 0
        %2611 = vmatpush1.bf16.msra.mxu0 0
        %2612 = vmatprep.subr.bf16.mxu0 0
        %2613 = vmatpush1.bf16.msra.mxu0 0
        %2614 = vmatprep.subr.bf16.mxu0 0
        %2615 = vmatpush1.bf16.msra.mxu0 0
        %2616 = vmatprep.subr.bf16.mxu0 0
        %2617 = vmatpush1.bf16.msra.mxu0 0
        %2618 = vmatprep.mubr.bf16.mxu0 0
        %2619 = vmatmul.mubr.bf16.gmra.mrb[0].mxu0 %v2584
        %v2620 = vpop.f32.mrb[0].mxu0
        %v2621 = vadd.f32 %v2569, %v2620
        %v2622 = vpop.f32.mrb[0].mxu0
        %v2623 = vpop.f32.mrb[0].mxu0
        %v2624 = vpop.f32.mrb[0].mxu0
        %2625 = vdwg.mxu0
        %v2626 = vadd.f32 %v1901, %v2621
        %v2627 = vld [vmem:[%s51] sm:$0x1]
        %v2628 = vld [vmem:[%s53] sm:$0x1]
        %v2629 = vsel %vm1164, %v2626, 0.0
        %2630 = vadd.xlane.f32.xlu0 %v2629
        %v2631 = vpop.xlane.xlu0 %2630
        %v2632 = vmul.f32 %v2631, %v1877
        %v2633 = vsub.f32 %v2626, %v2632
        %v2634 = vmul.f32 %v2633, %v2633
        %v2635 = vsel %vm1164, %v2634, 0.0
        %2636 = vadd.xlane.f32.xlu0 %v2635
        %v2637 = vpop.xlane.xlu0 %2636
        %v2638 = vmul.f32 %v2637, %v1877
        %v2639 = vadd.f32 %v2638, 1e-05
        %v2640 = vrsqrt.pop %v2639
        %v2641 = vmul.f32 %v2633, %v2640
        %v2643 = vlaneseq
        %v2644 = vshrl.u32 %v2643, 7
        %v2645 = vsub.s32 0, %v2644
        %v2646 = vrot.slane %v2627, %v2645
        %v2648 = vmul.f32 %v2641, %v2646
        %v2650 = vlaneseq
        %v2651 = vshrl.u32 %v2650, 7
        %v2652 = vsub.s32 0, %v2651
        %v2653 = vrot.slane %v2628, %v2652
        %v2655 = vadd.f32 %v2648, %v2653
        %v2656 = vpack.c.bf16 %v2655, %v2655
        %v2657 = vld [vmem:[#allocation23] sm:$0xf]
        %v2658 = vld [vmem:[#allocation23 + $0x4] sm:$0xf]
        %v2659 = vld [vmem:[#allocation23 + $0x8] sm:$0xf]
        %v2660 = vld [vmem:[#allocation23 + $0xc] sm:$0xf]
        %v2661 = vld [vmem:[%s41] sm:$0x1]
        %v2663 = vlaneseq
        %v2664 = vshrl.u32 %v2663, 7
        %v2665 = vsub.s32 0, %v2664
        %v2666 = vrot.slane %v2661, %v2665
        %v2672 = vunpack.c.l.b16 %v2657
        %v2673 = vunpack.c.l.b16 %v2658
        %v2674 = vunpack.c.l.b16 %v2659
        %v2675 = vunpack.c.l.b16 %v2660
        %v2676 = vpack.c.b16 %v2673, %v2672
        %v2677 = vpack.c.b16 %v2675, %v2674
        %v2681 = vsel %vm1164, %v2656, 0
        %2683 = vmatprep.subr.bf16.mxu0 0
        %2684 = vmatpush1.bf16.msra.mxu0 %v2676
        %2685 = vmatprep.subr.bf16.mxu0 0
        %2686 = vmatpush1.bf16.msra.mxu0 %v2677
        %2687 = vmatprep.subr.bf16.mxu0 0
        %2688 = vmatpush1.bf16.msra.mxu0 0
        %2689 = vmatprep.subr.bf16.mxu0 0
        %2690 = vmatpush1.bf16.msra.mxu0 0
        %2691 = vmatprep.subr.bf16.mxu0 0
        %2692 = vmatpush1.bf16.msra.mxu0 0
        %2693 = vmatprep.subr.bf16.mxu0 0
        %2694 = vmatpush1.bf16.msra.mxu0 0
        %2695 = vmatprep.subr.bf16.mxu0 0
        %2696 = vmatpush1.bf16.msra.mxu0 0
        %2697 = vmatprep.subr.bf16.mxu0 0
        %2698 = vmatpush1.bf16.msra.mxu0 0
        %2699 = vmatprep.subr.bf16.mxu0 0
        %2700 = vmatpush1.bf16.msra.mxu0 0
        %2701 = vmatprep.subr.bf16.mxu0 0
        %2702 = vmatpush1.bf16.msra.mxu0 0
        %2703 = vmatprep.subr.bf16.mxu0 0
        %2704 = vmatpush1.bf16.msra.mxu0 0
        %2705 = vmatprep.subr.bf16.mxu0 0
        %2706 = vmatpush1.bf16.msra.mxu0 0
        %2707 = vmatprep.subr.bf16.mxu0 0
        %2708 = vmatpush1.bf16.msra.mxu0 0
        %2709 = vmatprep.subr.bf16.mxu0 0
        %2710 = vmatpush1.bf16.msra.mxu0 0
        %2711 = vmatprep.subr.bf16.mxu0 0
        %2712 = vmatpush1.bf16.msra.mxu0 0
        %2713 = vmatprep.subr.bf16.mxu0 0
        %2714 = vmatpush1.bf16.msra.mxu0 0
        %2715 = vmatprep.mubr.bf16.mxu0 0
        %2716 = vmatmul.mubr.bf16.gmra.mrb[0].mxu0 %v2681
        %v2717 = vpop.f32.mrb[0].mxu0
        %v2718 = vadd.f32 %v2666, %v2717
        %v2719 = vpop.f32.mrb[0].mxu0
        %v2720 = vpop.f32.mrb[0].mxu0
        %v2721 = vpop.f32.mrb[0].mxu0
        %2722 = vdwg.mxu0
        %v2723 = vmax.f32 %v2718, 0.0
        %v2724 = vpack.c.bf16 %v2723, %v2723
        %v2725 = vld [vmem:[%s43] sm:$0xf]
        %v2726 = vld [vmem:[%s43 + $0x4] sm:$0xf]
        %v2727 = vld [vmem:[%s43 + $0x8] sm:$0xf]
        %v2728 = vld [vmem:[%s43 + $0xc] sm:$0xf]
        %v2729 = vld [vmem:[%s43 + $0x10] sm:$0xf]
        %v2730 = vld [vmem:[%s43 + $0x14] sm:$0xf]
        %v2731 = vld [vmem:[%s43 + $0x18] sm:$0xf]
        %v2732 = vld [vmem:[%s43 + $0x1c] sm:$0xf]
        %v2733 = vld [vmem:[%s45] sm:$0x1]
        %v2735 = vlaneseq
        %v2736 = vshrl.u32 %v2735, 7
        %v2737 = vsub.s32 0, %v2736
        %v2738 = vrot.slane %v2733, %v2737
        %v2748 = vunpack.c.l.b16 %v2725
        %v2749 = vunpack.c.l.b16 %v2726
        %v2750 = vunpack.c.l.b16 %v2727
        %v2751 = vunpack.c.l.b16 %v2728
        %v2752 = vunpack.c.l.b16 %v2729
        %v2753 = vunpack.c.l.b16 %v2730
        %v2754 = vunpack.c.l.b16 %v2731
        %v2755 = vunpack.c.l.b16 %v2732
        %v2756 = vpack.c.b16 %v2749, %v2748
        %v2757 = vpack.c.b16 %v2751, %v2750
        %v2758 = vpack.c.b16 %v2753, %v2752
        %v2759 = vpack.c.b16 %v2755, %v2754
        %vm2764 = vcmask 523264
        %v2766 = vsel %vm2764, %v2724, 0
        %2768 = vmatprep.subr.bf16.mxu0 0
        %2769 = vmatpush1.bf16.msra.mxu0 %v2756
        %2770 = vmatprep.subr.bf16.mxu0 0
        %2771 = vmatpush1.bf16.msra.mxu0 %v2757
        %2772 = vmatprep.subr.bf16.mxu0 0
        %2773 = vmatpush1.bf16.msra.mxu0 %v2758
        %2774 = vmatprep.subr.bf16.mxu0 0
        %2775 = vmatpush1.bf16.msra.mxu0 %v2759
        %2776 = vmatprep.subr.bf16.mxu0 0
        %2777 = vmatpush1.bf16.msra.mxu0 0
        %2778 = vmatprep.subr.bf16.mxu0 0
        %2779 = vmatpush1.bf16.msra.mxu0 0
        %2780 = vmatprep.subr.bf16.mxu0 0
        %2781 = vmatpush1.bf16.msra.mxu0 0
        %2782 = vmatprep.subr.bf16.mxu0 0
        %2783 = vmatpush1.bf16.msra.mxu0 0
        %2784 = vmatprep.subr.bf16.mxu0 0
        %2785 = vmatpush1.bf16.msra.mxu0 0
        %2786 = vmatprep.subr.bf16.mxu0 0
        %2787 = vmatpush1.bf16.msra.mxu0 0
        %2788 = vmatprep.subr.bf16.mxu0 0
        %2789 = vmatpush1.bf16.msra.mxu0 0
        %2790 = vmatprep.subr.bf16.mxu0 0
        %2791 = vmatpush1.bf16.msra.mxu0 0
        %2792 = vmatprep.subr.bf16.mxu0 0
        %2793 = vmatpush1.bf16.msra.mxu0 0
        %2794 = vmatprep.subr.bf16.mxu0 0
        %2795 = vmatpush1.bf16.msra.mxu0 0
        %2796 = vmatprep.subr.bf16.mxu0 0
        %2797 = vmatpush1.bf16.msra.mxu0 0
        %2798 = vmatprep.subr.bf16.mxu0 0
        %2799 = vmatpush1.bf16.msra.mxu0 0
        %2800 = vmatprep.mubr.bf16.mxu0 0
        %2801 = vmatmul.mubr.bf16.gmra.mrb[0].mxu0 %v2766
        %v2802 = vpop.f32.mrb[0].mxu0
        %v2803 = vadd.f32 %v2738, %v2802
        %v2804 = vpop.f32.mrb[0].mxu0
        %v2805 = vpop.f32.mrb[0].mxu0
        %v2806 = vpop.f32.mrb[0].mxu0
        %2807 = vdwg.mxu0
        %v2808 = vadd.f32 %v2655, %v2803
        %v2809 = vld [vmem:[%s55] sm:$0x1]
        %v2810 = vld [vmem:[%s57] sm:$0x1]
        %v2811 = vsel %vm1164, %v2808, 0.0
        %2812 = vadd.xlane.f32.xlu0 %v2811
        %v2813 = vpop.xlane.xlu0 %2812
        %v2814 = vmul.f32 %v2813, %v1877
        %v2815 = vsub.f32 %v2808, %v2814
        %v2816 = vmul.f32 %v2815, %v2815
        %v2817 = vsel %vm1164, %v2816, 0.0
        %2818 = vadd.xlane.f32.xlu0 %v2817
        %v2819 = vpop.xlane.xlu0 %2818
        %v2820 = vmul.f32 %v2819, %v1877
        %v2821 = vadd.f32 %v2820, 1e-05
        %v2822 = vrsqrt.pop %v2821
        %v2823 = vmul.f32 %v2815, %v2822
        %v2825 = vlaneseq
        %v2826 = vshrl.u32 %v2825, 7
        %v2827 = vsub.s32 0, %v2826
        %v2828 = vrot.slane %v2809, %v2827
        %v2830 = vmul.f32 %v2823, %v2828
        %v2832 = vlaneseq
        %v2833 = vshrl.u32 %v2832, 7
        %v2834 = vsub.s32 0, %v2833
        %v2835 = vrot.slane %v2810, %v2834
        %v2837 = vadd.f32 %v2830, %v2835
        %2838 = vst.msk [vmem:[%s1136] sm:$0xff] %vm1164, %v2837
        %s2839 = sand.u32 %s732, 1
        %s2840 = scalar_lea.sflag [#allocation5], %s2839
        %s2841 = sand.u32 %s732, 1
        %s2842 = smul.addr %s2841, 8
        %s2843 = scalar_lea.vmem [#allocation24], %s2842
        // Predicated region
        $region189: #{tpu_custom_call.1} parent=135 // pred_check
          %p2844 = pneg %p742
        $region190: #{tpu_custom_call.1} parent=135 // pred_check_branch
          %2846 = sbr.rel (%p2844) target = $region192
        $region191: #{tpu_custom_call.1} parent=135 // pred_region
          %s2848 = ssub.s32 128, 128
          %2849 = vsyncadd %s2840, %s2848
          %s2850 = sadd.s32 %s89, %s88
          %s2851 = smul.addr %s2850, 128
          %s2852 = scalar_lea.hbm %s59, %s2851
          %s2854 = sshll.u32 %s2843, 4
          %s2855 = int_to_ptr.vmem [resolvable:$true] %s2854
          %2857 = dma.vmem_to_hbm [thread:$0]  %s2855, 128, %s2852, %s2840
        $region192: #{tpu_custom_call.1} parent=135 // pred_fallthru
          _
      $region136: #{tpu_custom_call.1} parent=5 // pred_fallthru
        _
      %p2858 = scmp.le.s32.totalorder 2, %s79
      // Predicated region
      $region193: #{tpu_custom_call.1} parent=5 // pred_check
        %p2859 = pneg %p2858
      $region194: #{tpu_custom_call.1} parent=5 // pred_check_branch
        %2861 = sbr.rel (%p2859) target = $region196
      $region195: #{tpu_custom_call.1} parent=5 // pred_region
        %s2862 = ssub.s32 %s79, 2
        // Predicated region
        $region197: #{tpu_custom_call.1} parent=195 // pred_check
          %p2863 = pneg %p748
        $region198: #{tpu_custom_call.1} parent=195 // pred_check_branch
          %2865 = sbr.rel (%p2863) target = $region200
        $region199: #{tpu_custom_call.1} parent=195 // pred_region
          %s2866 = sand.u32 %s733, 1
          %s2867 = scalar_lea.sflag [#allocation5], %s2866
          %s2868 = sand.u32 %s733, 1
          %s2869 = smul.addr %s2868, 8
          %s2870 = scalar_lea.vmem [#allocation24], %s2869
          %2871 = dma.done %s2867, 128
        $region200: #{tpu_custom_call.1} parent=195 // pred_fallthru
          _
      $region196: #{tpu_custom_call.1} parent=5 // pred_fallthru
        _
    $region6: #{tpu_custom_call.1} parent=1 // loop_footer
      %s83 = sadd.s32 1, %s79
    $region7: #{tpu_custom_call.1} parent=1 // loop_footer_branch
      %78 = sbr.rel target = $region3
    $region8: #{tpu_custom_call.1} parent=1 // loop_exit
      _
    %2872 = vsyncpa [#allocation4], 1
    %s2873 = scalar_lea.sflag [#allocation4], 1
    %2874 = vsyncpa %s2873, 1
    %2875 = vsyncpa [#allocation7], 1
    %s2876 = scalar_lea.sflag [#allocation7], 1
    %2877 = vsyncpa %s2876, 1
    %2878 = vsyncpa [#allocation10], 1
    %2879 = vsyncpa [#allocation13], 1
    %2880 = vsyncpa [#allocation16], 1
    %2881 = vsyncpa [#allocation19], 1
    %2882 = vsyncpa [#allocation22], 1
    %2883 = vsyncpa [#allocation5], 1
    %s2884 = scalar_lea.sflag [#allocation5], 1
    %2885 = vsyncpa %s2884, 1

</llo_original>
